<compile_context>
chip_gen: v7x
topology: tpu7x:2x2x1
jax: 0.10.0
libtpu: 0.0.40
codegen_flags: <defaults>
</compile_context>

<pallas_src>
from functools import partial

import numpy as np
import jax
import jax.numpy as jnp
from jax import lax
from jax.experimental import pallas as pl
from jax.experimental.pallas import tpu as pltpu

_EPS = 1e-5


# ----------------------------------------------------------------------------
# In-kernel helpers (straight-line code: matmuls + elementwise + iota only)
# ----------------------------------------------------------------------------
def _shift_mats(R, H):
    """(R, R) row-shift selection matrices with per-image H-boundary zeroing.

    sd: row i <- row i-1 (zero at h == 0);  su: row i <- row i+1 (zero at h == H-1).
    Rows are flat (n, h) with stride H, so the masks implement the conv's
    padding=1 zero rows in H with no padded scratch and no masked slices.
    """
    ri = lax.broadcasted_iota(jnp.int32, (R, R), 0)
    ci = lax.broadcasted_iota(jnp.int32, (R, R), 1)
    sd = ((ci == ri - 1) & (ri % H != 0)).astype(jnp.float32)
    su = ((ci == ri + 1) & (ri % H != H - 1)).astype(jnp.float32)
    return sd, su


def _chan_proj(W, C):
    """(W*C, W*C) projector: each output lane gets the sum over the W lane-groups
    of its channel (used to fold / broadcast per-channel BN statistics)."""
    M = W * C
    ri = lax.broadcasted_iota(jnp.int32, (M, M), 0)
    ci = lax.broadcasted_iota(jnp.int32, (M, M), 1)
    return ((ri % C) == (ci % C)).astype(jnp.float32)


def _conv_bn_relu(x, b_ref, aux_ref, sd, su, proj, inv_count, eps):
    """3x3 conv (padding=1) + training-mode BatchNorm + ReLU for the whole batch.

    x:       (N*H, W*Cin) f32 slab, lane order w*Cin + ci.
    b_ref:   (3, W*Cin, W*Cout) bf16 banded weights (one band per kh tap; the
             band encodes kw taps, the Cin contraction and the W zero padding).
    aux_ref: (3, W*Cout) f32 rows = [bias, gamma, beta], pre-tiled over W lanes.
    """
    f32 = jnp.float32
    xu = jnp.dot(sd, x, preferred_element_type=f32).astype(jnp.bfloat16)   # row h-1
    xc = x.astype(jnp.bfloat16)                                            # row h
    xd = jnp.dot(su, x, preferred_element_type=f32).astype(jnp.bfloat16)   # row h+1
    pre = (jnp.dot(xu, b_ref[0], preferred_element_type=f32)
           + jnp.dot(xc, b_ref[1], preferred_element_type=f32)
           + jnp.dot(xd, b_ref[2], preferred_element_type=f32)
           + aux_ref[0:1, :])
    # Two-pass BatchNorm (mean, then centered variance) over (N, H, W), biased.
    mean = jnp.dot(jnp.sum(pre, axis=0, keepdims=True), proj,
                   preferred_element_type=f32) * inv_count
    cent = pre - mean
    var = jnp.dot(jnp.sum(cent * cent, axis=0, keepdims=True), proj,
                  preferred_element_type=f32) * inv_count
    scale = aux_ref[1:2, :] * lax.rsqrt(var + eps)
    return jnp.maximum(cent * scale + aux_ref[2:3, :], 0.0)


def _encoder_block(x, c1b, c1a, c2b, c2a, *, N, H, W, C, eps):
    """(conv3x3+BN+ReLU) x2 + MaxPool2d(2,2).  (N*H, W*Cin) -> (N*H/2, (W/2)*C)."""
    R = N * H
    sd, su = _shift_mats(R, H)
    proj = _chan_proj(W, C)
    inv = 1.0 / float(N * H * W)
    z = _conv_bn_relu(x, c1b, c1a, sd, su, proj, inv, eps)
    z = _conv_bn_relu(z, c2b, c2a, sd, su, proj, inv, eps)
    # H-pool: max(row, row+1) (su already masks the last row of each image, which
    # is never an even row since H is even), then keep even rows via selection.
    m = jnp.maximum(z, jnp.dot(su, z, preferred_element_type=jnp.float32))
    Rh = R // 2
    ri = lax.broadcasted_iota(jnp.int32, (Rh, R), 0)
    ci = lax.broadcasted_iota(jnp.int32, (Rh, R), 1)
    rsel = (ci == 2 * ri).astype(jnp.float32)
    hp = jnp.dot(rsel, m, preferred_element_type=jnp.float32)          # (R/2, W*C)
    # W-pool: even / odd lane-group selection matmuls, then VPU max.
    Mo = (W // 2) * C
    li = lax.broadcasted_iota(jnp.int32, (W * C, Mo), 0)
    lo = lax.broadcasted_iota(jnp.int32, (W * C, Mo), 1)
    base = 2 * lo - (lo % C)                                            # lane of (2*w2, c)
    sel0 = (li == base).astype(jnp.float32)
    sel1 = (li == base + C).astype(jnp.float32)
    return jnp.maximum(jnp.dot(hp, sel0, preferred_element_type=jnp.float32),
                       jnp.dot(hp, sel1, preferred_element_type=jnp.float32))


def _decoder_block(x, c1b, c1a, c2b, c2a, dcb, dca, *, N, H, W, C, eps):
    """(conv3x3+BN+ReLU) x2 + ConvTranspose2d(k=2, s=2).
    (N*H, W*Cin) -> (N*2H, 2W*Cd), rows already in flat NHWC order."""
    R = N * H
    sd, su = _shift_mats(R, H)
    proj = _chan_proj(W, C)
    inv = 1.0 / float(N * H * W)
    z = _conv_bn_relu(x, c1b, c1a, sd, su, proj, inv, eps)
    z = _conv_bn_relu(z, c2b, c2a, sd, su, proj, inv, eps)
    zb = z.astype(jnp.bfloat16)
    bias = dca[0:1, :]
    y0 = jnp.dot(zb, dcb[0], preferred_element_type=jnp.float32) + bias  # out rows 2h
    y1 = jnp.dot(zb, dcb[1], preferred_element_type=jnp.float32) + bias  # out rows 2h+1
    # Exact row interleave (out[2r] = y0[r], out[2r+1] = y1[r]) as two 0/1 matmuls.
    ri = lax.broadcasted_iota(jnp.int32, (2 * R, R), 0)
    ci = lax.broadcasted_iota(jnp.int32, (2 * R, R), 1)
    il0 = (ri == 2 * ci).astype(jnp.float32)
    il1 = (ri == 2 * ci + 1).astype(jnp.float32)
    return (jnp.dot(il0, y0, preferred_element_type=jnp.float32)
            + jnp.dot(il1, y1, preferred_element_type=jnp.float32))


# ----------------------------------------------------------------------------
# The single fused kernel for the whole module
# ----------------------------------------------------------------------------
def _semantic_kernel(*refs, N, H, W, d, eps):
    (x_ref,
     e1c1B, e1c1A, e1c2B, e1c2A,
     e2c1B, e2c1A, e2c2B, e2c2A,
     d2c1B, d2c1A, d2c2B, d2c2A, d2dB, d2dA,
     d1c1B, d1c1A, d1c2B, d1c2A, d1dB, d1dA,
     enc2_ref, dec1_ref) = refs

    x = x_ref[...]
    enc1 = _encoder_block(x, e1c1B, e1c1A, e1c2B, e1c2A,
                          N=N, H=H, W=W, C=2 * d, eps=eps)
    enc2 = _encoder_block(enc1, e2c1B, e2c1A, e2c2B, e2c2A,
                          N=N, H=H // 2, W=W // 2, C=4 * d, eps=eps)
    enc2_ref[...] = enc2
    dec2 = _decoder_block(enc2, d2c1B, d2c1A, d2c2B, d2c2A, d2dB, d2dA,
                          N=N, H=H // 4, W=W // 4, C=2 * d, eps=eps)
    # F.upsample(dec2, enc1.size()[2:], 'bilinear') is the identity here: dec2
    # already has enc1's spatial size (H/2, W/2) because H % 4 == W % 4 == 0.
    dec1 = _decoder_block(dec2, d1c1B, d1c1A, d1c2B, d1c2A, d1dB, d1dA,
                          N=N, H=H // 2, W=W // 2, C=d, eps=eps)
    dec1_ref[...] = dec1


# ----------------------------------------------------------------------------
# Host wrapper
# ----------------------------------------------------------------------------
_LAYER_ORDER = (("enc1", "c1"), ("enc1", "c2"),
                ("enc2", "c1"), ("enc2", "c2"),
                ("dec2", "c1"), ("dec2", "c2"), ("dec2", "dc"),
                ("dec1", "c1"), ("dec1", "c2"), ("dec1", "dc"))


def semantic_module_forward(x_nchw, params):
    N, C, H, W = x_nchw.shape
    d = C
    assert H % 4 == 0 and W % 4 == 0, "semanticModule requires H, W divisible by 4"
    # NCHW -> lane-dense flat layout: rows = N*H, lanes = W*C (channel minor).
    x = jnp.transpose(x_nchw, (0, 2, 3, 1)).reshape(N * H, W * C).astype(jnp.float32)

    flat = [x]
    for blk, lyr in _LAYER_ORDER:
        flat += [params[blk][lyr]["B"], params[blk][lyr]["aux"]]

    kern = partial(_semantic_kernel, N=N, H=H, W=W, d=d, eps=_EPS)
    vmem = pl.BlockSpec(memory_space=pltpu.MemorySpace.VMEM)
    enc2_slab, dec1_slab = pl.pallas_call(
        kern,
        out_shape=(
            jax.ShapeDtypeStruct((N * (H // 4), (W // 4) * 4 * d), jnp.float32),
            jax.ShapeDtypeStruct((N * H, W * d), jnp.float32),
        ),
        in_specs=[vmem] * len(flat),
        out_specs=(vmem, vmem),
    )(*flat)

    # Host glue: free reshapes + small transposes back to the PyTorch NCHW views.
    H4, W4 = H // 4, W // 4
    enc2_nchw = jnp.transpose(enc2_slab.reshape(N, H4, W4, 4 * d), (0, 3, 1, 2))
    dec1_nchw = jnp.transpose(dec1_slab.reshape(N, H, W, d), (0, 3, 1, 2))
    return enc2_nchw.reshape(-1), dec1_nchw


# ----------------------------------------------------------------------------
# Parameter construction: PyTorch-layout weights repacked (host side, once)
# into banded / lane-tiled form consumed by the kernel.
# ----------------------------------------------------------------------------
def _banded_conv(wt, b, Wsp):
    """wt: (Cout, Cin, 3, 3), b: (Cout,) -> B (3, Wsp*Cin, Wsp*Cout), aux (3, Wsp*Cout)."""
    cout, cin = wt.shape[0], wt.shape[1]
    B = np.zeros((3, Wsp * cin, Wsp * cout), np.float32)
    for kh in range(3):
        for kw in range(3):
            blk = wt[:, :, kh, kw].T                                  # (Cin, Cout)
            for wo in range(Wsp):
                wi = wo + kw - 1
                if 0 <= wi < Wsp:
                    B[kh, wi * cin:(wi + 1) * cin, wo * cout:(wo + 1) * cout] = blk
    aux = np.stack([np.tile(b, Wsp),
                    np.tile(np.ones((cout,), np.float32), Wsp),
                    np.tile(np.zeros((cout,), np.float32), Wsp)])
    return {"B": jnp.asarray(B, jnp.bfloat16), "aux": jnp.asarray(aux, jnp.float32)}


def _banded_deconv(wt, b, Wsp):
    """wt: (Cin, Cout, 2, 2), b: (Cout,) -> B (2, Wsp*Cin, 2*Wsp*Cout), aux (1, 2*Wsp*Cout)."""
    cin, cout = wt.shape[0], wt.shape[1]
    B = np.zeros((2, Wsp * cin, 2 * Wsp * cout), np.float32)
    for dh in range(2):
        for dw in range(2):
            blk = wt[:, :, dh, dw]                                    # (Cin, Cout)
            for w in range(Wsp):
                B[dh, w * cin:(w + 1) * cin,
                  (2 * w + dw) * cout:(2 * w + dw + 1) * cout] = blk
    aux = np.tile(b, 2 * Wsp).reshape(1, 2 * Wsp * cout)
    return {"B": jnp.asarray(B, jnp.bfloat16), "aux": jnp.asarray(aux, jnp.float32)}


def make_params(key, in_dim, W):
    d = in_dim

    def conv(k, cin, cout, wsp):
        k1, k2 = jax.random.split(k)
        wt = np.asarray(jax.random.normal(k1, (cout, cin, 3, 3), jnp.float32)) * (cin * 9) ** -0.5
        b = np.asarray(jax.random.normal(k2, (cout,), jnp.float32)) * 0.01
        return _banded_conv(wt, b, wsp)

    def deconv(k, cin, cout, wsp):
        k1, k2 = jax.random.split(k)
        wt = np.asarray(jax.random.normal(k1, (cin, cout, 2, 2), jnp.float32)) * (cin * 4) ** -0.5
        b = np.asarray(jax.random.normal(k2, (cout,), jnp.float32)) * 0.01
        return _banded_deconv(wt, b, wsp)

    ks = jax.random.split(key, 10)
    return {
        "enc1": {"c1": conv(ks[0], d, 2 * d, W), "c2": conv(ks[1], 2 * d, 2 * d, W)},
        "enc2": {"c1": conv(ks[2], 2 * d, 4 * d, W // 2), "c2": conv(ks[3], 4 * d, 4 * d, W // 2)},
        "dec2": {"c1": conv(ks[4], 4 * d, 2 * d, W // 4), "c2": conv(ks[5], 2 * d, 2 * d, W // 4),
                 "dc": deconv(ks[6], 2 * d, 2 * d, W // 4)},
        "dec1": {"c1": conv(ks[7], 2 * d, d, W // 2), "c2": conv(ks[8], d, d, W // 2),
                 "dc": deconv(ks[9], d, d, W // 2)},
    }


if __name__ == "__main__":
    key = jax.random.PRNGKey(0)
    kx, kp = jax.random.split(key)
    N, d, H, W = 2, 4, 16, 16                     # in_dim = 4
    x = jax.random.normal(kx, (N, d, H, W), jnp.float32)
    params = make_params(kp, d, W)

    fwd = jax.jit(semantic_module_forward)
    enc2_flat, dec1 = fwd(x, params)
    jax.block_until_ready((enc2_flat, dec1))

    assert enc2_flat.shape == (N * 4 * d * (H // 4) * (W // 4),)
    assert dec1.shape == (N, d, H, W)
    assert bool(jnp.all(jnp.isfinite(enc2_flat))) and bool(jnp.all(jnp.isfinite(dec1)))
    print("KERNEL_OK")
</pallas_src>

<mosaic_0001>
module attributes {stable_mosaic.version = 11 : i64} {
  func.func @_semantic_kernel(%arg0: memref<32x64xf32, #tpu.memory_space<vmem>>, %arg1: memref<3x64x128xbf16, #tpu.memory_space<vmem>>, %arg2: memref<3x128xf32, #tpu.memory_space<vmem>>, %arg3: memref<3x128x128xbf16, #tpu.memory_space<vmem>>, %arg4: memref<3x128xf32, #tpu.memory_space<vmem>>, %arg5: memref<3x64x128xbf16, #tpu.memory_space<vmem>>, %arg6: memref<3x128xf32, #tpu.memory_space<vmem>>, %arg7: memref<3x128x128xbf16, #tpu.memory_space<vmem>>, %arg8: memref<3x128xf32, #tpu.memory_space<vmem>>, %arg9: memref<3x64x32xbf16, #tpu.memory_space<vmem>>, %arg10: memref<3x32xf32, #tpu.memory_space<vmem>>, %arg11: memref<3x32x32xbf16, #tpu.memory_space<vmem>>, %arg12: memref<3x32xf32, #tpu.memory_space<vmem>>, %arg13: memref<2x32x64xbf16, #tpu.memory_space<vmem>>, %arg14: memref<1x64xf32, #tpu.memory_space<vmem>>, %arg15: memref<3x64x32xbf16, #tpu.memory_space<vmem>>, %arg16: memref<3x32xf32, #tpu.memory_space<vmem>>, %arg17: memref<3x32x32xbf16, #tpu.memory_space<vmem>>, %arg18: memref<3x32xf32, #tpu.memory_space<vmem>>, %arg19: memref<2x32x64xbf16, #tpu.memory_space<vmem>>, %arg20: memref<1x64xf32, #tpu.memory_space<vmem>>, %arg21: memref<8x64xf32, #tpu.memory_space<vmem>>, %arg22: memref<32x64xf32, #tpu.memory_space<vmem>>) attributes {dimension_semantics = [], scalar_prefetch = 0 : i64, scratch_operands = 0 : i64, tpu.core_type = #tpu.core_type<tc>} {
    %c0 = arith.constant 0 : index
    %c0_0 = arith.constant 0 : index
    %0 = vector.load %arg0[%c0, %c0_0] : memref<32x64xf32, #tpu.memory_space<vmem>>, vector<32x64xf32>
    %1 = tpu.iota {dimensions = array<i32: 0>} : vector<32x32xi32>
    %2 = tpu.iota {dimensions = array<i32: 1>} : vector<32x32xi32>
    %c1_i32 = arith.constant 1 : i32
    %3 = vector.broadcast %c1_i32 : i32 to vector<32x32xi32>
    %4 = arith.subi %1, %3 : vector<32x32xi32>
    %5 = arith.cmpi eq, %2, %4 : vector<32x32xi32>
    %c16_i32 = arith.constant 16 : i32
    %c0_i32 = arith.constant 0 : i32
    %6 = arith.cmpi eq, %c16_i32, %c0_i32 : i32
    %c1_i32_1 = arith.constant 1 : i32
    %7 = arith.select %6, %c1_i32_1, %c16_i32 : i32
    %8 = vector.broadcast %7 : i32 to vector<32x32xi32>
    %9 = arith.remsi %1, %8 : vector<32x32xi32>
    %c0_i32_2 = arith.constant 0 : i32
    %10 = vector.broadcast %c0_i32_2 : i32 to vector<32x32xi32>
    %11 = arith.cmpi ne, %9, %10 : vector<32x32xi32>
    %c0_i32_3 = arith.constant 0 : i32
    %12 = vector.broadcast %c0_i32_3 : i32 to vector<32x32xi32>
    %13 = arith.cmpi slt, %9, %12 : vector<32x32xi32>
    %c0_i32_4 = arith.constant 0 : i32
    %14 = arith.cmpi slt, %7, %c0_i32_4 : i32
    %15 = vector.broadcast %14 : i1 to vector<32x32xi1>
    %16 = vector.broadcast %15 : vector<32x32xi1> to vector<32x32xi1>
    %17 = arith.xori %13, %16 : vector<32x32xi1>
    %18 = arith.andi %17, %11 : vector<32x32xi1>
    %19 = vector.broadcast %7 : i32 to vector<32x32xi32>
    %20 = arith.addi %9, %19 : vector<32x32xi32>
    %21 = arith.select %18, %20, %9 : vector<32x32xi1>, vector<32x32xi32>
    %c0_i32_5 = arith.constant 0 : i32
    %22 = vector.broadcast %c0_i32_5 : i32 to vector<32x32xi32>
    %23 = arith.cmpi ne, %21, %22 : vector<32x32xi32>
    %24 = arith.andi %5, %23 : vector<32x32xi1>
    %25 = arith.extui %24 : vector<32x32xi1> to vector<32x32xi32>
    %26 = arith.sitofp %25 : vector<32x32xi32> to vector<32x32xf32>
    %c1_i32_6 = arith.constant 1 : i32
    %27 = vector.broadcast %c1_i32_6 : i32 to vector<32x32xi32>
    %28 = arith.addi %1, %27 : vector<32x32xi32>
    %29 = arith.cmpi eq, %2, %28 : vector<32x32xi32>
    %c16_i32_7 = arith.constant 16 : i32
    %c0_i32_8 = arith.constant 0 : i32
    %30 = arith.cmpi eq, %c16_i32_7, %c0_i32_8 : i32
    %c1_i32_9 = arith.constant 1 : i32
    %31 = arith.select %30, %c1_i32_9, %c16_i32_7 : i32
    %32 = vector.broadcast %31 : i32 to vector<32x32xi32>
    %33 = arith.remsi %1, %32 : vector<32x32xi32>
    %c0_i32_10 = arith.constant 0 : i32
    %34 = vector.broadcast %c0_i32_10 : i32 to vector<32x32xi32>
    %35 = arith.cmpi ne, %33, %34 : vector<32x32xi32>
    %c0_i32_11 = arith.constant 0 : i32
    %36 = vector.broadcast %c0_i32_11 : i32 to vector<32x32xi32>
    %37 = arith.cmpi slt, %33, %36 : vector<32x32xi32>
    %c0_i32_12 = arith.constant 0 : i32
    %38 = arith.cmpi slt, %31, %c0_i32_12 : i32
    %39 = vector.broadcast %38 : i1 to vector<32x32xi1>
    %40 = vector.broadcast %39 : vector<32x32xi1> to vector<32x32xi1>
    %41 = arith.xori %37, %40 : vector<32x32xi1>
    %42 = arith.andi %41, %35 : vector<32x32xi1>
    %43 = vector.broadcast %31 : i32 to vector<32x32xi32>
    %44 = arith.addi %33, %43 : vector<32x32xi32>
    %45 = arith.select %42, %44, %33 : vector<32x32xi1>, vector<32x32xi32>
    %c15_i32 = arith.constant 15 : i32
    %46 = vector.broadcast %c15_i32 : i32 to vector<32x32xi32>
    %47 = arith.cmpi ne, %45, %46 : vector<32x32xi32>
    %48 = arith.andi %29, %47 : vector<32x32xi1>
    %49 = arith.extui %48 : vector<32x32xi1> to vector<32x32xi32>
    %50 = arith.sitofp %49 : vector<32x32xi32> to vector<32x32xf32>
    %51 = tpu.iota {dimensions = array<i32: 0>} : vector<128x128xi32>
    %52 = tpu.iota {dimensions = array<i32: 1>} : vector<128x128xi32>
    %c8_i32 = arith.constant 8 : i32
    %c0_i32_13 = arith.constant 0 : i32
    %53 = arith.cmpi eq, %c8_i32, %c0_i32_13 : i32
    %c1_i32_14 = arith.constant 1 : i32
    %54 = arith.select %53, %c1_i32_14, %c8_i32 : i32
    %55 = vector.broadcast %54 : i32 to vector<128x128xi32>
    %56 = arith.remsi %51, %55 : vector<128x128xi32>
    %c0_i32_15 = arith.constant 0 : i32
    %57 = vector.broadcast %c0_i32_15 : i32 to vector<128x128xi32>
    %58 = arith.cmpi ne, %56, %57 : vector<128x128xi32>
    %c0_i32_16 = arith.constant 0 : i32
    %59 = vector.broadcast %c0_i32_16 : i32 to vector<128x128xi32>
    %60 = arith.cmpi slt, %56, %59 : vector<128x128xi32>
    %c0_i32_17 = arith.constant 0 : i32
    %61 = arith.cmpi slt, %54, %c0_i32_17 : i32
    %62 = vector.broadcast %61 : i1 to vector<128x128xi1>
    %63 = vector.broadcast %62 : vector<128x128xi1> to vector<128x128xi1>
    %64 = arith.xori %60, %63 : vector<128x128xi1>
    %65 = arith.andi %64, %58 : vector<128x128xi1>
    %66 = vector.broadcast %54 : i32 to vector<128x128xi32>
    %67 = arith.addi %56, %66 : vector<128x128xi32>
    %68 = arith.select %65, %67, %56 : vector<128x128xi1>, vector<128x128xi32>
    %c8_i32_18 = arith.constant 8 : i32
    %c0_i32_19 = arith.constant 0 : i32
    %69 = arith.cmpi eq, %c8_i32_18, %c0_i32_19 : i32
    %c1_i32_20 = arith.constant 1 : i32
    %70 = arith.select %69, %c1_i32_20, %c8_i32_18 : i32
    %71 = vector.broadcast %70 : i32 to vector<128x128xi32>
    %72 = arith.remsi %52, %71 : vector<128x128xi32>
    %c0_i32_21 = arith.constant 0 : i32
    %73 = vector.broadcast %c0_i32_21 : i32 to vector<128x128xi32>
    %74 = arith.cmpi ne, %72, %73 : vector<128x128xi32>
    %c0_i32_22 = arith.constant 0 : i32
    %75 = vector.broadcast %c0_i32_22 : i32 to vector<128x128xi32>
    %76 = arith.cmpi slt, %72, %75 : vector<128x128xi32>
    %c0_i32_23 = arith.constant 0 : i32
    %77 = arith.cmpi slt, %70, %c0_i32_23 : i32
    %78 = vector.broadcast %77 : i1 to vector<128x128xi1>
    %79 = vector.broadcast %78 : vector<128x128xi1> to vector<128x128xi1>
    %80 = arith.xori %76, %79 : vector<128x128xi1>
    %81 = arith.andi %80, %74 : vector<128x128xi1>
    %82 = vector.broadcast %70 : i32 to vector<128x128xi32>
    %83 = arith.addi %72, %82 : vector<128x128xi32>
    %84 = arith.select %81, %83, %72 : vector<128x128xi1>, vector<128x128xi32>
    %85 = arith.cmpi eq, %68, %84 : vector<128x128xi32>
    %86 = arith.extui %85 : vector<128x128xi1> to vector<128x128xi32>
    %87 = arith.sitofp %86 : vector<128x128xi32> to vector<128x128xf32>
    %cst = arith.constant dense<0.000000e+00> : vector<32x64xf32>
    %88 = tpu.matmul %26, %0, %cst {dimension_numbers = #tpu.dot_dimension_numbers<[1], [0], [0], [1], [0, 0, 1, 1], [], []>} : vector<32x32xf32>, vector<32x64xf32>, vector<32x64xf32> -> vector<32x64xf32>
    %89 = arith.truncf %88 : vector<32x64xf32> to vector<32x64xbf16>
    %90 = arith.truncf %0 : vector<32x64xf32> to vector<32x64xbf16>
    %cst_24 = arith.constant dense<0.000000e+00> : vector<32x64xf32>
    %91 = tpu.matmul %50, %0, %cst_24 {dimension_numbers = #tpu.dot_dimension_numbers<[1], [0], [0], [1], [0, 0, 1, 1], [], []>} : vector<32x32xf32>, vector<32x64xf32>, vector<32x64xf32> -> vector<32x64xf32>
    %92 = arith.truncf %91 : vector<32x64xf32> to vector<32x64xbf16>
    %c0_25 = arith.constant 0 : index
    %c0_26 = arith.constant 0 : index
    %c0_27 = arith.constant 0 : index
    %93 = vector.load %arg1[%c0_25, %c0_26, %c0_27] : memref<3x64x128xbf16, #tpu.memory_space<vmem>>, vector<1x64x128xbf16>
    %94 = vector.shape_cast %93 : vector<1x64x128xbf16> to vector<64x128xbf16>
    %cst_28 = arith.constant dense<0.000000e+00> : vector<32x128xf32>
    %95 = tpu.matmul %89, %94, %cst_28 {dimension_numbers = #tpu.dot_dimension_numbers<[1], [0], [0], [1], [0, 0, 1, 1], [], []>} : vector<32x64xbf16>, vector<64x128xbf16>, vector<32x128xf32> -> vector<32x128xf32>
    %c1 = arith.constant 1 : index
    %c0_29 = arith.constant 0 : index
    %c0_30 = arith.constant 0 : index
    %96 = vector.load %arg1[%c1, %c0_29, %c0_30] : memref<3x64x128xbf16, #tpu.memory_space<vmem>>, vector<1x64x128xbf16>
    %97 = vector.shape_cast %96 : vector<1x64x128xbf16> to vector<64x128xbf16>
    %cst_31 = arith.constant dense<0.000000e+00> : vector<32x128xf32>
    %98 = tpu.matmul %90, %97, %cst_31 {dimension_numbers = #tpu.dot_dimension_numbers<[1], [0], [0], [1], [0, 0, 1, 1], [], []>} : vector<32x64xbf16>, vector<64x128xbf16>, vector<32x128xf32> -> vector<32x128xf32>
    %99 = arith.addf %95, %98 : vector<32x128xf32>
    %c2 = arith.constant 2 : index
    %c0_32 = arith.constant 0 : index
    %c0_33 = arith.constant 0 : index
    %100 = vector.load %arg1[%c2, %c0_32, %c0_33] : memref<3x64x128xbf16, #tpu.memory_space<vmem>>, vector<1x64x128xbf16>
    %101 = vector.shape_cast %100 : vector<1x64x128xbf16> to vector<64x128xbf16>
    %cst_34 = arith.constant dense<0.000000e+00> : vector<32x128xf32>
    %102 = tpu.matmul %92, %101, %cst_34 {dimension_numbers = #tpu.dot_dimension_numbers<[1], [0], [0], [1], [0, 0, 1, 1], [], []>} : vector<32x64xbf16>, vector<64x128xbf16>, vector<32x128xf32> -> vector<32x128xf32>
    %103 = arith.addf %99, %102 : vector<32x128xf32>
    %c0_35 = arith.constant 0 : index
    %c0_36 = arith.constant 0 : index
    %104 = vector.load %arg2[%c0_35, %c0_36] : memref<3x128xf32, #tpu.memory_space<vmem>>, vector<1x128xf32>
    %105 = vector.broadcast %104 : vector<1x128xf32> to vector<32x128xf32>
    %106 = arith.addf %103, %105 : vector<32x128xf32>
    %cst_37 = arith.constant dense<0.000000e+00> : vector<128xf32>
    %107 = vector.multi_reduction <add>, %106, %cst_37 [0] : vector<32x128xf32> to vector<128xf32>
    %108 = vector.shape_cast %107 : vector<128xf32> to vector<1x128xf32>
    %cst_38 = arith.constant dense<0.000000e+00> : vector<1x128xf32>
    %109 = tpu.matmul %108, %87, %cst_38 {dimension_numbers = #tpu.dot_dimension_numbers<[1], [0], [0], [1], [0, 0, 1, 1], [], []>} : vector<1x128xf32>, vector<128x128xf32>, vector<1x128xf32> -> vector<1x128xf32>
    %cst_39 = arith.constant 0.001953125 : f32
    %110 = vector.broadcast %cst_39 : f32 to vector<1x128xf32>
    %111 = arith.mulf %109, %110 : vector<1x128xf32>
    %112 = vector.broadcast %111 : vector<1x128xf32> to vector<32x128xf32>
    %113 = arith.subf %106, %112 : vector<32x128xf32>
    %114 = arith.mulf %113, %113 : vector<32x128xf32>
    %cst_40 = arith.constant dense<0.000000e+00> : vector<128xf32>
    %115 = vector.multi_reduction <add>, %114, %cst_40 [0] : vector<32x128xf32> to vector<128xf32>
    %116 = vector.shape_cast %115 : vector<128xf32> to vector<1x128xf32>
    %cst_41 = arith.constant dense<0.000000e+00> : vector<1x128xf32>
    %117 = tpu.matmul %116, %87, %cst_41 {dimension_numbers = #tpu.dot_dimension_numbers<[1], [0], [0], [1], [0, 0, 1, 1], [], []>} : vector<1x128xf32>, vector<128x128xf32>, vector<1x128xf32> -> vector<1x128xf32>
    %cst_42 = arith.constant 0.001953125 : f32
    %118 = vector.broadcast %cst_42 : f32 to vector<1x128xf32>
    %119 = arith.mulf %117, %118 : vector<1x128xf32>
    %c1_43 = arith.constant 1 : index
    %c0_44 = arith.constant 0 : index
    %120 = vector.load %arg2[%c1_43, %c0_44] : memref<3x128xf32, #tpu.memory_space<vmem>>, vector<1x128xf32>
    %cst_45 = arith.constant 9.99999974E-6 : f32
    %121 = vector.broadcast %cst_45 : f32 to vector<1x128xf32>
    %122 = arith.addf %119, %121 : vector<1x128xf32>
    %123 = math.rsqrt %122 : vector<1x128xf32>
    %124 = arith.mulf %120, %123 : vector<1x128xf32>
    %125 = vector.broadcast %124 : vector<1x128xf32> to vector<32x128xf32>
    %126 = arith.mulf %113, %125 : vector<32x128xf32>
    %c2_46 = arith.constant 2 : index
    %c0_47 = arith.constant 0 : index
    %127 = vector.load %arg2[%c2_46, %c0_47] : memref<3x128xf32, #tpu.memory_space<vmem>>, vector<1x128xf32>
    %128 = vector.broadcast %127 : vector<1x128xf32> to vector<32x128xf32>
    %129 = arith.addf %126, %128 : vector<32x128xf32>
    %cst_48 = arith.constant 0.000000e+00 : f32
    %130 = vector.broadcast %cst_48 : f32 to vector<32x128xf32>
    %131 = arith.maximumf %129, %130 : vector<32x128xf32>
    %cst_49 = arith.constant dense<0.000000e+00> : vector<32x128xf32>
    %132 = tpu.matmul %26, %131, %cst_49 {dimension_numbers = #tpu.dot_dimension_numbers<[1], [0], [0], [1], [0, 0, 1, 1], [], []>} : vector<32x32xf32>, vector<32x128xf32>, vector<32x128xf32> -> vector<32x128xf32>
    %133 = arith.truncf %132 : vector<32x128xf32> to vector<32x128xbf16>
    %134 = arith.truncf %131 : vector<32x128xf32> to vector<32x128xbf16>
    %cst_50 = arith.constant dense<0.000000e+00> : vector<32x128xf32>
    %135 = tpu.matmul %50, %131, %cst_50 {dimension_numbers = #tpu.dot_dimension_numbers<[1], [0], [0], [1], [0, 0, 1, 1], [], []>} : vector<32x32xf32>, vector<32x128xf32>, vector<32x128xf32> -> vector<32x128xf32>
    %136 = arith.truncf %135 : vector<32x128xf32> to vector<32x128xbf16>
    %c0_51 = arith.constant 0 : index
    %c0_52 = arith.constant 0 : index
    %c0_53 = arith.constant 0 : index
    %137 = vector.load %arg3[%c0_51, %c0_52, %c0_53] : memref<3x128x128xbf16, #tpu.memory_space<vmem>>, vector<1x128x128xbf16>
    %138 = vector.shape_cast %137 : vector<1x128x128xbf16> to vector<128x128xbf16>
    %cst_54 = arith.constant dense<0.000000e+00> : vector<32x128xf32>
    %139 = tpu.matmul %133, %138, %cst_54 {dimension_numbers = #tpu.dot_dimension_numbers<[1], [0], [0], [1], [0, 0, 1, 1], [], []>} : vector<32x128xbf16>, vector<128x128xbf16>, vector<32x128xf32> -> vector<32x128xf32>
    %c1_55 = arith.constant 1 : index
    %c0_56 = arith.constant 0 : index
    %c0_57 = arith.constant 0 : index
    %140 = vector.load %arg3[%c1_55, %c0_56, %c0_57] : memref<3x128x128xbf16, #tpu.memory_space<vmem>>, vector<1x128x128xbf16>
    %141 = vector.shape_cast %140 : vector<1x128x128xbf16> to vector<128x128xbf16>
    %cst_58 = arith.constant dense<0.000000e+00> : vector<32x128xf32>
    %142 = tpu.matmul %134, %141, %cst_58 {dimension_numbers = #tpu.dot_dimension_numbers<[1], [0], [0], [1], [0, 0, 1, 1], [], []>} : vector<32x128xbf16>, vector<128x128xbf16>, vector<32x128xf32> -> vector<32x128xf32>
    %143 = arith.addf %139, %142 : vector<32x128xf32>
    %c2_59 = arith.constant 2 : index
    %c0_60 = arith.constant 0 : index
    %c0_61 = arith.constant 0 : index
    %144 = vector.load %arg3[%c2_59, %c0_60, %c0_61] : memref<3x128x128xbf16, #tpu.memory_space<vmem>>, vector<1x128x128xbf16>
    %145 = vector.shape_cast %144 : vector<1x128x128xbf16> to vector<128x128xbf16>
    %cst_62 = arith.constant dense<0.000000e+00> : vector<32x128xf32>
    %146 = tpu.matmul %136, %145, %cst_62 {dimension_numbers = #tpu.dot_dimension_numbers<[1], [0], [0], [1], [0, 0, 1, 1], [], []>} : vector<32x128xbf16>, vector<128x128xbf16>, vector<32x128xf32> -> vector<32x128xf32>
    %147 = arith.addf %143, %146 : vector<32x128xf32>
    %c0_63 = arith.constant 0 : index
    %c0_64 = arith.constant 0 : index
    %148 = vector.load %arg4[%c0_63, %c0_64] : memref<3x128xf32, #tpu.memory_space<vmem>>, vector<1x128xf32>
    %149 = vector.broadcast %148 : vector<1x128xf32> to vector<32x128xf32>
    %150 = arith.addf %147, %149 : vector<32x128xf32>
    %cst_65 = arith.constant dense<0.000000e+00> : vector<128xf32>
    %151 = vector.multi_reduction <add>, %150, %cst_65 [0] : vector<32x128xf32> to vector<128xf32>
    %152 = vector.shape_cast %151 : vector<128xf32> to vector<1x128xf32>
    %cst_66 = arith.constant dense<0.000000e+00> : vector<1x128xf32>
    %153 = tpu.matmul %152, %87, %cst_66 {dimension_numbers = #tpu.dot_dimension_numbers<[1], [0], [0], [1], [0, 0, 1, 1], [], []>} : vector<1x128xf32>, vector<128x128xf32>, vector<1x128xf32> -> vector<1x128xf32>
    %cst_67 = arith.constant 0.001953125 : f32
    %154 = vector.broadcast %cst_67 : f32 to vector<1x128xf32>
    %155 = arith.mulf %153, %154 : vector<1x128xf32>
    %156 = vector.broadcast %155 : vector<1x128xf32> to vector<32x128xf32>
    %157 = arith.subf %150, %156 : vector<32x128xf32>
    %158 = arith.mulf %157, %157 : vector<32x128xf32>
    %cst_68 = arith.constant dense<0.000000e+00> : vector<128xf32>
    %159 = vector.multi_reduction <add>, %158, %cst_68 [0] : vector<32x128xf32> to vector<128xf32>
    %160 = vector.shape_cast %159 : vector<128xf32> to vector<1x128xf32>
    %cst_69 = arith.constant dense<0.000000e+00> : vector<1x128xf32>
    %161 = tpu.matmul %160, %87, %cst_69 {dimension_numbers = #tpu.dot_dimension_numbers<[1], [0], [0], [1], [0, 0, 1, 1], [], []>} : vector<1x128xf32>, vector<128x128xf32>, vector<1x128xf32> -> vector<1x128xf32>
    %cst_70 = arith.constant 0.001953125 : f32
    %162 = vector.broadcast %cst_70 : f32 to vector<1x128xf32>
    %163 = arith.mulf %161, %162 : vector<1x128xf32>
    %c1_71 = arith.constant 1 : index
    %c0_72 = arith.constant 0 : index
    %164 = vector.load %arg4[%c1_71, %c0_72] : memref<3x128xf32, #tpu.memory_space<vmem>>, vector<1x128xf32>
    %cst_73 = arith.constant 9.99999974E-6 : f32
    %165 = vector.broadcast %cst_73 : f32 to vector<1x128xf32>
    %166 = arith.addf %163, %165 : vector<1x128xf32>
    %167 = math.rsqrt %166 : vector<1x128xf32>
    %168 = arith.mulf %164, %167 : vector<1x128xf32>
    %169 = vector.broadcast %168 : vector<1x128xf32> to vector<32x128xf32>
    %170 = arith.mulf %157, %169 : vector<32x128xf32>
    %c2_74 = arith.constant 2 : index
    %c0_75 = arith.constant 0 : index
    %171 = vector.load %arg4[%c2_74, %c0_75] : memref<3x128xf32, #tpu.memory_space<vmem>>, vector<1x128xf32>
    %172 = vector.broadcast %171 : vector<1x128xf32> to vector<32x128xf32>
    %173 = arith.addf %170, %172 : vector<32x128xf32>
    %cst_76 = arith.constant 0.000000e+00 : f32
    %174 = vector.broadcast %cst_76 : f32 to vector<32x128xf32>
    %175 = arith.maximumf %173, %174 : vector<32x128xf32>
    %cst_77 = arith.constant dense<0.000000e+00> : vector<32x128xf32>
    %176 = tpu.matmul %50, %175, %cst_77 {dimension_numbers = #tpu.dot_dimension_numbers<[1], [0], [0], [1], [0, 0, 1, 1], [], []>} : vector<32x32xf32>, vector<32x128xf32>, vector<32x128xf32> -> vector<32x128xf32>
    %177 = arith.maximumf %175, %176 : vector<32x128xf32>
    %178 = tpu.iota {dimensions = array<i32: 0>} : vector<16x32xi32>
    %179 = tpu.iota {dimensions = array<i32: 1>} : vector<16x32xi32>
    %c2_i32 = arith.constant 2 : i32
    %180 = vector.broadcast %c2_i32 : i32 to vector<16x32xi32>
    %181 = arith.muli %180, %178 : vector<16x32xi32>
    %182 = arith.cmpi eq, %179, %181 : vector<16x32xi32>
    %183 = arith.extui %182 : vector<16x32xi1> to vector<16x32xi32>
    %184 = arith.sitofp %183 : vector<16x32xi32> to vector<16x32xf32>
    %cst_78 = arith.constant dense<0.000000e+00> : vector<16x128xf32>
    %185 = tpu.matmul %184, %177, %cst_78 {dimension_numbers = #tpu.dot_dimension_numbers<[1], [0], [0], [1], [0, 0, 1, 1], [], []>} : vector<16x32xf32>, vector<32x128xf32>, vector<16x128xf32> -> vector<16x128xf32>
    %186 = tpu.iota {dimensions = array<i32: 0>} : vector<128x64xi32>
    %187 = tpu.iota {dimensions = array<i32: 1>} : vector<128x64xi32>
    %c2_i32_79 = arith.constant 2 : i32
    %188 = vector.broadcast %c2_i32_79 : i32 to vector<128x64xi32>
    %189 = arith.muli %188, %187 : vector<128x64xi32>
    %c8_i32_80 = arith.constant 8 : i32
    %c0_i32_81 = arith.constant 0 : i32
    %190 = arith.cmpi eq, %c8_i32_80, %c0_i32_81 : i32
    %c1_i32_82 = arith.constant 1 : i32
    %191 = arith.select %190, %c1_i32_82, %c8_i32_80 : i32
    %192 = vector.broadcast %191 : i32 to vector<128x64xi32>
    %193 = arith.remsi %187, %192 : vector<128x64xi32>
    %c0_i32_83 = arith.constant 0 : i32
    %194 = vector.broadcast %c0_i32_83 : i32 to vector<128x64xi32>
    %195 = arith.cmpi ne, %193, %194 : vector<128x64xi32>
    %c0_i32_84 = arith.constant 0 : i32
    %196 = vector.broadcast %c0_i32_84 : i32 to vector<128x64xi32>
    %197 = arith.cmpi slt, %193, %196 : vector<128x64xi32>
    %c0_i32_85 = arith.constant 0 : i32
    %198 = arith.cmpi slt, %191, %c0_i32_85 : i32
    %199 = vector.broadcast %198 : i1 to vector<128x64xi1>
    %200 = vector.broadcast %199 : vector<128x64xi1> to vector<128x64xi1>
    %201 = arith.xori %197, %200 : vector<128x64xi1>
    %202 = arith.andi %201, %195 : vector<128x64xi1>
    %203 = vector.broadcast %191 : i32 to vector<128x64xi32>
    %204 = arith.addi %193, %203 : vector<128x64xi32>
    %205 = arith.select %202, %204, %193 : vector<128x64xi1>, vector<128x64xi32>
    %206 = arith.subi %189, %205 : vector<128x64xi32>
    %207 = arith.cmpi eq, %186, %206 : vector<128x64xi32>
    %208 = arith.extui %207 : vector<128x64xi1> to vector<128x64xi32>
    %209 = arith.sitofp %208 : vector<128x64xi32> to vector<128x64xf32>
    %c8_i32_86 = arith.constant 8 : i32
    %210 = vector.broadcast %c8_i32_86 : i32 to vector<128x64xi32>
    %211 = arith.addi %206, %210 : vector<128x64xi32>
    %212 = arith.cmpi eq, %186, %211 : vector<128x64xi32>
    %213 = arith.extui %212 : vector<128x64xi1> to vector<128x64xi32>
    %214 = arith.sitofp %213 : vector<128x64xi32> to vector<128x64xf32>
    %cst_87 = arith.constant dense<0.000000e+00> : vector<16x64xf32>
    %215 = tpu.matmul %185, %209, %cst_87 {dimension_numbers = #tpu.dot_dimension_numbers<[1], [0], [0], [1], [0, 0, 1, 1], [], []>} : vector<16x128xf32>, vector<128x64xf32>, vector<16x64xf32> -> vector<16x64xf32>
    %cst_88 = arith.constant dense<0.000000e+00> : vector<16x64xf32>
    %216 = tpu.matmul %185, %214, %cst_88 {dimension_numbers = #tpu.dot_dimension_numbers<[1], [0], [0], [1], [0, 0, 1, 1], [], []>} : vector<16x128xf32>, vector<128x64xf32>, vector<16x64xf32> -> vector<16x64xf32>
    %217 = arith.maximumf %215, %216 : vector<16x64xf32>
    %218 = tpu.iota {dimensions = array<i32: 0>} : vector<16x16xi32>
    %219 = tpu.iota {dimensions = array<i32: 1>} : vector<16x16xi32>
    %c1_i32_89 = arith.constant 1 : i32
    %220 = vector.broadcast %c1_i32_89 : i32 to vector<16x16xi32>
    %221 = arith.subi %218, %220 : vector<16x16xi32>
    %222 = arith.cmpi eq, %219, %221 : vector<16x16xi32>
    %c8_i32_90 = arith.constant 8 : i32
    %c0_i32_91 = arith.constant 0 : i32
    %223 = arith.cmpi eq, %c8_i32_90, %c0_i32_91 : i32
    %c1_i32_92 = arith.constant 1 : i32
    %224 = arith.select %223, %c1_i32_92, %c8_i32_90 : i32
    %225 = vector.broadcast %224 : i32 to vector<16x16xi32>
    %226 = arith.remsi %218, %225 : vector<16x16xi32>
    %c0_i32_93 = arith.constant 0 : i32
    %227 = vector.broadcast %c0_i32_93 : i32 to vector<16x16xi32>
    %228 = arith.cmpi ne, %226, %227 : vector<16x16xi32>
    %c0_i32_94 = arith.constant 0 : i32
    %229 = vector.broadcast %c0_i32_94 : i32 to vector<16x16xi32>
    %230 = arith.cmpi slt, %226, %229 : vector<16x16xi32>
    %c0_i32_95 = arith.constant 0 : i32
    %231 = arith.cmpi slt, %224, %c0_i32_95 : i32
    %232 = vector.broadcast %231 : i1 to vector<16x16xi1>
    %233 = vector.broadcast %232 : vector<16x16xi1> to vector<16x16xi1>
    %234 = arith.xori %230, %233 : vector<16x16xi1>
    %235 = arith.andi %234, %228 : vector<16x16xi1>
    %236 = vector.broadcast %224 : i32 to vector<16x16xi32>
    %237 = arith.addi %226, %236 : vector<16x16xi32>
    %238 = arith.select %235, %237, %226 : vector<16x16xi1>, vector<16x16xi32>
    %c0_i32_96 = arith.constant 0 : i32
    %239 = vector.broadcast %c0_i32_96 : i32 to vector<16x16xi32>
    %240 = arith.cmpi ne, %238, %239 : vector<16x16xi32>
    %241 = arith.andi %222, %240 : vector<16x16xi1>
    %242 = arith.extui %241 : vector<16x16xi1> to vector<16x16xi32>
    %243 = arith.sitofp %242 : vector<16x16xi32> to vector<16x16xf32>
    %c1_i32_97 = arith.constant 1 : i32
    %244 = vector.broadcast %c1_i32_97 : i32 to vector<16x16xi32>
    %245 = arith.addi %218, %244 : vector<16x16xi32>
    %246 = arith.cmpi eq, %219, %245 : vector<16x16xi32>
    %c8_i32_98 = arith.constant 8 : i32
    %c0_i32_99 = arith.constant 0 : i32
    %247 = arith.cmpi eq, %c8_i32_98, %c0_i32_99 : i32
    %c1_i32_100 = arith.constant 1 : i32
    %248 = arith.select %247, %c1_i32_100, %c8_i32_98 : i32
    %249 = vector.broadcast %248 : i32 to vector<16x16xi32>
    %250 = arith.remsi %218, %249 : vector<16x16xi32>
    %c0_i32_101 = arith.constant 0 : i32
    %251 = vector.broadcast %c0_i32_101 : i32 to vector<16x16xi32>
    %252 = arith.cmpi ne, %250, %251 : vector<16x16xi32>
    %c0_i32_102 = arith.constant 0 : i32
    %253 = vector.broadcast %c0_i32_102 : i32 to vector<16x16xi32>
    %254 = arith.cmpi slt, %250, %253 : vector<16x16xi32>
    %c0_i32_103 = arith.constant 0 : i32
    %255 = arith.cmpi slt, %248, %c0_i32_103 : i32
    %256 = vector.broadcast %255 : i1 to vector<16x16xi1>
    %257 = vector.broadcast %256 : vector<16x16xi1> to vector<16x16xi1>
    %258 = arith.xori %254, %257 : vector<16x16xi1>
    %259 = arith.andi %258, %252 : vector<16x16xi1>
    %260 = vector.broadcast %248 : i32 to vector<16x16xi32>
    %261 = arith.addi %250, %260 : vector<16x16xi32>
    %262 = arith.select %259, %261, %250 : vector<16x16xi1>, vector<16x16xi32>
    %c7_i32 = arith.constant 7 : i32
    %263 = vector.broadcast %c7_i32 : i32 to vector<16x16xi32>
    %264 = arith.cmpi ne, %262, %263 : vector<16x16xi32>
    %265 = arith.andi %246, %264 : vector<16x16xi1>
    %266 = arith.extui %265 : vector<16x16xi1> to vector<16x16xi32>
    %267 = arith.sitofp %266 : vector<16x16xi32> to vector<16x16xf32>
    %268 = tpu.iota {dimensions = array<i32: 0>} : vector<128x128xi32>
    %269 = tpu.iota {dimensions = array<i32: 1>} : vector<128x128xi32>
    %c16_i32_104 = arith.constant 16 : i32
    %c0_i32_105 = arith.constant 0 : i32
    %270 = arith.cmpi eq, %c16_i32_104, %c0_i32_105 : i32
    %c1_i32_106 = arith.constant 1 : i32
    %271 = arith.select %270, %c1_i32_106, %c16_i32_104 : i32
    %272 = vector.broadcast %271 : i32 to vector<128x128xi32>
    %273 = arith.remsi %268, %272 : vector<128x128xi32>
    %c0_i32_107 = arith.constant 0 : i32
    %274 = vector.broadcast %c0_i32_107 : i32 to vector<128x128xi32>
    %275 = arith.cmpi ne, %273, %274 : vector<128x128xi32>
    %c0_i32_108 = arith.constant 0 : i32
    %276 = vector.broadcast %c0_i32_108 : i32 to vector<128x128xi32>
    %277 = arith.cmpi slt, %273, %276 : vector<128x128xi32>
    %c0_i32_109 = arith.constant 0 : i32
    %278 = arith.cmpi slt, %271, %c0_i32_109 : i32
    %279 = vector.broadcast %278 : i1 to vector<128x128xi1>
    %280 = vector.broadcast %279 : vector<128x128xi1> to vector<128x128xi1>
    %281 = arith.xori %277, %280 : vector<128x128xi1>
    %282 = arith.andi %281, %275 : vector<128x128xi1>
    %283 = vector.broadcast %271 : i32 to vector<128x128xi32>
    %284 = arith.addi %273, %283 : vector<128x128xi32>
    %285 = arith.select %282, %284, %273 : vector<128x128xi1>, vector<128x128xi32>
    %c16_i32_110 = arith.constant 16 : i32
    %c0_i32_111 = arith.constant 0 : i32
    %286 = arith.cmpi eq, %c16_i32_110, %c0_i32_111 : i32
    %c1_i32_112 = arith.constant 1 : i32
    %287 = arith.select %286, %c1_i32_112, %c16_i32_110 : i32
    %288 = vector.broadcast %287 : i32 to vector<128x128xi32>
    %289 = arith.remsi %269, %288 : vector<128x128xi32>
    %c0_i32_113 = arith.constant 0 : i32
    %290 = vector.broadcast %c0_i32_113 : i32 to vector<128x128xi32>
    %291 = arith.cmpi ne, %289, %290 : vector<128x128xi32>
    %c0_i32_114 = arith.constant 0 : i32
    %292 = vector.broadcast %c0_i32_114 : i32 to vector<128x128xi32>
    %293 = arith.cmpi slt, %289, %292 : vector<128x128xi32>
    %c0_i32_115 = arith.constant 0 : i32
    %294 = arith.cmpi slt, %287, %c0_i32_115 : i32
    %295 = vector.broadcast %294 : i1 to vector<128x128xi1>
    %296 = vector.broadcast %295 : vector<128x128xi1> to vector<128x128xi1>
    %297 = arith.xori %293, %296 : vector<128x128xi1>
    %298 = arith.andi %297, %291 : vector<128x128xi1>
    %299 = vector.broadcast %287 : i32 to vector<128x128xi32>
    %300 = arith.addi %289, %299 : vector<128x128xi32>
    %301 = arith.select %298, %300, %289 : vector<128x128xi1>, vector<128x128xi32>
    %302 = arith.cmpi eq, %285, %301 : vector<128x128xi32>
    %303 = arith.extui %302 : vector<128x128xi1> to vector<128x128xi32>
    %304 = arith.sitofp %303 : vector<128x128xi32> to vector<128x128xf32>
    %cst_116 = arith.constant dense<0.000000e+00> : vector<16x64xf32>
    %305 = tpu.matmul %243, %217, %cst_116 {dimension_numbers = #tpu.dot_dimension_numbers<[1], [0], [0], [1], [0, 0, 1, 1], [], []>} : vector<16x16xf32>, vector<16x64xf32>, vector<16x64xf32> -> vector<16x64xf32>
    %306 = arith.truncf %305 : vector<16x64xf32> to vector<16x64xbf16>
    %307 = arith.truncf %217 : vector<16x64xf32> to vector<16x64xbf16>
    %cst_117 = arith.constant dense<0.000000e+00> : vector<16x64xf32>
    %308 = tpu.matmul %267, %217, %cst_117 {dimension_numbers = #tpu.dot_dimension_numbers<[1], [0], [0], [1], [0, 0, 1, 1], [], []>} : vector<16x16xf32>, vector<16x64xf32>, vector<16x64xf32> -> vector<16x64xf32>
    %309 = arith.truncf %308 : vector<16x64xf32> to vector<16x64xbf16>
    %c0_118 = arith.constant 0 : index
    %c0_119 = arith.constant 0 : index
    %c0_120 = arith.constant 0 : index
    %310 = vector.load %arg5[%c0_118, %c0_119, %c0_120] : memref<3x64x128xbf16, #tpu.memory_space<vmem>>, vector<1x64x128xbf16>
    %311 = vector.shape_cast %310 : vector<1x64x128xbf16> to vector<64x128xbf16>
    %cst_121 = arith.constant dense<0.000000e+00> : vector<16x128xf32>
    %312 = tpu.matmul %306, %311, %cst_121 {dimension_numbers = #tpu.dot_dimension_numbers<[1], [0], [0], [1], [0, 0, 1, 1], [], []>} : vector<16x64xbf16>, vector<64x128xbf16>, vector<16x128xf32> -> vector<16x128xf32>
    %c1_122 = arith.constant 1 : index
    %c0_123 = arith.constant 0 : index
    %c0_124 = arith.constant 0 : index
    %313 = vector.load %arg5[%c1_122, %c0_123, %c0_124] : memref<3x64x128xbf16, #tpu.memory_space<vmem>>, vector<1x64x128xbf16>
    %314 = vector.shape_cast %313 : vector<1x64x128xbf16> to vector<64x128xbf16>
    %cst_125 = arith.constant dense<0.000000e+00> : vector<16x128xf32>
    %315 = tpu.matmul %307, %314, %cst_125 {dimension_numbers = #tpu.dot_dimension_numbers<[1], [0], [0], [1], [0, 0, 1, 1], [], []>} : vector<16x64xbf16>, vector<64x128xbf16>, vector<16x128xf32> -> vector<16x128xf32>
    %316 = arith.addf %312, %315 : vector<16x128xf32>
    %c2_126 = arith.constant 2 : index
    %c0_127 = arith.constant 0 : index
    %c0_128 = arith.constant 0 : index
    %317 = vector.load %arg5[%c2_126, %c0_127, %c0_128] : memref<3x64x128xbf16, #tpu.memory_space<vmem>>, vector<1x64x128xbf16>
    %318 = vector.shape_cast %317 : vector<1x64x128xbf16> to vector<64x128xbf16>
    %cst_129 = arith.constant dense<0.000000e+00> : vector<16x128xf32>
    %319 = tpu.matmul %309, %318, %cst_129 {dimension_numbers = #tpu.dot_dimension_numbers<[1], [0], [0], [1], [0, 0, 1, 1], [], []>} : vector<16x64xbf16>, vector<64x128xbf16>, vector<16x128xf32> -> vector<16x128xf32>
    %320 = arith.addf %316, %319 : vector<16x128xf32>
    %c0_130 = arith.constant 0 : index
    %c0_131 = arith.constant 0 : index
    %321 = vector.load %arg6[%c0_130, %c0_131] : memref<3x128xf32, #tpu.memory_space<vmem>>, vector<1x128xf32>
    %322 = vector.broadcast %321 : vector<1x128xf32> to vector<16x128xf32>
    %323 = arith.addf %320, %322 : vector<16x128xf32>
    %cst_132 = arith.constant dense<0.000000e+00> : vector<128xf32>
    %324 = vector.multi_reduction <add>, %323, %cst_132 [0] : vector<16x128xf32> to vector<128xf32>
    %325 = vector.shape_cast %324 : vector<128xf32> to vector<1x128xf32>
    %cst_133 = arith.constant dense<0.000000e+00> : vector<1x128xf32>
    %326 = tpu.matmul %325, %304, %cst_133 {dimension_numbers = #tpu.dot_dimension_numbers<[1], [0], [0], [1], [0, 0, 1, 1], [], []>} : vector<1x128xf32>, vector<128x128xf32>, vector<1x128xf32> -> vector<1x128xf32>
    %cst_134 = arith.constant 7.812500e-03 : f32
    %327 = vector.broadcast %cst_134 : f32 to vector<1x128xf32>
    %328 = arith.mulf %326, %327 : vector<1x128xf32>
    %329 = vector.broadcast %328 : vector<1x128xf32> to vector<16x128xf32>
    %330 = arith.subf %323, %329 : vector<16x128xf32>
    %331 = arith.mulf %330, %330 : vector<16x128xf32>
    %cst_135 = arith.constant dense<0.000000e+00> : vector<128xf32>
    %332 = vector.multi_reduction <add>, %331, %cst_135 [0] : vector<16x128xf32> to vector<128xf32>
    %333 = vector.shape_cast %332 : vector<128xf32> to vector<1x128xf32>
    %cst_136 = arith.constant dense<0.000000e+00> : vector<1x128xf32>
    %334 = tpu.matmul %333, %304, %cst_136 {dimension_numbers = #tpu.dot_dimension_numbers<[1], [0], [0], [1], [0, 0, 1, 1], [], []>} : vector<1x128xf32>, vector<128x128xf32>, vector<1x128xf32> -> vector<1x128xf32>
    %cst_137 = arith.constant 7.812500e-03 : f32
    %335 = vector.broadcast %cst_137 : f32 to vector<1x128xf32>
    %336 = arith.mulf %334, %335 : vector<1x128xf32>
    %c1_138 = arith.constant 1 : index
    %c0_139 = arith.constant 0 : index
    %337 = vector.load %arg6[%c1_138, %c0_139] : memref<3x128xf32, #tpu.memory_space<vmem>>, vector<1x128xf32>
    %cst_140 = arith.constant 9.99999974E-6 : f32
    %338 = vector.broadcast %cst_140 : f32 to vector<1x128xf32>
    %339 = arith.addf %336, %338 : vector<1x128xf32>
    %340 = math.rsqrt %339 : vector<1x128xf32>
    %341 = arith.mulf %337, %340 : vector<1x128xf32>
    %342 = vector.broadcast %341 : vector<1x128xf32> to vector<16x128xf32>
    %343 = arith.mulf %330, %342 : vector<16x128xf32>
    %c2_141 = arith.constant 2 : index
    %c0_142 = arith.constant 0 : index
    %344 = vector.load %arg6[%c2_141, %c0_142] : memref<3x128xf32, #tpu.memory_space<vmem>>, vector<1x128xf32>
    %345 = vector.broadcast %344 : vector<1x128xf32> to vector<16x128xf32>
    %346 = arith.addf %343, %345 : vector<16x128xf32>
    %cst_143 = arith.constant 0.000000e+00 : f32
    %347 = vector.broadcast %cst_143 : f32 to vector<16x128xf32>
    %348 = arith.maximumf %346, %347 : vector<16x128xf32>
    %cst_144 = arith.constant dense<0.000000e+00> : vector<16x128xf32>
    %349 = tpu.matmul %243, %348, %cst_144 {dimension_numbers = #tpu.dot_dimension_numbers<[1], [0], [0], [1], [0, 0, 1, 1], [], []>} : vector<16x16xf32>, vector<16x128xf32>, vector<16x128xf32> -> vector<16x128xf32>
    %350 = arith.truncf %349 : vector<16x128xf32> to vector<16x128xbf16>
    %351 = arith.truncf %348 : vector<16x128xf32> to vector<16x128xbf16>
    %cst_145 = arith.constant dense<0.000000e+00> : vector<16x128xf32>
    %352 = tpu.matmul %267, %348, %cst_145 {dimension_numbers = #tpu.dot_dimension_numbers<[1], [0], [0], [1], [0, 0, 1, 1], [], []>} : vector<16x16xf32>, vector<16x128xf32>, vector<16x128xf32> -> vector<16x128xf32>
    %353 = arith.truncf %352 : vector<16x128xf32> to vector<16x128xbf16>
    %c0_146 = arith.constant 0 : index
    %c0_147 = arith.constant 0 : index
    %c0_148 = arith.constant 0 : index
    %354 = vector.load %arg7[%c0_146, %c0_147, %c0_148] : memref<3x128x128xbf16, #tpu.memory_space<vmem>>, vector<1x128x128xbf16>
    %355 = vector.shape_cast %354 : vector<1x128x128xbf16> to vector<128x128xbf16>
    %cst_149 = arith.constant dense<0.000000e+00> : vector<16x128xf32>
    %356 = tpu.matmul %350, %355, %cst_149 {dimension_numbers = #tpu.dot_dimension_numbers<[1], [0], [0], [1], [0, 0, 1, 1], [], []>} : vector<16x128xbf16>, vector<128x128xbf16>, vector<16x128xf32> -> vector<16x128xf32>
    %c1_150 = arith.constant 1 : index
    %c0_151 = arith.constant 0 : index
    %c0_152 = arith.constant 0 : index
    %357 = vector.load %arg7[%c1_150, %c0_151, %c0_152] : memref<3x128x128xbf16, #tpu.memory_space<vmem>>, vector<1x128x128xbf16>
    %358 = vector.shape_cast %357 : vector<1x128x128xbf16> to vector<128x128xbf16>
    %cst_153 = arith.constant dense<0.000000e+00> : vector<16x128xf32>
    %359 = tpu.matmul %351, %358, %cst_153 {dimension_numbers = #tpu.dot_dimension_numbers<[1], [0], [0], [1], [0, 0, 1, 1], [], []>} : vector<16x128xbf16>, vector<128x128xbf16>, vector<16x128xf32> -> vector<16x128xf32>
    %360 = arith.addf %356, %359 : vector<16x128xf32>
    %c2_154 = arith.constant 2 : index
    %c0_155 = arith.constant 0 : index
    %c0_156 = arith.constant 0 : index
    %361 = vector.load %arg7[%c2_154, %c0_155, %c0_156] : memref<3x128x128xbf16, #tpu.memory_space<vmem>>, vector<1x128x128xbf16>
    %362 = vector.shape_cast %361 : vector<1x128x128xbf16> to vector<128x128xbf16>
    %cst_157 = arith.constant dense<0.000000e+00> : vector<16x128xf32>
    %363 = tpu.matmul %353, %362, %cst_157 {dimension_numbers = #tpu.dot_dimension_numbers<[1], [0], [0], [1], [0, 0, 1, 1], [], []>} : vector<16x128xbf16>, vector<128x128xbf16>, vector<16x128xf32> -> vector<16x128xf32>
    %364 = arith.addf %360, %363 : vector<16x128xf32>
    %c0_158 = arith.constant 0 : index
    %c0_159 = arith.constant 0 : index
    %365 = vector.load %arg8[%c0_158, %c0_159] : memref<3x128xf32, #tpu.memory_space<vmem>>, vector<1x128xf32>
    %366 = vector.broadcast %365 : vector<1x128xf32> to vector<16x128xf32>
    %367 = arith.addf %364, %366 : vector<16x128xf32>
    %cst_160 = arith.constant dense<0.000000e+00> : vector<128xf32>
    %368 = vector.multi_reduction <add>, %367, %cst_160 [0] : vector<16x128xf32> to vector<128xf32>
    %369 = vector.shape_cast %368 : vector<128xf32> to vector<1x128xf32>
    %cst_161 = arith.constant dense<0.000000e+00> : vector<1x128xf32>
    %370 = tpu.matmul %369, %304, %cst_161 {dimension_numbers = #tpu.dot_dimension_numbers<[1], [0], [0], [1], [0, 0, 1, 1], [], []>} : vector<1x128xf32>, vector<128x128xf32>, vector<1x128xf32> -> vector<1x128xf32>
    %cst_162 = arith.constant 7.812500e-03 : f32
    %371 = vector.broadcast %cst_162 : f32 to vector<1x128xf32>
    %372 = arith.mulf %370, %371 : vector<1x128xf32>
    %373 = vector.broadcast %372 : vector<1x128xf32> to vector<16x128xf32>
    %374 = arith.subf %367, %373 : vector<16x128xf32>
    %375 = arith.mulf %374, %374 : vector<16x128xf32>
    %cst_163 = arith.constant dense<0.000000e+00> : vector<128xf32>
    %376 = vector.multi_reduction <add>, %375, %cst_163 [0] : vector<16x128xf32> to vector<128xf32>
    %377 = vector.shape_cast %376 : vector<128xf32> to vector<1x128xf32>
    %cst_164 = arith.constant dense<0.000000e+00> : vector<1x128xf32>
    %378 = tpu.matmul %377, %304, %cst_164 {dimension_numbers = #tpu.dot_dimension_numbers<[1], [0], [0], [1], [0, 0, 1, 1], [], []>} : vector<1x128xf32>, vector<128x128xf32>, vector<1x128xf32> -> vector<1x128xf32>
    %cst_165 = arith.constant 7.812500e-03 : f32
    %379 = vector.broadcast %cst_165 : f32 to vector<1x128xf32>
    %380 = arith.mulf %378, %379 : vector<1x128xf32>
    %c1_166 = arith.constant 1 : index
    %c0_167 = arith.constant 0 : index
    %381 = vector.load %arg8[%c1_166, %c0_167] : memref<3x128xf32, #tpu.memory_space<vmem>>, vector<1x128xf32>
    %cst_168 = arith.constant 9.99999974E-6 : f32
    %382 = vector.broadcast %cst_168 : f32 to vector<1x128xf32>
    %383 = arith.addf %380, %382 : vector<1x128xf32>
    %384 = math.rsqrt %383 : vector<1x128xf32>
    %385 = arith.mulf %381, %384 : vector<1x128xf32>
    %386 = vector.broadcast %385 : vector<1x128xf32> to vector<16x128xf32>
    %387 = arith.mulf %374, %386 : vector<16x128xf32>
    %c2_169 = arith.constant 2 : index
    %c0_170 = arith.constant 0 : index
    %388 = vector.load %arg8[%c2_169, %c0_170] : memref<3x128xf32, #tpu.memory_space<vmem>>, vector<1x128xf32>
    %389 = vector.broadcast %388 : vector<1x128xf32> to vector<16x128xf32>
    %390 = arith.addf %387, %389 : vector<16x128xf32>
    %cst_171 = arith.constant 0.000000e+00 : f32
    %391 = vector.broadcast %cst_171 : f32 to vector<16x128xf32>
    %392 = arith.maximumf %390, %391 : vector<16x128xf32>
    %cst_172 = arith.constant dense<0.000000e+00> : vector<16x128xf32>
    %393 = tpu.matmul %267, %392, %cst_172 {dimension_numbers = #tpu.dot_dimension_numbers<[1], [0], [0], [1], [0, 0, 1, 1], [], []>} : vector<16x16xf32>, vector<16x128xf32>, vector<16x128xf32> -> vector<16x128xf32>
    %394 = arith.maximumf %392, %393 : vector<16x128xf32>
    %395 = tpu.iota {dimensions = array<i32: 0>} : vector<8x16xi32>
    %396 = tpu.iota {dimensions = array<i32: 1>} : vector<8x16xi32>
    %c2_i32_173 = arith.constant 2 : i32
    %397 = vector.broadcast %c2_i32_173 : i32 to vector<8x16xi32>
    %398 = arith.muli %397, %395 : vector<8x16xi32>
    %399 = arith.cmpi eq, %396, %398 : vector<8x16xi32>
    %400 = arith.extui %399 : vector<8x16xi1> to vector<8x16xi32>
    %401 = arith.sitofp %400 : vector<8x16xi32> to vector<8x16xf32>
    %cst_174 = arith.constant dense<0.000000e+00> : vector<8x128xf32>
    %402 = tpu.matmul %401, %394, %cst_174 {dimension_numbers = #tpu.dot_dimension_numbers<[1], [0], [0], [1], [0, 0, 1, 1], [], []>} : vector<8x16xf32>, vector<16x128xf32>, vector<8x128xf32> -> vector<8x128xf32>
    %403 = tpu.iota {dimensions = array<i32: 0>} : vector<128x64xi32>
    %404 = tpu.iota {dimensions = array<i32: 1>} : vector<128x64xi32>
    %c2_i32_175 = arith.constant 2 : i32
    %405 = vector.broadcast %c2_i32_175 : i32 to vector<128x64xi32>
    %406 = arith.muli %405, %404 : vector<128x64xi32>
    %c16_i32_176 = arith.constant 16 : i32
    %c0_i32_177 = arith.constant 0 : i32
    %407 = arith.cmpi eq, %c16_i32_176, %c0_i32_177 : i32
    %c1_i32_178 = arith.constant 1 : i32
    %408 = arith.select %407, %c1_i32_178, %c16_i32_176 : i32
    %409 = vector.broadcast %408 : i32 to vector<128x64xi32>
    %410 = arith.remsi %404, %409 : vector<128x64xi32>
    %c0_i32_179 = arith.constant 0 : i32
    %411 = vector.broadcast %c0_i32_179 : i32 to vector<128x64xi32>
    %412 = arith.cmpi ne, %410, %411 : vector<128x64xi32>
    %c0_i32_180 = arith.constant 0 : i32
    %413 = vector.broadcast %c0_i32_180 : i32 to vector<128x64xi32>
    %414 = arith.cmpi slt, %410, %413 : vector<128x64xi32>
    %c0_i32_181 = arith.constant 0 : i32
    %415 = arith.cmpi slt, %408, %c0_i32_181 : i32
    %416 = vector.broadcast %415 : i1 to vector<128x64xi1>
    %417 = vector.broadcast %416 : vector<128x64xi1> to vector<128x64xi1>
    %418 = arith.xori %414, %417 : vector<128x64xi1>
    %419 = arith.andi %418, %412 : vector<128x64xi1>
    %420 = vector.broadcast %408 : i32 to vector<128x64xi32>
    %421 = arith.addi %410, %420 : vector<128x64xi32>
    %422 = arith.select %419, %421, %410 : vector<128x64xi1>, vector<128x64xi32>
    %423 = arith.subi %406, %422 : vector<128x64xi32>
    %424 = arith.cmpi eq, %403, %423 : vector<128x64xi32>
    %425 = arith.extui %424 : vector<128x64xi1> to vector<128x64xi32>
    %426 = arith.sitofp %425 : vector<128x64xi32> to vector<128x64xf32>
    %c16_i32_182 = arith.constant 16 : i32
    %427 = vector.broadcast %c16_i32_182 : i32 to vector<128x64xi32>
    %428 = arith.addi %423, %427 : vector<128x64xi32>
    %429 = arith.cmpi eq, %403, %428 : vector<128x64xi32>
    %430 = arith.extui %429 : vector<128x64xi1> to vector<128x64xi32>
    %431 = arith.sitofp %430 : vector<128x64xi32> to vector<128x64xf32>
    %cst_183 = arith.constant dense<0.000000e+00> : vector<8x64xf32>
    %432 = tpu.matmul %402, %426, %cst_183 {dimension_numbers = #tpu.dot_dimension_numbers<[1], [0], [0], [1], [0, 0, 1, 1], [], []>} : vector<8x128xf32>, vector<128x64xf32>, vector<8x64xf32> -> vector<8x64xf32>
    %cst_184 = arith.constant dense<0.000000e+00> : vector<8x64xf32>
    %433 = tpu.matmul %402, %431, %cst_184 {dimension_numbers = #tpu.dot_dimension_numbers<[1], [0], [0], [1], [0, 0, 1, 1], [], []>} : vector<8x128xf32>, vector<128x64xf32>, vector<8x64xf32> -> vector<8x64xf32>
    %434 = arith.maximumf %432, %433 : vector<8x64xf32>
    %c0_185 = arith.constant 0 : index
    %c0_186 = arith.constant 0 : index
    %435 = vector.load %arg21[%c0_185, %c0_186] : memref<8x64xf32, #tpu.memory_space<vmem>>, vector<8x64xf32>
    tpu.vector_store %arg21[%c0_185, %c0_186], %434 {strides = array<i32>} : memref<8x64xf32, #tpu.memory_space<vmem>>, vector<8x64xf32>,
    %436 = tpu.iota {dimensions = array<i32: 0>} : vector<8x8xi32>
    %437 = tpu.iota {dimensions = array<i32: 1>} : vector<8x8xi32>
    %c1_i32_187 = arith.constant 1 : i32
    %438 = vector.broadcast %c1_i32_187 : i32 to vector<8x8xi32>
    %439 = arith.subi %436, %438 : vector<8x8xi32>
    %440 = arith.cmpi eq, %437, %439 : vector<8x8xi32>
    %c4_i32 = arith.constant 4 : i32
    %c0_i32_188 = arith.constant 0 : i32
    %441 = arith.cmpi eq, %c4_i32, %c0_i32_188 : i32
    %c1_i32_189 = arith.constant 1 : i32
    %442 = arith.select %441, %c1_i32_189, %c4_i32 : i32
    %443 = vector.broadcast %442 : i32 to vector<8x8xi32>
    %444 = arith.remsi %436, %443 : vector<8x8xi32>
    %c0_i32_190 = arith.constant 0 : i32
    %445 = vector.broadcast %c0_i32_190 : i32 to vector<8x8xi32>
    %446 = arith.cmpi ne, %444, %445 : vector<8x8xi32>
    %c0_i32_191 = arith.constant 0 : i32
    %447 = vector.broadcast %c0_i32_191 : i32 to vector<8x8xi32>
    %448 = arith.cmpi slt, %444, %447 : vector<8x8xi32>
    %c0_i32_192 = arith.constant 0 : i32
    %449 = arith.cmpi slt, %442, %c0_i32_192 : i32
    %450 = vector.broadcast %449 : i1 to vector<8x8xi1>
    %451 = vector.broadcast %450 : vector<8x8xi1> to vector<8x8xi1>
    %452 = arith.xori %448, %451 : vector<8x8xi1>
    %453 = arith.andi %452, %446 : vector<8x8xi1>
    %454 = vector.broadcast %442 : i32 to vector<8x8xi32>
    %455 = arith.addi %444, %454 : vector<8x8xi32>
    %456 = arith.select %453, %455, %444 : vector<8x8xi1>, vector<8x8xi32>
    %c0_i32_193 = arith.constant 0 : i32
    %457 = vector.broadcast %c0_i32_193 : i32 to vector<8x8xi32>
    %458 = arith.cmpi ne, %456, %457 : vector<8x8xi32>
    %459 = arith.andi %440, %458 : vector<8x8xi1>
    %460 = arith.extui %459 : vector<8x8xi1> to vector<8x8xi32>
    %461 = arith.sitofp %460 : vector<8x8xi32> to vector<8x8xf32>
    %c1_i32_194 = arith.constant 1 : i32
    %462 = vector.broadcast %c1_i32_194 : i32 to vector<8x8xi32>
    %463 = arith.addi %436, %462 : vector<8x8xi32>
    %464 = arith.cmpi eq, %437, %463 : vector<8x8xi32>
    %c4_i32_195 = arith.constant 4 : i32
    %c0_i32_196 = arith.constant 0 : i32
    %465 = arith.cmpi eq, %c4_i32_195, %c0_i32_196 : i32
    %c1_i32_197 = arith.constant 1 : i32
    %466 = arith.select %465, %c1_i32_197, %c4_i32_195 : i32
    %467 = vector.broadcast %466 : i32 to vector<8x8xi32>
    %468 = arith.remsi %436, %467 : vector<8x8xi32>
    %c0_i32_198 = arith.constant 0 : i32
    %469 = vector.broadcast %c0_i32_198 : i32 to vector<8x8xi32>
    %470 = arith.cmpi ne, %468, %469 : vector<8x8xi32>
    %c0_i32_199 = arith.constant 0 : i32
    %471 = vector.broadcast %c0_i32_199 : i32 to vector<8x8xi32>
    %472 = arith.cmpi slt, %468, %471 : vector<8x8xi32>
    %c0_i32_200 = arith.constant 0 : i32
    %473 = arith.cmpi slt, %466, %c0_i32_200 : i32
    %474 = vector.broadcast %473 : i1 to vector<8x8xi1>
    %475 = vector.broadcast %474 : vector<8x8xi1> to vector<8x8xi1>
    %476 = arith.xori %472, %475 : vector<8x8xi1>
    %477 = arith.andi %476, %470 : vector<8x8xi1>
    %478 = vector.broadcast %466 : i32 to vector<8x8xi32>
    %479 = arith.addi %468, %478 : vector<8x8xi32>
    %480 = arith.select %477, %479, %468 : vector<8x8xi1>, vector<8x8xi32>
    %c3_i32 = arith.constant 3 : i32
    %481 = vector.broadcast %c3_i32 : i32 to vector<8x8xi32>
    %482 = arith.cmpi ne, %480, %481 : vector<8x8xi32>
    %483 = arith.andi %464, %482 : vector<8x8xi1>
    %484 = arith.extui %483 : vector<8x8xi1> to vector<8x8xi32>
    %485 = arith.sitofp %484 : vector<8x8xi32> to vector<8x8xf32>
    %486 = tpu.iota {dimensions = array<i32: 0>} : vector<32x32xi32>
    %487 = tpu.iota {dimensions = array<i32: 1>} : vector<32x32xi32>
    %c8_i32_201 = arith.constant 8 : i32
    %c0_i32_202 = arith.constant 0 : i32
    %488 = arith.cmpi eq, %c8_i32_201, %c0_i32_202 : i32
    %c1_i32_203 = arith.constant 1 : i32
    %489 = arith.select %488, %c1_i32_203, %c8_i32_201 : i32
    %490 = vector.broadcast %489 : i32 to vector<32x32xi32>
    %491 = arith.remsi %486, %490 : vector<32x32xi32>
    %c0_i32_204 = arith.constant 0 : i32
    %492 = vector.broadcast %c0_i32_204 : i32 to vector<32x32xi32>
    %493 = arith.cmpi ne, %491, %492 : vector<32x32xi32>
    %c0_i32_205 = arith.constant 0 : i32
    %494 = vector.broadcast %c0_i32_205 : i32 to vector<32x32xi32>
    %495 = arith.cmpi slt, %491, %494 : vector<32x32xi32>
    %c0_i32_206 = arith.constant 0 : i32
    %496 = arith.cmpi slt, %489, %c0_i32_206 : i32
    %497 = vector.broadcast %496 : i1 to vector<32x32xi1>
    %498 = vector.broadcast %497 : vector<32x32xi1> to vector<32x32xi1>
    %499 = arith.xori %495, %498 : vector<32x32xi1>
    %500 = arith.andi %499, %493 : vector<32x32xi1>
    %501 = vector.broadcast %489 : i32 to vector<32x32xi32>
    %502 = arith.addi %491, %501 : vector<32x32xi32>
    %503 = arith.select %500, %502, %491 : vector<32x32xi1>, vector<32x32xi32>
    %c8_i32_207 = arith.constant 8 : i32
    %c0_i32_208 = arith.constant 0 : i32
    %504 = arith.cmpi eq, %c8_i32_207, %c0_i32_208 : i32
    %c1_i32_209 = arith.constant 1 : i32
    %505 = arith.select %504, %c1_i32_209, %c8_i32_207 : i32
    %506 = vector.broadcast %505 : i32 to vector<32x32xi32>
    %507 = arith.remsi %487, %506 : vector<32x32xi32>
    %c0_i32_210 = arith.constant 0 : i32
    %508 = vector.broadcast %c0_i32_210 : i32 to vector<32x32xi32>
    %509 = arith.cmpi ne, %507, %508 : vector<32x32xi32>
    %c0_i32_211 = arith.constant 0 : i32
    %510 = vector.broadcast %c0_i32_211 : i32 to vector<32x32xi32>
    %511 = arith.cmpi slt, %507, %510 : vector<32x32xi32>
    %c0_i32_212 = arith.constant 0 : i32
    %512 = arith.cmpi slt, %505, %c0_i32_212 : i32
    %513 = vector.broadcast %512 : i1 to vector<32x32xi1>
    %514 = vector.broadcast %513 : vector<32x32xi1> to vector<32x32xi1>
    %515 = arith.xori %511, %514 : vector<32x32xi1>
    %516 = arith.andi %515, %509 : vector<32x32xi1>
    %517 = vector.broadcast %505 : i32 to vector<32x32xi32>
    %518 = arith.addi %507, %517 : vector<32x32xi32>
    %519 = arith.select %516, %518, %507 : vector<32x32xi1>, vector<32x32xi32>
    %520 = arith.cmpi eq, %503, %519 : vector<32x32xi32>
    %521 = arith.extui %520 : vector<32x32xi1> to vector<32x32xi32>
    %522 = arith.sitofp %521 : vector<32x32xi32> to vector<32x32xf32>
    %cst_213 = arith.constant dense<0.000000e+00> : vector<8x64xf32>
    %523 = tpu.matmul %461, %434, %cst_213 {dimension_numbers = #tpu.dot_dimension_numbers<[1], [0], [0], [1], [0, 0, 1, 1], [], []>} : vector<8x8xf32>, vector<8x64xf32>, vector<8x64xf32> -> vector<8x64xf32>
    %524 = arith.truncf %523 : vector<8x64xf32> to vector<8x64xbf16>
    %525 = arith.truncf %434 : vector<8x64xf32> to vector<8x64xbf16>
    %cst_214 = arith.constant dense<0.000000e+00> : vector<8x64xf32>
    %526 = tpu.matmul %485, %434, %cst_214 {dimension_numbers = #tpu.dot_dimension_numbers<[1], [0], [0], [1], [0, 0, 1, 1], [], []>} : vector<8x8xf32>, vector<8x64xf32>, vector<8x64xf32> -> vector<8x64xf32>
    %527 = arith.truncf %526 : vector<8x64xf32> to vector<8x64xbf16>
    %c0_215 = arith.constant 0 : index
    %c0_216 = arith.constant 0 : index
    %c0_217 = arith.constant 0 : index
    %528 = vector.load %arg9[%c0_215, %c0_216, %c0_217] : memref<3x64x32xbf16, #tpu.memory_space<vmem>>, vector<1x64x32xbf16>
    %529 = vector.shape_cast %528 : vector<1x64x32xbf16> to vector<64x32xbf16>
    %cst_218 = arith.constant dense<0.000000e+00> : vector<8x32xf32>
    %530 = tpu.matmul %524, %529, %cst_218 {dimension_numbers = #tpu.dot_dimension_numbers<[1], [0], [0], [1], [0, 0, 1, 1], [], []>} : vector<8x64xbf16>, vector<64x32xbf16>, vector<8x32xf32> -> vector<8x32xf32>
    %c1_219 = arith.constant 1 : index
    %c0_220 = arith.constant 0 : index
    %c0_221 = arith.constant 0 : index
    %531 = vector.load %arg9[%c1_219, %c0_220, %c0_221] : memref<3x64x32xbf16, #tpu.memory_space<vmem>>, vector<1x64x32xbf16>
    %532 = vector.shape_cast %531 : vector<1x64x32xbf16> to vector<64x32xbf16>
    %cst_222 = arith.constant dense<0.000000e+00> : vector<8x32xf32>
    %533 = tpu.matmul %525, %532, %cst_222 {dimension_numbers = #tpu.dot_dimension_numbers<[1], [0], [0], [1], [0, 0, 1, 1], [], []>} : vector<8x64xbf16>, vector<64x32xbf16>, vector<8x32xf32> -> vector<8x32xf32>
    %534 = arith.addf %530, %533 : vector<8x32xf32>
    %c2_223 = arith.constant 2 : index
    %c0_224 = arith.constant 0 : index
    %c0_225 = arith.constant 0 : index
    %535 = vector.load %arg9[%c2_223, %c0_224, %c0_225] : memref<3x64x32xbf16, #tpu.memory_space<vmem>>, vector<1x64x32xbf16>
    %536 = vector.shape_cast %535 : vector<1x64x32xbf16> to vector<64x32xbf16>
    %cst_226 = arith.constant dense<0.000000e+00> : vector<8x32xf32>
    %537 = tpu.matmul %527, %536, %cst_226 {dimension_numbers = #tpu.dot_dimension_numbers<[1], [0], [0], [1], [0, 0, 1, 1], [], []>} : vector<8x64xbf16>, vector<64x32xbf16>, vector<8x32xf32> -> vector<8x32xf32>
    %538 = arith.addf %534, %537 : vector<8x32xf32>
    %c0_227 = arith.constant 0 : index
    %c0_228 = arith.constant 0 : index
    %539 = vector.load %arg10[%c0_227, %c0_228] : memref<3x32xf32, #tpu.memory_space<vmem>>, vector<1x32xf32>
    %540 = vector.broadcast %539 : vector<1x32xf32> to vector<8x32xf32>
    %541 = arith.addf %538, %540 : vector<8x32xf32>
    %cst_229 = arith.constant dense<0.000000e+00> : vector<32xf32>
    %542 = vector.multi_reduction <add>, %541, %cst_229 [0] : vector<8x32xf32> to vector<32xf32>
    %543 = vector.shape_cast %542 : vector<32xf32> to vector<1x32xf32>
    %cst_230 = arith.constant dense<0.000000e+00> : vector<1x32xf32>
    %544 = tpu.matmul %543, %522, %cst_230 {dimension_numbers = #tpu.dot_dimension_numbers<[1], [0], [0], [1], [0, 0, 1, 1], [], []>} : vector<1x32xf32>, vector<32x32xf32>, vector<1x32xf32> -> vector<1x32xf32>
    %cst_231 = arith.constant 3.125000e-02 : f32
    %545 = vector.broadcast %cst_231 : f32 to vector<1x32xf32>
    %546 = arith.mulf %544, %545 : vector<1x32xf32>
    %547 = vector.broadcast %546 : vector<1x32xf32> to vector<8x32xf32>
    %548 = arith.subf %541, %547 : vector<8x32xf32>
    %549 = arith.mulf %548, %548 : vector<8x32xf32>
    %cst_232 = arith.constant dense<0.000000e+00> : vector<32xf32>
    %550 = vector.multi_reduction <add>, %549, %cst_232 [0] : vector<8x32xf32> to vector<32xf32>
    %551 = vector.shape_cast %550 : vector<32xf32> to vector<1x32xf32>
    %cst_233 = arith.constant dense<0.000000e+00> : vector<1x32xf32>
    %552 = tpu.matmul %551, %522, %cst_233 {dimension_numbers = #tpu.dot_dimension_numbers<[1], [0], [0], [1], [0, 0, 1, 1], [], []>} : vector<1x32xf32>, vector<32x32xf32>, vector<1x32xf32> -> vector<1x32xf32>
    %cst_234 = arith.constant 3.125000e-02 : f32
    %553 = vector.broadcast %cst_234 : f32 to vector<1x32xf32>
    %554 = arith.mulf %552, %553 : vector<1x32xf32>
    %c1_235 = arith.constant 1 : index
    %c0_236 = arith.constant 0 : index
    %555 = vector.load %arg10[%c1_235, %c0_236] : memref<3x32xf32, #tpu.memory_space<vmem>>, vector<1x32xf32>
    %cst_237 = arith.constant 9.99999974E-6 : f32
    %556 = vector.broadcast %cst_237 : f32 to vector<1x32xf32>
    %557 = arith.addf %554, %556 : vector<1x32xf32>
    %558 = math.rsqrt %557 : vector<1x32xf32>
    %559 = arith.mulf %555, %558 : vector<1x32xf32>
    %560 = vector.broadcast %559 : vector<1x32xf32> to vector<8x32xf32>
    %561 = arith.mulf %548, %560 : vector<8x32xf32>
    %c2_238 = arith.constant 2 : index
    %c0_239 = arith.constant 0 : index
    %562 = vector.load %arg10[%c2_238, %c0_239] : memref<3x32xf32, #tpu.memory_space<vmem>>, vector<1x32xf32>
    %563 = vector.broadcast %562 : vector<1x32xf32> to vector<8x32xf32>
    %564 = arith.addf %561, %563 : vector<8x32xf32>
    %cst_240 = arith.constant 0.000000e+00 : f32
    %565 = vector.broadcast %cst_240 : f32 to vector<8x32xf32>
    %566 = arith.maximumf %564, %565 : vector<8x32xf32>
    %cst_241 = arith.constant dense<0.000000e+00> : vector<8x32xf32>
    %567 = tpu.matmul %461, %566, %cst_241 {dimension_numbers = #tpu.dot_dimension_numbers<[1], [0], [0], [1], [0, 0, 1, 1], [], []>} : vector<8x8xf32>, vector<8x32xf32>, vector<8x32xf32> -> vector<8x32xf32>
    %568 = arith.truncf %567 : vector<8x32xf32> to vector<8x32xbf16>
    %569 = arith.truncf %566 : vector<8x32xf32> to vector<8x32xbf16>
    %cst_242 = arith.constant dense<0.000000e+00> : vector<8x32xf32>
    %570 = tpu.matmul %485, %566, %cst_242 {dimension_numbers = #tpu.dot_dimension_numbers<[1], [0], [0], [1], [0, 0, 1, 1], [], []>} : vector<8x8xf32>, vector<8x32xf32>, vector<8x32xf32> -> vector<8x32xf32>
    %571 = arith.truncf %570 : vector<8x32xf32> to vector<8x32xbf16>
    %c0_243 = arith.constant 0 : index
    %c0_244 = arith.constant 0 : index
    %c0_245 = arith.constant 0 : index
    %572 = vector.load %arg11[%c0_243, %c0_244, %c0_245] : memref<3x32x32xbf16, #tpu.memory_space<vmem>>, vector<1x32x32xbf16>
    %573 = vector.shape_cast %572 : vector<1x32x32xbf16> to vector<32x32xbf16>
    %cst_246 = arith.constant dense<0.000000e+00> : vector<8x32xf32>
    %574 = tpu.matmul %568, %573, %cst_246 {dimension_numbers = #tpu.dot_dimension_numbers<[1], [0], [0], [1], [0, 0, 1, 1], [], []>} : vector<8x32xbf16>, vector<32x32xbf16>, vector<8x32xf32> -> vector<8x32xf32>
    %c1_247 = arith.constant 1 : index
    %c0_248 = arith.constant 0 : index
    %c0_249 = arith.constant 0 : index
    %575 = vector.load %arg11[%c1_247, %c0_248, %c0_249] : memref<3x32x32xbf16, #tpu.memory_space<vmem>>, vector<1x32x32xbf16>
    %576 = vector.shape_cast %575 : vector<1x32x32xbf16> to vector<32x32xbf16>
    %cst_250 = arith.constant dense<0.000000e+00> : vector<8x32xf32>
    %577 = tpu.matmul %569, %576, %cst_250 {dimension_numbers = #tpu.dot_dimension_numbers<[1], [0], [0], [1], [0, 0, 1, 1], [], []>} : vector<8x32xbf16>, vector<32x32xbf16>, vector<8x32xf32> -> vector<8x32xf32>
    %578 = arith.addf %574, %577 : vector<8x32xf32>
    %c2_251 = arith.constant 2 : index
    %c0_252 = arith.constant 0 : index
    %c0_253 = arith.constant 0 : index
    %579 = vector.load %arg11[%c2_251, %c0_252, %c0_253] : memref<3x32x32xbf16, #tpu.memory_space<vmem>>, vector<1x32x32xbf16>
    %580 = vector.shape_cast %579 : vector<1x32x32xbf16> to vector<32x32xbf16>
    %cst_254 = arith.constant dense<0.000000e+00> : vector<8x32xf32>
    %581 = tpu.matmul %571, %580, %cst_254 {dimension_numbers = #tpu.dot_dimension_numbers<[1], [0], [0], [1], [0, 0, 1, 1], [], []>} : vector<8x32xbf16>, vector<32x32xbf16>, vector<8x32xf32> -> vector<8x32xf32>
    %582 = arith.addf %578, %581 : vector<8x32xf32>
    %c0_255 = arith.constant 0 : index
    %c0_256 = arith.constant 0 : index
    %583 = vector.load %arg12[%c0_255, %c0_256] : memref<3x32xf32, #tpu.memory_space<vmem>>, vector<1x32xf32>
    %584 = vector.broadcast %583 : vector<1x32xf32> to vector<8x32xf32>
    %585 = arith.addf %582, %584 : vector<8x32xf32>
    %cst_257 = arith.constant dense<0.000000e+00> : vector<32xf32>
    %586 = vector.multi_reduction <add>, %585, %cst_257 [0] : vector<8x32xf32> to vector<32xf32>
    %587 = vector.shape_cast %586 : vector<32xf32> to vector<1x32xf32>
    %cst_258 = arith.constant dense<0.000000e+00> : vector<1x32xf32>
    %588 = tpu.matmul %587, %522, %cst_258 {dimension_numbers = #tpu.dot_dimension_numbers<[1], [0], [0], [1], [0, 0, 1, 1], [], []>} : vector<1x32xf32>, vector<32x32xf32>, vector<1x32xf32> -> vector<1x32xf32>
    %cst_259 = arith.constant 3.125000e-02 : f32
    %589 = vector.broadcast %cst_259 : f32 to vector<1x32xf32>
    %590 = arith.mulf %588, %589 : vector<1x32xf32>
    %591 = vector.broadcast %590 : vector<1x32xf32> to vector<8x32xf32>
    %592 = arith.subf %585, %591 : vector<8x32xf32>
    %593 = arith.mulf %592, %592 : vector<8x32xf32>
    %cst_260 = arith.constant dense<0.000000e+00> : vector<32xf32>
    %594 = vector.multi_reduction <add>, %593, %cst_260 [0] : vector<8x32xf32> to vector<32xf32>
    %595 = vector.shape_cast %594 : vector<32xf32> to vector<1x32xf32>
    %cst_261 = arith.constant dense<0.000000e+00> : vector<1x32xf32>
    %596 = tpu.matmul %595, %522, %cst_261 {dimension_numbers = #tpu.dot_dimension_numbers<[1], [0], [0], [1], [0, 0, 1, 1], [], []>} : vector<1x32xf32>, vector<32x32xf32>, vector<1x32xf32> -> vector<1x32xf32>
    %cst_262 = arith.constant 3.125000e-02 : f32
    %597 = vector.broadcast %cst_262 : f32 to vector<1x32xf32>
    %598 = arith.mulf %596, %597 : vector<1x32xf32>
    %c1_263 = arith.constant 1 : index
    %c0_264 = arith.constant 0 : index
    %599 = vector.load %arg12[%c1_263, %c0_264] : memref<3x32xf32, #tpu.memory_space<vmem>>, vector<1x32xf32>
    %cst_265 = arith.constant 9.99999974E-6 : f32
    %600 = vector.broadcast %cst_265 : f32 to vector<1x32xf32>
    %601 = arith.addf %598, %600 : vector<1x32xf32>
    %602 = math.rsqrt %601 : vector<1x32xf32>
    %603 = arith.mulf %599, %602 : vector<1x32xf32>
    %604 = vector.broadcast %603 : vector<1x32xf32> to vector<8x32xf32>
    %605 = arith.mulf %592, %604 : vector<8x32xf32>
    %c2_266 = arith.constant 2 : index
    %c0_267 = arith.constant 0 : index
    %606 = vector.load %arg12[%c2_266, %c0_267] : memref<3x32xf32, #tpu.memory_space<vmem>>, vector<1x32xf32>
    %607 = vector.broadcast %606 : vector<1x32xf32> to vector<8x32xf32>
    %608 = arith.addf %605, %607 : vector<8x32xf32>
    %cst_268 = arith.constant 0.000000e+00 : f32
    %609 = vector.broadcast %cst_268 : f32 to vector<8x32xf32>
    %610 = arith.maximumf %608, %609 : vector<8x32xf32>
    %611 = arith.truncf %610 : vector<8x32xf32> to vector<8x32xbf16>
    %c0_269 = arith.constant 0 : index
    %c0_270 = arith.constant 0 : index
    %612 = vector.load %arg14[%c0_269, %c0_270] : memref<1x64xf32, #tpu.memory_space<vmem>>, vector<1x64xf32>
    %c0_271 = arith.constant 0 : index
    %c0_272 = arith.constant 0 : index
    %c0_273 = arith.constant 0 : index
    %613 = vector.load %arg13[%c0_271, %c0_272, %c0_273] : memref<2x32x64xbf16, #tpu.memory_space<vmem>>, vector<1x32x64xbf16>
    %614 = vector.shape_cast %613 : vector<1x32x64xbf16> to vector<32x64xbf16>
    %cst_274 = arith.constant dense<0.000000e+00> : vector<8x64xf32>
    %615 = tpu.matmul %611, %614, %cst_274 {dimension_numbers = #tpu.dot_dimension_numbers<[1], [0], [0], [1], [0, 0, 1, 1], [], []>} : vector<8x32xbf16>, vector<32x64xbf16>, vector<8x64xf32> -> vector<8x64xf32>
    %616 = vector.broadcast %612 : vector<1x64xf32> to vector<8x64xf32>
    %617 = arith.addf %615, %616 : vector<8x64xf32>
    %c1_275 = arith.constant 1 : index
    %c0_276 = arith.constant 0 : index
    %c0_277 = arith.constant 0 : index
    %618 = vector.load %arg13[%c1_275, %c0_276, %c0_277] : memref<2x32x64xbf16, #tpu.memory_space<vmem>>, vector<1x32x64xbf16>
    %619 = vector.shape_cast %618 : vector<1x32x64xbf16> to vector<32x64xbf16>
    %cst_278 = arith.constant dense<0.000000e+00> : vector<8x64xf32>
    %620 = tpu.matmul %611, %619, %cst_278 {dimension_numbers = #tpu.dot_dimension_numbers<[1], [0], [0], [1], [0, 0, 1, 1], [], []>} : vector<8x32xbf16>, vector<32x64xbf16>, vector<8x64xf32> -> vector<8x64xf32>
    %621 = vector.broadcast %612 : vector<1x64xf32> to vector<8x64xf32>
    %622 = arith.addf %620, %621 : vector<8x64xf32>
    %623 = tpu.iota {dimensions = array<i32: 0>} : vector<16x8xi32>
    %624 = tpu.iota {dimensions = array<i32: 1>} : vector<16x8xi32>
    %c2_i32_279 = arith.constant 2 : i32
    %625 = vector.broadcast %c2_i32_279 : i32 to vector<16x8xi32>
    %626 = arith.muli %625, %624 : vector<16x8xi32>
    %627 = arith.cmpi eq, %623, %626 : vector<16x8xi32>
    %628 = arith.extui %627 : vector<16x8xi1> to vector<16x8xi32>
    %629 = arith.sitofp %628 : vector<16x8xi32> to vector<16x8xf32>
    %c2_i32_280 = arith.constant 2 : i32
    %630 = vector.broadcast %c2_i32_280 : i32 to vector<16x8xi32>
    %631 = arith.muli %630, %624 : vector<16x8xi32>
    %c1_i32_281 = arith.constant 1 : i32
    %632 = vector.broadcast %c1_i32_281 : i32 to vector<16x8xi32>
    %633 = arith.addi %631, %632 : vector<16x8xi32>
    %634 = arith.cmpi eq, %623, %633 : vector<16x8xi32>
    %635 = arith.extui %634 : vector<16x8xi1> to vector<16x8xi32>
    %636 = arith.sitofp %635 : vector<16x8xi32> to vector<16x8xf32>
    %cst_282 = arith.constant dense<0.000000e+00> : vector<16x64xf32>
    %637 = tpu.matmul %629, %617, %cst_282 {dimension_numbers = #tpu.dot_dimension_numbers<[1], [0], [0], [1], [0, 0, 1, 1], [], []>} : vector<16x8xf32>, vector<8x64xf32>, vector<16x64xf32> -> vector<16x64xf32>
    %cst_283 = arith.constant dense<0.000000e+00> : vector<16x64xf32>
    %638 = tpu.matmul %636, %622, %cst_283 {dimension_numbers = #tpu.dot_dimension_numbers<[1], [0], [0], [1], [0, 0, 1, 1], [], []>} : vector<16x8xf32>, vector<8x64xf32>, vector<16x64xf32> -> vector<16x64xf32>
    %639 = arith.addf %637, %638 : vector<16x64xf32>
    %640 = tpu.iota {dimensions = array<i32: 0>} : vector<16x16xi32>
    %641 = tpu.iota {dimensions = array<i32: 1>} : vector<16x16xi32>
    %c1_i32_284 = arith.constant 1 : i32
    %642 = vector.broadcast %c1_i32_284 : i32 to vector<16x16xi32>
    %643 = arith.subi %640, %642 : vector<16x16xi32>
    %644 = arith.cmpi eq, %641, %643 : vector<16x16xi32>
    %c8_i32_285 = arith.constant 8 : i32
    %c0_i32_286 = arith.constant 0 : i32
    %645 = arith.cmpi eq, %c8_i32_285, %c0_i32_286 : i32
    %c1_i32_287 = arith.constant 1 : i32
    %646 = arith.select %645, %c1_i32_287, %c8_i32_285 : i32
    %647 = vector.broadcast %646 : i32 to vector<16x16xi32>
    %648 = arith.remsi %640, %647 : vector<16x16xi32>
    %c0_i32_288 = arith.constant 0 : i32
    %649 = vector.broadcast %c0_i32_288 : i32 to vector<16x16xi32>
    %650 = arith.cmpi ne, %648, %649 : vector<16x16xi32>
    %c0_i32_289 = arith.constant 0 : i32
    %651 = vector.broadcast %c0_i32_289 : i32 to vector<16x16xi32>
    %652 = arith.cmpi slt, %648, %651 : vector<16x16xi32>
    %c0_i32_290 = arith.constant 0 : i32
    %653 = arith.cmpi slt, %646, %c0_i32_290 : i32
    %654 = vector.broadcast %653 : i1 to vector<16x16xi1>
    %655 = vector.broadcast %654 : vector<16x16xi1> to vector<16x16xi1>
    %656 = arith.xori %652, %655 : vector<16x16xi1>
    %657 = arith.andi %656, %650 : vector<16x16xi1>
    %658 = vector.broadcast %646 : i32 to vector<16x16xi32>
    %659 = arith.addi %648, %658 : vector<16x16xi32>
    %660 = arith.select %657, %659, %648 : vector<16x16xi1>, vector<16x16xi32>
    %c0_i32_291 = arith.constant 0 : i32
    %661 = vector.broadcast %c0_i32_291 : i32 to vector<16x16xi32>
    %662 = arith.cmpi ne, %660, %661 : vector<16x16xi32>
    %663 = arith.andi %644, %662 : vector<16x16xi1>
    %664 = arith.extui %663 : vector<16x16xi1> to vector<16x16xi32>
    %665 = arith.sitofp %664 : vector<16x16xi32> to vector<16x16xf32>
    %c1_i32_292 = arith.constant 1 : i32
    %666 = vector.broadcast %c1_i32_292 : i32 to vector<16x16xi32>
    %667 = arith.addi %640, %666 : vector<16x16xi32>
    %668 = arith.cmpi eq, %641, %667 : vector<16x16xi32>
    %c8_i32_293 = arith.constant 8 : i32
    %c0_i32_294 = arith.constant 0 : i32
    %669 = arith.cmpi eq, %c8_i32_293, %c0_i32_294 : i32
    %c1_i32_295 = arith.constant 1 : i32
    %670 = arith.select %669, %c1_i32_295, %c8_i32_293 : i32
    %671 = vector.broadcast %670 : i32 to vector<16x16xi32>
    %672 = arith.remsi %640, %671 : vector<16x16xi32>
    %c0_i32_296 = arith.constant 0 : i32
    %673 = vector.broadcast %c0_i32_296 : i32 to vector<16x16xi32>
    %674 = arith.cmpi ne, %672, %673 : vector<16x16xi32>
    %c0_i32_297 = arith.constant 0 : i32
    %675 = vector.broadcast %c0_i32_297 : i32 to vector<16x16xi32>
    %676 = arith.cmpi slt, %672, %675 : vector<16x16xi32>
    %c0_i32_298 = arith.constant 0 : i32
    %677 = arith.cmpi slt, %670, %c0_i32_298 : i32
    %678 = vector.broadcast %677 : i1 to vector<16x16xi1>
    %679 = vector.broadcast %678 : vector<16x16xi1> to vector<16x16xi1>
    %680 = arith.xori %676, %679 : vector<16x16xi1>
    %681 = arith.andi %680, %674 : vector<16x16xi1>
    %682 = vector.broadcast %670 : i32 to vector<16x16xi32>
    %683 = arith.addi %672, %682 : vector<16x16xi32>
    %684 = arith.select %681, %683, %672 : vector<16x16xi1>, vector<16x16xi32>
    %c7_i32_299 = arith.constant 7 : i32
    %685 = vector.broadcast %c7_i32_299 : i32 to vector<16x16xi32>
    %686 = arith.cmpi ne, %684, %685 : vector<16x16xi32>
    %687 = arith.andi %668, %686 : vector<16x16xi1>
    %688 = arith.extui %687 : vector<16x16xi1> to vector<16x16xi32>
    %689 = arith.sitofp %688 : vector<16x16xi32> to vector<16x16xf32>
    %690 = tpu.iota {dimensions = array<i32: 0>} : vector<32x32xi32>
    %691 = tpu.iota {dimensions = array<i32: 1>} : vector<32x32xi32>
    %c4_i32_300 = arith.constant 4 : i32
    %c0_i32_301 = arith.constant 0 : i32
    %692 = arith.cmpi eq, %c4_i32_300, %c0_i32_301 : i32
    %c1_i32_302 = arith.constant 1 : i32
    %693 = arith.select %692, %c1_i32_302, %c4_i32_300 : i32
    %694 = vector.broadcast %693 : i32 to vector<32x32xi32>
    %695 = arith.remsi %690, %694 : vector<32x32xi32>
    %c0_i32_303 = arith.constant 0 : i32
    %696 = vector.broadcast %c0_i32_303 : i32 to vector<32x32xi32>
    %697 = arith.cmpi ne, %695, %696 : vector<32x32xi32>
    %c0_i32_304 = arith.constant 0 : i32
    %698 = vector.broadcast %c0_i32_304 : i32 to vector<32x32xi32>
    %699 = arith.cmpi slt, %695, %698 : vector<32x32xi32>
    %c0_i32_305 = arith.constant 0 : i32
    %700 = arith.cmpi slt, %693, %c0_i32_305 : i32
    %701 = vector.broadcast %700 : i1 to vector<32x32xi1>
    %702 = vector.broadcast %701 : vector<32x32xi1> to vector<32x32xi1>
    %703 = arith.xori %699, %702 : vector<32x32xi1>
    %704 = arith.andi %703, %697 : vector<32x32xi1>
    %705 = vector.broadcast %693 : i32 to vector<32x32xi32>
    %706 = arith.addi %695, %705 : vector<32x32xi32>
    %707 = arith.select %704, %706, %695 : vector<32x32xi1>, vector<32x32xi32>
    %c4_i32_306 = arith.constant 4 : i32
    %c0_i32_307 = arith.constant 0 : i32
    %708 = arith.cmpi eq, %c4_i32_306, %c0_i32_307 : i32
    %c1_i32_308 = arith.constant 1 : i32
    %709 = arith.select %708, %c1_i32_308, %c4_i32_306 : i32
    %710 = vector.broadcast %709 : i32 to vector<32x32xi32>
    %711 = arith.remsi %691, %710 : vector<32x32xi32>
    %c0_i32_309 = arith.constant 0 : i32
    %712 = vector.broadcast %c0_i32_309 : i32 to vector<32x32xi32>
    %713 = arith.cmpi ne, %711, %712 : vector<32x32xi32>
    %c0_i32_310 = arith.constant 0 : i32
    %714 = vector.broadcast %c0_i32_310 : i32 to vector<32x32xi32>
    %715 = arith.cmpi slt, %711, %714 : vector<32x32xi32>
    %c0_i32_311 = arith.constant 0 : i32
    %716 = arith.cmpi slt, %709, %c0_i32_311 : i32
    %717 = vector.broadcast %716 : i1 to vector<32x32xi1>
    %718 = vector.broadcast %717 : vector<32x32xi1> to vector<32x32xi1>
    %719 = arith.xori %715, %718 : vector<32x32xi1>
    %720 = arith.andi %719, %713 : vector<32x32xi1>
    %721 = vector.broadcast %709 : i32 to vector<32x32xi32>
    %722 = arith.addi %711, %721 : vector<32x32xi32>
    %723 = arith.select %720, %722, %711 : vector<32x32xi1>, vector<32x32xi32>
    %724 = arith.cmpi eq, %707, %723 : vector<32x32xi32>
    %725 = arith.extui %724 : vector<32x32xi1> to vector<32x32xi32>
    %726 = arith.sitofp %725 : vector<32x32xi32> to vector<32x32xf32>
    %cst_312 = arith.constant dense<0.000000e+00> : vector<16x64xf32>
    %727 = tpu.matmul %665, %639, %cst_312 {dimension_numbers = #tpu.dot_dimension_numbers<[1], [0], [0], [1], [0, 0, 1, 1], [], []>} : vector<16x16xf32>, vector<16x64xf32>, vector<16x64xf32> -> vector<16x64xf32>
    %728 = arith.truncf %727 : vector<16x64xf32> to vector<16x64xbf16>
    %729 = arith.truncf %639 : vector<16x64xf32> to vector<16x64xbf16>
    %cst_313 = arith.constant dense<0.000000e+00> : vector<16x64xf32>
    %730 = tpu.matmul %689, %639, %cst_313 {dimension_numbers = #tpu.dot_dimension_numbers<[1], [0], [0], [1], [0, 0, 1, 1], [], []>} : vector<16x16xf32>, vector<16x64xf32>, vector<16x64xf32> -> vector<16x64xf32>
    %731 = arith.truncf %730 : vector<16x64xf32> to vector<16x64xbf16>
    %c0_314 = arith.constant 0 : index
    %c0_315 = arith.constant 0 : index
    %c0_316 = arith.constant 0 : index
    %732 = vector.load %arg15[%c0_314, %c0_315, %c0_316] : memref<3x64x32xbf16, #tpu.memory_space<vmem>>, vector<1x64x32xbf16>
    %733 = vector.shape_cast %732 : vector<1x64x32xbf16> to vector<64x32xbf16>
    %cst_317 = arith.constant dense<0.000000e+00> : vector<16x32xf32>
    %734 = tpu.matmul %728, %733, %cst_317 {dimension_numbers = #tpu.dot_dimension_numbers<[1], [0], [0], [1], [0, 0, 1, 1], [], []>} : vector<16x64xbf16>, vector<64x32xbf16>, vector<16x32xf32> -> vector<16x32xf32>
    %c1_318 = arith.constant 1 : index
    %c0_319 = arith.constant 0 : index
    %c0_320 = arith.constant 0 : index
    %735 = vector.load %arg15[%c1_318, %c0_319, %c0_320] : memref<3x64x32xbf16, #tpu.memory_space<vmem>>, vector<1x64x32xbf16>
    %736 = vector.shape_cast %735 : vector<1x64x32xbf16> to vector<64x32xbf16>
    %cst_321 = arith.constant dense<0.000000e+00> : vector<16x32xf32>
    %737 = tpu.matmul %729, %736, %cst_321 {dimension_numbers = #tpu.dot_dimension_numbers<[1], [0], [0], [1], [0, 0, 1, 1], [], []>} : vector<16x64xbf16>, vector<64x32xbf16>, vector<16x32xf32> -> vector<16x32xf32>
    %738 = arith.addf %734, %737 : vector<16x32xf32>
    %c2_322 = arith.constant 2 : index
    %c0_323 = arith.constant 0 : index
    %c0_324 = arith.constant 0 : index
    %739 = vector.load %arg15[%c2_322, %c0_323, %c0_324] : memref<3x64x32xbf16, #tpu.memory_space<vmem>>, vector<1x64x32xbf16>
    %740 = vector.shape_cast %739 : vector<1x64x32xbf16> to vector<64x32xbf16>
    %cst_325 = arith.constant dense<0.000000e+00> : vector<16x32xf32>
    %741 = tpu.matmul %731, %740, %cst_325 {dimension_numbers = #tpu.dot_dimension_numbers<[1], [0], [0], [1], [0, 0, 1, 1], [], []>} : vector<16x64xbf16>, vector<64x32xbf16>, vector<16x32xf32> -> vector<16x32xf32>
    %742 = arith.addf %738, %741 : vector<16x32xf32>
    %c0_326 = arith.constant 0 : index
    %c0_327 = arith.constant 0 : index
    %743 = vector.load %arg16[%c0_326, %c0_327] : memref<3x32xf32, #tpu.memory_space<vmem>>, vector<1x32xf32>
    %744 = vector.broadcast %743 : vector<1x32xf32> to vector<16x32xf32>
    %745 = arith.addf %742, %744 : vector<16x32xf32>
    %cst_328 = arith.constant dense<0.000000e+00> : vector<32xf32>
    %746 = vector.multi_reduction <add>, %745, %cst_328 [0] : vector<16x32xf32> to vector<32xf32>
    %747 = vector.shape_cast %746 : vector<32xf32> to vector<1x32xf32>
    %cst_329 = arith.constant dense<0.000000e+00> : vector<1x32xf32>
    %748 = tpu.matmul %747, %726, %cst_329 {dimension_numbers = #tpu.dot_dimension_numbers<[1], [0], [0], [1], [0, 0, 1, 1], [], []>} : vector<1x32xf32>, vector<32x32xf32>, vector<1x32xf32> -> vector<1x32xf32>
    %cst_330 = arith.constant 7.812500e-03 : f32
    %749 = vector.broadcast %cst_330 : f32 to vector<1x32xf32>
    %750 = arith.mulf %748, %749 : vector<1x32xf32>
    %751 = vector.broadcast %750 : vector<1x32xf32> to vector<16x32xf32>
    %752 = arith.subf %745, %751 : vector<16x32xf32>
    %753 = arith.mulf %752, %752 : vector<16x32xf32>
    %cst_331 = arith.constant dense<0.000000e+00> : vector<32xf32>
    %754 = vector.multi_reduction <add>, %753, %cst_331 [0] : vector<16x32xf32> to vector<32xf32>
    %755 = vector.shape_cast %754 : vector<32xf32> to vector<1x32xf32>
    %cst_332 = arith.constant dense<0.000000e+00> : vector<1x32xf32>
    %756 = tpu.matmul %755, %726, %cst_332 {dimension_numbers = #tpu.dot_dimension_numbers<[1], [0], [0], [1], [0, 0, 1, 1], [], []>} : vector<1x32xf32>, vector<32x32xf32>, vector<1x32xf32> -> vector<1x32xf32>
    %cst_333 = arith.constant 7.812500e-03 : f32
    %757 = vector.broadcast %cst_333 : f32 to vector<1x32xf32>
    %758 = arith.mulf %756, %757 : vector<1x32xf32>
    %c1_334 = arith.constant 1 : index
    %c0_335 = arith.constant 0 : index
    %759 = vector.load %arg16[%c1_334, %c0_335] : memref<3x32xf32, #tpu.memory_space<vmem>>, vector<1x32xf32>
    %cst_336 = arith.constant 9.99999974E-6 : f32
    %760 = vector.broadcast %cst_336 : f32 to vector<1x32xf32>
    %761 = arith.addf %758, %760 : vector<1x32xf32>
    %762 = math.rsqrt %761 : vector<1x32xf32>
    %763 = arith.mulf %759, %762 : vector<1x32xf32>
    %764 = vector.broadcast %763 : vector<1x32xf32> to vector<16x32xf32>
    %765 = arith.mulf %752, %764 : vector<16x32xf32>
    %c2_337 = arith.constant 2 : index
    %c0_338 = arith.constant 0 : index
    %766 = vector.load %arg16[%c2_337, %c0_338] : memref<3x32xf32, #tpu.memory_space<vmem>>, vector<1x32xf32>
    %767 = vector.broadcast %766 : vector<1x32xf32> to vector<16x32xf32>
    %768 = arith.addf %765, %767 : vector<16x32xf32>
    %cst_339 = arith.constant 0.000000e+00 : f32
    %769 = vector.broadcast %cst_339 : f32 to vector<16x32xf32>
    %770 = arith.maximumf %768, %769 : vector<16x32xf32>
    %cst_340 = arith.constant dense<0.000000e+00> : vector<16x32xf32>
    %771 = tpu.matmul %665, %770, %cst_340 {dimension_numbers = #tpu.dot_dimension_numbers<[1], [0], [0], [1], [0, 0, 1, 1], [], []>} : vector<16x16xf32>, vector<16x32xf32>, vector<16x32xf32> -> vector<16x32xf32>
    %772 = arith.truncf %771 : vector<16x32xf32> to vector<16x32xbf16>
    %773 = arith.truncf %770 : vector<16x32xf32> to vector<16x32xbf16>
    %cst_341 = arith.constant dense<0.000000e+00> : vector<16x32xf32>
    %774 = tpu.matmul %689, %770, %cst_341 {dimension_numbers = #tpu.dot_dimension_numbers<[1], [0], [0], [1], [0, 0, 1, 1], [], []>} : vector<16x16xf32>, vector<16x32xf32>, vector<16x32xf32> -> vector<16x32xf32>
    %775 = arith.truncf %774 : vector<16x32xf32> to vector<16x32xbf16>
    %c0_342 = arith.constant 0 : index
    %c0_343 = arith.constant 0 : index
    %c0_344 = arith.constant 0 : index
    %776 = vector.load %arg17[%c0_342, %c0_343, %c0_344] : memref<3x32x32xbf16, #tpu.memory_space<vmem>>, vector<1x32x32xbf16>
    %777 = vector.shape_cast %776 : vector<1x32x32xbf16> to vector<32x32xbf16>
    %cst_345 = arith.constant dense<0.000000e+00> : vector<16x32xf32>
    %778 = tpu.matmul %772, %777, %cst_345 {dimension_numbers = #tpu.dot_dimension_numbers<[1], [0], [0], [1], [0, 0, 1, 1], [], []>} : vector<16x32xbf16>, vector<32x32xbf16>, vector<16x32xf32> -> vector<16x32xf32>
    %c1_346 = arith.constant 1 : index
    %c0_347 = arith.constant 0 : index
    %c0_348 = arith.constant 0 : index
    %779 = vector.load %arg17[%c1_346, %c0_347, %c0_348] : memref<3x32x32xbf16, #tpu.memory_space<vmem>>, vector<1x32x32xbf16>
    %780 = vector.shape_cast %779 : vector<1x32x32xbf16> to vector<32x32xbf16>
    %cst_349 = arith.constant dense<0.000000e+00> : vector<16x32xf32>
    %781 = tpu.matmul %773, %780, %cst_349 {dimension_numbers = #tpu.dot_dimension_numbers<[1], [0], [0], [1], [0, 0, 1, 1], [], []>} : vector<16x32xbf16>, vector<32x32xbf16>, vector<16x32xf32> -> vector<16x32xf32>
    %782 = arith.addf %778, %781 : vector<16x32xf32>
    %c2_350 = arith.constant 2 : index
    %c0_351 = arith.constant 0 : index
    %c0_352 = arith.constant 0 : index
    %783 = vector.load %arg17[%c2_350, %c0_351, %c0_352] : memref<3x32x32xbf16, #tpu.memory_space<vmem>>, vector<1x32x32xbf16>
    %784 = vector.shape_cast %783 : vector<1x32x32xbf16> to vector<32x32xbf16>
    %cst_353 = arith.constant dense<0.000000e+00> : vector<16x32xf32>
    %785 = tpu.matmul %775, %784, %cst_353 {dimension_numbers = #tpu.dot_dimension_numbers<[1], [0], [0], [1], [0, 0, 1, 1], [], []>} : vector<16x32xbf16>, vector<32x32xbf16>, vector<16x32xf32> -> vector<16x32xf32>
    %786 = arith.addf %782, %785 : vector<16x32xf32>
    %c0_354 = arith.constant 0 : index
    %c0_355 = arith.constant 0 : index
    %787 = vector.load %arg18[%c0_354, %c0_355] : memref<3x32xf32, #tpu.memory_space<vmem>>, vector<1x32xf32>
    %788 = vector.broadcast %787 : vector<1x32xf32> to vector<16x32xf32>
    %789 = arith.addf %786, %788 : vector<16x32xf32>
    %cst_356 = arith.constant dense<0.000000e+00> : vector<32xf32>
    %790 = vector.multi_reduction <add>, %789, %cst_356 [0] : vector<16x32xf32> to vector<32xf32>
    %791 = vector.shape_cast %790 : vector<32xf32> to vector<1x32xf32>
    %cst_357 = arith.constant dense<0.000000e+00> : vector<1x32xf32>
    %792 = tpu.matmul %791, %726, %cst_357 {dimension_numbers = #tpu.dot_dimension_numbers<[1], [0], [0], [1], [0, 0, 1, 1], [], []>} : vector<1x32xf32>, vector<32x32xf32>, vector<1x32xf32> -> vector<1x32xf32>
    %cst_358 = arith.constant 7.812500e-03 : f32
    %793 = vector.broadcast %cst_358 : f32 to vector<1x32xf32>
    %794 = arith.mulf %792, %793 : vector<1x32xf32>
    %795 = vector.broadcast %794 : vector<1x32xf32> to vector<16x32xf32>
    %796 = arith.subf %789, %795 : vector<16x32xf32>
    %797 = arith.mulf %796, %796 : vector<16x32xf32>
    %cst_359 = arith.constant dense<0.000000e+00> : vector<32xf32>
    %798 = vector.multi_reduction <add>, %797, %cst_359 [0] : vector<16x32xf32> to vector<32xf32>
    %799 = vector.shape_cast %798 : vector<32xf32> to vector<1x32xf32>
    %cst_360 = arith.constant dense<0.000000e+00> : vector<1x32xf32>
    %800 = tpu.matmul %799, %726, %cst_360 {dimension_numbers = #tpu.dot_dimension_numbers<[1], [0], [0], [1], [0, 0, 1, 1], [], []>} : vector<1x32xf32>, vector<32x32xf32>, vector<1x32xf32> -> vector<1x32xf32>
    %cst_361 = arith.constant 7.812500e-03 : f32
    %801 = vector.broadcast %cst_361 : f32 to vector<1x32xf32>
    %802 = arith.mulf %800, %801 : vector<1x32xf32>
    %c1_362 = arith.constant 1 : index
    %c0_363 = arith.constant 0 : index
    %803 = vector.load %arg18[%c1_362, %c0_363] : memref<3x32xf32, #tpu.memory_space<vmem>>, vector<1x32xf32>
    %cst_364 = arith.constant 9.99999974E-6 : f32
    %804 = vector.broadcast %cst_364 : f32 to vector<1x32xf32>
    %805 = arith.addf %802, %804 : vector<1x32xf32>
    %806 = math.rsqrt %805 : vector<1x32xf32>
    %807 = arith.mulf %803, %806 : vector<1x32xf32>
    %808 = vector.broadcast %807 : vector<1x32xf32> to vector<16x32xf32>
    %809 = arith.mulf %796, %808 : vector<16x32xf32>
    %c2_365 = arith.constant 2 : index
    %c0_366 = arith.constant 0 : index
    %810 = vector.load %arg18[%c2_365, %c0_366] : memref<3x32xf32, #tpu.memory_space<vmem>>, vector<1x32xf32>
    %811 = vector.broadcast %810 : vector<1x32xf32> to vector<16x32xf32>
    %812 = arith.addf %809, %811 : vector<16x32xf32>
    %cst_367 = arith.constant 0.000000e+00 : f32
    %813 = vector.broadcast %cst_367 : f32 to vector<16x32xf32>
    %814 = arith.maximumf %812, %813 : vector<16x32xf32>
    %815 = arith.truncf %814 : vector<16x32xf32> to vector<16x32xbf16>
    %c0_368 = arith.constant 0 : index
    %c0_369 = arith.constant 0 : index
    %816 = vector.load %arg20[%c0_368, %c0_369] : memref<1x64xf32, #tpu.memory_space<vmem>>, vector<1x64xf32>
    %c0_370 = arith.constant 0 : index
    %c0_371 = arith.constant 0 : index
    %c0_372 = arith.constant 0 : index
    %817 = vector.load %arg19[%c0_370, %c0_371, %c0_372] : memref<2x32x64xbf16, #tpu.memory_space<vmem>>, vector<1x32x64xbf16>
    %818 = vector.shape_cast %817 : vector<1x32x64xbf16> to vector<32x64xbf16>
    %cst_373 = arith.constant dense<0.000000e+00> : vector<16x64xf32>
    %819 = tpu.matmul %815, %818, %cst_373 {dimension_numbers = #tpu.dot_dimension_numbers<[1], [0], [0], [1], [0, 0, 1, 1], [], []>} : vector<16x32xbf16>, vector<32x64xbf16>, vector<16x64xf32> -> vector<16x64xf32>
    %820 = vector.broadcast %816 : vector<1x64xf32> to vector<16x64xf32>
    %821 = arith.addf %819, %820 : vector<16x64xf32>
    %c1_374 = arith.constant 1 : index
    %c0_375 = arith.constant 0 : index
    %c0_376 = arith.constant 0 : index
    %822 = vector.load %arg19[%c1_374, %c0_375, %c0_376] : memref<2x32x64xbf16, #tpu.memory_space<vmem>>, vector<1x32x64xbf16>
    %823 = vector.shape_cast %822 : vector<1x32x64xbf16> to vector<32x64xbf16>
    %cst_377 = arith.constant dense<0.000000e+00> : vector<16x64xf32>
    %824 = tpu.matmul %815, %823, %cst_377 {dimension_numbers = #tpu.dot_dimension_numbers<[1], [0], [0], [1], [0, 0, 1, 1], [], []>} : vector<16x32xbf16>, vector<32x64xbf16>, vector<16x64xf32> -> vector<16x64xf32>
    %825 = vector.broadcast %816 : vector<1x64xf32> to vector<16x64xf32>
    %826 = arith.addf %824, %825 : vector<16x64xf32>
    %827 = tpu.iota {dimensions = array<i32: 0>} : vector<32x16xi32>
    %828 = tpu.iota {dimensions = array<i32: 1>} : vector<32x16xi32>
    %c2_i32_378 = arith.constant 2 : i32
    %829 = vector.broadcast %c2_i32_378 : i32 to vector<32x16xi32>
    %830 = arith.muli %829, %828 : vector<32x16xi32>
    %831 = arith.cmpi eq, %827, %830 : vector<32x16xi32>
    %832 = arith.extui %831 : vector<32x16xi1> to vector<32x16xi32>
    %833 = arith.sitofp %832 : vector<32x16xi32> to vector<32x16xf32>
    %c2_i32_379 = arith.constant 2 : i32
    %834 = vector.broadcast %c2_i32_379 : i32 to vector<32x16xi32>
    %835 = arith.muli %834, %828 : vector<32x16xi32>
    %c1_i32_380 = arith.constant 1 : i32
    %836 = vector.broadcast %c1_i32_380 : i32 to vector<32x16xi32>
    %837 = arith.addi %835, %836 : vector<32x16xi32>
    %838 = arith.cmpi eq, %827, %837 : vector<32x16xi32>
    %839 = arith.extui %838 : vector<32x16xi1> to vector<32x16xi32>
    %840 = arith.sitofp %839 : vector<32x16xi32> to vector<32x16xf32>
    %cst_381 = arith.constant dense<0.000000e+00> : vector<32x64xf32>
    %841 = tpu.matmul %833, %821, %cst_381 {dimension_numbers = #tpu.dot_dimension_numbers<[1], [0], [0], [1], [0, 0, 1, 1], [], []>} : vector<32x16xf32>, vector<16x64xf32>, vector<32x64xf32> -> vector<32x64xf32>
    %cst_382 = arith.constant dense<0.000000e+00> : vector<32x64xf32>
    %842 = tpu.matmul %840, %826, %cst_382 {dimension_numbers = #tpu.dot_dimension_numbers<[1], [0], [0], [1], [0, 0, 1, 1], [], []>} : vector<32x16xf32>, vector<16x64xf32>, vector<32x64xf32> -> vector<32x64xf32>
    %843 = arith.addf %841, %842 : vector<32x64xf32>
    %c0_383 = arith.constant 0 : index
    %c0_384 = arith.constant 0 : index
    %844 = vector.load %arg22[%c0_383, %c0_384] : memref<32x64xf32, #tpu.memory_space<vmem>>, vector<32x64xf32>
    tpu.vector_store %arg22[%c0_383, %c0_384], %843 {strides = array<i32>} : memref<32x64xf32, #tpu.memory_space<vmem>>, vector<32x64xf32>,
    return
  }
}

</mosaic_0001>

<llo_original>
// kernel: semantic_module_forward.1
$region0: #{semantic_module_forward.1}
  #allocation0 [shape = 'u32[]', space=smem, size = 0x4, offset = 0x4, fixed_abs, tag = 'smem constant byte address 0x4 - core index']
  #allocation1 [shape = 'u32[144,128]{1,0:T(1,128)}', space=vmem, size = 0x12000, scoped, tag = 'internal scratch']
  %s0 = inlined_call_operand.vmem [shape: f32[32,64], index: 0, kind: input, shape index: {}]
  %s1 = inlined_call_operand.vmem [shape: bf16[3,64,128], index: 1, kind: input, shape index: {}]
  %s2 = inlined_call_operand.vmem [shape: f32[3,128], index: 2, kind: input, shape index: {}]
  %s3 = inlined_call_operand.vmem [shape: bf16[3,128,128], index: 3, kind: input, shape index: {}]
  %s4 = inlined_call_operand.vmem [shape: f32[3,128], index: 4, kind: input, shape index: {}]
  %s5 = inlined_call_operand.vmem [shape: bf16[3,64,128], index: 5, kind: input, shape index: {}]
  %s6 = inlined_call_operand.vmem [shape: f32[3,128], index: 6, kind: input, shape index: {}]
  %s7 = inlined_call_operand.vmem [shape: bf16[3,128,128], index: 7, kind: input, shape index: {}]
  %s8 = inlined_call_operand.vmem [shape: f32[3,128], index: 8, kind: input, shape index: {}]
  %s9 = inlined_call_operand.vmem [shape: bf16[3,64,32], index: 9, kind: input, shape index: {}]
  %s10 = inlined_call_operand.vmem [shape: f32[3,32], index: 10, kind: input, shape index: {}]
  %s11 = inlined_call_operand.vmem [shape: bf16[3,32,32], index: 11, kind: input, shape index: {}]
  %s12 = inlined_call_operand.vmem [shape: f32[3,32], index: 12, kind: input, shape index: {}]
  %s13 = inlined_call_operand.vmem [shape: bf16[2,32,64], index: 13, kind: input, shape index: {}]
  %s14 = inlined_call_operand.vmem [shape: f32[1,64], index: 14, kind: input, shape index: {}]
  %s15 = inlined_call_operand.vmem [shape: bf16[3,64,32], index: 15, kind: input, shape index: {}]
  %s16 = inlined_call_operand.hbm [shape: f32[3,32], index: 16, kind: input, shape index: {}]
  %s17 = inlined_call_operand.vmem [shape: bf16[3,32,32], index: 17, kind: input, shape index: {}]
  %s18 = inlined_call_operand.hbm [shape: f32[3,32], index: 18, kind: input, shape index: {}]
  %s19 = inlined_call_operand.vmem [shape: bf16[2,32,64], index: 19, kind: input, shape index: {}]
  %s20 = inlined_call_operand.hbm [shape: f32[1,64], index: 20, kind: input, shape index: {}]
  %s21 = inlined_call_operand.vmem [shape: f32[8,64], index: 21, kind: output, shape index: {0}]
  %s22 = inlined_call_operand.vmem [shape: f32[32,64], index: 22, kind: output, shape index: {1}]
  %23 = xla_tuple %s21, %s22
  %s24 = sld [smem:[#allocation0]]
  $region114: #{semantic_module_forward.1} parent=0
    _
  %s26 = ssub.s32 1, %s24
  %s27 = scalar_select 0, %s26, %s24
  $region1: #{semantic_module_forward.1} parent=0
    #allocation2 [shape = 'u8[2048]{0}', space=vmem, size = 0x800, scoped, tag = 'input window, operand 16, single buffered']
    #allocation3 [shape = 's32[1]{0}', space=sflag, size = 0x4, scoped, tag = 'scoped memory for semantic_module_forward.1']
    #allocation4 [shape = 'u8[2048]{0}', space=vmem, size = 0x800, scoped, tag = 'input window, operand 18, single buffered']
    #allocation5 [shape = 's32[1]{0}', space=sflag, size = 0x4, scoped, tag = 'scoped memory for semantic_module_forward.1']
    #allocation6 [shape = 'u8[512]{0}', space=vmem, size = 0x400, scoped, tag = 'input window, operand 20, single buffered']
    %28 = vsyncpa [#allocation3], 0
    %29 = vsyncpa [#allocation5], 0
    // Predicated region
    $region2: #{semantic_module_forward.1} parent=1 // pred_check
      _
    $region3: #{semantic_module_forward.1} parent=1 // pred_check_branch
      %31 = sbr.rel (0) target = $region5
    $region4: #{semantic_module_forward.1} parent=1 // pred_region
      _
    $region5: #{semantic_module_forward.1} parent=1 // pred_fallthru
      _
    // Predicated region
    $region6: #{semantic_module_forward.1} parent=1 // pred_check
      _
    $region7: #{semantic_module_forward.1} parent=1 // pred_check_branch
      %33 = sbr.rel (0) target = $region9
    $region8: #{semantic_module_forward.1} parent=1 // pred_region
      _
    $region9: #{semantic_module_forward.1} parent=1 // pred_fallthru
      _
    // Predicated region
    $region10: #{semantic_module_forward.1} parent=1 // pred_check
      _
    $region11: #{semantic_module_forward.1} parent=1 // pred_check_branch
      %35 = sbr.rel (0) target = $region13
    $region12: #{semantic_module_forward.1} parent=1 // pred_region
      _
    $region13: #{semantic_module_forward.1} parent=1 // pred_fallthru
      _
    // Predicated region
    $region14: #{semantic_module_forward.1} parent=1 // pred_check
      _
    $region15: #{semantic_module_forward.1} parent=1 // pred_check_branch
      %37 = sbr.rel (0) target = $region17
    $region16: #{semantic_module_forward.1} parent=1 // pred_region
      _
    $region17: #{semantic_module_forward.1} parent=1 // pred_fallthru
      _
    // Predicated region
    $region18: #{semantic_module_forward.1} parent=1 // pred_check
      _
    $region19: #{semantic_module_forward.1} parent=1 // pred_check_branch
      %39 = sbr.rel (0) target = $region21
    $region20: #{semantic_module_forward.1} parent=1 // pred_region
      _
    $region21: #{semantic_module_forward.1} parent=1 // pred_fallthru
      _
    // Predicated region
    $region22: #{semantic_module_forward.1} parent=1 // pred_check
      _
    $region23: #{semantic_module_forward.1} parent=1 // pred_check_branch
      %41 = sbr.rel (0) target = $region25
    $region24: #{semantic_module_forward.1} parent=1 // pred_region
      _
    $region25: #{semantic_module_forward.1} parent=1 // pred_fallthru
      _
    // Predicated region
    $region26: #{semantic_module_forward.1} parent=1 // pred_check
      _
    $region27: #{semantic_module_forward.1} parent=1 // pred_check_branch
      %43 = sbr.rel (0) target = $region29
    $region28: #{semantic_module_forward.1} parent=1 // pred_region
      _
    $region29: #{semantic_module_forward.1} parent=1 // pred_fallthru
      _
    // Predicated region
    $region30: #{semantic_module_forward.1} parent=1 // pred_check
      _
    $region31: #{semantic_module_forward.1} parent=1 // pred_check_branch
      %45 = sbr.rel (0) target = $region33
    $region32: #{semantic_module_forward.1} parent=1 // pred_region
      _
    $region33: #{semantic_module_forward.1} parent=1 // pred_fallthru
      _
    // Predicated region
    $region34: #{semantic_module_forward.1} parent=1 // pred_check
      _
    $region35: #{semantic_module_forward.1} parent=1 // pred_check_branch
      %47 = sbr.rel (0) target = $region37
    $region36: #{semantic_module_forward.1} parent=1 // pred_region
      _
    $region37: #{semantic_module_forward.1} parent=1 // pred_fallthru
      _
    // Predicated region
    $region38: #{semantic_module_forward.1} parent=1 // pred_check
      _
    $region39: #{semantic_module_forward.1} parent=1 // pred_check_branch
      %49 = sbr.rel (0) target = $region41
    $region40: #{semantic_module_forward.1} parent=1 // pred_region
      _
    $region41: #{semantic_module_forward.1} parent=1 // pred_fallthru
      _
    // Predicated region
    $region42: #{semantic_module_forward.1} parent=1 // pred_check
      _
    $region43: #{semantic_module_forward.1} parent=1 // pred_check_branch
      %51 = sbr.rel (0) target = $region45
    $region44: #{semantic_module_forward.1} parent=1 // pred_region
      _
    $region45: #{semantic_module_forward.1} parent=1 // pred_fallthru
      _
    // Predicated region
    $region46: #{semantic_module_forward.1} parent=1 // pred_check
      _
    $region47: #{semantic_module_forward.1} parent=1 // pred_check_branch
      %53 = sbr.rel (0) target = $region49
    $region48: #{semantic_module_forward.1} parent=1 // pred_region
      _
    $region49: #{semantic_module_forward.1} parent=1 // pred_fallthru
      _
    // Predicated region
    $region50: #{semantic_module_forward.1} parent=1 // pred_check
      _
    $region51: #{semantic_module_forward.1} parent=1 // pred_check_branch
      %55 = sbr.rel (0) target = $region53
    $region52: #{semantic_module_forward.1} parent=1 // pred_region
      _
    $region53: #{semantic_module_forward.1} parent=1 // pred_fallthru
      _
    // Predicated region
    $region54: #{semantic_module_forward.1} parent=1 // pred_check
      _
    $region55: #{semantic_module_forward.1} parent=1 // pred_check_branch
      %57 = sbr.rel (0) target = $region57
    $region56: #{semantic_module_forward.1} parent=1 // pred_region
      _
    $region57: #{semantic_module_forward.1} parent=1 // pred_fallthru
      _
    // Predicated region
    $region58: #{semantic_module_forward.1} parent=1 // pred_check
      _
    $region59: #{semantic_module_forward.1} parent=1 // pred_check_branch
      %59 = sbr.rel (0) target = $region61
    $region60: #{semantic_module_forward.1} parent=1 // pred_region
      _
    $region61: #{semantic_module_forward.1} parent=1 // pred_fallthru
      _
    // Predicated region
    $region62: #{semantic_module_forward.1} parent=1 // pred_check
      _
    $region63: #{semantic_module_forward.1} parent=1 // pred_check_branch
      %61 = sbr.rel (0) target = $region65
    $region64: #{semantic_module_forward.1} parent=1 // pred_region
      _
    $region65: #{semantic_module_forward.1} parent=1 // pred_fallthru
      _
    // Predicated region
    $region66: #{semantic_module_forward.1} parent=1 // pred_check
      _
    $region67: #{semantic_module_forward.1} parent=1 // pred_check_branch
      %63 = sbr.rel (0) target = $region69
    $region68: #{semantic_module_forward.1} parent=1 // pred_region
      %s65 = ssub.s32 64, 64
      %66 = vsyncadd [#allocation3], %s65
      %s68 = sshll.u32 [#allocation2], 4
      %s69 = int_to_ptr.vmem [resolvable:$true] %s68
      %71 = dma.hbm_to_vmem [thread:$0]  %s16, 64, %s69, [#allocation3]
    $region69: #{semantic_module_forward.1} parent=1 // pred_fallthru
      _
    // Predicated region
    $region70: #{semantic_module_forward.1} parent=1 // pred_check
      _
    $region71: #{semantic_module_forward.1} parent=1 // pred_check_branch
      %73 = sbr.rel (0) target = $region73
    $region72: #{semantic_module_forward.1} parent=1 // pred_region
      _
    $region73: #{semantic_module_forward.1} parent=1 // pred_fallthru
      _
    // Predicated region
    $region74: #{semantic_module_forward.1} parent=1 // pred_check
      _
    $region75: #{semantic_module_forward.1} parent=1 // pred_check_branch
      %75 = sbr.rel (0) target = $region77
    $region76: #{semantic_module_forward.1} parent=1 // pred_region
      %s77 = ssub.s32 64, 64
      %78 = vsyncadd [#allocation5], %s77
      %s80 = sshll.u32 [#allocation4], 4
      %s81 = int_to_ptr.vmem [resolvable:$true] %s80
      %83 = dma.hbm_to_vmem [thread:$0]  %s18, 64, %s81, [#allocation5]
    $region77: #{semantic_module_forward.1} parent=1 // pred_fallthru
      _
    // Predicated region
    $region78: #{semantic_module_forward.1} parent=1 // pred_check
      _
    $region79: #{semantic_module_forward.1} parent=1 // pred_check_branch
      %85 = sbr.rel (0) target = $region81
    $region80: #{semantic_module_forward.1} parent=1 // pred_region
      _
    $region81: #{semantic_module_forward.1} parent=1 // pred_fallthru
      _
    // Predicated region
    $region82: #{semantic_module_forward.1} parent=1 // pred_check
      _
    $region83: #{semantic_module_forward.1} parent=1 // pred_check_branch
      %87 = sbr.rel (0) target = $region85
    $region84: #{semantic_module_forward.1} parent=1 // pred_region
      %s89 = ssub.s32 16, 16
      %90 = vsyncadd [#allocation5], %s89
      %s92 = sshll.u32 [#allocation6], 4
      %s93 = int_to_ptr.vmem [resolvable:$true] %s92
      %95 = dma.hbm_to_vmem [thread:$0]  %s20, 16, %s93, [#allocation5]
    $region85: #{semantic_module_forward.1} parent=1 // pred_fallthru
      _
    // Predicated region
    $region86: #{semantic_module_forward.1} parent=1 // pred_check
      _
    $region87: #{semantic_module_forward.1} parent=1 // pred_check_branch
      %97 = sbr.rel (0) target = $region89
    $region88: #{semantic_module_forward.1} parent=1 // pred_region
      %98 = dma.done [#allocation3], 64
    $region89: #{semantic_module_forward.1} parent=1 // pred_fallthru
      _
    // Predicated region
    $region90: #{semantic_module_forward.1} parent=1 // pred_check
      _
    $region91: #{semantic_module_forward.1} parent=1 // pred_check_branch
      %100 = sbr.rel (0) target = $region93
    $region92: #{semantic_module_forward.1} parent=1 // pred_region
      %101 = dma.done [#allocation5], 64
    $region93: #{semantic_module_forward.1} parent=1 // pred_fallthru
      _
    // Predicated region
    $region94: #{semantic_module_forward.1} parent=1 // pred_check
      _
    $region95: #{semantic_module_forward.1} parent=1 // pred_check_branch
      %103 = sbr.rel (0) target = $region97
    $region96: #{semantic_module_forward.1} parent=1 // pred_region
      %104 = dma.done [#allocation5], 16
    $region97: #{semantic_module_forward.1} parent=1 // pred_fallthru
      _
    %v106 = vld [vmem:[%s0] sm:$0xff]
    %v107 = vld [vmem:[%s0 + $0x8] sm:$0xff]
    %v108 = vld [vmem:[%s0 + $0x10] sm:$0xff]
    %v109 = vld [vmem:[%s0 + $0x18] sm:$0xff]
    %v110 = vlaneseq
    %v111 = vshrl.u32 %v110, 7
    %v112 = vadd.s32 %v111, 8
    %v113 = vadd.s32 %v111, 16
    %v114 = vadd.s32 %v111, 24
    %v115 = vlaneseq
    %v116 = vand.u32 %v115, 127
    %v117 = vsub.s32 %v111, 1
    %v118 = vsub.s32 %v112, 1
    %v119 = vsub.s32 %v113, 1
    %v120 = vsub.s32 %v114, 1
    %vm121 = vcmp.eq.s32.totalorder %v116, %v117
    %vm122 = vcmp.eq.s32.totalorder %v116, %v118
    %vm123 = vcmp.eq.s32.totalorder %v116, %v119
    %vm124 = vcmp.eq.s32.totalorder %v116, %v120
    %vm125 = vcmp.lt.s32.totalorder %v111, 0
    %v126 = vsub.s32 0, %v111
    %v127 = vsel %vm125, %v126, %v111
    %v128 = vshrl.u32 %v127, 4
    %v129 = vand.u32 %v127, 15
    %v130 = vsub.s32 0, %v129
    %v131 = vsel %vm125, %v130, %v129
    %vm132 = vcmp.lt.s32.totalorder %v112, 0
    %v133 = vsub.s32 0, %v112
    %v134 = vsel %vm132, %v133, %v112
    %v135 = vshrl.u32 %v134, 4
    %v136 = vand.u32 %v134, 15
    %v137 = vsub.s32 0, %v136
    %v138 = vsel %vm132, %v137, %v136
    %vm139 = vcmp.lt.s32.totalorder %v113, 0
    %v140 = vsub.s32 0, %v113
    %v141 = vsel %vm139, %v140, %v113
    %v142 = vshrl.u32 %v141, 4
    %v143 = vand.u32 %v141, 15
    %v144 = vsub.s32 0, %v143
    %v145 = vsel %vm139, %v144, %v143
    %vm146 = vcmp.lt.s32.totalorder %v114, 0
    %v147 = vsub.s32 0, %v114
    %v148 = vsel %vm146, %v147, %v114
    %v149 = vshrl.u32 %v148, 4
    %v150 = vand.u32 %v148, 15
    %v151 = vsub.s32 0, %v150
    %v152 = vsel %vm146, %v151, %v150
    %vm153 = vcmp.ne.s32.totalorder %v131, 0
    %vm154 = vcmp.ne.s32.totalorder %v138, 0
    %vm155 = vcmp.ne.s32.totalorder %v145, 0
    %vm156 = vcmp.ne.s32.totalorder %v152, 0
    %vm157 = vcmp.lt.s32.totalorder %v131, 0
    %vm158 = vcmp.lt.s32.totalorder %v138, 0
    %vm159 = vcmp.lt.s32.totalorder %v145, 0
    %vm160 = vcmp.lt.s32.totalorder %v152, 0
    %vm161 = vmand %vm157, %vm153
    %vm162 = vmand %vm158, %vm154
    %vm163 = vmand %vm159, %vm155
    %vm164 = vmand %vm160, %vm156
    %v165 = vadd.s32 %v131, 16
    %v166 = vadd.s32 %v138, 16
    %v167 = vadd.s32 %v145, 16
    %v168 = vadd.s32 %v152, 16
    %v169 = vsel %vm161, %v165, %v131
    %v170 = vsel %vm162, %v166, %v138
    %v171 = vsel %vm163, %v167, %v145
    %v172 = vsel %vm164, %v168, %v152
    %vm173 = vcmp.ne.s32.totalorder %v169, 0
    %vm174 = vcmp.ne.s32.totalorder %v170, 0
    %vm175 = vcmp.ne.s32.totalorder %v171, 0
    %vm176 = vcmp.ne.s32.totalorder %v172, 0
    %vm177 = vmand %vm121, %vm173
    %vm178 = vmand %vm122, %vm174
    %vm179 = vmand %vm123, %vm175
    %vm180 = vmand %vm124, %vm176
    %v181 = vsel %vm177, 1, 0
    %v182 = vsel %vm178, 1, 0
    %v183 = vsel %vm179, 1, 0
    %v184 = vsel %vm180, 1, 0
    %v185 = vcvt.s32.f32 %v181
    %v186 = vcvt.s32.f32 %v182
    %v187 = vcvt.s32.f32 %v183
    %v188 = vcvt.s32.f32 %v184
    %v189 = vadd.s32 %v111, 1
    %v190 = vadd.s32 %v112, 1
    %v191 = vadd.s32 %v113, 1
    %v192 = vadd.s32 %v114, 1
    %vm193 = vcmp.eq.s32.totalorder %v116, %v189
    %vm194 = vcmp.eq.s32.totalorder %v116, %v190
    %vm195 = vcmp.eq.s32.totalorder %v116, %v191
    %vm196 = vcmp.eq.s32.totalorder %v116, %v192
    %vm197 = vcmp.ne.s32.totalorder %v169, 15
    %vm198 = vcmp.ne.s32.totalorder %v170, 15
    %vm199 = vcmp.ne.s32.totalorder %v171, 15
    %vm200 = vcmp.ne.s32.totalorder %v172, 15
    %vm201 = vmand %vm193, %vm197
    %vm202 = vmand %vm194, %vm198
    %vm203 = vmand %vm195, %vm199
    %vm204 = vmand %vm196, %vm200
    %v205 = vsel %vm201, 1, 0
    %v206 = vsel %vm202, 1, 0
    %v207 = vsel %vm203, 1, 0
    %v208 = vsel %vm204, 1, 0
    %v209 = vcvt.s32.f32 %v205
    %v210 = vcvt.s32.f32 %v206
    %v211 = vcvt.s32.f32 %v207
    %v212 = vcvt.s32.f32 %v208
    %v213 = vadd.s32 %v111, 32
    %v214 = vadd.s32 %v111, 40
    %v215 = vadd.s32 %v111, 48
    %v216 = vadd.s32 %v111, 56
    %v217 = vadd.s32 %v111, 64
    %v218 = vadd.s32 %v111, 72
    %v219 = vadd.s32 %v111, 80
    %v220 = vadd.s32 %v111, 88
    %v221 = vadd.s32 %v111, 96
    %v222 = vadd.s32 %v111, 104
    %v223 = vadd.s32 %v111, 112
    %v224 = vadd.s32 %v111, 120
    %vm225 = vcmp.lt.s32.totalorder %v111, 0
    %v226 = vsub.s32 0, %v111
    %v227 = vsel %vm225, %v226, %v111
    %v228 = vshrl.u32 %v227, 3
    %v229 = vand.u32 %v227, 7
    %v230 = vsub.s32 0, %v229
    %v231 = vsel %vm225, %v230, %v229
    %vm232 = vcmp.lt.s32.totalorder %v112, 0
    %v233 = vsub.s32 0, %v112
    %v234 = vsel %vm232, %v233, %v112
    %v235 = vshrl.u32 %v234, 3
    %v236 = vand.u32 %v234, 7
    %v237 = vsub.s32 0, %v236
    %v238 = vsel %vm232, %v237, %v236
    %vm239 = vcmp.lt.s32.totalorder %v113, 0
    %v240 = vsub.s32 0, %v113
    %v241 = vsel %vm239, %v240, %v113
    %v242 = vshrl.u32 %v241, 3
    %v243 = vand.u32 %v241, 7
    %v244 = vsub.s32 0, %v243
    %v245 = vsel %vm239, %v244, %v243
    %vm246 = vcmp.lt.s32.totalorder %v114, 0
    %v247 = vsub.s32 0, %v114
    %v248 = vsel %vm246, %v247, %v114
    %v249 = vshrl.u32 %v248, 3
    %v250 = vand.u32 %v248, 7
    %v251 = vsub.s32 0, %v250
    %v252 = vsel %vm246, %v251, %v250
    %vm253 = vcmp.lt.s32.totalorder %v213, 0
    %v254 = vsub.s32 0, %v213
    %v255 = vsel %vm253, %v254, %v213
    %v256 = vshrl.u32 %v255, 3
    %v257 = vand.u32 %v255, 7
    %v258 = vsub.s32 0, %v257
    %v259 = vsel %vm253, %v258, %v257
    %vm260 = vcmp.lt.s32.totalorder %v214, 0
    %v261 = vsub.s32 0, %v214
    %v262 = vsel %vm260, %v261, %v214
    %v263 = vshrl.u32 %v262, 3
    %v264 = vand.u32 %v262, 7
    %v265 = vsub.s32 0, %v264
    %v266 = vsel %vm260, %v265, %v264
    %vm267 = vcmp.lt.s32.totalorder %v215, 0
    %v268 = vsub.s32 0, %v215
    %v269 = vsel %vm267, %v268, %v215
    %v270 = vshrl.u32 %v269, 3
    %v271 = vand.u32 %v269, 7
    %v272 = vsub.s32 0, %v271
    %v273 = vsel %vm267, %v272, %v271
    %vm274 = vcmp.lt.s32.totalorder %v216, 0
    %v275 = vsub.s32 0, %v216
    %v276 = vsel %vm274, %v275, %v216
    %v277 = vshrl.u32 %v276, 3
    %v278 = vand.u32 %v276, 7
    %v279 = vsub.s32 0, %v278
    %v280 = vsel %vm274, %v279, %v278
    %vm281 = vcmp.lt.s32.totalorder %v217, 0
    %v282 = vsub.s32 0, %v217
    %v283 = vsel %vm281, %v282, %v217
    %v284 = vshrl.u32 %v283, 3
    %v285 = vand.u32 %v283, 7
    %v286 = vsub.s32 0, %v285
    %v287 = vsel %vm281, %v286, %v285
    %vm288 = vcmp.lt.s32.totalorder %v218, 0
    %v289 = vsub.s32 0, %v218
    %v290 = vsel %vm288, %v289, %v218
    %v291 = vshrl.u32 %v290, 3
    %v292 = vand.u32 %v290, 7
    %v293 = vsub.s32 0, %v292
    %v294 = vsel %vm288, %v293, %v292
    %vm295 = vcmp.lt.s32.totalorder %v219, 0
    %v296 = vsub.s32 0, %v219
    %v297 = vsel %vm295, %v296, %v219
    %v298 = vshrl.u32 %v297, 3
    %v299 = vand.u32 %v297, 7
    %v300 = vsub.s32 0, %v299
    %v301 = vsel %vm295, %v300, %v299
    %vm302 = vcmp.lt.s32.totalorder %v220, 0
    %v303 = vsub.s32 0, %v220
    %v304 = vsel %vm302, %v303, %v220
    %v305 = vshrl.u32 %v304, 3
    %v306 = vand.u32 %v304, 7
    %v307 = vsub.s32 0, %v306
    %v308 = vsel %vm302, %v307, %v306
    %vm309 = vcmp.lt.s32.totalorder %v221, 0
    %v310 = vsub.s32 0, %v221
    %v311 = vsel %vm309, %v310, %v221
    %v312 = vshrl.u32 %v311, 3
    %v313 = vand.u32 %v311, 7
    %v314 = vsub.s32 0, %v313
    %v315 = vsel %vm309, %v314, %v313
    %vm316 = vcmp.lt.s32.totalorder %v222, 0
    %v317 = vsub.s32 0, %v222
    %v318 = vsel %vm316, %v317, %v222
    %v319 = vshrl.u32 %v318, 3
    %v320 = vand.u32 %v318, 7
    %v321 = vsub.s32 0, %v320
    %v322 = vsel %vm316, %v321, %v320
    %vm323 = vcmp.lt.s32.totalorder %v223, 0
    %v324 = vsub.s32 0, %v223
    %v325 = vsel %vm323, %v324, %v223
    %v326 = vshrl.u32 %v325, 3
    %v327 = vand.u32 %v325, 7
    %v328 = vsub.s32 0, %v327
    %v329 = vsel %vm323, %v328, %v327
    %vm330 = vcmp.lt.s32.totalorder %v224, 0
    %v331 = vsub.s32 0, %v224
    %v332 = vsel %vm330, %v331, %v224
    %v333 = vshrl.u32 %v332, 3
    %v334 = vand.u32 %v332, 7
    %v335 = vsub.s32 0, %v334
    %v336 = vsel %vm330, %v335, %v334
    %vm337 = vcmp.ne.s32.totalorder %v231, 0
    %vm338 = vcmp.ne.s32.totalorder %v238, 0
    %vm339 = vcmp.ne.s32.totalorder %v245, 0
    %vm340 = vcmp.ne.s32.totalorder %v252, 0
    %vm341 = vcmp.ne.s32.totalorder %v259, 0
    %vm342 = vcmp.ne.s32.totalorder %v266, 0
    %vm343 = vcmp.ne.s32.totalorder %v273, 0
    %vm344 = vcmp.ne.s32.totalorder %v280, 0
    %vm345 = vcmp.ne.s32.totalorder %v287, 0
    %vm346 = vcmp.ne.s32.totalorder %v294, 0
    %vm347 = vcmp.ne.s32.totalorder %v301, 0
    %vm348 = vcmp.ne.s32.totalorder %v308, 0
    %vm349 = vcmp.ne.s32.totalorder %v315, 0
    %vm350 = vcmp.ne.s32.totalorder %v322, 0
    %vm351 = vcmp.ne.s32.totalorder %v329, 0
    %vm352 = vcmp.ne.s32.totalorder %v336, 0
    %vm353 = vcmp.lt.s32.totalorder %v231, 0
    %vm354 = vcmp.lt.s32.totalorder %v238, 0
    %vm355 = vcmp.lt.s32.totalorder %v245, 0
    %vm356 = vcmp.lt.s32.totalorder %v252, 0
    %vm357 = vcmp.lt.s32.totalorder %v259, 0
    %vm358 = vcmp.lt.s32.totalorder %v266, 0
    %vm359 = vcmp.lt.s32.totalorder %v273, 0
    %vm360 = vcmp.lt.s32.totalorder %v280, 0
    %vm361 = vcmp.lt.s32.totalorder %v287, 0
    %vm362 = vcmp.lt.s32.totalorder %v294, 0
    %vm363 = vcmp.lt.s32.totalorder %v301, 0
    %vm364 = vcmp.lt.s32.totalorder %v308, 0
    %vm365 = vcmp.lt.s32.totalorder %v315, 0
    %vm366 = vcmp.lt.s32.totalorder %v322, 0
    %vm367 = vcmp.lt.s32.totalorder %v329, 0
    %vm368 = vcmp.lt.s32.totalorder %v336, 0
    %vm369 = vmand %vm353, %vm337
    %vm370 = vmand %vm354, %vm338
    %vm371 = vmand %vm355, %vm339
    %vm372 = vmand %vm356, %vm340
    %vm373 = vmand %vm357, %vm341
    %vm374 = vmand %vm358, %vm342
    %vm375 = vmand %vm359, %vm343
    %vm376 = vmand %vm360, %vm344
    %vm377 = vmand %vm361, %vm345
    %vm378 = vmand %vm362, %vm346
    %vm379 = vmand %vm363, %vm347
    %vm380 = vmand %vm364, %vm348
    %vm381 = vmand %vm365, %vm349
    %vm382 = vmand %vm366, %vm350
    %vm383 = vmand %vm367, %vm351
    %vm384 = vmand %vm368, %vm352
    %v385 = vadd.s32 %v231, 8
    %v386 = vadd.s32 %v238, 8
    %v387 = vadd.s32 %v245, 8
    %v388 = vadd.s32 %v252, 8
    %v389 = vadd.s32 %v259, 8
    %v390 = vadd.s32 %v266, 8
    %v391 = vadd.s32 %v273, 8
    %v392 = vadd.s32 %v280, 8
    %v393 = vadd.s32 %v287, 8
    %v394 = vadd.s32 %v294, 8
    %v395 = vadd.s32 %v301, 8
    %v396 = vadd.s32 %v308, 8
    %v397 = vadd.s32 %v315, 8
    %v398 = vadd.s32 %v322, 8
    %v399 = vadd.s32 %v329, 8
    %v400 = vadd.s32 %v336, 8
    %v401 = vsel %vm369, %v385, %v231
    %v402 = vsel %vm370, %v386, %v238
    %v403 = vsel %vm371, %v387, %v245
    %v404 = vsel %vm372, %v388, %v252
    %v405 = vsel %vm373, %v389, %v259
    %v406 = vsel %vm374, %v390, %v266
    %v407 = vsel %vm375, %v391, %v273
    %v408 = vsel %vm376, %v392, %v280
    %v409 = vsel %vm377, %v393, %v287
    %v410 = vsel %vm378, %v394, %v294
    %v411 = vsel %vm379, %v395, %v301
    %v412 = vsel %vm380, %v396, %v308
    %v413 = vsel %vm381, %v397, %v315
    %v414 = vsel %vm382, %v398, %v322
    %v415 = vsel %vm383, %v399, %v329
    %v416 = vsel %vm384, %v400, %v336
    %vm417 = vcmp.lt.s32.totalorder %v116, 0
    %v418 = vsub.s32 0, %v116
    %v419 = vsel %vm417, %v418, %v116
    %v420 = vshrl.u32 %v419, 3
    %v421 = vand.u32 %v419, 7
    %v422 = vsub.s32 0, %v421
    %v423 = vsel %vm417, %v422, %v421
    %vm424 = vcmp.ne.s32.totalorder %v423, 0
    %vm425 = vcmp.lt.s32.totalorder %v423, 0
    %vm426 = vmand %vm425, %vm424
    %v427 = vadd.s32 %v423, 8
    %v428 = vsel %vm426, %v427, %v423
    %vm429 = vcmp.eq.s32.totalorder %v401, %v428
    %vm430 = vcmp.eq.s32.totalorder %v402, %v428
    %vm431 = vcmp.eq.s32.totalorder %v403, %v428
    %vm432 = vcmp.eq.s32.totalorder %v404, %v428
    %vm433 = vcmp.eq.s32.totalorder %v405, %v428
    %vm434 = vcmp.eq.s32.totalorder %v406, %v428
    %vm435 = vcmp.eq.s32.totalorder %v407, %v428
    %vm436 = vcmp.eq.s32.totalorder %v408, %v428
    %vm437 = vcmp.eq.s32.totalorder %v409, %v428
    %vm438 = vcmp.eq.s32.totalorder %v410, %v428
    %vm439 = vcmp.eq.s32.totalorder %v411, %v428
    %vm440 = vcmp.eq.s32.totalorder %v412, %v428
    %vm441 = vcmp.eq.s32.totalorder %v413, %v428
    %vm442 = vcmp.eq.s32.totalorder %v414, %v428
    %vm443 = vcmp.eq.s32.totalorder %v415, %v428
    %vm444 = vcmp.eq.s32.totalorder %v416, %v428
    %v445 = vsel %vm429, 1, 0
    %v446 = vsel %vm430, 1, 0
    %v447 = vsel %vm431, 1, 0
    %v448 = vsel %vm432, 1, 0
    %v449 = vsel %vm433, 1, 0
    %v450 = vsel %vm434, 1, 0
    %v451 = vsel %vm435, 1, 0
    %v452 = vsel %vm436, 1, 0
    %v453 = vsel %vm437, 1, 0
    %v454 = vsel %vm438, 1, 0
    %v455 = vsel %vm439, 1, 0
    %v456 = vsel %vm440, 1, 0
    %v457 = vsel %vm441, 1, 0
    %v458 = vsel %vm442, 1, 0
    %v459 = vsel %vm443, 1, 0
    %v460 = vsel %vm444, 1, 0
    %v461 = vcvt.s32.f32 %v445
    %v462 = vcvt.s32.f32 %v446
    %v463 = vcvt.s32.f32 %v447
    %v464 = vcvt.s32.f32 %v448
    %v465 = vcvt.s32.f32 %v449
    %v466 = vcvt.s32.f32 %v450
    %v467 = vcvt.s32.f32 %v451
    %v468 = vcvt.s32.f32 %v452
    %v469 = vcvt.s32.f32 %v453
    %v470 = vcvt.s32.f32 %v454
    %v471 = vcvt.s32.f32 %v455
    %v472 = vcvt.s32.f32 %v456
    %v473 = vcvt.s32.f32 %v457
    %v474 = vcvt.s32.f32 %v458
    %v475 = vcvt.s32.f32 %v459
    %v476 = vcvt.s32.f32 %v460
    %vm477 = vcmask 261120
    %v479 = vsel %vm477, %v185, 0
    %v482 = vsel %vm477, %v186, 0
    %v485 = vsel %vm477, %v187, 0
    %v488 = vsel %vm477, %v188, 0
    %490 = vmatprep.subr.mxu0 0.0
    %491 = vmatpush1.msra.mxu0 %v106
    %492 = vmatprep.subr.mxu0 0.0
    %493 = vmatpush1.msra.mxu0 %v107
    %494 = vmatprep.subr.mxu0 0.0
    %495 = vmatpush1.msra.mxu0 %v108
    %496 = vmatprep.subr.mxu0 0.0
    %497 = vmatpush1.msra.mxu0 %v109
    %498 = vmatprep.subr.mxu0 0.0
    %499 = vmatpush1.msra.mxu0 0.0
    %500 = vmatprep.subr.mxu0 0.0
    %501 = vmatpush1.msra.mxu0 0.0
    %502 = vmatprep.subr.mxu0 0.0
    %503 = vmatpush1.msra.mxu0 0.0
    %504 = vmatprep.subr.mxu0 0.0
    %505 = vmatpush1.msra.mxu0 0.0
    %506 = vmatprep.subr.mxu0 0.0
    %507 = vmatpush1.msra.mxu0 0.0
    %508 = vmatprep.subr.mxu0 0.0
    %509 = vmatpush1.msra.mxu0 0.0
    %510 = vmatprep.subr.mxu0 0.0
    %511 = vmatpush1.msra.mxu0 0.0
    %512 = vmatprep.subr.mxu0 0.0
    %513 = vmatpush1.msra.mxu0 0.0
    %514 = vmatprep.subr.mxu0 0.0
    %515 = vmatpush1.msra.mxu0 0.0
    %516 = vmatprep.subr.mxu0 0.0
    %517 = vmatpush1.msra.mxu0 0.0
    %518 = vmatprep.subr.mxu0 0.0
    %519 = vmatpush1.msra.mxu0 0.0
    %520 = vmatprep.subr.mxu0 0.0
    %521 = vmatpush1.msra.mxu0 0.0
    %522 = vmatprep.subr.mxu0 0.0
    %523 = vmatpush1.msra.mxu0 0.0
    %524 = vmatprep.subr.mxu0 0.0
    %525 = vmatpush1.msra.mxu0 0.0
    %526 = vmatprep.subr.mxu0 0.0
    %527 = vmatpush1.msra.mxu0 0.0
    %528 = vmatprep.subr.mxu0 0.0
    %529 = vmatpush1.msra.mxu0 0.0
    %530 = vmatprep.subr.mxu0 0.0
    %531 = vmatpush1.msra.mxu0 0.0
    %532 = vmatprep.subr.mxu0 0.0
    %533 = vmatpush1.msra.mxu0 0.0
    %534 = vmatprep.subr.mxu0 0.0
    %535 = vmatpush1.msra.mxu0 0.0
    %536 = vmatprep.subr.mxu0 0.0
    %537 = vmatpush1.msra.mxu0 0.0
    %538 = vmatprep.subr.mxu0 0.0
    %539 = vmatpush1.msra.mxu0 0.0
    %540 = vmatprep.subr.mxu0 0.0
    %541 = vmatpush1.msra.mxu0 0.0
    %542 = vmatprep.subr.mxu0 0.0
    %543 = vmatpush1.msra.mxu0 0.0
    %544 = vmatprep.subr.mxu0 0.0
    %545 = vmatpush1.msra.mxu0 0.0
    %546 = vmatprep.subr.mxu0 0.0
    %547 = vmatpush1.msra.mxu0 0.0
    %548 = vmatprep.subr.mxu0 0.0
    %549 = vmatpush1.msra.mxu0 0.0
    %550 = vmatprep.subr.mxu0 0.0
    %551 = vmatpush1.msra.mxu0 0.0
    %552 = vmatprep.subr.mxu0 0.0
    %553 = vmatpush1.msra.mxu0 0.0
    %554 = vmatprep.mubr.f32.mxu0 0.0
    %555 = vmatmul.mubr.f32.gmra.mrb[0].mxu0 %v479
    %v556 = vpop.f32.mrb[0].mxu0
    %v557 = vadd.f32 0.0, %v556
    %v558 = vpop.f32.mrb[0].mxu0
    %559 = vmatprep.mubr.f32.mxu0 0.0
    %560 = vmatmul.mubr.f32.gmra.mrb[0].mxu0 %v482
    %v561 = vpop.f32.mrb[0].mxu0
    %v562 = vadd.f32 0.0, %v561
    %v563 = vpop.f32.mrb[0].mxu0
    %564 = vmatprep.mubr.f32.mxu0 0.0
    %565 = vmatmul.mubr.f32.gmra.mrb[0].mxu0 %v485
    %v566 = vpop.f32.mrb[0].mxu0
    %v567 = vadd.f32 0.0, %v566
    %v568 = vpop.f32.mrb[0].mxu0
    %569 = vmatprep.mubr.f32.mxu0 0.0
    %570 = vmatmul.mubr.f32.gmra.mrb[0].mxu0 %v488
    %v571 = vpop.f32.mrb[0].mxu0
    %v572 = vadd.f32 0.0, %v571
    %v573 = vpop.f32.mrb[0].mxu0
    %574 = vdwg.mxu0
    %v575 = vpack.c.bf16 %v562, %v557
    %v576 = vpack.c.bf16 %v572, %v567
    %v577 = vpack.c.bf16 %v107, %v106
    %v578 = vpack.c.bf16 %v109, %v108
    %v580 = vsel %vm477, %v209, 0
    %v583 = vsel %vm477, %v210, 0
    %v586 = vsel %vm477, %v211, 0
    %v589 = vsel %vm477, %v212, 0
    %591 = vmatprep.subr.mxu0 0.0
    %592 = vmatpush1.msra.mxu0 %v106
    %593 = vmatprep.subr.mxu0 0.0
    %594 = vmatpush1.msra.mxu0 %v107
    %595 = vmatprep.subr.mxu0 0.0
    %596 = vmatpush1.msra.mxu0 %v108
    %597 = vmatprep.subr.mxu0 0.0
    %598 = vmatpush1.msra.mxu0 %v109
    %599 = vmatprep.subr.mxu0 0.0
    %600 = vmatpush1.msra.mxu0 0.0
    %601 = vmatprep.subr.mxu0 0.0
    %602 = vmatpush1.msra.mxu0 0.0
    %603 = vmatprep.subr.mxu0 0.0
    %604 = vmatpush1.msra.mxu0 0.0
    %605 = vmatprep.subr.mxu0 0.0
    %606 = vmatpush1.msra.mxu0 0.0
    %607 = vmatprep.subr.mxu0 0.0
    %608 = vmatpush1.msra.mxu0 0.0
    %609 = vmatprep.subr.mxu0 0.0
    %610 = vmatpush1.msra.mxu0 0.0
    %611 = vmatprep.subr.mxu0 0.0
    %612 = vmatpush1.msra.mxu0 0.0
    %613 = vmatprep.subr.mxu0 0.0
    %614 = vmatpush1.msra.mxu0 0.0
    %615 = vmatprep.subr.mxu0 0.0
    %616 = vmatpush1.msra.mxu0 0.0
    %617 = vmatprep.subr.mxu0 0.0
    %618 = vmatpush1.msra.mxu0 0.0
    %619 = vmatprep.subr.mxu0 0.0
    %620 = vmatpush1.msra.mxu0 0.0
    %621 = vmatprep.subr.mxu0 0.0
    %622 = vmatpush1.msra.mxu0 0.0
    %623 = vmatprep.subr.mxu0 0.0
    %624 = vmatpush1.msra.mxu0 0.0
    %625 = vmatprep.subr.mxu0 0.0
    %626 = vmatpush1.msra.mxu0 0.0
    %627 = vmatprep.subr.mxu0 0.0
    %628 = vmatpush1.msra.mxu0 0.0
    %629 = vmatprep.subr.mxu0 0.0
    %630 = vmatpush1.msra.mxu0 0.0
    %631 = vmatprep.subr.mxu0 0.0
    %632 = vmatpush1.msra.mxu0 0.0
    %633 = vmatprep.subr.mxu0 0.0
    %634 = vmatpush1.msra.mxu0 0.0
    %635 = vmatprep.subr.mxu0 0.0
    %636 = vmatpush1.msra.mxu0 0.0
    %637 = vmatprep.subr.mxu0 0.0
    %638 = vmatpush1.msra.mxu0 0.0
    %639 = vmatprep.subr.mxu0 0.0
    %640 = vmatpush1.msra.mxu0 0.0
    %641 = vmatprep.subr.mxu0 0.0
    %642 = vmatpush1.msra.mxu0 0.0
    %643 = vmatprep.subr.mxu0 0.0
    %644 = vmatpush1.msra.mxu0 0.0
    %645 = vmatprep.subr.mxu0 0.0
    %646 = vmatpush1.msra.mxu0 0.0
    %647 = vmatprep.subr.mxu0 0.0
    %648 = vmatpush1.msra.mxu0 0.0
    %649 = vmatprep.subr.mxu0 0.0
    %650 = vmatpush1.msra.mxu0 0.0
    %651 = vmatprep.subr.mxu0 0.0
    %652 = vmatpush1.msra.mxu0 0.0
    %653 = vmatprep.subr.mxu0 0.0
    %654 = vmatpush1.msra.mxu0 0.0
    %655 = vmatprep.mubr.f32.mxu0 0.0
    %656 = vmatmul.mubr.f32.gmra.mrb[0].mxu0 %v580
    %v657 = vpop.f32.mrb[0].mxu0
    %v658 = vadd.f32 0.0, %v657
    %v659 = vpop.f32.mrb[0].mxu0
    %660 = vmatprep.mubr.f32.mxu0 0.0
    %661 = vmatmul.mubr.f32.gmra.mrb[0].mxu0 %v583
    %v662 = vpop.f32.mrb[0].mxu0
    %v663 = vadd.f32 0.0, %v662
    %v664 = vpop.f32.mrb[0].mxu0
    %665 = vmatprep.mubr.f32.mxu0 0.0
    %666 = vmatmul.mubr.f32.gmra.mrb[0].mxu0 %v586
    %v667 = vpop.f32.mrb[0].mxu0
    %v668 = vadd.f32 0.0, %v667
    %v669 = vpop.f32.mrb[0].mxu0
    %670 = vmatprep.mubr.f32.mxu0 0.0
    %671 = vmatmul.mubr.f32.gmra.mrb[0].mxu0 %v589
    %v672 = vpop.f32.mrb[0].mxu0
    %v673 = vadd.f32 0.0, %v672
    %v674 = vpop.f32.mrb[0].mxu0
    %675 = vdwg.mxu0
    %v676 = vpack.c.bf16 %v663, %v658
    %v677 = vpack.c.bf16 %v673, %v668
    %v678 = vld [vmem:[%s1] sm:$0xf]
    %v679 = vld [vmem:[%s1 + $0x4] sm:$0xf]
    %v680 = vld [vmem:[%s1 + $0x8] sm:$0xf]
    %v681 = vld [vmem:[%s1 + $0xc] sm:$0xf]
    %v682 = vld [vmem:[%s1 + $0x10] sm:$0xf]
    %v683 = vld [vmem:[%s1 + $0x14] sm:$0xf]
    %v684 = vld [vmem:[%s1 + $0x18] sm:$0xf]
    %v685 = vld [vmem:[%s1 + $0x1c] sm:$0xf]
    %s686 = scalar_lea.vmem %s1, 32
    %v687 = vld [vmem:[%s686] sm:$0xf]
    %v688 = vld [vmem:[%s686 + $0x4] sm:$0xf]
    %v689 = vld [vmem:[%s686 + $0x8] sm:$0xf]
    %v690 = vld [vmem:[%s686 + $0xc] sm:$0xf]
    %v691 = vld [vmem:[%s686 + $0x10] sm:$0xf]
    %v692 = vld [vmem:[%s686 + $0x14] sm:$0xf]
    %v693 = vld [vmem:[%s686 + $0x18] sm:$0xf]
    %v694 = vld [vmem:[%s686 + $0x1c] sm:$0xf]
    %v703 = vunpack.c.l.b16 %v687
    %v704 = vunpack.c.l.b16 %v688
    %v705 = vunpack.c.l.b16 %v689
    %v706 = vunpack.c.l.b16 %v690
    %v707 = vunpack.c.l.b16 %v691
    %v708 = vunpack.c.l.b16 %v692
    %v709 = vunpack.c.l.b16 %v693
    %v710 = vunpack.c.l.b16 %v694
    %v711 = vpack.c.b16 %v704, %v703
    %v712 = vpack.c.b16 %v706, %v705
    %v713 = vpack.c.b16 %v708, %v707
    %v714 = vpack.c.b16 %v710, %v709
    %vm719 = vcmask 523264
    %v721 = vsel %vm719, %v577, 0
    %v724 = vsel %vm719, %v578, 0
    %726 = vmatprep.subr.bf16.mxu0 0
    %727 = vmatpush1.bf16.msra.mxu0 %v711
    %728 = vmatprep.subr.bf16.mxu0 0
    %729 = vmatpush1.bf16.msra.mxu0 %v712
    %730 = vmatprep.subr.bf16.mxu0 0
    %731 = vmatpush1.bf16.msra.mxu0 %v713
    %732 = vmatprep.subr.bf16.mxu0 0
    %733 = vmatpush1.bf16.msra.mxu0 %v714
    %734 = vmatprep.subr.bf16.mxu0 0
    %735 = vmatpush1.bf16.msra.mxu0 0
    %736 = vmatprep.subr.bf16.mxu0 0
    %737 = vmatpush1.bf16.msra.mxu0 0
    %738 = vmatprep.subr.bf16.mxu0 0
    %739 = vmatpush1.bf16.msra.mxu0 0
    %740 = vmatprep.subr.bf16.mxu0 0
    %741 = vmatpush1.bf16.msra.mxu0 0
    %742 = vmatprep.subr.bf16.mxu0 0
    %743 = vmatpush1.bf16.msra.mxu0 0
    %744 = vmatprep.subr.bf16.mxu0 0
    %745 = vmatpush1.bf16.msra.mxu0 0
    %746 = vmatprep.subr.bf16.mxu0 0
    %747 = vmatpush1.bf16.msra.mxu0 0
    %748 = vmatprep.subr.bf16.mxu0 0
    %749 = vmatpush1.bf16.msra.mxu0 0
    %750 = vmatprep.subr.bf16.mxu0 0
    %751 = vmatpush1.bf16.msra.mxu0 0
    %752 = vmatprep.subr.bf16.mxu0 0
    %753 = vmatpush1.bf16.msra.mxu0 0
    %754 = vmatprep.subr.bf16.mxu0 0
    %755 = vmatpush1.bf16.msra.mxu0 0
    %756 = vmatprep.subr.bf16.mxu0 0
    %757 = vmatpush1.bf16.msra.mxu0 0
    %758 = vmatprep.mubr.bf16.mxu0 0
    %759 = vmatmul.mubr.bf16.gmra.mrb[0].mxu0 %v721
    %v760 = vpop.f32.mrb[0].mxu0
    %v761 = vadd.f32 0.0, %v760
    %v762 = vpop.f32.mrb[0].mxu0
    %v763 = vpop.f32.mrb[0].mxu0
    %v764 = vadd.f32 0.0, %v763
    %v765 = vpop.f32.mrb[0].mxu0
    %766 = vmatprep.mubr.bf16.mxu0 0
    %767 = vmatmul.mubr.bf16.gmra.mrb[0].mxu0 %v724
    %v768 = vpop.f32.mrb[0].mxu0
    %v769 = vadd.f32 0.0, %v768
    %v770 = vpop.f32.mrb[0].mxu0
    %v771 = vpop.f32.mrb[0].mxu0
    %v772 = vadd.f32 0.0, %v771
    %v773 = vpop.f32.mrb[0].mxu0
    %774 = vdwg.mxu0
    %v783 = vunpack.c.l.b16 %v678
    %v784 = vunpack.c.l.b16 %v679
    %v785 = vunpack.c.l.b16 %v680
    %v786 = vunpack.c.l.b16 %v681
    %v787 = vunpack.c.l.b16 %v682
    %v788 = vunpack.c.l.b16 %v683
    %v789 = vunpack.c.l.b16 %v684
    %v790 = vunpack.c.l.b16 %v685
    %v791 = vpack.c.b16 %v784, %v783
    %v792 = vpack.c.b16 %v786, %v785
    %v793 = vpack.c.b16 %v788, %v787
    %v794 = vpack.c.b16 %v790, %v789
    %v800 = vsel %vm719, %v575, 0
    %v803 = vsel %vm719, %v576, 0
    %805 = vmatprep.subr.bf16.mxu0 0
    %806 = vmatpush1.bf16.msra.mxu0 %v791
    %807 = vmatprep.subr.bf16.mxu0 0
    %808 = vmatpush1.bf16.msra.mxu0 %v792
    %809 = vmatprep.subr.bf16.mxu0 0
    %810 = vmatpush1.bf16.msra.mxu0 %v793
    %811 = vmatprep.subr.bf16.mxu0 0
    %812 = vmatpush1.bf16.msra.mxu0 %v794
    %813 = vmatprep.subr.bf16.mxu0 0
    %814 = vmatpush1.bf16.msra.mxu0 0
    %815 = vmatprep.subr.bf16.mxu0 0
    %816 = vmatpush1.bf16.msra.mxu0 0
    %817 = vmatprep.subr.bf16.mxu0 0
    %818 = vmatpush1.bf16.msra.mxu0 0
    %819 = vmatprep.subr.bf16.mxu0 0
    %820 = vmatpush1.bf16.msra.mxu0 0
    %821 = vmatprep.subr.bf16.mxu0 0
    %822 = vmatpush1.bf16.msra.mxu0 0
    %823 = vmatprep.subr.bf16.mxu0 0
    %824 = vmatpush1.bf16.msra.mxu0 0
    %825 = vmatprep.subr.bf16.mxu0 0
    %826 = vmatpush1.bf16.msra.mxu0 0
    %827 = vmatprep.subr.bf16.mxu0 0
    %828 = vmatpush1.bf16.msra.mxu0 0
    %829 = vmatprep.subr.bf16.mxu0 0
    %830 = vmatpush1.bf16.msra.mxu0 0
    %831 = vmatprep.subr.bf16.mxu0 0
    %832 = vmatpush1.bf16.msra.mxu0 0
    %833 = vmatprep.subr.bf16.mxu0 0
    %834 = vmatpush1.bf16.msra.mxu0 0
    %835 = vmatprep.subr.bf16.mxu0 0
    %836 = vmatpush1.bf16.msra.mxu0 0
    %837 = vmatprep.mubr.bf16.mxu0 0
    %838 = vmatmul.mubr.bf16.gmra.mrb[0].mxu0 %v800
    %v839 = vpop.f32.mrb[0].mxu0
    %v840 = vadd.f32 %v761, %v839
    %v841 = vpop.f32.mrb[0].mxu0
    %v842 = vpop.f32.mrb[0].mxu0
    %v843 = vadd.f32 %v764, %v842
    %v844 = vpop.f32.mrb[0].mxu0
    %845 = vmatprep.mubr.bf16.mxu0 0
    %846 = vmatmul.mubr.bf16.gmra.mrb[0].mxu0 %v803
    %v847 = vpop.f32.mrb[0].mxu0
    %v848 = vadd.f32 %v769, %v847
    %v849 = vpop.f32.mrb[0].mxu0
    %v850 = vpop.f32.mrb[0].mxu0
    %v851 = vadd.f32 %v772, %v850
    %v852 = vpop.f32.mrb[0].mxu0
    %853 = vdwg.mxu0
    %s854 = scalar_lea.vmem %s1, 64
    %v855 = vld [vmem:[%s854] sm:$0xf]
    %v856 = vld [vmem:[%s854 + $0x4] sm:$0xf]
    %v857 = vld [vmem:[%s854 + $0x8] sm:$0xf]
    %v858 = vld [vmem:[%s854 + $0xc] sm:$0xf]
    %v859 = vld [vmem:[%s854 + $0x10] sm:$0xf]
    %v860 = vld [vmem:[%s854 + $0x14] sm:$0xf]
    %v861 = vld [vmem:[%s854 + $0x18] sm:$0xf]
    %v862 = vld [vmem:[%s854 + $0x1c] sm:$0xf]
    %v871 = vunpack.c.l.b16 %v855
    %v872 = vunpack.c.l.b16 %v856
    %v873 = vunpack.c.l.b16 %v857
    %v874 = vunpack.c.l.b16 %v858
    %v875 = vunpack.c.l.b16 %v859
    %v876 = vunpack.c.l.b16 %v860
    %v877 = vunpack.c.l.b16 %v861
    %v878 = vunpack.c.l.b16 %v862
    %v879 = vpack.c.b16 %v872, %v871
    %v880 = vpack.c.b16 %v874, %v873
    %v881 = vpack.c.b16 %v876, %v875
    %v882 = vpack.c.b16 %v878, %v877
    %v888 = vsel %vm719, %v676, 0
    %v891 = vsel %vm719, %v677, 0
    %893 = vmatprep.subr.bf16.mxu0 0
    %894 = vmatpush1.bf16.msra.mxu0 %v879
    %895 = vmatprep.subr.bf16.mxu0 0
    %896 = vmatpush1.bf16.msra.mxu0 %v880
    %897 = vmatprep.subr.bf16.mxu0 0
    %898 = vmatpush1.bf16.msra.mxu0 %v881
    %899 = vmatprep.subr.bf16.mxu0 0
    %900 = vmatpush1.bf16.msra.mxu0 %v882
    %901 = vmatprep.subr.bf16.mxu0 0
    %902 = vmatpush1.bf16.msra.mxu0 0
    %903 = vmatprep.subr.bf16.mxu0 0
    %904 = vmatpush1.bf16.msra.mxu0 0
    %905 = vmatprep.subr.bf16.mxu0 0
    %906 = vmatpush1.bf16.msra.mxu0 0
    %907 = vmatprep.subr.bf16.mxu0 0
    %908 = vmatpush1.bf16.msra.mxu0 0
    %909 = vmatprep.subr.bf16.mxu0 0
    %910 = vmatpush1.bf16.msra.mxu0 0
    %911 = vmatprep.subr.bf16.mxu0 0
    %912 = vmatpush1.bf16.msra.mxu0 0
    %913 = vmatprep.subr.bf16.mxu0 0
    %914 = vmatpush1.bf16.msra.mxu0 0
    %915 = vmatprep.subr.bf16.mxu0 0
    %916 = vmatpush1.bf16.msra.mxu0 0
    %917 = vmatprep.subr.bf16.mxu0 0
    %918 = vmatpush1.bf16.msra.mxu0 0
    %919 = vmatprep.subr.bf16.mxu0 0
    %920 = vmatpush1.bf16.msra.mxu0 0
    %921 = vmatprep.subr.bf16.mxu0 0
    %922 = vmatpush1.bf16.msra.mxu0 0
    %923 = vmatprep.subr.bf16.mxu0 0
    %924 = vmatpush1.bf16.msra.mxu0 0
    %925 = vmatprep.mubr.bf16.mxu0 0
    %926 = vmatmul.mubr.bf16.gmra.mrb[0].mxu0 %v888
    %v927 = vpop.f32.mrb[0].mxu0
    %v928 = vadd.f32 0.0, %v927
    %v929 = vpop.f32.mrb[0].mxu0
    %v930 = vpop.f32.mrb[0].mxu0
    %v931 = vadd.f32 0.0, %v930
    %v932 = vpop.f32.mrb[0].mxu0
    %933 = vmatprep.mubr.bf16.mxu0 0
    %934 = vmatmul.mubr.bf16.gmra.mrb[0].mxu0 %v891
    %v935 = vpop.f32.mrb[0].mxu0
    %v936 = vadd.f32 0.0, %v935
    %v937 = vpop.f32.mrb[0].mxu0
    %v938 = vpop.f32.mrb[0].mxu0
    %v939 = vadd.f32 0.0, %v938
    %v940 = vpop.f32.mrb[0].mxu0
    %941 = vdwg.mxu0
    %v942 = vadd.f32 %v840, %v928
    %v943 = vadd.f32 %v843, %v931
    %v944 = vadd.f32 %v848, %v936
    %v945 = vadd.f32 %v851, %v939
    %v946 = vld [vmem:[%s2] sm:$0x1]
    %v947 = vlaneseq
    %v948 = vshrl.u32 %v947, 7
    %v949 = vsub.s32 0, %v948
    %v950 = vrot.slane %v946, %v949
    %v951 = vadd.f32 %v942, %v950
    %v952 = vadd.f32 %v943, %v950
    %v953 = vadd.f32 %v944, %v950
    %v954 = vadd.f32 %v945, %v950
    %v955 = vadd.f32 %v951, %v952
    %v956 = vadd.f32 %v955, %v953
    %v957 = vadd.f32 %v956, %v954
    %v958 = vrot.slane %v957, 4
    %v959 = vadd.f32 %v957, %v958
    %v960 = vrot.slane %v959, 2
    %v961 = vadd.f32 %v959, %v960
    %v962 = vrot.slane %v961, 1
    %v963 = vadd.f32 %v961, %v962
    %964 = vmatprep.subr.mxu0 0.0
    %965 = vmatpush1.msra.mxu0 %v461
    %966 = vmatprep.subr.mxu0 0.0
    %967 = vmatpush1.msra.mxu0 %v462
    %968 = vmatprep.subr.mxu0 0.0
    %969 = vmatpush1.msra.mxu0 %v463
    %970 = vmatprep.subr.mxu0 0.0
    %971 = vmatpush1.msra.mxu0 %v464
    %972 = vmatprep.subr.mxu0 0.0
    %973 = vmatpush1.msra.mxu0 %v465
    %974 = vmatprep.subr.mxu0 0.0
    %975 = vmatpush1.msra.mxu0 %v466
    %976 = vmatprep.subr.mxu0 0.0
    %977 = vmatpush1.msra.mxu0 %v467
    %978 = vmatprep.subr.mxu0 0.0
    %979 = vmatpush1.msra.mxu0 %v468
    %980 = vmatprep.subr.mxu0 0.0
    %981 = vmatpush1.msra.mxu0 %v469
    %982 = vmatprep.subr.mxu0 0.0
    %983 = vmatpush1.msra.mxu0 %v470
    %984 = vmatprep.subr.mxu0 0.0
    %985 = vmatpush1.msra.mxu0 %v471
    %986 = vmatprep.subr.mxu0 0.0
    %987 = vmatpush1.msra.mxu0 %v472
    %988 = vmatprep.subr.mxu0 0.0
    %989 = vmatpush1.msra.mxu0 %v473
    %990 = vmatprep.subr.mxu0 0.0
    %991 = vmatpush1.msra.mxu0 %v474
    %992 = vmatprep.subr.mxu0 0.0
    %993 = vmatpush1.msra.mxu0 %v475
    %994 = vmatprep.subr.mxu0 0.0
    %995 = vmatpush1.msra.mxu0 %v476
    %996 = vmatprep.subr.mxu0 0.0
    %997 = vmatpush1.msra.mxu0 0.0
    %998 = vmatprep.subr.mxu0 0.0
    %999 = vmatpush1.msra.mxu0 0.0
    %1000 = vmatprep.subr.mxu0 0.0
    %1001 = vmatpush1.msra.mxu0 0.0
    %1002 = vmatprep.subr.mxu0 0.0
    %1003 = vmatpush1.msra.mxu0 0.0
    %1004 = vmatprep.subr.mxu0 0.0
    %1005 = vmatpush1.msra.mxu0 0.0
    %1006 = vmatprep.subr.mxu0 0.0
    %1007 = vmatpush1.msra.mxu0 0.0
    %1008 = vmatprep.subr.mxu0 0.0
    %1009 = vmatpush1.msra.mxu0 0.0
    %1010 = vmatprep.subr.mxu0 0.0
    %1011 = vmatpush1.msra.mxu0 0.0
    %1012 = vmatprep.subr.mxu0 0.0
    %1013 = vmatpush1.msra.mxu0 0.0
    %1014 = vmatprep.subr.mxu0 0.0
    %1015 = vmatpush1.msra.mxu0 0.0
    %1016 = vmatprep.subr.mxu0 0.0
    %1017 = vmatpush1.msra.mxu0 0.0
    %1018 = vmatprep.subr.mxu0 0.0
    %1019 = vmatpush1.msra.mxu0 0.0
    %1020 = vmatprep.subr.mxu0 0.0
    %1021 = vmatpush1.msra.mxu0 0.0
    %1022 = vmatprep.subr.mxu0 0.0
    %1023 = vmatpush1.msra.mxu0 0.0
    %1024 = vmatprep.subr.mxu0 0.0
    %1025 = vmatpush1.msra.mxu0 0.0
    %1026 = vmatprep.subr.mxu0 0.0
    %1027 = vmatpush1.msra.mxu0 0.0
    %1028 = vmatprep.mubr.f32.mxu0 0.0
    %1029 = vmatmul.mubr.f32.gmra.mrb[0].mxu0 %v963
    %v1030 = vpop.f32.mrb[0].mxu0
    %v1031 = vadd.f32 0.0, %v1030
    %v1032 = vpop.f32.mrb[0].mxu0
    %1033 = vdwg.mxu0
    %v1034 = vmul.f32 %v1031, 0.001953125
    %v1035 = vlaneseq
    %v1036 = vshrl.u32 %v1035, 7
    %v1037 = vsub.s32 0, %v1036
    %v1038 = vrot.slane %v1034, %v1037
    %v1039 = vsub.f32 %v951, %v1038
    %v1040 = vsub.f32 %v952, %v1038
    %v1041 = vsub.f32 %v953, %v1038
    %v1042 = vsub.f32 %v954, %v1038
    %v1043 = vmul.f32 %v1039, %v1039
    %v1044 = vmul.f32 %v1040, %v1040
    %v1045 = vmul.f32 %v1041, %v1041
    %v1046 = vmul.f32 %v1042, %v1042
    %v1047 = vadd.f32 %v1043, %v1044
    %v1048 = vadd.f32 %v1047, %v1045
    %v1049 = vadd.f32 %v1048, %v1046
    %v1050 = vrot.slane %v1049, 4
    %v1051 = vadd.f32 %v1049, %v1050
    %v1052 = vrot.slane %v1051, 2
    %v1053 = vadd.f32 %v1051, %v1052
    %v1054 = vrot.slane %v1053, 1
    %v1055 = vadd.f32 %v1053, %v1054
    %1056 = vmatprep.subr.mxu0 0.0
    %1057 = vmatpush1.msra.mxu0 %v461
    %1058 = vmatprep.subr.mxu0 0.0
    %1059 = vmatpush1.msra.mxu0 %v462
    %1060 = vmatprep.subr.mxu0 0.0
    %1061 = vmatpush1.msra.mxu0 %v463
    %1062 = vmatprep.subr.mxu0 0.0
    %1063 = vmatpush1.msra.mxu0 %v464
    %1064 = vmatprep.subr.mxu0 0.0
    %1065 = vmatpush1.msra.mxu0 %v465
    %1066 = vmatprep.subr.mxu0 0.0
    %1067 = vmatpush1.msra.mxu0 %v466
    %1068 = vmatprep.subr.mxu0 0.0
    %1069 = vmatpush1.msra.mxu0 %v467
    %1070 = vmatprep.subr.mxu0 0.0
    %1071 = vmatpush1.msra.mxu0 %v468
    %1072 = vmatprep.subr.mxu0 0.0
    %1073 = vmatpush1.msra.mxu0 %v469
    %1074 = vmatprep.subr.mxu0 0.0
    %1075 = vmatpush1.msra.mxu0 %v470
    %1076 = vmatprep.subr.mxu0 0.0
    %1077 = vmatpush1.msra.mxu0 %v471
    %1078 = vmatprep.subr.mxu0 0.0
    %1079 = vmatpush1.msra.mxu0 %v472
    %1080 = vmatprep.subr.mxu0 0.0
    %1081 = vmatpush1.msra.mxu0 %v473
    %1082 = vmatprep.subr.mxu0 0.0
    %1083 = vmatpush1.msra.mxu0 %v474
    %1084 = vmatprep.subr.mxu0 0.0
    %1085 = vmatpush1.msra.mxu0 %v475
    %1086 = vmatprep.subr.mxu0 0.0
    %1087 = vmatpush1.msra.mxu0 %v476
    %1088 = vmatprep.subr.mxu0 0.0
    %1089 = vmatpush1.msra.mxu0 0.0
    %1090 = vmatprep.subr.mxu0 0.0
    %1091 = vmatpush1.msra.mxu0 0.0
    %1092 = vmatprep.subr.mxu0 0.0
    %1093 = vmatpush1.msra.mxu0 0.0
    %1094 = vmatprep.subr.mxu0 0.0
    %1095 = vmatpush1.msra.mxu0 0.0
    %1096 = vmatprep.subr.mxu0 0.0
    %1097 = vmatpush1.msra.mxu0 0.0
    %1098 = vmatprep.subr.mxu0 0.0
    %1099 = vmatpush1.msra.mxu0 0.0
    %1100 = vmatprep.subr.mxu0 0.0
    %1101 = vmatpush1.msra.mxu0 0.0
    %1102 = vmatprep.subr.mxu0 0.0
    %1103 = vmatpush1.msra.mxu0 0.0
    %1104 = vmatprep.subr.mxu0 0.0
    %1105 = vmatpush1.msra.mxu0 0.0
    %1106 = vmatprep.subr.mxu0 0.0
    %1107 = vmatpush1.msra.mxu0 0.0
    %1108 = vmatprep.subr.mxu0 0.0
    %1109 = vmatpush1.msra.mxu0 0.0
    %1110 = vmatprep.subr.mxu0 0.0
    %1111 = vmatpush1.msra.mxu0 0.0
    %1112 = vmatprep.subr.mxu0 0.0
    %1113 = vmatpush1.msra.mxu0 0.0
    %1114 = vmatprep.subr.mxu0 0.0
    %1115 = vmatpush1.msra.mxu0 0.0
    %1116 = vmatprep.subr.mxu0 0.0
    %1117 = vmatpush1.msra.mxu0 0.0
    %1118 = vmatprep.subr.mxu0 0.0
    %1119 = vmatpush1.msra.mxu0 0.0
    %1120 = vmatprep.mubr.f32.mxu0 0.0
    %1121 = vmatmul.mubr.f32.gmra.mrb[0].mxu0 %v1055
    %v1122 = vpop.f32.mrb[0].mxu0
    %v1123 = vadd.f32 0.0, %v1122
    %v1124 = vpop.f32.mrb[0].mxu0
    %1125 = vdwg.mxu0
    %v1126 = vmul.f32 %v1123, 0.001953125
    %v1127 = vld [vmem:[%s2 + $0x1] sm:$0x1]
    %v1128 = vadd.f32 %v1126, 1e-05
    %v1129 = vrsqrt.pop %v1128
    %v1130 = vmul.f32 %v1127, %v1129
    %v1131 = vlaneseq
    %v1132 = vshrl.u32 %v1131, 7
    %v1133 = vsub.s32 0, %v1132
    %v1134 = vrot.slane %v1130, %v1133
    %v1135 = vmul.f32 %v1039, %v1134
    %v1136 = vmul.f32 %v1040, %v1134
    %v1137 = vmul.f32 %v1041, %v1134
    %v1138 = vmul.f32 %v1042, %v1134
    %v1139 = vld [vmem:[%s2 + $0x2] sm:$0x1]
    %v1140 = vlaneseq
    %v1141 = vshrl.u32 %v1140, 7
    %v1142 = vsub.s32 0, %v1141
    %v1143 = vrot.slane %v1139, %v1142
    %v1144 = vadd.f32 %v1135, %v1143
    %v1145 = vadd.f32 %v1136, %v1143
    %v1146 = vadd.f32 %v1137, %v1143
    %v1147 = vadd.f32 %v1138, %v1143
    %v1148 = vmax.f32 %v1144, 0.0
    %v1149 = vmax.f32 %v1145, 0.0
    %v1150 = vmax.f32 %v1146, 0.0
    %v1151 = vmax.f32 %v1147, 0.0
    %1152 = vmatprep.subr.mxu0 0.0
    %1153 = vmatpush1.msra.mxu0 %v1148
    %1154 = vmatprep.subr.mxu0 0.0
    %1155 = vmatpush1.msra.mxu0 %v1149
    %1156 = vmatprep.subr.mxu0 0.0
    %1157 = vmatpush1.msra.mxu0 %v1150
    %1158 = vmatprep.subr.mxu0 0.0
    %1159 = vmatpush1.msra.mxu0 %v1151
    %1160 = vmatprep.subr.mxu0 0.0
    %1161 = vmatpush1.msra.mxu0 0.0
    %1162 = vmatprep.subr.mxu0 0.0
    %1163 = vmatpush1.msra.mxu0 0.0
    %1164 = vmatprep.subr.mxu0 0.0
    %1165 = vmatpush1.msra.mxu0 0.0
    %1166 = vmatprep.subr.mxu0 0.0
    %1167 = vmatpush1.msra.mxu0 0.0
    %1168 = vmatprep.subr.mxu0 0.0
    %1169 = vmatpush1.msra.mxu0 0.0
    %1170 = vmatprep.subr.mxu0 0.0
    %1171 = vmatpush1.msra.mxu0 0.0
    %1172 = vmatprep.subr.mxu0 0.0
    %1173 = vmatpush1.msra.mxu0 0.0
    %1174 = vmatprep.subr.mxu0 0.0
    %1175 = vmatpush1.msra.mxu0 0.0
    %1176 = vmatprep.subr.mxu0 0.0
    %1177 = vmatpush1.msra.mxu0 0.0
    %1178 = vmatprep.subr.mxu0 0.0
    %1179 = vmatpush1.msra.mxu0 0.0
    %1180 = vmatprep.subr.mxu0 0.0
    %1181 = vmatpush1.msra.mxu0 0.0
    %1182 = vmatprep.subr.mxu0 0.0
    %1183 = vmatpush1.msra.mxu0 0.0
    %1184 = vmatprep.subr.mxu0 0.0
    %1185 = vmatpush1.msra.mxu0 0.0
    %1186 = vmatprep.subr.mxu0 0.0
    %1187 = vmatpush1.msra.mxu0 0.0
    %1188 = vmatprep.subr.mxu0 0.0
    %1189 = vmatpush1.msra.mxu0 0.0
    %1190 = vmatprep.subr.mxu0 0.0
    %1191 = vmatpush1.msra.mxu0 0.0
    %1192 = vmatprep.subr.mxu0 0.0
    %1193 = vmatpush1.msra.mxu0 0.0
    %1194 = vmatprep.subr.mxu0 0.0
    %1195 = vmatpush1.msra.mxu0 0.0
    %1196 = vmatprep.subr.mxu0 0.0
    %1197 = vmatpush1.msra.mxu0 0.0
    %1198 = vmatprep.subr.mxu0 0.0
    %1199 = vmatpush1.msra.mxu0 0.0
    %1200 = vmatprep.subr.mxu0 0.0
    %1201 = vmatpush1.msra.mxu0 0.0
    %1202 = vmatprep.subr.mxu0 0.0
    %1203 = vmatpush1.msra.mxu0 0.0
    %1204 = vmatprep.subr.mxu0 0.0
    %1205 = vmatpush1.msra.mxu0 0.0
    %1206 = vmatprep.subr.mxu0 0.0
    %1207 = vmatpush1.msra.mxu0 0.0
    %1208 = vmatprep.subr.mxu0 0.0
    %1209 = vmatpush1.msra.mxu0 0.0
    %1210 = vmatprep.subr.mxu0 0.0
    %1211 = vmatpush1.msra.mxu0 0.0
    %1212 = vmatprep.subr.mxu0 0.0
    %1213 = vmatpush1.msra.mxu0 0.0
    %1214 = vmatprep.subr.mxu0 0.0
    %1215 = vmatpush1.msra.mxu0 0.0
    %1216 = vmatprep.mubr.f32.mxu0 0.0
    %1217 = vmatmul.mubr.f32.gmra.mrb[0].mxu0 %v479
    %v1218 = vpop.f32.mrb[0].mxu0
    %v1219 = vadd.f32 0.0, %v1218
    %v1220 = vpop.f32.mrb[0].mxu0
    %1221 = vmatprep.mubr.f32.mxu0 0.0
    %1222 = vmatmul.mubr.f32.gmra.mrb[0].mxu0 %v482
    %v1223 = vpop.f32.mrb[0].mxu0
    %v1224 = vadd.f32 0.0, %v1223
    %v1225 = vpop.f32.mrb[0].mxu0
    %1226 = vmatprep.mubr.f32.mxu0 0.0
    %1227 = vmatmul.mubr.f32.gmra.mrb[0].mxu0 %v485
    %v1228 = vpop.f32.mrb[0].mxu0
    %v1229 = vadd.f32 0.0, %v1228
    %v1230 = vpop.f32.mrb[0].mxu0
    %1231 = vmatprep.mubr.f32.mxu0 0.0
    %1232 = vmatmul.mubr.f32.gmra.mrb[0].mxu0 %v488
    %v1233 = vpop.f32.mrb[0].mxu0
    %v1234 = vadd.f32 0.0, %v1233
    %v1235 = vpop.f32.mrb[0].mxu0
    %1236 = vdwg.mxu0
    %v1237 = vpack.c.bf16 %v1224, %v1219
    %v1238 = vpack.c.bf16 %v1234, %v1229
    %v1239 = vpack.c.bf16 %v1149, %v1148
    %v1240 = vpack.c.bf16 %v1151, %v1150
    %1241 = vmatprep.subr.mxu0 0.0
    %1242 = vmatpush1.msra.mxu0 %v1148
    %1243 = vmatprep.subr.mxu0 0.0
    %1244 = vmatpush1.msra.mxu0 %v1149
    %1245 = vmatprep.subr.mxu0 0.0
    %1246 = vmatpush1.msra.mxu0 %v1150
    %1247 = vmatprep.subr.mxu0 0.0
    %1248 = vmatpush1.msra.mxu0 %v1151
    %1249 = vmatprep.subr.mxu0 0.0
    %1250 = vmatpush1.msra.mxu0 0.0
    %1251 = vmatprep.subr.mxu0 0.0
    %1252 = vmatpush1.msra.mxu0 0.0
    %1253 = vmatprep.subr.mxu0 0.0
    %1254 = vmatpush1.msra.mxu0 0.0
    %1255 = vmatprep.subr.mxu0 0.0
    %1256 = vmatpush1.msra.mxu0 0.0
    %1257 = vmatprep.subr.mxu0 0.0
    %1258 = vmatpush1.msra.mxu0 0.0
    %1259 = vmatprep.subr.mxu0 0.0
    %1260 = vmatpush1.msra.mxu0 0.0
    %1261 = vmatprep.subr.mxu0 0.0
    %1262 = vmatpush1.msra.mxu0 0.0
    %1263 = vmatprep.subr.mxu0 0.0
    %1264 = vmatpush1.msra.mxu0 0.0
    %1265 = vmatprep.subr.mxu0 0.0
    %1266 = vmatpush1.msra.mxu0 0.0
    %1267 = vmatprep.subr.mxu0 0.0
    %1268 = vmatpush1.msra.mxu0 0.0
    %1269 = vmatprep.subr.mxu0 0.0
    %1270 = vmatpush1.msra.mxu0 0.0
    %1271 = vmatprep.subr.mxu0 0.0
    %1272 = vmatpush1.msra.mxu0 0.0
    %1273 = vmatprep.subr.mxu0 0.0
    %1274 = vmatpush1.msra.mxu0 0.0
    %1275 = vmatprep.subr.mxu0 0.0
    %1276 = vmatpush1.msra.mxu0 0.0
    %1277 = vmatprep.subr.mxu0 0.0
    %1278 = vmatpush1.msra.mxu0 0.0
    %1279 = vmatprep.subr.mxu0 0.0
    %1280 = vmatpush1.msra.mxu0 0.0
    %1281 = vmatprep.subr.mxu0 0.0
    %1282 = vmatpush1.msra.mxu0 0.0
    %1283 = vmatprep.subr.mxu0 0.0
    %1284 = vmatpush1.msra.mxu0 0.0
    %1285 = vmatprep.subr.mxu0 0.0
    %1286 = vmatpush1.msra.mxu0 0.0
    %1287 = vmatprep.subr.mxu0 0.0
    %1288 = vmatpush1.msra.mxu0 0.0
    %1289 = vmatprep.subr.mxu0 0.0
    %1290 = vmatpush1.msra.mxu0 0.0
    %1291 = vmatprep.subr.mxu0 0.0
    %1292 = vmatpush1.msra.mxu0 0.0
    %1293 = vmatprep.subr.mxu0 0.0
    %1294 = vmatpush1.msra.mxu0 0.0
    %1295 = vmatprep.subr.mxu0 0.0
    %1296 = vmatpush1.msra.mxu0 0.0
    %1297 = vmatprep.subr.mxu0 0.0
    %1298 = vmatpush1.msra.mxu0 0.0
    %1299 = vmatprep.subr.mxu0 0.0
    %1300 = vmatpush1.msra.mxu0 0.0
    %1301 = vmatprep.subr.mxu0 0.0
    %1302 = vmatpush1.msra.mxu0 0.0
    %1303 = vmatprep.subr.mxu0 0.0
    %1304 = vmatpush1.msra.mxu0 0.0
    %1305 = vmatprep.mubr.f32.mxu0 0.0
    %1306 = vmatmul.mubr.f32.gmra.mrb[0].mxu0 %v580
    %v1307 = vpop.f32.mrb[0].mxu0
    %v1308 = vadd.f32 0.0, %v1307
    %v1309 = vpop.f32.mrb[0].mxu0
    %1310 = vmatprep.mubr.f32.mxu0 0.0
    %1311 = vmatmul.mubr.f32.gmra.mrb[0].mxu0 %v583
    %v1312 = vpop.f32.mrb[0].mxu0
    %v1313 = vadd.f32 0.0, %v1312
    %v1314 = vpop.f32.mrb[0].mxu0
    %1315 = vmatprep.mubr.f32.mxu0 0.0
    %1316 = vmatmul.mubr.f32.gmra.mrb[0].mxu0 %v586
    %v1317 = vpop.f32.mrb[0].mxu0
    %v1318 = vadd.f32 0.0, %v1317
    %v1319 = vpop.f32.mrb[0].mxu0
    %1320 = vmatprep.mubr.f32.mxu0 0.0
    %1321 = vmatmul.mubr.f32.gmra.mrb[0].mxu0 %v589
    %v1322 = vpop.f32.mrb[0].mxu0
    %v1323 = vadd.f32 0.0, %v1322
    %v1324 = vpop.f32.mrb[0].mxu0
    %1325 = vdwg.mxu0
    %v1326 = vpack.c.bf16 %v1313, %v1308
    %v1327 = vpack.c.bf16 %v1323, %v1318
    %v1328 = vld [vmem:[%s3] sm:$0xf]
    %v1329 = vld [vmem:[%s3 + $0x4] sm:$0xf]
    %v1330 = vld [vmem:[%s3 + $0x8] sm:$0xf]
    %v1331 = vld [vmem:[%s3 + $0xc] sm:$0xf]
    %v1332 = vld [vmem:[%s3 + $0x10] sm:$0xf]
    %v1333 = vld [vmem:[%s3 + $0x14] sm:$0xf]
    %v1334 = vld [vmem:[%s3 + $0x18] sm:$0xf]
    %v1335 = vld [vmem:[%s3 + $0x1c] sm:$0xf]
    %v1336 = vld [vmem:[%s3 + $0x20] sm:$0xf]
    %v1337 = vld [vmem:[%s3 + $0x24] sm:$0xf]
    %v1338 = vld [vmem:[%s3 + $0x28] sm:$0xf]
    %v1339 = vld [vmem:[%s3 + $0x2c] sm:$0xf]
    %v1340 = vld [vmem:[%s3 + $0x30] sm:$0xf]
    %v1341 = vld [vmem:[%s3 + $0x34] sm:$0xf]
    %v1342 = vld [vmem:[%s3 + $0x38] sm:$0xf]
    %v1343 = vld [vmem:[%s3 + $0x3c] sm:$0xf]
    %s1344 = scalar_lea.vmem %s3, 64
    %v1345 = vld [vmem:[%s1344] sm:$0xf]
    %v1346 = vld [vmem:[%s1344 + $0x4] sm:$0xf]
    %v1347 = vld [vmem:[%s1344 + $0x8] sm:$0xf]
    %v1348 = vld [vmem:[%s1344 + $0xc] sm:$0xf]
    %v1349 = vld [vmem:[%s1344 + $0x10] sm:$0xf]
    %v1350 = vld [vmem:[%s1344 + $0x14] sm:$0xf]
    %v1351 = vld [vmem:[%s1344 + $0x18] sm:$0xf]
    %v1352 = vld [vmem:[%s1344 + $0x1c] sm:$0xf]
    %v1353 = vld [vmem:[%s1344 + $0x20] sm:$0xf]
    %v1354 = vld [vmem:[%s1344 + $0x24] sm:$0xf]
    %v1355 = vld [vmem:[%s1344 + $0x28] sm:$0xf]
    %v1356 = vld [vmem:[%s1344 + $0x2c] sm:$0xf]
    %v1357 = vld [vmem:[%s1344 + $0x30] sm:$0xf]
    %v1358 = vld [vmem:[%s1344 + $0x34] sm:$0xf]
    %v1359 = vld [vmem:[%s1344 + $0x38] sm:$0xf]
    %v1360 = vld [vmem:[%s1344 + $0x3c] sm:$0xf]
    %v1377 = vunpack.c.l.b16 %v1345
    %v1378 = vunpack.c.l.b16 %v1346
    %v1379 = vunpack.c.l.b16 %v1347
    %v1380 = vunpack.c.l.b16 %v1348
    %v1381 = vunpack.c.l.b16 %v1349
    %v1382 = vunpack.c.l.b16 %v1350
    %v1383 = vunpack.c.l.b16 %v1351
    %v1384 = vunpack.c.l.b16 %v1352
    %v1385 = vunpack.c.l.b16 %v1353
    %v1386 = vunpack.c.l.b16 %v1354
    %v1387 = vunpack.c.l.b16 %v1355
    %v1388 = vunpack.c.l.b16 %v1356
    %v1389 = vunpack.c.l.b16 %v1357
    %v1390 = vunpack.c.l.b16 %v1358
    %v1391 = vunpack.c.l.b16 %v1359
    %v1392 = vunpack.c.l.b16 %v1360
    %v1393 = vpack.c.b16 %v1378, %v1377
    %v1394 = vpack.c.b16 %v1380, %v1379
    %v1395 = vpack.c.b16 %v1382, %v1381
    %v1396 = vpack.c.b16 %v1384, %v1383
    %v1397 = vpack.c.b16 %v1386, %v1385
    %v1398 = vpack.c.b16 %v1388, %v1387
    %v1399 = vpack.c.b16 %v1390, %v1389
    %v1400 = vpack.c.b16 %v1392, %v1391
    %1409 = vmatprep.subr.bf16.mxu0 0
    %1410 = vmatpush1.bf16.msra.mxu0 %v1393
    %1411 = vmatprep.subr.bf16.mxu0 0
    %1412 = vmatpush1.bf16.msra.mxu0 %v1394
    %1413 = vmatprep.subr.bf16.mxu0 0
    %1414 = vmatpush1.bf16.msra.mxu0 %v1395
    %1415 = vmatprep.subr.bf16.mxu0 0
    %1416 = vmatpush1.bf16.msra.mxu0 %v1396
    %1417 = vmatprep.subr.bf16.mxu0 0
    %1418 = vmatpush1.bf16.msra.mxu0 %v1397
    %1419 = vmatprep.subr.bf16.mxu0 0
    %1420 = vmatpush1.bf16.msra.mxu0 %v1398
    %1421 = vmatprep.subr.bf16.mxu0 0
    %1422 = vmatpush1.bf16.msra.mxu0 %v1399
    %1423 = vmatprep.subr.bf16.mxu0 0
    %1424 = vmatpush1.bf16.msra.mxu0 %v1400
    %1425 = vmatprep.subr.bf16.mxu0 0
    %1426 = vmatpush1.bf16.msra.mxu0 0
    %1427 = vmatprep.subr.bf16.mxu0 0
    %1428 = vmatpush1.bf16.msra.mxu0 0
    %1429 = vmatprep.subr.bf16.mxu0 0
    %1430 = vmatpush1.bf16.msra.mxu0 0
    %1431 = vmatprep.subr.bf16.mxu0 0
    %1432 = vmatpush1.bf16.msra.mxu0 0
    %1433 = vmatprep.subr.bf16.mxu0 0
    %1434 = vmatpush1.bf16.msra.mxu0 0
    %1435 = vmatprep.subr.bf16.mxu0 0
    %1436 = vmatpush1.bf16.msra.mxu0 0
    %1437 = vmatprep.subr.bf16.mxu0 0
    %1438 = vmatpush1.bf16.msra.mxu0 0
    %1439 = vmatprep.subr.bf16.mxu0 0
    %1440 = vmatpush1.bf16.msra.mxu0 0
    %1441 = vmatprep.mubr.bf16.mxu0 0
    %1442 = vmatmul.mubr.bf16.gmra.mrb[0].mxu0 %v1239
    %v1443 = vpop.f32.mrb[0].mxu0
    %v1444 = vadd.f32 0.0, %v1443
    %v1445 = vpop.f32.mrb[0].mxu0
    %v1446 = vpop.f32.mrb[0].mxu0
    %v1447 = vadd.f32 0.0, %v1446
    %v1448 = vpop.f32.mrb[0].mxu0
    %1449 = vmatprep.mubr.bf16.mxu0 0
    %1450 = vmatmul.mubr.bf16.gmra.mrb[0].mxu0 %v1240
    %v1451 = vpop.f32.mrb[0].mxu0
    %v1452 = vadd.f32 0.0, %v1451
    %v1453 = vpop.f32.mrb[0].mxu0
    %v1454 = vpop.f32.mrb[0].mxu0
    %v1455 = vadd.f32 0.0, %v1454
    %v1456 = vpop.f32.mrb[0].mxu0
    %1457 = vdwg.mxu0
    %v1474 = vunpack.c.l.b16 %v1328
    %v1475 = vunpack.c.l.b16 %v1329
    %v1476 = vunpack.c.l.b16 %v1330
    %v1477 = vunpack.c.l.b16 %v1331
    %v1478 = vunpack.c.l.b16 %v1332
    %v1479 = vunpack.c.l.b16 %v1333
    %v1480 = vunpack.c.l.b16 %v1334
    %v1481 = vunpack.c.l.b16 %v1335
    %v1482 = vunpack.c.l.b16 %v1336
    %v1483 = vunpack.c.l.b16 %v1337
    %v1484 = vunpack.c.l.b16 %v1338
    %v1485 = vunpack.c.l.b16 %v1339
    %v1486 = vunpack.c.l.b16 %v1340
    %v1487 = vunpack.c.l.b16 %v1341
    %v1488 = vunpack.c.l.b16 %v1342
    %v1489 = vunpack.c.l.b16 %v1343
    %v1490 = vpack.c.b16 %v1475, %v1474
    %v1491 = vpack.c.b16 %v1477, %v1476
    %v1492 = vpack.c.b16 %v1479, %v1478
    %v1493 = vpack.c.b16 %v1481, %v1480
    %v1494 = vpack.c.b16 %v1483, %v1482
    %v1495 = vpack.c.b16 %v1485, %v1484
    %v1496 = vpack.c.b16 %v1487, %v1486
    %v1497 = vpack.c.b16 %v1489, %v1488
    %1506 = vmatprep.subr.bf16.mxu0 0
    %1507 = vmatpush1.bf16.msra.mxu0 %v1490
    %1508 = vmatprep.subr.bf16.mxu0 0
    %1509 = vmatpush1.bf16.msra.mxu0 %v1491
    %1510 = vmatprep.subr.bf16.mxu0 0
    %1511 = vmatpush1.bf16.msra.mxu0 %v1492
    %1512 = vmatprep.subr.bf16.mxu0 0
    %1513 = vmatpush1.bf16.msra.mxu0 %v1493
    %1514 = vmatprep.subr.bf16.mxu0 0
    %1515 = vmatpush1.bf16.msra.mxu0 %v1494
    %1516 = vmatprep.subr.bf16.mxu0 0
    %1517 = vmatpush1.bf16.msra.mxu0 %v1495
    %1518 = vmatprep.subr.bf16.mxu0 0
    %1519 = vmatpush1.bf16.msra.mxu0 %v1496
    %1520 = vmatprep.subr.bf16.mxu0 0
    %1521 = vmatpush1.bf16.msra.mxu0 %v1497
    %1522 = vmatprep.subr.bf16.mxu0 0
    %1523 = vmatpush1.bf16.msra.mxu0 0
    %1524 = vmatprep.subr.bf16.mxu0 0
    %1525 = vmatpush1.bf16.msra.mxu0 0
    %1526 = vmatprep.subr.bf16.mxu0 0
    %1527 = vmatpush1.bf16.msra.mxu0 0
    %1528 = vmatprep.subr.bf16.mxu0 0
    %1529 = vmatpush1.bf16.msra.mxu0 0
    %1530 = vmatprep.subr.bf16.mxu0 0
    %1531 = vmatpush1.bf16.msra.mxu0 0
    %1532 = vmatprep.subr.bf16.mxu0 0
    %1533 = vmatpush1.bf16.msra.mxu0 0
    %1534 = vmatprep.subr.bf16.mxu0 0
    %1535 = vmatpush1.bf16.msra.mxu0 0
    %1536 = vmatprep.subr.bf16.mxu0 0
    %1537 = vmatpush1.bf16.msra.mxu0 0
    %1538 = vmatprep.mubr.bf16.mxu0 0
    %1539 = vmatmul.mubr.bf16.gmra.mrb[0].mxu0 %v1237
    %v1540 = vpop.f32.mrb[0].mxu0
    %v1541 = vadd.f32 %v1444, %v1540
    %v1542 = vpop.f32.mrb[0].mxu0
    %v1543 = vpop.f32.mrb[0].mxu0
    %v1544 = vadd.f32 %v1447, %v1543
    %v1545 = vpop.f32.mrb[0].mxu0
    %1546 = vmatprep.mubr.bf16.mxu0 0
    %1547 = vmatmul.mubr.bf16.gmra.mrb[0].mxu0 %v1238
    %v1548 = vpop.f32.mrb[0].mxu0
    %v1549 = vadd.f32 %v1452, %v1548
    %v1550 = vpop.f32.mrb[0].mxu0
    %v1551 = vpop.f32.mrb[0].mxu0
    %v1552 = vadd.f32 %v1455, %v1551
    %v1553 = vpop.f32.mrb[0].mxu0
    %1554 = vdwg.mxu0
    %s1555 = scalar_lea.vmem %s3, 128
    %v1556 = vld [vmem:[%s1555] sm:$0xf]
    %v1557 = vld [vmem:[%s1555 + $0x4] sm:$0xf]
    %v1558 = vld [vmem:[%s1555 + $0x8] sm:$0xf]
    %v1559 = vld [vmem:[%s1555 + $0xc] sm:$0xf]
    %v1560 = vld [vmem:[%s1555 + $0x10] sm:$0xf]
    %v1561 = vld [vmem:[%s1555 + $0x14] sm:$0xf]
    %v1562 = vld [vmem:[%s1555 + $0x18] sm:$0xf]
    %v1563 = vld [vmem:[%s1555 + $0x1c] sm:$0xf]
    %v1564 = vld [vmem:[%s1555 + $0x20] sm:$0xf]
    %v1565 = vld [vmem:[%s1555 + $0x24] sm:$0xf]
    %v1566 = vld [vmem:[%s1555 + $0x28] sm:$0xf]
    %v1567 = vld [vmem:[%s1555 + $0x2c] sm:$0xf]
    %v1568 = vld [vmem:[%s1555 + $0x30] sm:$0xf]
    %v1569 = vld [vmem:[%s1555 + $0x34] sm:$0xf]
    %v1570 = vld [vmem:[%s1555 + $0x38] sm:$0xf]
    %v1571 = vld [vmem:[%s1555 + $0x3c] sm:$0xf]
    %v1588 = vunpack.c.l.b16 %v1556
    %v1589 = vunpack.c.l.b16 %v1557
    %v1590 = vunpack.c.l.b16 %v1558
    %v1591 = vunpack.c.l.b16 %v1559
    %v1592 = vunpack.c.l.b16 %v1560
    %v1593 = vunpack.c.l.b16 %v1561
    %v1594 = vunpack.c.l.b16 %v1562
    %v1595 = vunpack.c.l.b16 %v1563
    %v1596 = vunpack.c.l.b16 %v1564
    %v1597 = vunpack.c.l.b16 %v1565
    %v1598 = vunpack.c.l.b16 %v1566
    %v1599 = vunpack.c.l.b16 %v1567
    %v1600 = vunpack.c.l.b16 %v1568
    %v1601 = vunpack.c.l.b16 %v1569
    %v1602 = vunpack.c.l.b16 %v1570
    %v1603 = vunpack.c.l.b16 %v1571
    %v1604 = vpack.c.b16 %v1589, %v1588
    %v1605 = vpack.c.b16 %v1591, %v1590
    %v1606 = vpack.c.b16 %v1593, %v1592
    %v1607 = vpack.c.b16 %v1595, %v1594
    %v1608 = vpack.c.b16 %v1597, %v1596
    %v1609 = vpack.c.b16 %v1599, %v1598
    %v1610 = vpack.c.b16 %v1601, %v1600
    %v1611 = vpack.c.b16 %v1603, %v1602
    %1620 = vmatprep.subr.bf16.mxu0 0
    %1621 = vmatpush1.bf16.msra.mxu0 %v1604
    %1622 = vmatprep.subr.bf16.mxu0 0
    %1623 = vmatpush1.bf16.msra.mxu0 %v1605
    %1624 = vmatprep.subr.bf16.mxu0 0
    %1625 = vmatpush1.bf16.msra.mxu0 %v1606
    %1626 = vmatprep.subr.bf16.mxu0 0
    %1627 = vmatpush1.bf16.msra.mxu0 %v1607
    %1628 = vmatprep.subr.bf16.mxu0 0
    %1629 = vmatpush1.bf16.msra.mxu0 %v1608
    %1630 = vmatprep.subr.bf16.mxu0 0
    %1631 = vmatpush1.bf16.msra.mxu0 %v1609
    %1632 = vmatprep.subr.bf16.mxu0 0
    %1633 = vmatpush1.bf16.msra.mxu0 %v1610
    %1634 = vmatprep.subr.bf16.mxu0 0
    %1635 = vmatpush1.bf16.msra.mxu0 %v1611
    %1636 = vmatprep.subr.bf16.mxu0 0
    %1637 = vmatpush1.bf16.msra.mxu0 0
    %1638 = vmatprep.subr.bf16.mxu0 0
    %1639 = vmatpush1.bf16.msra.mxu0 0
    %1640 = vmatprep.subr.bf16.mxu0 0
    %1641 = vmatpush1.bf16.msra.mxu0 0
    %1642 = vmatprep.subr.bf16.mxu0 0
    %1643 = vmatpush1.bf16.msra.mxu0 0
    %1644 = vmatprep.subr.bf16.mxu0 0
    %1645 = vmatpush1.bf16.msra.mxu0 0
    %1646 = vmatprep.subr.bf16.mxu0 0
    %1647 = vmatpush1.bf16.msra.mxu0 0
    %1648 = vmatprep.subr.bf16.mxu0 0
    %1649 = vmatpush1.bf16.msra.mxu0 0
    %1650 = vmatprep.subr.bf16.mxu0 0
    %1651 = vmatpush1.bf16.msra.mxu0 0
    %1652 = vmatprep.mubr.bf16.mxu0 0
    %1653 = vmatmul.mubr.bf16.gmra.mrb[0].mxu0 %v1326
    %v1654 = vpop.f32.mrb[0].mxu0
    %v1655 = vadd.f32 0.0, %v1654
    %v1656 = vpop.f32.mrb[0].mxu0
    %v1657 = vpop.f32.mrb[0].mxu0
    %v1658 = vadd.f32 0.0, %v1657
    %v1659 = vpop.f32.mrb[0].mxu0
    %1660 = vmatprep.mubr.bf16.mxu0 0
    %1661 = vmatmul.mubr.bf16.gmra.mrb[0].mxu0 %v1327
    %v1662 = vpop.f32.mrb[0].mxu0
    %v1663 = vadd.f32 0.0, %v1662
    %v1664 = vpop.f32.mrb[0].mxu0
    %v1665 = vpop.f32.mrb[0].mxu0
    %v1666 = vadd.f32 0.0, %v1665
    %v1667 = vpop.f32.mrb[0].mxu0
    %1668 = vdwg.mxu0
    %v1669 = vadd.f32 %v1541, %v1655
    %v1670 = vadd.f32 %v1544, %v1658
    %v1671 = vadd.f32 %v1549, %v1663
    %v1672 = vadd.f32 %v1552, %v1666
    %v1673 = vld [vmem:[%s4] sm:$0x1]
    %v1674 = vlaneseq
    %v1675 = vshrl.u32 %v1674, 7
    %v1676 = vsub.s32 0, %v1675
    %v1677 = vrot.slane %v1673, %v1676
    %v1678 = vadd.f32 %v1669, %v1677
    %v1679 = vadd.f32 %v1670, %v1677
    %v1680 = vadd.f32 %v1671, %v1677
    %v1681 = vadd.f32 %v1672, %v1677
    %v1682 = vadd.f32 %v1678, %v1679
    %v1683 = vadd.f32 %v1682, %v1680
    %v1684 = vadd.f32 %v1683, %v1681
    %v1685 = vrot.slane %v1684, 4
    %v1686 = vadd.f32 %v1684, %v1685
    %v1687 = vrot.slane %v1686, 2
    %v1688 = vadd.f32 %v1686, %v1687
    %v1689 = vrot.slane %v1688, 1
    %v1690 = vadd.f32 %v1688, %v1689
    %1691 = vmatprep.subr.mxu0 0.0
    %1692 = vmatpush1.msra.mxu0 %v461
    %1693 = vmatprep.subr.mxu0 0.0
    %1694 = vmatpush1.msra.mxu0 %v462
    %1695 = vmatprep.subr.mxu0 0.0
    %1696 = vmatpush1.msra.mxu0 %v463
    %1697 = vmatprep.subr.mxu0 0.0
    %1698 = vmatpush1.msra.mxu0 %v464
    %1699 = vmatprep.subr.mxu0 0.0
    %1700 = vmatpush1.msra.mxu0 %v465
    %1701 = vmatprep.subr.mxu0 0.0
    %1702 = vmatpush1.msra.mxu0 %v466
    %1703 = vmatprep.subr.mxu0 0.0
    %1704 = vmatpush1.msra.mxu0 %v467
    %1705 = vmatprep.subr.mxu0 0.0
    %1706 = vmatpush1.msra.mxu0 %v468
    %1707 = vmatprep.subr.mxu0 0.0
    %1708 = vmatpush1.msra.mxu0 %v469
    %1709 = vmatprep.subr.mxu0 0.0
    %1710 = vmatpush1.msra.mxu0 %v470
    %1711 = vmatprep.subr.mxu0 0.0
    %1712 = vmatpush1.msra.mxu0 %v471
    %1713 = vmatprep.subr.mxu0 0.0
    %1714 = vmatpush1.msra.mxu0 %v472
    %1715 = vmatprep.subr.mxu0 0.0
    %1716 = vmatpush1.msra.mxu0 %v473
    %1717 = vmatprep.subr.mxu0 0.0
    %1718 = vmatpush1.msra.mxu0 %v474
    %1719 = vmatprep.subr.mxu0 0.0
    %1720 = vmatpush1.msra.mxu0 %v475
    %1721 = vmatprep.subr.mxu0 0.0
    %1722 = vmatpush1.msra.mxu0 %v476
    %1723 = vmatprep.subr.mxu0 0.0
    %1724 = vmatpush1.msra.mxu0 0.0
    %1725 = vmatprep.subr.mxu0 0.0
    %1726 = vmatpush1.msra.mxu0 0.0
    %1727 = vmatprep.subr.mxu0 0.0
    %1728 = vmatpush1.msra.mxu0 0.0
    %1729 = vmatprep.subr.mxu0 0.0
    %1730 = vmatpush1.msra.mxu0 0.0
    %1731 = vmatprep.subr.mxu0 0.0
    %1732 = vmatpush1.msra.mxu0 0.0
    %1733 = vmatprep.subr.mxu0 0.0
    %1734 = vmatpush1.msra.mxu0 0.0
    %1735 = vmatprep.subr.mxu0 0.0
    %1736 = vmatpush1.msra.mxu0 0.0
    %1737 = vmatprep.subr.mxu0 0.0
    %1738 = vmatpush1.msra.mxu0 0.0
    %1739 = vmatprep.subr.mxu0 0.0
    %1740 = vmatpush1.msra.mxu0 0.0
    %1741 = vmatprep.subr.mxu0 0.0
    %1742 = vmatpush1.msra.mxu0 0.0
    %1743 = vmatprep.subr.mxu0 0.0
    %1744 = vmatpush1.msra.mxu0 0.0
    %1745 = vmatprep.subr.mxu0 0.0
    %1746 = vmatpush1.msra.mxu0 0.0
    %1747 = vmatprep.subr.mxu0 0.0
    %1748 = vmatpush1.msra.mxu0 0.0
    %1749 = vmatprep.subr.mxu0 0.0
    %1750 = vmatpush1.msra.mxu0 0.0
    %1751 = vmatprep.subr.mxu0 0.0
    %1752 = vmatpush1.msra.mxu0 0.0
    %1753 = vmatprep.subr.mxu0 0.0
    %1754 = vmatpush1.msra.mxu0 0.0
    %1755 = vmatprep.mubr.f32.mxu0 0.0
    %1756 = vmatmul.mubr.f32.gmra.mrb[0].mxu0 %v1690
    %v1757 = vpop.f32.mrb[0].mxu0
    %v1758 = vadd.f32 0.0, %v1757
    %v1759 = vpop.f32.mrb[0].mxu0
    %1760 = vdwg.mxu0
    %v1761 = vmul.f32 %v1758, 0.001953125
    %v1762 = vlaneseq
    %v1763 = vshrl.u32 %v1762, 7
    %v1764 = vsub.s32 0, %v1763
    %v1765 = vrot.slane %v1761, %v1764
    %v1766 = vsub.f32 %v1678, %v1765
    %v1767 = vsub.f32 %v1679, %v1765
    %v1768 = vsub.f32 %v1680, %v1765
    %v1769 = vsub.f32 %v1681, %v1765
    %v1770 = vmul.f32 %v1766, %v1766
    %v1771 = vmul.f32 %v1767, %v1767
    %v1772 = vmul.f32 %v1768, %v1768
    %v1773 = vmul.f32 %v1769, %v1769
    %v1774 = vadd.f32 %v1770, %v1771
    %v1775 = vadd.f32 %v1774, %v1772
    %v1776 = vadd.f32 %v1775, %v1773
    %v1777 = vrot.slane %v1776, 4
    %v1778 = vadd.f32 %v1776, %v1777
    %v1779 = vrot.slane %v1778, 2
    %v1780 = vadd.f32 %v1778, %v1779
    %v1781 = vrot.slane %v1780, 1
    %v1782 = vadd.f32 %v1780, %v1781
    %1783 = vmatprep.subr.mxu0 0.0
    %1784 = vmatpush1.msra.mxu0 %v461
    %1785 = vmatprep.subr.mxu0 0.0
    %1786 = vmatpush1.msra.mxu0 %v462
    %1787 = vmatprep.subr.mxu0 0.0
    %1788 = vmatpush1.msra.mxu0 %v463
    %1789 = vmatprep.subr.mxu0 0.0
    %1790 = vmatpush1.msra.mxu0 %v464
    %1791 = vmatprep.subr.mxu0 0.0
    %1792 = vmatpush1.msra.mxu0 %v465
    %1793 = vmatprep.subr.mxu0 0.0
    %1794 = vmatpush1.msra.mxu0 %v466
    %1795 = vmatprep.subr.mxu0 0.0
    %1796 = vmatpush1.msra.mxu0 %v467
    %1797 = vmatprep.subr.mxu0 0.0
    %1798 = vmatpush1.msra.mxu0 %v468
    %1799 = vmatprep.subr.mxu0 0.0
    %1800 = vmatpush1.msra.mxu0 %v469
    %1801 = vmatprep.subr.mxu0 0.0
    %1802 = vmatpush1.msra.mxu0 %v470
    %1803 = vmatprep.subr.mxu0 0.0
    %1804 = vmatpush1.msra.mxu0 %v471
    %1805 = vmatprep.subr.mxu0 0.0
    %1806 = vmatpush1.msra.mxu0 %v472
    %1807 = vmatprep.subr.mxu0 0.0
    %1808 = vmatpush1.msra.mxu0 %v473
    %1809 = vmatprep.subr.mxu0 0.0
    %1810 = vmatpush1.msra.mxu0 %v474
    %1811 = vmatprep.subr.mxu0 0.0
    %1812 = vmatpush1.msra.mxu0 %v475
    %1813 = vmatprep.subr.mxu0 0.0
    %1814 = vmatpush1.msra.mxu0 %v476
    %1815 = vmatprep.subr.mxu0 0.0
    %1816 = vmatpush1.msra.mxu0 0.0
    %1817 = vmatprep.subr.mxu0 0.0
    %1818 = vmatpush1.msra.mxu0 0.0
    %1819 = vmatprep.subr.mxu0 0.0
    %1820 = vmatpush1.msra.mxu0 0.0
    %1821 = vmatprep.subr.mxu0 0.0
    %1822 = vmatpush1.msra.mxu0 0.0
    %1823 = vmatprep.subr.mxu0 0.0
    %1824 = vmatpush1.msra.mxu0 0.0
    %1825 = vmatprep.subr.mxu0 0.0
    %1826 = vmatpush1.msra.mxu0 0.0
    %1827 = vmatprep.subr.mxu0 0.0
    %1828 = vmatpush1.msra.mxu0 0.0
    %1829 = vmatprep.subr.mxu0 0.0
    %1830 = vmatpush1.msra.mxu0 0.0
    %1831 = vmatprep.subr.mxu0 0.0
    %1832 = vmatpush1.msra.mxu0 0.0
    %1833 = vmatprep.subr.mxu0 0.0
    %1834 = vmatpush1.msra.mxu0 0.0
    %1835 = vmatprep.subr.mxu0 0.0
    %1836 = vmatpush1.msra.mxu0 0.0
    %1837 = vmatprep.subr.mxu0 0.0
    %1838 = vmatpush1.msra.mxu0 0.0
    %1839 = vmatprep.subr.mxu0 0.0
    %1840 = vmatpush1.msra.mxu0 0.0
    %1841 = vmatprep.subr.mxu0 0.0
    %1842 = vmatpush1.msra.mxu0 0.0
    %1843 = vmatprep.subr.mxu0 0.0
    %1844 = vmatpush1.msra.mxu0 0.0
    %1845 = vmatprep.subr.mxu0 0.0
    %1846 = vmatpush1.msra.mxu0 0.0
    %1847 = vmatprep.mubr.f32.mxu0 0.0
    %1848 = vmatmul.mubr.f32.gmra.mrb[0].mxu0 %v1782
    %v1849 = vpop.f32.mrb[0].mxu0
    %v1850 = vadd.f32 0.0, %v1849
    %v1851 = vpop.f32.mrb[0].mxu0
    %1852 = vdwg.mxu0
    %v1853 = vmul.f32 %v1850, 0.001953125
    %v1854 = vld [vmem:[%s4 + $0x1] sm:$0x1]
    %v1855 = vadd.f32 %v1853, 1e-05
    %v1856 = vrsqrt.pop %v1855
    %v1857 = vmul.f32 %v1854, %v1856
    %v1858 = vlaneseq
    %v1859 = vshrl.u32 %v1858, 7
    %v1860 = vsub.s32 0, %v1859
    %v1861 = vrot.slane %v1857, %v1860
    %v1862 = vmul.f32 %v1766, %v1861
    %v1863 = vmul.f32 %v1767, %v1861
    %v1864 = vmul.f32 %v1768, %v1861
    %v1865 = vmul.f32 %v1769, %v1861
    %v1866 = vld [vmem:[%s4 + $0x2] sm:$0x1]
    %v1867 = vlaneseq
    %v1868 = vshrl.u32 %v1867, 7
    %v1869 = vsub.s32 0, %v1868
    %v1870 = vrot.slane %v1866, %v1869
    %v1871 = vadd.f32 %v1862, %v1870
    %v1872 = vadd.f32 %v1863, %v1870
    %v1873 = vadd.f32 %v1864, %v1870
    %v1874 = vadd.f32 %v1865, %v1870
    %v1875 = vmax.f32 %v1871, 0.0
    %v1876 = vmax.f32 %v1872, 0.0
    %v1877 = vmax.f32 %v1873, 0.0
    %v1878 = vmax.f32 %v1874, 0.0
    %1879 = vmatprep.subr.mxu0 0.0
    %1880 = vmatpush1.msra.mxu0 %v1875
    %1881 = vmatprep.subr.mxu0 0.0
    %1882 = vmatpush1.msra.mxu0 %v1876
    %1883 = vmatprep.subr.mxu0 0.0
    %1884 = vmatpush1.msra.mxu0 %v1877
    %1885 = vmatprep.subr.mxu0 0.0
    %1886 = vmatpush1.msra.mxu0 %v1878
    %1887 = vmatprep.subr.mxu0 0.0
    %1888 = vmatpush1.msra.mxu0 0.0
    %1889 = vmatprep.subr.mxu0 0.0
    %1890 = vmatpush1.msra.mxu0 0.0
    %1891 = vmatprep.subr.mxu0 0.0
    %1892 = vmatpush1.msra.mxu0 0.0
    %1893 = vmatprep.subr.mxu0 0.0
    %1894 = vmatpush1.msra.mxu0 0.0
    %1895 = vmatprep.subr.mxu0 0.0
    %1896 = vmatpush1.msra.mxu0 0.0
    %1897 = vmatprep.subr.mxu0 0.0
    %1898 = vmatpush1.msra.mxu0 0.0
    %1899 = vmatprep.subr.mxu0 0.0
    %1900 = vmatpush1.msra.mxu0 0.0
    %1901 = vmatprep.subr.mxu0 0.0
    %1902 = vmatpush1.msra.mxu0 0.0
    %1903 = vmatprep.subr.mxu0 0.0
    %1904 = vmatpush1.msra.mxu0 0.0
    %1905 = vmatprep.subr.mxu0 0.0
    %1906 = vmatpush1.msra.mxu0 0.0
    %1907 = vmatprep.subr.mxu0 0.0
    %1908 = vmatpush1.msra.mxu0 0.0
    %1909 = vmatprep.subr.mxu0 0.0
    %1910 = vmatpush1.msra.mxu0 0.0
    %1911 = vmatprep.subr.mxu0 0.0
    %1912 = vmatpush1.msra.mxu0 0.0
    %1913 = vmatprep.subr.mxu0 0.0
    %1914 = vmatpush1.msra.mxu0 0.0
    %1915 = vmatprep.subr.mxu0 0.0
    %1916 = vmatpush1.msra.mxu0 0.0
    %1917 = vmatprep.subr.mxu0 0.0
    %1918 = vmatpush1.msra.mxu0 0.0
    %1919 = vmatprep.subr.mxu0 0.0
    %1920 = vmatpush1.msra.mxu0 0.0
    %1921 = vmatprep.subr.mxu0 0.0
    %1922 = vmatpush1.msra.mxu0 0.0
    %1923 = vmatprep.subr.mxu0 0.0
    %1924 = vmatpush1.msra.mxu0 0.0
    %1925 = vmatprep.subr.mxu0 0.0
    %1926 = vmatpush1.msra.mxu0 0.0
    %1927 = vmatprep.subr.mxu0 0.0
    %1928 = vmatpush1.msra.mxu0 0.0
    %1929 = vmatprep.subr.mxu0 0.0
    %1930 = vmatpush1.msra.mxu0 0.0
    %1931 = vmatprep.subr.mxu0 0.0
    %1932 = vmatpush1.msra.mxu0 0.0
    %1933 = vmatprep.subr.mxu0 0.0
    %1934 = vmatpush1.msra.mxu0 0.0
    %1935 = vmatprep.subr.mxu0 0.0
    %1936 = vmatpush1.msra.mxu0 0.0
    %1937 = vmatprep.subr.mxu0 0.0
    %1938 = vmatpush1.msra.mxu0 0.0
    %1939 = vmatprep.subr.mxu0 0.0
    %1940 = vmatpush1.msra.mxu0 0.0
    %1941 = vmatprep.subr.mxu0 0.0
    %1942 = vmatpush1.msra.mxu0 0.0
    %1943 = vmatprep.mubr.f32.mxu0 0.0
    %1944 = vmatmul.mubr.f32.gmra.mrb[0].mxu0 %v580
    %v1945 = vpop.f32.mrb[0].mxu0
    %v1946 = vadd.f32 0.0, %v1945
    %v1947 = vpop.f32.mrb[0].mxu0
    %1948 = vmatprep.mubr.f32.mxu0 0.0
    %1949 = vmatmul.mubr.f32.gmra.mrb[0].mxu0 %v583
    %v1950 = vpop.f32.mrb[0].mxu0
    %v1951 = vadd.f32 0.0, %v1950
    %v1952 = vpop.f32.mrb[0].mxu0
    %1953 = vmatprep.mubr.f32.mxu0 0.0
    %1954 = vmatmul.mubr.f32.gmra.mrb[0].mxu0 %v586
    %v1955 = vpop.f32.mrb[0].mxu0
    %v1956 = vadd.f32 0.0, %v1955
    %v1957 = vpop.f32.mrb[0].mxu0
    %1958 = vmatprep.mubr.f32.mxu0 0.0
    %1959 = vmatmul.mubr.f32.gmra.mrb[0].mxu0 %v589
    %v1960 = vpop.f32.mrb[0].mxu0
    %v1961 = vadd.f32 0.0, %v1960
    %v1962 = vpop.f32.mrb[0].mxu0
    %1963 = vdwg.mxu0
    %v1964 = vmax.f32 %v1875, %v1946
    %v1965 = vmax.f32 %v1876, %v1951
    %v1966 = vmax.f32 %v1877, %v1956
    %v1967 = vmax.f32 %v1878, %v1961
    %v1968 = vmul.u32 %v111, 2
    %v1969 = vmul.u32 %v112, 2
    %vm1970 = vcmp.eq.s32.totalorder %v116, %v1968
    %vm1971 = vcmp.eq.s32.totalorder %v116, %v1969
    %v1972 = vsel %vm1970, 1, 0
    %v1973 = vsel %vm1971, 1, 0
    %v1974 = vcvt.s32.f32 %v1972
    %v1975 = vcvt.s32.f32 %v1973
    %v1977 = vsel %vm477, %v1974, 0
    %v1980 = vsel %vm477, %v1975, 0
    %1982 = vmatprep.subr.mxu0 0.0
    %1983 = vmatpush1.msra.mxu0 %v1964
    %1984 = vmatprep.subr.mxu0 0.0
    %1985 = vmatpush1.msra.mxu0 %v1965
    %1986 = vmatprep.subr.mxu0 0.0
    %1987 = vmatpush1.msra.mxu0 %v1966
    %1988 = vmatprep.subr.mxu0 0.0
    %1989 = vmatpush1.msra.mxu0 %v1967
    %1990 = vmatprep.subr.mxu0 0.0
    %1991 = vmatpush1.msra.mxu0 0.0
    %1992 = vmatprep.subr.mxu0 0.0
    %1993 = vmatpush1.msra.mxu0 0.0
    %1994 = vmatprep.subr.mxu0 0.0
    %1995 = vmatpush1.msra.mxu0 0.0
    %1996 = vmatprep.subr.mxu0 0.0
    %1997 = vmatpush1.msra.mxu0 0.0
    %1998 = vmatprep.subr.mxu0 0.0
    %1999 = vmatpush1.msra.mxu0 0.0
    %2000 = vmatprep.subr.mxu0 0.0
    %2001 = vmatpush1.msra.mxu0 0.0
    %2002 = vmatprep.subr.mxu0 0.0
    %2003 = vmatpush1.msra.mxu0 0.0
    %2004 = vmatprep.subr.mxu0 0.0
    %2005 = vmatpush1.msra.mxu0 0.0
    %2006 = vmatprep.subr.mxu0 0.0
    %2007 = vmatpush1.msra.mxu0 0.0
    %2008 = vmatprep.subr.mxu0 0.0
    %2009 = vmatpush1.msra.mxu0 0.0
    %2010 = vmatprep.subr.mxu0 0.0
    %2011 = vmatpush1.msra.mxu0 0.0
    %2012 = vmatprep.subr.mxu0 0.0
    %2013 = vmatpush1.msra.mxu0 0.0
    %2014 = vmatprep.subr.mxu0 0.0
    %2015 = vmatpush1.msra.mxu0 0.0
    %2016 = vmatprep.subr.mxu0 0.0
    %2017 = vmatpush1.msra.mxu0 0.0
    %2018 = vmatprep.subr.mxu0 0.0
    %2019 = vmatpush1.msra.mxu0 0.0
    %2020 = vmatprep.subr.mxu0 0.0
    %2021 = vmatpush1.msra.mxu0 0.0
    %2022 = vmatprep.subr.mxu0 0.0
    %2023 = vmatpush1.msra.mxu0 0.0
    %2024 = vmatprep.subr.mxu0 0.0
    %2025 = vmatpush1.msra.mxu0 0.0
    %2026 = vmatprep.subr.mxu0 0.0
    %2027 = vmatpush1.msra.mxu0 0.0
    %2028 = vmatprep.subr.mxu0 0.0
    %2029 = vmatpush1.msra.mxu0 0.0
    %2030 = vmatprep.subr.mxu0 0.0
    %2031 = vmatpush1.msra.mxu0 0.0
    %2032 = vmatprep.subr.mxu0 0.0
    %2033 = vmatpush1.msra.mxu0 0.0
    %2034 = vmatprep.subr.mxu0 0.0
    %2035 = vmatpush1.msra.mxu0 0.0
    %2036 = vmatprep.subr.mxu0 0.0
    %2037 = vmatpush1.msra.mxu0 0.0
    %2038 = vmatprep.subr.mxu0 0.0
    %2039 = vmatpush1.msra.mxu0 0.0
    %2040 = vmatprep.subr.mxu0 0.0
    %2041 = vmatpush1.msra.mxu0 0.0
    %2042 = vmatprep.subr.mxu0 0.0
    %2043 = vmatpush1.msra.mxu0 0.0
    %2044 = vmatprep.subr.mxu0 0.0
    %2045 = vmatpush1.msra.mxu0 0.0
    %2046 = vmatprep.mubr.f32.mxu0 0.0
    %2047 = vmatmul.mubr.f32.gmra.mrb[0].mxu0 %v1977
    %v2048 = vpop.f32.mrb[0].mxu0
    %v2049 = vadd.f32 0.0, %v2048
    %v2050 = vpop.f32.mrb[0].mxu0
    %2051 = vmatprep.mubr.f32.mxu0 0.0
    %2052 = vmatmul.mubr.f32.gmra.mrb[0].mxu0 %v1980
    %v2053 = vpop.f32.mrb[0].mxu0
    %v2054 = vadd.f32 0.0, %v2053
    %v2055 = vpop.f32.mrb[0].mxu0
    %2056 = vdwg.mxu0
    %v2057 = vmul.u32 %v116, 2
    %v2058 = vsub.s32 %v2057, %v428
    %vm2059 = vcmp.eq.s32.totalorder %v111, %v2058
    %vm2060 = vcmp.eq.s32.totalorder %v112, %v2058
    %vm2061 = vcmp.eq.s32.totalorder %v113, %v2058
    %vm2062 = vcmp.eq.s32.totalorder %v114, %v2058
    %vm2063 = vcmp.eq.s32.totalorder %v213, %v2058
    %vm2064 = vcmp.eq.s32.totalorder %v214, %v2058
    %vm2065 = vcmp.eq.s32.totalorder %v215, %v2058
    %vm2066 = vcmp.eq.s32.totalorder %v216, %v2058
    %vm2067 = vcmp.eq.s32.totalorder %v217, %v2058
    %vm2068 = vcmp.eq.s32.totalorder %v218, %v2058
    %vm2069 = vcmp.eq.s32.totalorder %v219, %v2058
    %vm2070 = vcmp.eq.s32.totalorder %v220, %v2058
    %vm2071 = vcmp.eq.s32.totalorder %v221, %v2058
    %vm2072 = vcmp.eq.s32.totalorder %v222, %v2058
    %vm2073 = vcmp.eq.s32.totalorder %v223, %v2058
    %vm2074 = vcmp.eq.s32.totalorder %v224, %v2058
    %v2075 = vsel %vm2059, 1, 0
    %v2076 = vsel %vm2060, 1, 0
    %v2077 = vsel %vm2061, 1, 0
    %v2078 = vsel %vm2062, 1, 0
    %v2079 = vsel %vm2063, 1, 0
    %v2080 = vsel %vm2064, 1, 0
    %v2081 = vsel %vm2065, 1, 0
    %v2082 = vsel %vm2066, 1, 0
    %v2083 = vsel %vm2067, 1, 0
    %v2084 = vsel %vm2068, 1, 0
    %v2085 = vsel %vm2069, 1, 0
    %v2086 = vsel %vm2070, 1, 0
    %v2087 = vsel %vm2071, 1, 0
    %v2088 = vsel %vm2072, 1, 0
    %v2089 = vsel %vm2073, 1, 0
    %v2090 = vsel %vm2074, 1, 0
    %v2091 = vcvt.s32.f32 %v2075
    %v2092 = vcvt.s32.f32 %v2076
    %v2093 = vcvt.s32.f32 %v2077
    %v2094 = vcvt.s32.f32 %v2078
    %v2095 = vcvt.s32.f32 %v2079
    %v2096 = vcvt.s32.f32 %v2080
    %v2097 = vcvt.s32.f32 %v2081
    %v2098 = vcvt.s32.f32 %v2082
    %v2099 = vcvt.s32.f32 %v2083
    %v2100 = vcvt.s32.f32 %v2084
    %v2101 = vcvt.s32.f32 %v2085
    %v2102 = vcvt.s32.f32 %v2086
    %v2103 = vcvt.s32.f32 %v2087
    %v2104 = vcvt.s32.f32 %v2088
    %v2105 = vcvt.s32.f32 %v2089
    %v2106 = vcvt.s32.f32 %v2090
    %v2107 = vadd.s32 %v2058, 8
    %vm2108 = vcmp.eq.s32.totalorder %v111, %v2107
    %vm2109 = vcmp.eq.s32.totalorder %v112, %v2107
    %vm2110 = vcmp.eq.s32.totalorder %v113, %v2107
    %vm2111 = vcmp.eq.s32.totalorder %v114, %v2107
    %vm2112 = vcmp.eq.s32.totalorder %v213, %v2107
    %vm2113 = vcmp.eq.s32.totalorder %v214, %v2107
    %vm2114 = vcmp.eq.s32.totalorder %v215, %v2107
    %vm2115 = vcmp.eq.s32.totalorder %v216, %v2107
    %vm2116 = vcmp.eq.s32.totalorder %v217, %v2107
    %vm2117 = vcmp.eq.s32.totalorder %v218, %v2107
    %vm2118 = vcmp.eq.s32.totalorder %v219, %v2107
    %vm2119 = vcmp.eq.s32.totalorder %v220, %v2107
    %vm2120 = vcmp.eq.s32.totalorder %v221, %v2107
    %vm2121 = vcmp.eq.s32.totalorder %v222, %v2107
    %vm2122 = vcmp.eq.s32.totalorder %v223, %v2107
    %vm2123 = vcmp.eq.s32.totalorder %v224, %v2107
    %v2124 = vsel %vm2108, 1, 0
    %v2125 = vsel %vm2109, 1, 0
    %v2126 = vsel %vm2110, 1, 0
    %v2127 = vsel %vm2111, 1, 0
    %v2128 = vsel %vm2112, 1, 0
    %v2129 = vsel %vm2113, 1, 0
    %v2130 = vsel %vm2114, 1, 0
    %v2131 = vsel %vm2115, 1, 0
    %v2132 = vsel %vm2116, 1, 0
    %v2133 = vsel %vm2117, 1, 0
    %v2134 = vsel %vm2118, 1, 0
    %v2135 = vsel %vm2119, 1, 0
    %v2136 = vsel %vm2120, 1, 0
    %v2137 = vsel %vm2121, 1, 0
    %v2138 = vsel %vm2122, 1, 0
    %v2139 = vsel %vm2123, 1, 0
    %v2140 = vcvt.s32.f32 %v2124
    %v2141 = vcvt.s32.f32 %v2125
    %v2142 = vcvt.s32.f32 %v2126
    %v2143 = vcvt.s32.f32 %v2127
    %v2144 = vcvt.s32.f32 %v2128
    %v2145 = vcvt.s32.f32 %v2129
    %v2146 = vcvt.s32.f32 %v2130
    %v2147 = vcvt.s32.f32 %v2131
    %v2148 = vcvt.s32.f32 %v2132
    %v2149 = vcvt.s32.f32 %v2133
    %v2150 = vcvt.s32.f32 %v2134
    %v2151 = vcvt.s32.f32 %v2135
    %v2152 = vcvt.s32.f32 %v2136
    %v2153 = vcvt.s32.f32 %v2137
    %v2154 = vcvt.s32.f32 %v2138
    %v2155 = vcvt.s32.f32 %v2139
    %2156 = vmatprep.subr.mxu0 0.0
    %2157 = vmatpush1.msra.mxu0 %v2091
    %2158 = vmatprep.subr.mxu0 0.0
    %2159 = vmatpush1.msra.mxu0 %v2092
    %2160 = vmatprep.subr.mxu0 0.0
    %2161 = vmatpush1.msra.mxu0 %v2093
    %2162 = vmatprep.subr.mxu0 0.0
    %2163 = vmatpush1.msra.mxu0 %v2094
    %2164 = vmatprep.subr.mxu0 0.0
    %2165 = vmatpush1.msra.mxu0 %v2095
    %2166 = vmatprep.subr.mxu0 0.0
    %2167 = vmatpush1.msra.mxu0 %v2096
    %2168 = vmatprep.subr.mxu0 0.0
    %2169 = vmatpush1.msra.mxu0 %v2097
    %2170 = vmatprep.subr.mxu0 0.0
    %2171 = vmatpush1.msra.mxu0 %v2098
    %2172 = vmatprep.subr.mxu0 0.0
    %2173 = vmatpush1.msra.mxu0 %v2099
    %2174 = vmatprep.subr.mxu0 0.0
    %2175 = vmatpush1.msra.mxu0 %v2100
    %2176 = vmatprep.subr.mxu0 0.0
    %2177 = vmatpush1.msra.mxu0 %v2101
    %2178 = vmatprep.subr.mxu0 0.0
    %2179 = vmatpush1.msra.mxu0 %v2102
    %2180 = vmatprep.subr.mxu0 0.0
    %2181 = vmatpush1.msra.mxu0 %v2103
    %2182 = vmatprep.subr.mxu0 0.0
    %2183 = vmatpush1.msra.mxu0 %v2104
    %2184 = vmatprep.subr.mxu0 0.0
    %2185 = vmatpush1.msra.mxu0 %v2105
    %2186 = vmatprep.subr.mxu0 0.0
    %2187 = vmatpush1.msra.mxu0 %v2106
    %2188 = vmatprep.subr.mxu0 0.0
    %2189 = vmatpush1.msra.mxu0 0.0
    %2190 = vmatprep.subr.mxu0 0.0
    %2191 = vmatpush1.msra.mxu0 0.0
    %2192 = vmatprep.subr.mxu0 0.0
    %2193 = vmatpush1.msra.mxu0 0.0
    %2194 = vmatprep.subr.mxu0 0.0
    %2195 = vmatpush1.msra.mxu0 0.0
    %2196 = vmatprep.subr.mxu0 0.0
    %2197 = vmatpush1.msra.mxu0 0.0
    %2198 = vmatprep.subr.mxu0 0.0
    %2199 = vmatpush1.msra.mxu0 0.0
    %2200 = vmatprep.subr.mxu0 0.0
    %2201 = vmatpush1.msra.mxu0 0.0
    %2202 = vmatprep.subr.mxu0 0.0
    %2203 = vmatpush1.msra.mxu0 0.0
    %2204 = vmatprep.subr.mxu0 0.0
    %2205 = vmatpush1.msra.mxu0 0.0
    %2206 = vmatprep.subr.mxu0 0.0
    %2207 = vmatpush1.msra.mxu0 0.0
    %2208 = vmatprep.subr.mxu0 0.0
    %2209 = vmatpush1.msra.mxu0 0.0
    %2210 = vmatprep.subr.mxu0 0.0
    %2211 = vmatpush1.msra.mxu0 0.0
    %2212 = vmatprep.subr.mxu0 0.0
    %2213 = vmatpush1.msra.mxu0 0.0
    %2214 = vmatprep.subr.mxu0 0.0
    %2215 = vmatpush1.msra.mxu0 0.0
    %2216 = vmatprep.subr.mxu0 0.0
    %2217 = vmatpush1.msra.mxu0 0.0
    %2218 = vmatprep.subr.mxu0 0.0
    %2219 = vmatpush1.msra.mxu0 0.0
    %2220 = vmatprep.mubr.f32.mxu0 0.0
    %2221 = vmatmul.mubr.f32.gmra.mrb[0].mxu0 %v2049
    %v2222 = vpop.f32.mrb[0].mxu0
    %v2223 = vadd.f32 0.0, %v2222
    %v2224 = vpop.f32.mrb[0].mxu0
    %2225 = vmatprep.mubr.f32.mxu0 0.0
    %2226 = vmatmul.mubr.f32.gmra.mrb[0].mxu0 %v2054
    %v2227 = vpop.f32.mrb[0].mxu0
    %v2228 = vadd.f32 0.0, %v2227
    %v2229 = vpop.f32.mrb[0].mxu0
    %2230 = vdwg.mxu0
    %2231 = vmatprep.subr.mxu0 0.0
    %2232 = vmatpush1.msra.mxu0 %v2140
    %2233 = vmatprep.subr.mxu0 0.0
    %2234 = vmatpush1.msra.mxu0 %v2141
    %2235 = vmatprep.subr.mxu0 0.0
    %2236 = vmatpush1.msra.mxu0 %v2142
    %2237 = vmatprep.subr.mxu0 0.0
    %2238 = vmatpush1.msra.mxu0 %v2143
    %2239 = vmatprep.subr.mxu0 0.0
    %2240 = vmatpush1.msra.mxu0 %v2144
    %2241 = vmatprep.subr.mxu0 0.0
    %2242 = vmatpush1.msra.mxu0 %v2145
    %2243 = vmatprep.subr.mxu0 0.0
    %2244 = vmatpush1.msra.mxu0 %v2146
    %2245 = vmatprep.subr.mxu0 0.0
    %2246 = vmatpush1.msra.mxu0 %v2147
    %2247 = vmatprep.subr.mxu0 0.0
    %2248 = vmatpush1.msra.mxu0 %v2148
    %2249 = vmatprep.subr.mxu0 0.0
    %2250 = vmatpush1.msra.mxu0 %v2149
    %2251 = vmatprep.subr.mxu0 0.0
    %2252 = vmatpush1.msra.mxu0 %v2150
    %2253 = vmatprep.subr.mxu0 0.0
    %2254 = vmatpush1.msra.mxu0 %v2151
    %2255 = vmatprep.subr.mxu0 0.0
    %2256 = vmatpush1.msra.mxu0 %v2152
    %2257 = vmatprep.subr.mxu0 0.0
    %2258 = vmatpush1.msra.mxu0 %v2153
    %2259 = vmatprep.subr.mxu0 0.0
    %2260 = vmatpush1.msra.mxu0 %v2154
    %2261 = vmatprep.subr.mxu0 0.0
    %2262 = vmatpush1.msra.mxu0 %v2155
    %2263 = vmatprep.subr.mxu0 0.0
    %2264 = vmatpush1.msra.mxu0 0.0
    %2265 = vmatprep.subr.mxu0 0.0
    %2266 = vmatpush1.msra.mxu0 0.0
    %2267 = vmatprep.subr.mxu0 0.0
    %2268 = vmatpush1.msra.mxu0 0.0
    %2269 = vmatprep.subr.mxu0 0.0
    %2270 = vmatpush1.msra.mxu0 0.0
    %2271 = vmatprep.subr.mxu0 0.0
    %2272 = vmatpush1.msra.mxu0 0.0
    %2273 = vmatprep.subr.mxu0 0.0
    %2274 = vmatpush1.msra.mxu0 0.0
    %2275 = vmatprep.subr.mxu0 0.0
    %2276 = vmatpush1.msra.mxu0 0.0
    %2277 = vmatprep.subr.mxu0 0.0
    %2278 = vmatpush1.msra.mxu0 0.0
    %2279 = vmatprep.subr.mxu0 0.0
    %2280 = vmatpush1.msra.mxu0 0.0
    %2281 = vmatprep.subr.mxu0 0.0
    %2282 = vmatpush1.msra.mxu0 0.0
    %2283 = vmatprep.subr.mxu0 0.0
    %2284 = vmatpush1.msra.mxu0 0.0
    %2285 = vmatprep.subr.mxu0 0.0
    %2286 = vmatpush1.msra.mxu0 0.0
    %2287 = vmatprep.subr.mxu0 0.0
    %2288 = vmatpush1.msra.mxu0 0.0
    %2289 = vmatprep.subr.mxu0 0.0
    %2290 = vmatpush1.msra.mxu0 0.0
    %2291 = vmatprep.subr.mxu0 0.0
    %2292 = vmatpush1.msra.mxu0 0.0
    %2293 = vmatprep.subr.mxu0 0.0
    %2294 = vmatpush1.msra.mxu0 0.0
    %2295 = vmatprep.mubr.f32.mxu0 0.0
    %2296 = vmatmul.mubr.f32.gmra.mrb[0].mxu0 %v2049
    %v2297 = vpop.f32.mrb[0].mxu0
    %v2298 = vadd.f32 0.0, %v2297
    %v2299 = vpop.f32.mrb[0].mxu0
    %2300 = vmatprep.mubr.f32.mxu0 0.0
    %2301 = vmatmul.mubr.f32.gmra.mrb[0].mxu0 %v2054
    %v2302 = vpop.f32.mrb[0].mxu0
    %v2303 = vadd.f32 0.0, %v2302
    %v2304 = vpop.f32.mrb[0].mxu0
    %2305 = vdwg.mxu0
    %v2306 = vmax.f32 %v2223, %v2298
    %v2307 = vmax.f32 %v2228, %v2303
    %vm2308 = vcmp.ne.s32.totalorder %v401, 0
    %vm2309 = vcmp.ne.s32.totalorder %v402, 0
    %vm2310 = vmand %vm121, %vm2308
    %vm2311 = vmand %vm122, %vm2309
    %v2312 = vsel %vm2310, 1, 0
    %v2313 = vsel %vm2311, 1, 0
    %v2314 = vcvt.s32.f32 %v2312
    %v2315 = vcvt.s32.f32 %v2313
    %vm2316 = vcmp.ne.s32.totalorder %v401, 7
    %vm2317 = vcmp.ne.s32.totalorder %v402, 7
    %vm2318 = vmand %vm193, %vm2316
    %vm2319 = vmand %vm194, %vm2317
    %v2320 = vsel %vm2318, 1, 0
    %v2321 = vsel %vm2319, 1, 0
    %v2322 = vcvt.s32.f32 %v2320
    %v2323 = vcvt.s32.f32 %v2321
    %vm2324 = vcmp.lt.s32.totalorder %v213, 0
    %v2325 = vsub.s32 0, %v213
    %v2326 = vsel %vm2324, %v2325, %v213
    %v2327 = vshrl.u32 %v2326, 4
    %v2328 = vand.u32 %v2326, 15
    %v2329 = vsub.s32 0, %v2328
    %v2330 = vsel %vm2324, %v2329, %v2328
    %vm2331 = vcmp.lt.s32.totalorder %v214, 0
    %v2332 = vsub.s32 0, %v214
    %v2333 = vsel %vm2331, %v2332, %v214
    %v2334 = vshrl.u32 %v2333, 4
    %v2335 = vand.u32 %v2333, 15
    %v2336 = vsub.s32 0, %v2335
    %v2337 = vsel %vm2331, %v2336, %v2335
    %vm2338 = vcmp.lt.s32.totalorder %v215, 0
    %v2339 = vsub.s32 0, %v215
    %v2340 = vsel %vm2338, %v2339, %v215
    %v2341 = vshrl.u32 %v2340, 4
    %v2342 = vand.u32 %v2340, 15
    %v2343 = vsub.s32 0, %v2342
    %v2344 = vsel %vm2338, %v2343, %v2342
    %vm2345 = vcmp.lt.s32.totalorder %v216, 0
    %v2346 = vsub.s32 0, %v216
    %v2347 = vsel %vm2345, %v2346, %v216
    %v2348 = vshrl.u32 %v2347, 4
    %v2349 = vand.u32 %v2347, 15
    %v2350 = vsub.s32 0, %v2349
    %v2351 = vsel %vm2345, %v2350, %v2349
    %vm2352 = vcmp.lt.s32.totalorder %v217, 0
    %v2353 = vsub.s32 0, %v217
    %v2354 = vsel %vm2352, %v2353, %v217
    %v2355 = vshrl.u32 %v2354, 4
    %v2356 = vand.u32 %v2354, 15
    %v2357 = vsub.s32 0, %v2356
    %v2358 = vsel %vm2352, %v2357, %v2356
    %vm2359 = vcmp.lt.s32.totalorder %v218, 0
    %v2360 = vsub.s32 0, %v218
    %v2361 = vsel %vm2359, %v2360, %v218
    %v2362 = vshrl.u32 %v2361, 4
    %v2363 = vand.u32 %v2361, 15
    %v2364 = vsub.s32 0, %v2363
    %v2365 = vsel %vm2359, %v2364, %v2363
    %vm2366 = vcmp.lt.s32.totalorder %v219, 0
    %v2367 = vsub.s32 0, %v219
    %v2368 = vsel %vm2366, %v2367, %v219
    %v2369 = vshrl.u32 %v2368, 4
    %v2370 = vand.u32 %v2368, 15
    %v2371 = vsub.s32 0, %v2370
    %v2372 = vsel %vm2366, %v2371, %v2370
    %vm2373 = vcmp.lt.s32.totalorder %v220, 0
    %v2374 = vsub.s32 0, %v220
    %v2375 = vsel %vm2373, %v2374, %v220
    %v2376 = vshrl.u32 %v2375, 4
    %v2377 = vand.u32 %v2375, 15
    %v2378 = vsub.s32 0, %v2377
    %v2379 = vsel %vm2373, %v2378, %v2377
    %vm2380 = vcmp.lt.s32.totalorder %v221, 0
    %v2381 = vsub.s32 0, %v221
    %v2382 = vsel %vm2380, %v2381, %v221
    %v2383 = vshrl.u32 %v2382, 4
    %v2384 = vand.u32 %v2382, 15
    %v2385 = vsub.s32 0, %v2384
    %v2386 = vsel %vm2380, %v2385, %v2384
    %vm2387 = vcmp.lt.s32.totalorder %v222, 0
    %v2388 = vsub.s32 0, %v222
    %v2389 = vsel %vm2387, %v2388, %v222
    %v2390 = vshrl.u32 %v2389, 4
    %v2391 = vand.u32 %v2389, 15
    %v2392 = vsub.s32 0, %v2391
    %v2393 = vsel %vm2387, %v2392, %v2391
    %vm2394 = vcmp.lt.s32.totalorder %v223, 0
    %v2395 = vsub.s32 0, %v223
    %v2396 = vsel %vm2394, %v2395, %v223
    %v2397 = vshrl.u32 %v2396, 4
    %v2398 = vand.u32 %v2396, 15
    %v2399 = vsub.s32 0, %v2398
    %v2400 = vsel %vm2394, %v2399, %v2398
    %vm2401 = vcmp.lt.s32.totalorder %v224, 0
    %v2402 = vsub.s32 0, %v224
    %v2403 = vsel %vm2401, %v2402, %v224
    %v2404 = vshrl.u32 %v2403, 4
    %v2405 = vand.u32 %v2403, 15
    %v2406 = vsub.s32 0, %v2405
    %v2407 = vsel %vm2401, %v2406, %v2405
    %vm2408 = vcmp.ne.s32.totalorder %v2330, 0
    %vm2409 = vcmp.ne.s32.totalorder %v2337, 0
    %vm2410 = vcmp.ne.s32.totalorder %v2344, 0
    %vm2411 = vcmp.ne.s32.totalorder %v2351, 0
    %vm2412 = vcmp.ne.s32.totalorder %v2358, 0
    %vm2413 = vcmp.ne.s32.totalorder %v2365, 0
    %vm2414 = vcmp.ne.s32.totalorder %v2372, 0
    %vm2415 = vcmp.ne.s32.totalorder %v2379, 0
    %vm2416 = vcmp.ne.s32.totalorder %v2386, 0
    %vm2417 = vcmp.ne.s32.totalorder %v2393, 0
    %vm2418 = vcmp.ne.s32.totalorder %v2400, 0
    %vm2419 = vcmp.ne.s32.totalorder %v2407, 0
    %vm2420 = vcmp.lt.s32.totalorder %v2330, 0
    %vm2421 = vcmp.lt.s32.totalorder %v2337, 0
    %vm2422 = vcmp.lt.s32.totalorder %v2344, 0
    %vm2423 = vcmp.lt.s32.totalorder %v2351, 0
    %vm2424 = vcmp.lt.s32.totalorder %v2358, 0
    %vm2425 = vcmp.lt.s32.totalorder %v2365, 0
    %vm2426 = vcmp.lt.s32.totalorder %v2372, 0
    %vm2427 = vcmp.lt.s32.totalorder %v2379, 0
    %vm2428 = vcmp.lt.s32.totalorder %v2386, 0
    %vm2429 = vcmp.lt.s32.totalorder %v2393, 0
    %vm2430 = vcmp.lt.s32.totalorder %v2400, 0
    %vm2431 = vcmp.lt.s32.totalorder %v2407, 0
    %vm2432 = vmand %vm2420, %vm2408
    %vm2433 = vmand %vm2421, %vm2409
    %vm2434 = vmand %vm2422, %vm2410
    %vm2435 = vmand %vm2423, %vm2411
    %vm2436 = vmand %vm2424, %vm2412
    %vm2437 = vmand %vm2425, %vm2413
    %vm2438 = vmand %vm2426, %vm2414
    %vm2439 = vmand %vm2427, %vm2415
    %vm2440 = vmand %vm2428, %vm2416
    %vm2441 = vmand %vm2429, %vm2417
    %vm2442 = vmand %vm2430, %vm2418
    %vm2443 = vmand %vm2431, %vm2419
    %v2444 = vadd.s32 %v2330, 16
    %v2445 = vadd.s32 %v2337, 16
    %v2446 = vadd.s32 %v2344, 16
    %v2447 = vadd.s32 %v2351, 16
    %v2448 = vadd.s32 %v2358, 16
    %v2449 = vadd.s32 %v2365, 16
    %v2450 = vadd.s32 %v2372, 16
    %v2451 = vadd.s32 %v2379, 16
    %v2452 = vadd.s32 %v2386, 16
    %v2453 = vadd.s32 %v2393, 16
    %v2454 = vadd.s32 %v2400, 16
    %v2455 = vadd.s32 %v2407, 16
    %v2456 = vsel %vm2432, %v2444, %v2330
    %v2457 = vsel %vm2433, %v2445, %v2337
    %v2458 = vsel %vm2434, %v2446, %v2344
    %v2459 = vsel %vm2435, %v2447, %v2351
    %v2460 = vsel %vm2436, %v2448, %v2358
    %v2461 = vsel %vm2437, %v2449, %v2365
    %v2462 = vsel %vm2438, %v2450, %v2372
    %v2463 = vsel %vm2439, %v2451, %v2379
    %v2464 = vsel %vm2440, %v2452, %v2386
    %v2465 = vsel %vm2441, %v2453, %v2393
    %v2466 = vsel %vm2442, %v2454, %v2400
    %v2467 = vsel %vm2443, %v2455, %v2407
    %vm2468 = vcmp.lt.s32.totalorder %v116, 0
    %v2469 = vsub.s32 0, %v116
    %v2470 = vsel %vm2468, %v2469, %v116
    %v2471 = vshrl.u32 %v2470, 4
    %v2472 = vand.u32 %v2470, 15
    %v2473 = vsub.s32 0, %v2472
    %v2474 = vsel %vm2468, %v2473, %v2472
    %vm2475 = vcmp.ne.s32.totalorder %v2474, 0
    %vm2476 = vcmp.lt.s32.totalorder %v2474, 0
    %vm2477 = vmand %vm2476, %vm2475
    %v2478 = vadd.s32 %v2474, 16
    %v2479 = vsel %vm2477, %v2478, %v2474
    %vm2480 = vcmp.eq.s32.totalorder %v169, %v2479
    %vm2481 = vcmp.eq.s32.totalorder %v170, %v2479
    %vm2482 = vcmp.eq.s32.totalorder %v171, %v2479
    %vm2483 = vcmp.eq.s32.totalorder %v172, %v2479
    %vm2484 = vcmp.eq.s32.totalorder %v2456, %v2479
    %vm2485 = vcmp.eq.s32.totalorder %v2457, %v2479
    %vm2486 = vcmp.eq.s32.totalorder %v2458, %v2479
    %vm2487 = vcmp.eq.s32.totalorder %v2459, %v2479
    %vm2488 = vcmp.eq.s32.totalorder %v2460, %v2479
    %vm2489 = vcmp.eq.s32.totalorder %v2461, %v2479
    %vm2490 = vcmp.eq.s32.totalorder %v2462, %v2479
    %vm2491 = vcmp.eq.s32.totalorder %v2463, %v2479
    %vm2492 = vcmp.eq.s32.totalorder %v2464, %v2479
    %vm2493 = vcmp.eq.s32.totalorder %v2465, %v2479
    %vm2494 = vcmp.eq.s32.totalorder %v2466, %v2479
    %vm2495 = vcmp.eq.s32.totalorder %v2467, %v2479
    %v2496 = vsel %vm2480, 1, 0
    %v2497 = vsel %vm2481, 1, 0
    %v2498 = vsel %vm2482, 1, 0
    %v2499 = vsel %vm2483, 1, 0
    %v2500 = vsel %vm2484, 1, 0
    %v2501 = vsel %vm2485, 1, 0
    %v2502 = vsel %vm2486, 1, 0
    %v2503 = vsel %vm2487, 1, 0
    %v2504 = vsel %vm2488, 1, 0
    %v2505 = vsel %vm2489, 1, 0
    %v2506 = vsel %vm2490, 1, 0
    %v2507 = vsel %vm2491, 1, 0
    %v2508 = vsel %vm2492, 1, 0
    %v2509 = vsel %vm2493, 1, 0
    %v2510 = vsel %vm2494, 1, 0
    %v2511 = vsel %vm2495, 1, 0
    %v2512 = vcvt.s32.f32 %v2496
    %v2513 = vcvt.s32.f32 %v2497
    %v2514 = vcvt.s32.f32 %v2498
    %v2515 = vcvt.s32.f32 %v2499
    %v2516 = vcvt.s32.f32 %v2500
    %v2517 = vcvt.s32.f32 %v2501
    %v2518 = vcvt.s32.f32 %v2502
    %v2519 = vcvt.s32.f32 %v2503
    %v2520 = vcvt.s32.f32 %v2504
    %v2521 = vcvt.s32.f32 %v2505
    %v2522 = vcvt.s32.f32 %v2506
    %v2523 = vcvt.s32.f32 %v2507
    %v2524 = vcvt.s32.f32 %v2508
    %v2525 = vcvt.s32.f32 %v2509
    %v2526 = vcvt.s32.f32 %v2510
    %v2527 = vcvt.s32.f32 %v2511
    %vm2528 = vcmask 130048
    %v2530 = vsel %vm2528, %v2314, 0
    %v2533 = vsel %vm2528, %v2315, 0
    %2535 = vmatprep.subr.mxu0 0.0
    %2536 = vmatpush1.msra.mxu0 %v2306
    %2537 = vmatprep.subr.mxu0 0.0
    %2538 = vmatpush1.msra.mxu0 %v2307
    %2539 = vmatprep.subr.mxu0 0.0
    %2540 = vmatpush1.msra.mxu0 0.0
    %2541 = vmatprep.subr.mxu0 0.0
    %2542 = vmatpush1.msra.mxu0 0.0
    %2543 = vmatprep.subr.mxu0 0.0
    %2544 = vmatpush1.msra.mxu0 0.0
    %2545 = vmatprep.subr.mxu0 0.0
    %2546 = vmatpush1.msra.mxu0 0.0
    %2547 = vmatprep.subr.mxu0 0.0
    %2548 = vmatpush1.msra.mxu0 0.0
    %2549 = vmatprep.subr.mxu0 0.0
    %2550 = vmatpush1.msra.mxu0 0.0
    %2551 = vmatprep.subr.mxu0 0.0
    %2552 = vmatpush1.msra.mxu0 0.0
    %2553 = vmatprep.subr.mxu0 0.0
    %2554 = vmatpush1.msra.mxu0 0.0
    %2555 = vmatprep.subr.mxu0 0.0
    %2556 = vmatpush1.msra.mxu0 0.0
    %2557 = vmatprep.subr.mxu0 0.0
    %2558 = vmatpush1.msra.mxu0 0.0
    %2559 = vmatprep.subr.mxu0 0.0
    %2560 = vmatpush1.msra.mxu0 0.0
    %2561 = vmatprep.subr.mxu0 0.0
    %2562 = vmatpush1.msra.mxu0 0.0
    %2563 = vmatprep.subr.mxu0 0.0
    %2564 = vmatpush1.msra.mxu0 0.0
    %2565 = vmatprep.subr.mxu0 0.0
    %2566 = vmatpush1.msra.mxu0 0.0
    %2567 = vmatprep.subr.mxu0 0.0
    %2568 = vmatpush1.msra.mxu0 0.0
    %2569 = vmatprep.subr.mxu0 0.0
    %2570 = vmatpush1.msra.mxu0 0.0
    %2571 = vmatprep.subr.mxu0 0.0
    %2572 = vmatpush1.msra.mxu0 0.0
    %2573 = vmatprep.subr.mxu0 0.0
    %2574 = vmatpush1.msra.mxu0 0.0
    %2575 = vmatprep.subr.mxu0 0.0
    %2576 = vmatpush1.msra.mxu0 0.0
    %2577 = vmatprep.subr.mxu0 0.0
    %2578 = vmatpush1.msra.mxu0 0.0
    %2579 = vmatprep.subr.mxu0 0.0
    %2580 = vmatpush1.msra.mxu0 0.0
    %2581 = vmatprep.subr.mxu0 0.0
    %2582 = vmatpush1.msra.mxu0 0.0
    %2583 = vmatprep.subr.mxu0 0.0
    %2584 = vmatpush1.msra.mxu0 0.0
    %2585 = vmatprep.subr.mxu0 0.0
    %2586 = vmatpush1.msra.mxu0 0.0
    %2587 = vmatprep.subr.mxu0 0.0
    %2588 = vmatpush1.msra.mxu0 0.0
    %2589 = vmatprep.subr.mxu0 0.0
    %2590 = vmatpush1.msra.mxu0 0.0
    %2591 = vmatprep.subr.mxu0 0.0
    %2592 = vmatpush1.msra.mxu0 0.0
    %2593 = vmatprep.subr.mxu0 0.0
    %2594 = vmatpush1.msra.mxu0 0.0
    %2595 = vmatprep.subr.mxu0 0.0
    %2596 = vmatpush1.msra.mxu0 0.0
    %2597 = vmatprep.subr.mxu0 0.0
    %2598 = vmatpush1.msra.mxu0 0.0
    %2599 = vmatprep.mubr.f32.mxu0 0.0
    %2600 = vmatmul.mubr.f32.gmra.mrb[0].mxu0 %v2530
    %v2601 = vpop.f32.mrb[0].mxu0
    %v2602 = vadd.f32 0.0, %v2601
    %v2603 = vpop.f32.mrb[0].mxu0
    %2604 = vmatprep.mubr.f32.mxu0 0.0
    %2605 = vmatmul.mubr.f32.gmra.mrb[0].mxu0 %v2533
    %v2606 = vpop.f32.mrb[0].mxu0
    %v2607 = vadd.f32 0.0, %v2606
    %v2608 = vpop.f32.mrb[0].mxu0
    %2609 = vdwg.mxu0
    %v2610 = vpack.c.bf16 %v2607, %v2602
    %v2611 = vpack.c.bf16 %v2307, %v2306
    %v2613 = vsel %vm2528, %v2322, 0
    %v2616 = vsel %vm2528, %v2323, 0
    %2618 = vmatprep.subr.mxu0 0.0
    %2619 = vmatpush1.msra.mxu0 %v2306
    %2620 = vmatprep.subr.mxu0 0.0
    %2621 = vmatpush1.msra.mxu0 %v2307
    %2622 = vmatprep.subr.mxu0 0.0
    %2623 = vmatpush1.msra.mxu0 0.0
    %2624 = vmatprep.subr.mxu0 0.0
    %2625 = vmatpush1.msra.mxu0 0.0
    %2626 = vmatprep.subr.mxu0 0.0
    %2627 = vmatpush1.msra.mxu0 0.0
    %2628 = vmatprep.subr.mxu0 0.0
    %2629 = vmatpush1.msra.mxu0 0.0
    %2630 = vmatprep.subr.mxu0 0.0
    %2631 = vmatpush1.msra.mxu0 0.0
    %2632 = vmatprep.subr.mxu0 0.0
    %2633 = vmatpush1.msra.mxu0 0.0
    %2634 = vmatprep.subr.mxu0 0.0
    %2635 = vmatpush1.msra.mxu0 0.0
    %2636 = vmatprep.subr.mxu0 0.0
    %2637 = vmatpush1.msra.mxu0 0.0
    %2638 = vmatprep.subr.mxu0 0.0
    %2639 = vmatpush1.msra.mxu0 0.0
    %2640 = vmatprep.subr.mxu0 0.0
    %2641 = vmatpush1.msra.mxu0 0.0
    %2642 = vmatprep.subr.mxu0 0.0
    %2643 = vmatpush1.msra.mxu0 0.0
    %2644 = vmatprep.subr.mxu0 0.0
    %2645 = vmatpush1.msra.mxu0 0.0
    %2646 = vmatprep.subr.mxu0 0.0
    %2647 = vmatpush1.msra.mxu0 0.0
    %2648 = vmatprep.subr.mxu0 0.0
    %2649 = vmatpush1.msra.mxu0 0.0
    %2650 = vmatprep.subr.mxu0 0.0
    %2651 = vmatpush1.msra.mxu0 0.0
    %2652 = vmatprep.subr.mxu0 0.0
    %2653 = vmatpush1.msra.mxu0 0.0
    %2654 = vmatprep.subr.mxu0 0.0
    %2655 = vmatpush1.msra.mxu0 0.0
    %2656 = vmatprep.subr.mxu0 0.0
    %2657 = vmatpush1.msra.mxu0 0.0
    %2658 = vmatprep.subr.mxu0 0.0
    %2659 = vmatpush1.msra.mxu0 0.0
    %2660 = vmatprep.subr.mxu0 0.0
    %2661 = vmatpush1.msra.mxu0 0.0
    %2662 = vmatprep.subr.mxu0 0.0
    %2663 = vmatpush1.msra.mxu0 0.0
    %2664 = vmatprep.subr.mxu0 0.0
    %2665 = vmatpush1.msra.mxu0 0.0
    %2666 = vmatprep.subr.mxu0 0.0
    %2667 = vmatpush1.msra.mxu0 0.0
    %2668 = vmatprep.subr.mxu0 0.0
    %2669 = vmatpush1.msra.mxu0 0.0
    %2670 = vmatprep.subr.mxu0 0.0
    %2671 = vmatpush1.msra.mxu0 0.0
    %2672 = vmatprep.subr.mxu0 0.0
    %2673 = vmatpush1.msra.mxu0 0.0
    %2674 = vmatprep.subr.mxu0 0.0
    %2675 = vmatpush1.msra.mxu0 0.0
    %2676 = vmatprep.subr.mxu0 0.0
    %2677 = vmatpush1.msra.mxu0 0.0
    %2678 = vmatprep.subr.mxu0 0.0
    %2679 = vmatpush1.msra.mxu0 0.0
    %2680 = vmatprep.subr.mxu0 0.0
    %2681 = vmatpush1.msra.mxu0 0.0
    %2682 = vmatprep.mubr.f32.mxu0 0.0
    %2683 = vmatmul.mubr.f32.gmra.mrb[0].mxu0 %v2613
    %v2684 = vpop.f32.mrb[0].mxu0
    %v2685 = vadd.f32 0.0, %v2684
    %v2686 = vpop.f32.mrb[0].mxu0
    %2687 = vmatprep.mubr.f32.mxu0 0.0
    %2688 = vmatmul.mubr.f32.gmra.mrb[0].mxu0 %v2616
    %v2689 = vpop.f32.mrb[0].mxu0
    %v2690 = vadd.f32 0.0, %v2689
    %v2691 = vpop.f32.mrb[0].mxu0
    %2692 = vdwg.mxu0
    %v2693 = vpack.c.bf16 %v2690, %v2685
    %v2694 = vld [vmem:[%s5] sm:$0xf]
    %v2695 = vld [vmem:[%s5 + $0x4] sm:$0xf]
    %v2696 = vld [vmem:[%s5 + $0x8] sm:$0xf]
    %v2697 = vld [vmem:[%s5 + $0xc] sm:$0xf]
    %v2698 = vld [vmem:[%s5 + $0x10] sm:$0xf]
    %v2699 = vld [vmem:[%s5 + $0x14] sm:$0xf]
    %v2700 = vld [vmem:[%s5 + $0x18] sm:$0xf]
    %v2701 = vld [vmem:[%s5 + $0x1c] sm:$0xf]
    %s2702 = scalar_lea.vmem %s5, 32
    %v2703 = vld [vmem:[%s2702] sm:$0xf]
    %v2704 = vld [vmem:[%s2702 + $0x4] sm:$0xf]
    %v2705 = vld [vmem:[%s2702 + $0x8] sm:$0xf]
    %v2706 = vld [vmem:[%s2702 + $0xc] sm:$0xf]
    %v2707 = vld [vmem:[%s2702 + $0x10] sm:$0xf]
    %v2708 = vld [vmem:[%s2702 + $0x14] sm:$0xf]
    %v2709 = vld [vmem:[%s2702 + $0x18] sm:$0xf]
    %v2710 = vld [vmem:[%s2702 + $0x1c] sm:$0xf]
    %v2719 = vunpack.c.l.b16 %v2703
    %v2720 = vunpack.c.l.b16 %v2704
    %v2721 = vunpack.c.l.b16 %v2705
    %v2722 = vunpack.c.l.b16 %v2706
    %v2723 = vunpack.c.l.b16 %v2707
    %v2724 = vunpack.c.l.b16 %v2708
    %v2725 = vunpack.c.l.b16 %v2709
    %v2726 = vunpack.c.l.b16 %v2710
    %v2727 = vpack.c.b16 %v2720, %v2719
    %v2728 = vpack.c.b16 %v2722, %v2721
    %v2729 = vpack.c.b16 %v2724, %v2723
    %v2730 = vpack.c.b16 %v2726, %v2725
    %v2736 = vsel %vm719, %v2611, 0
    %2738 = vmatprep.subr.bf16.mxu0 0
    %2739 = vmatpush1.bf16.msra.mxu0 %v2727
    %2740 = vmatprep.subr.bf16.mxu0 0
    %2741 = vmatpush1.bf16.msra.mxu0 %v2728
    %2742 = vmatprep.subr.bf16.mxu0 0
    %2743 = vmatpush1.bf16.msra.mxu0 %v2729
    %2744 = vmatprep.subr.bf16.mxu0 0
    %2745 = vmatpush1.bf16.msra.mxu0 %v2730
    %2746 = vmatprep.subr.bf16.mxu0 0
    %2747 = vmatpush1.bf16.msra.mxu0 0
    %2748 = vmatprep.subr.bf16.mxu0 0
    %2749 = vmatpush1.bf16.msra.mxu0 0
    %2750 = vmatprep.subr.bf16.mxu0 0
    %2751 = vmatpush1.bf16.msra.mxu0 0
    %2752 = vmatprep.subr.bf16.mxu0 0
    %2753 = vmatpush1.bf16.msra.mxu0 0
    %2754 = vmatprep.subr.bf16.mxu0 0
    %2755 = vmatpush1.bf16.msra.mxu0 0
    %2756 = vmatprep.subr.bf16.mxu0 0
    %2757 = vmatpush1.bf16.msra.mxu0 0
    %2758 = vmatprep.subr.bf16.mxu0 0
    %2759 = vmatpush1.bf16.msra.mxu0 0
    %2760 = vmatprep.subr.bf16.mxu0 0
    %2761 = vmatpush1.bf16.msra.mxu0 0
    %2762 = vmatprep.subr.bf16.mxu0 0
    %2763 = vmatpush1.bf16.msra.mxu0 0
    %2764 = vmatprep.subr.bf16.mxu0 0
    %2765 = vmatpush1.bf16.msra.mxu0 0
    %2766 = vmatprep.subr.bf16.mxu0 0
    %2767 = vmatpush1.bf16.msra.mxu0 0
    %2768 = vmatprep.subr.bf16.mxu0 0
    %2769 = vmatpush1.bf16.msra.mxu0 0
    %2770 = vmatprep.mubr.bf16.mxu0 0
    %2771 = vmatmul.mubr.bf16.gmra.mrb[0].mxu0 %v2736
    %v2772 = vpop.f32.mrb[0].mxu0
    %v2773 = vadd.f32 0.0, %v2772
    %v2774 = vpop.f32.mrb[0].mxu0
    %v2775 = vpop.f32.mrb[0].mxu0
    %v2776 = vadd.f32 0.0, %v2775
    %v2777 = vpop.f32.mrb[0].mxu0
    %2778 = vdwg.mxu0
    %v2787 = vunpack.c.l.b16 %v2694
    %v2788 = vunpack.c.l.b16 %v2695
    %v2789 = vunpack.c.l.b16 %v2696
    %v2790 = vunpack.c.l.b16 %v2697
    %v2791 = vunpack.c.l.b16 %v2698
    %v2792 = vunpack.c.l.b16 %v2699
    %v2793 = vunpack.c.l.b16 %v2700
    %v2794 = vunpack.c.l.b16 %v2701
    %v2795 = vpack.c.b16 %v2788, %v2787
    %v2796 = vpack.c.b16 %v2790, %v2789
    %v2797 = vpack.c.b16 %v2792, %v2791
    %v2798 = vpack.c.b16 %v2794, %v2793
    %v2804 = vsel %vm719, %v2610, 0
    %2806 = vmatprep.subr.bf16.mxu0 0
    %2807 = vmatpush1.bf16.msra.mxu0 %v2795
    %2808 = vmatprep.subr.bf16.mxu0 0
    %2809 = vmatpush1.bf16.msra.mxu0 %v2796
    %2810 = vmatprep.subr.bf16.mxu0 0
    %2811 = vmatpush1.bf16.msra.mxu0 %v2797
    %2812 = vmatprep.subr.bf16.mxu0 0
    %2813 = vmatpush1.bf16.msra.mxu0 %v2798
    %2814 = vmatprep.subr.bf16.mxu0 0
    %2815 = vmatpush1.bf16.msra.mxu0 0
    %2816 = vmatprep.subr.bf16.mxu0 0
    %2817 = vmatpush1.bf16.msra.mxu0 0
    %2818 = vmatprep.subr.bf16.mxu0 0
    %2819 = vmatpush1.bf16.msra.mxu0 0
    %2820 = vmatprep.subr.bf16.mxu0 0
    %2821 = vmatpush1.bf16.msra.mxu0 0
    %2822 = vmatprep.subr.bf16.mxu0 0
    %2823 = vmatpush1.bf16.msra.mxu0 0
    %2824 = vmatprep.subr.bf16.mxu0 0
    %2825 = vmatpush1.bf16.msra.mxu0 0
    %2826 = vmatprep.subr.bf16.mxu0 0
    %2827 = vmatpush1.bf16.msra.mxu0 0
    %2828 = vmatprep.subr.bf16.mxu0 0
    %2829 = vmatpush1.bf16.msra.mxu0 0
    %2830 = vmatprep.subr.bf16.mxu0 0
    %2831 = vmatpush1.bf16.msra.mxu0 0
    %2832 = vmatprep.subr.bf16.mxu0 0
    %2833 = vmatpush1.bf16.msra.mxu0 0
    %2834 = vmatprep.subr.bf16.mxu0 0
    %2835 = vmatpush1.bf16.msra.mxu0 0
    %2836 = vmatprep.subr.bf16.mxu0 0
    %2837 = vmatpush1.bf16.msra.mxu0 0
    %2838 = vmatprep.mubr.bf16.mxu0 0
    %2839 = vmatmul.mubr.bf16.gmra.mrb[0].mxu0 %v2804
    %v2840 = vpop.f32.mrb[0].mxu0
    %v2841 = vadd.f32 %v2773, %v2840
    %v2842 = vpop.f32.mrb[0].mxu0
    %v2843 = vpop.f32.mrb[0].mxu0
    %v2844 = vadd.f32 %v2776, %v2843
    %v2845 = vpop.f32.mrb[0].mxu0
    %2846 = vdwg.mxu0
    %s2847 = scalar_lea.vmem %s5, 64
    %v2848 = vld [vmem:[%s2847] sm:$0xf]
    %v2849 = vld [vmem:[%s2847 + $0x4] sm:$0xf]
    %v2850 = vld [vmem:[%s2847 + $0x8] sm:$0xf]
    %v2851 = vld [vmem:[%s2847 + $0xc] sm:$0xf]
    %v2852 = vld [vmem:[%s2847 + $0x10] sm:$0xf]
    %v2853 = vld [vmem:[%s2847 + $0x14] sm:$0xf]
    %v2854 = vld [vmem:[%s2847 + $0x18] sm:$0xf]
    %v2855 = vld [vmem:[%s2847 + $0x1c] sm:$0xf]
    %v2864 = vunpack.c.l.b16 %v2848
    %v2865 = vunpack.c.l.b16 %v2849
    %v2866 = vunpack.c.l.b16 %v2850
    %v2867 = vunpack.c.l.b16 %v2851
    %v2868 = vunpack.c.l.b16 %v2852
    %v2869 = vunpack.c.l.b16 %v2853
    %v2870 = vunpack.c.l.b16 %v2854
    %v2871 = vunpack.c.l.b16 %v2855
    %v2872 = vpack.c.b16 %v2865, %v2864
    %v2873 = vpack.c.b16 %v2867, %v2866
    %v2874 = vpack.c.b16 %v2869, %v2868
    %v2875 = vpack.c.b16 %v2871, %v2870
    %v2881 = vsel %vm719, %v2693, 0
    %2883 = vmatprep.subr.bf16.mxu0 0
    %2884 = vmatpush1.bf16.msra.mxu0 %v2872
    %2885 = vmatprep.subr.bf16.mxu0 0
    %2886 = vmatpush1.bf16.msra.mxu0 %v2873
    %2887 = vmatprep.subr.bf16.mxu0 0
    %2888 = vmatpush1.bf16.msra.mxu0 %v2874
    %2889 = vmatprep.subr.bf16.mxu0 0
    %2890 = vmatpush1.bf16.msra.mxu0 %v2875
    %2891 = vmatprep.subr.bf16.mxu0 0
    %2892 = vmatpush1.bf16.msra.mxu0 0
    %2893 = vmatprep.subr.bf16.mxu0 0
    %2894 = vmatpush1.bf16.msra.mxu0 0
    %2895 = vmatprep.subr.bf16.mxu0 0
    %2896 = vmatpush1.bf16.msra.mxu0 0
    %2897 = vmatprep.subr.bf16.mxu0 0
    %2898 = vmatpush1.bf16.msra.mxu0 0
    %2899 = vmatprep.subr.bf16.mxu0 0
    %2900 = vmatpush1.bf16.msra.mxu0 0
    %2901 = vmatprep.subr.bf16.mxu0 0
    %2902 = vmatpush1.bf16.msra.mxu0 0
    %2903 = vmatprep.subr.bf16.mxu0 0
    %2904 = vmatpush1.bf16.msra.mxu0 0
    %2905 = vmatprep.subr.bf16.mxu0 0
    %2906 = vmatpush1.bf16.msra.mxu0 0
    %2907 = vmatprep.subr.bf16.mxu0 0
    %2908 = vmatpush1.bf16.msra.mxu0 0
    %2909 = vmatprep.subr.bf16.mxu0 0
    %2910 = vmatpush1.bf16.msra.mxu0 0
    %2911 = vmatprep.subr.bf16.mxu0 0
    %2912 = vmatpush1.bf16.msra.mxu0 0
    %2913 = vmatprep.subr.bf16.mxu0 0
    %2914 = vmatpush1.bf16.msra.mxu0 0
    %2915 = vmatprep.mubr.bf16.mxu0 0
    %2916 = vmatmul.mubr.bf16.gmra.mrb[0].mxu0 %v2881
    %v2917 = vpop.f32.mrb[0].mxu0
    %v2918 = vadd.f32 0.0, %v2917
    %v2919 = vpop.f32.mrb[0].mxu0
    %v2920 = vpop.f32.mrb[0].mxu0
    %v2921 = vadd.f32 0.0, %v2920
    %v2922 = vpop.f32.mrb[0].mxu0
    %2923 = vdwg.mxu0
    %v2924 = vadd.f32 %v2841, %v2918
    %v2925 = vadd.f32 %v2844, %v2921
    %v2926 = vld [vmem:[%s6] sm:$0x1]
    %v2927 = vlaneseq
    %v2928 = vshrl.u32 %v2927, 7
    %v2929 = vsub.s32 0, %v2928
    %v2930 = vrot.slane %v2926, %v2929
    %v2931 = vadd.f32 %v2924, %v2930
    %v2932 = vadd.f32 %v2925, %v2930
    %v2933 = vadd.f32 %v2931, %v2932
    %v2934 = vrot.slane %v2933, 4
    %v2935 = vadd.f32 %v2933, %v2934
    %v2936 = vrot.slane %v2935, 2
    %v2937 = vadd.f32 %v2935, %v2936
    %v2938 = vrot.slane %v2937, 1
    %v2939 = vadd.f32 %v2937, %v2938
    %2940 = vmatprep.subr.mxu0 0.0
    %2941 = vmatpush1.msra.mxu0 %v2512
    %2942 = vmatprep.subr.mxu0 0.0
    %2943 = vmatpush1.msra.mxu0 %v2513
    %2944 = vmatprep.subr.mxu0 0.0
    %2945 = vmatpush1.msra.mxu0 %v2514
    %2946 = vmatprep.subr.mxu0 0.0
    %2947 = vmatpush1.msra.mxu0 %v2515
    %2948 = vmatprep.subr.mxu0 0.0
    %2949 = vmatpush1.msra.mxu0 %v2516
    %2950 = vmatprep.subr.mxu0 0.0
    %2951 = vmatpush1.msra.mxu0 %v2517
    %2952 = vmatprep.subr.mxu0 0.0
    %2953 = vmatpush1.msra.mxu0 %v2518
    %2954 = vmatprep.subr.mxu0 0.0
    %2955 = vmatpush1.msra.mxu0 %v2519
    %2956 = vmatprep.subr.mxu0 0.0
    %2957 = vmatpush1.msra.mxu0 %v2520
    %2958 = vmatprep.subr.mxu0 0.0
    %2959 = vmatpush1.msra.mxu0 %v2521
    %2960 = vmatprep.subr.mxu0 0.0
    %2961 = vmatpush1.msra.mxu0 %v2522
    %2962 = vmatprep.subr.mxu0 0.0
    %2963 = vmatpush1.msra.mxu0 %v2523
    %2964 = vmatprep.subr.mxu0 0.0
    %2965 = vmatpush1.msra.mxu0 %v2524
    %2966 = vmatprep.subr.mxu0 0.0
    %2967 = vmatpush1.msra.mxu0 %v2525
    %2968 = vmatprep.subr.mxu0 0.0
    %2969 = vmatpush1.msra.mxu0 %v2526
    %2970 = vmatprep.subr.mxu0 0.0
    %2971 = vmatpush1.msra.mxu0 %v2527
    %2972 = vmatprep.subr.mxu0 0.0
    %2973 = vmatpush1.msra.mxu0 0.0
    %2974 = vmatprep.subr.mxu0 0.0
    %2975 = vmatpush1.msra.mxu0 0.0
    %2976 = vmatprep.subr.mxu0 0.0
    %2977 = vmatpush1.msra.mxu0 0.0
    %2978 = vmatprep.subr.mxu0 0.0
    %2979 = vmatpush1.msra.mxu0 0.0
    %2980 = vmatprep.subr.mxu0 0.0
    %2981 = vmatpush1.msra.mxu0 0.0
    %2982 = vmatprep.subr.mxu0 0.0
    %2983 = vmatpush1.msra.mxu0 0.0
    %2984 = vmatprep.subr.mxu0 0.0
    %2985 = vmatpush1.msra.mxu0 0.0
    %2986 = vmatprep.subr.mxu0 0.0
    %2987 = vmatpush1.msra.mxu0 0.0
    %2988 = vmatprep.subr.mxu0 0.0
    %2989 = vmatpush1.msra.mxu0 0.0
    %2990 = vmatprep.subr.mxu0 0.0
    %2991 = vmatpush1.msra.mxu0 0.0
    %2992 = vmatprep.subr.mxu0 0.0
    %2993 = vmatpush1.msra.mxu0 0.0
    %2994 = vmatprep.subr.mxu0 0.0
    %2995 = vmatpush1.msra.mxu0 0.0
    %2996 = vmatprep.subr.mxu0 0.0
    %2997 = vmatpush1.msra.mxu0 0.0
    %2998 = vmatprep.subr.mxu0 0.0
    %2999 = vmatpush1.msra.mxu0 0.0
    %3000 = vmatprep.subr.mxu0 0.0
    %3001 = vmatpush1.msra.mxu0 0.0
    %3002 = vmatprep.subr.mxu0 0.0
    %3003 = vmatpush1.msra.mxu0 0.0
    %3004 = vmatprep.mubr.f32.mxu0 0.0
    %3005 = vmatmul.mubr.f32.gmra.mrb[0].mxu0 %v2939
    %v3006 = vpop.f32.mrb[0].mxu0
    %v3007 = vadd.f32 0.0, %v3006
    %v3008 = vpop.f32.mrb[0].mxu0
    %3009 = vdwg.mxu0
    %v3010 = vmul.f32 %v3007, 0.0078125
    %v3011 = vlaneseq
    %v3012 = vshrl.u32 %v3011, 7
    %v3013 = vsub.s32 0, %v3012
    %v3014 = vrot.slane %v3010, %v3013
    %v3015 = vsub.f32 %v2931, %v3014
    %v3016 = vsub.f32 %v2932, %v3014
    %v3017 = vmul.f32 %v3015, %v3015
    %v3018 = vmul.f32 %v3016, %v3016
    %v3019 = vadd.f32 %v3017, %v3018
    %v3020 = vrot.slane %v3019, 4
    %v3021 = vadd.f32 %v3019, %v3020
    %v3022 = vrot.slane %v3021, 2
    %v3023 = vadd.f32 %v3021, %v3022
    %v3024 = vrot.slane %v3023, 1
    %v3025 = vadd.f32 %v3023, %v3024
    %3026 = vmatprep.subr.mxu0 0.0
    %3027 = vmatpush1.msra.mxu0 %v2512
    %3028 = vmatprep.subr.mxu0 0.0
    %3029 = vmatpush1.msra.mxu0 %v2513
    %3030 = vmatprep.subr.mxu0 0.0
    %3031 = vmatpush1.msra.mxu0 %v2514
    %3032 = vmatprep.subr.mxu0 0.0
    %3033 = vmatpush1.msra.mxu0 %v2515
    %3034 = vmatprep.subr.mxu0 0.0
    %3035 = vmatpush1.msra.mxu0 %v2516
    %3036 = vmatprep.subr.mxu0 0.0
    %3037 = vmatpush1.msra.mxu0 %v2517
    %3038 = vmatprep.subr.mxu0 0.0
    %3039 = vmatpush1.msra.mxu0 %v2518
    %3040 = vmatprep.subr.mxu0 0.0
    %3041 = vmatpush1.msra.mxu0 %v2519
    %3042 = vmatprep.subr.mxu0 0.0
    %3043 = vmatpush1.msra.mxu0 %v2520
    %3044 = vmatprep.subr.mxu0 0.0
    %3045 = vmatpush1.msra.mxu0 %v2521
    %3046 = vmatprep.subr.mxu0 0.0
    %3047 = vmatpush1.msra.mxu0 %v2522
    %3048 = vmatprep.subr.mxu0 0.0
    %3049 = vmatpush1.msra.mxu0 %v2523
    %3050 = vmatprep.subr.mxu0 0.0
    %3051 = vmatpush1.msra.mxu0 %v2524
    %3052 = vmatprep.subr.mxu0 0.0
    %3053 = vmatpush1.msra.mxu0 %v2525
    %3054 = vmatprep.subr.mxu0 0.0
    %3055 = vmatpush1.msra.mxu0 %v2526
    %3056 = vmatprep.subr.mxu0 0.0
    %3057 = vmatpush1.msra.mxu0 %v2527
    %3058 = vmatprep.subr.mxu0 0.0
    %3059 = vmatpush1.msra.mxu0 0.0
    %3060 = vmatprep.subr.mxu0 0.0
    %3061 = vmatpush1.msra.mxu0 0.0
    %3062 = vmatprep.subr.mxu0 0.0
    %3063 = vmatpush1.msra.mxu0 0.0
    %3064 = vmatprep.subr.mxu0 0.0
    %3065 = vmatpush1.msra.mxu0 0.0
    %3066 = vmatprep.subr.mxu0 0.0
    %3067 = vmatpush1.msra.mxu0 0.0
    %3068 = vmatprep.subr.mxu0 0.0
    %3069 = vmatpush1.msra.mxu0 0.0
    %3070 = vmatprep.subr.mxu0 0.0
    %3071 = vmatpush1.msra.mxu0 0.0
    %3072 = vmatprep.subr.mxu0 0.0
    %3073 = vmatpush1.msra.mxu0 0.0
    %3074 = vmatprep.subr.mxu0 0.0
    %3075 = vmatpush1.msra.mxu0 0.0
    %3076 = vmatprep.subr.mxu0 0.0
    %3077 = vmatpush1.msra.mxu0 0.0
    %3078 = vmatprep.subr.mxu0 0.0
    %3079 = vmatpush1.msra.mxu0 0.0
    %3080 = vmatprep.subr.mxu0 0.0
    %3081 = vmatpush1.msra.mxu0 0.0
    %3082 = vmatprep.subr.mxu0 0.0
    %3083 = vmatpush1.msra.mxu0 0.0
    %3084 = vmatprep.subr.mxu0 0.0
    %3085 = vmatpush1.msra.mxu0 0.0
    %3086 = vmatprep.subr.mxu0 0.0
    %3087 = vmatpush1.msra.mxu0 0.0
    %3088 = vmatprep.subr.mxu0 0.0
    %3089 = vmatpush1.msra.mxu0 0.0
    %3090 = vmatprep.mubr.f32.mxu0 0.0
    %3091 = vmatmul.mubr.f32.gmra.mrb[0].mxu0 %v3025
    %v3092 = vpop.f32.mrb[0].mxu0
    %v3093 = vadd.f32 0.0, %v3092
    %v3094 = vpop.f32.mrb[0].mxu0
    %3095 = vdwg.mxu0
    %v3096 = vmul.f32 %v3093, 0.0078125
    %v3097 = vld [vmem:[%s6 + $0x1] sm:$0x1]
    %v3098 = vadd.f32 %v3096, 1e-05
    %v3099 = vrsqrt.pop %v3098
    %v3100 = vmul.f32 %v3097, %v3099
    %v3101 = vlaneseq
    %v3102 = vshrl.u32 %v3101, 7
    %v3103 = vsub.s32 0, %v3102
    %v3104 = vrot.slane %v3100, %v3103
    %v3105 = vmul.f32 %v3015, %v3104
    %v3106 = vmul.f32 %v3016, %v3104
    %v3107 = vld [vmem:[%s6 + $0x2] sm:$0x1]
    %v3108 = vlaneseq
    %v3109 = vshrl.u32 %v3108, 7
    %v3110 = vsub.s32 0, %v3109
    %v3111 = vrot.slane %v3107, %v3110
    %v3112 = vadd.f32 %v3105, %v3111
    %v3113 = vadd.f32 %v3106, %v3111
    %v3114 = vmax.f32 %v3112, 0.0
    %v3115 = vmax.f32 %v3113, 0.0
    %3116 = vmatprep.subr.mxu0 0.0
    %3117 = vmatpush1.msra.mxu0 %v3114
    %3118 = vmatprep.subr.mxu0 0.0
    %3119 = vmatpush1.msra.mxu0 %v3115
    %3120 = vmatprep.subr.mxu0 0.0
    %3121 = vmatpush1.msra.mxu0 0.0
    %3122 = vmatprep.subr.mxu0 0.0
    %3123 = vmatpush1.msra.mxu0 0.0
    %3124 = vmatprep.subr.mxu0 0.0
    %3125 = vmatpush1.msra.mxu0 0.0
    %3126 = vmatprep.subr.mxu0 0.0
    %3127 = vmatpush1.msra.mxu0 0.0
    %3128 = vmatprep.subr.mxu0 0.0
    %3129 = vmatpush1.msra.mxu0 0.0
    %3130 = vmatprep.subr.mxu0 0.0
    %3131 = vmatpush1.msra.mxu0 0.0
    %3132 = vmatprep.subr.mxu0 0.0
    %3133 = vmatpush1.msra.mxu0 0.0
    %3134 = vmatprep.subr.mxu0 0.0
    %3135 = vmatpush1.msra.mxu0 0.0
    %3136 = vmatprep.subr.mxu0 0.0
    %3137 = vmatpush1.msra.mxu0 0.0
    %3138 = vmatprep.subr.mxu0 0.0
    %3139 = vmatpush1.msra.mxu0 0.0
    %3140 = vmatprep.subr.mxu0 0.0
    %3141 = vmatpush1.msra.mxu0 0.0
    %3142 = vmatprep.subr.mxu0 0.0
    %3143 = vmatpush1.msra.mxu0 0.0
    %3144 = vmatprep.subr.mxu0 0.0
    %3145 = vmatpush1.msra.mxu0 0.0
    %3146 = vmatprep.subr.mxu0 0.0
    %3147 = vmatpush1.msra.mxu0 0.0
    %3148 = vmatprep.subr.mxu0 0.0
    %3149 = vmatpush1.msra.mxu0 0.0
    %3150 = vmatprep.subr.mxu0 0.0
    %3151 = vmatpush1.msra.mxu0 0.0
    %3152 = vmatprep.subr.mxu0 0.0
    %3153 = vmatpush1.msra.mxu0 0.0
    %3154 = vmatprep.subr.mxu0 0.0
    %3155 = vmatpush1.msra.mxu0 0.0
    %3156 = vmatprep.subr.mxu0 0.0
    %3157 = vmatpush1.msra.mxu0 0.0
    %3158 = vmatprep.subr.mxu0 0.0
    %3159 = vmatpush1.msra.mxu0 0.0
    %3160 = vmatprep.subr.mxu0 0.0
    %3161 = vmatpush1.msra.mxu0 0.0
    %3162 = vmatprep.subr.mxu0 0.0
    %3163 = vmatpush1.msra.mxu0 0.0
    %3164 = vmatprep.subr.mxu0 0.0
    %3165 = vmatpush1.msra.mxu0 0.0
    %3166 = vmatprep.subr.mxu0 0.0
    %3167 = vmatpush1.msra.mxu0 0.0
    %3168 = vmatprep.subr.mxu0 0.0
    %3169 = vmatpush1.msra.mxu0 0.0
    %3170 = vmatprep.subr.mxu0 0.0
    %3171 = vmatpush1.msra.mxu0 0.0
    %3172 = vmatprep.subr.mxu0 0.0
    %3173 = vmatpush1.msra.mxu0 0.0
    %3174 = vmatprep.subr.mxu0 0.0
    %3175 = vmatpush1.msra.mxu0 0.0
    %3176 = vmatprep.subr.mxu0 0.0
    %3177 = vmatpush1.msra.mxu0 0.0
    %3178 = vmatprep.subr.mxu0 0.0
    %3179 = vmatpush1.msra.mxu0 0.0
    %3180 = vmatprep.mubr.f32.mxu0 0.0
    %3181 = vmatmul.mubr.f32.gmra.mrb[0].mxu0 %v2530
    %v3182 = vpop.f32.mrb[0].mxu0
    %v3183 = vadd.f32 0.0, %v3182
    %v3184 = vpop.f32.mrb[0].mxu0
    %3185 = vmatprep.mubr.f32.mxu0 0.0
    %3186 = vmatmul.mubr.f32.gmra.mrb[0].mxu0 %v2533
    %v3187 = vpop.f32.mrb[0].mxu0
    %v3188 = vadd.f32 0.0, %v3187
    %v3189 = vpop.f32.mrb[0].mxu0
    %3190 = vdwg.mxu0
    %v3191 = vpack.c.bf16 %v3188, %v3183
    %v3192 = vpack.c.bf16 %v3115, %v3114
    %3193 = vmatprep.subr.mxu0 0.0
    %3194 = vmatpush1.msra.mxu0 %v3114
    %3195 = vmatprep.subr.mxu0 0.0
    %3196 = vmatpush1.msra.mxu0 %v3115
    %3197 = vmatprep.subr.mxu0 0.0
    %3198 = vmatpush1.msra.mxu0 0.0
    %3199 = vmatprep.subr.mxu0 0.0
    %3200 = vmatpush1.msra.mxu0 0.0
    %3201 = vmatprep.subr.mxu0 0.0
    %3202 = vmatpush1.msra.mxu0 0.0
    %3203 = vmatprep.subr.mxu0 0.0
    %3204 = vmatpush1.msra.mxu0 0.0
    %3205 = vmatprep.subr.mxu0 0.0
    %3206 = vmatpush1.msra.mxu0 0.0
    %3207 = vmatprep.subr.mxu0 0.0
    %3208 = vmatpush1.msra.mxu0 0.0
    %3209 = vmatprep.subr.mxu0 0.0
    %3210 = vmatpush1.msra.mxu0 0.0
    %3211 = vmatprep.subr.mxu0 0.0
    %3212 = vmatpush1.msra.mxu0 0.0
    %3213 = vmatprep.subr.mxu0 0.0
    %3214 = vmatpush1.msra.mxu0 0.0
    %3215 = vmatprep.subr.mxu0 0.0
    %3216 = vmatpush1.msra.mxu0 0.0
    %3217 = vmatprep.subr.mxu0 0.0
    %3218 = vmatpush1.msra.mxu0 0.0
    %3219 = vmatprep.subr.mxu0 0.0
    %3220 = vmatpush1.msra.mxu0 0.0
    %3221 = vmatprep.subr.mxu0 0.0
    %3222 = vmatpush1.msra.mxu0 0.0
    %3223 = vmatprep.subr.mxu0 0.0
    %3224 = vmatpush1.msra.mxu0 0.0
    %3225 = vmatprep.subr.mxu0 0.0
    %3226 = vmatpush1.msra.mxu0 0.0
    %3227 = vmatprep.subr.mxu0 0.0
    %3228 = vmatpush1.msra.mxu0 0.0
    %3229 = vmatprep.subr.mxu0 0.0
    %3230 = vmatpush1.msra.mxu0 0.0
    %3231 = vmatprep.subr.mxu0 0.0
    %3232 = vmatpush1.msra.mxu0 0.0
    %3233 = vmatprep.subr.mxu0 0.0
    %3234 = vmatpush1.msra.mxu0 0.0
    %3235 = vmatprep.subr.mxu0 0.0
    %3236 = vmatpush1.msra.mxu0 0.0
    %3237 = vmatprep.subr.mxu0 0.0
    %3238 = vmatpush1.msra.mxu0 0.0
    %3239 = vmatprep.subr.mxu0 0.0
    %3240 = vmatpush1.msra.mxu0 0.0
    %3241 = vmatprep.subr.mxu0 0.0
    %3242 = vmatpush1.msra.mxu0 0.0
    %3243 = vmatprep.subr.mxu0 0.0
    %3244 = vmatpush1.msra.mxu0 0.0
    %3245 = vmatprep.subr.mxu0 0.0
    %3246 = vmatpush1.msra.mxu0 0.0
    %3247 = vmatprep.subr.mxu0 0.0
    %3248 = vmatpush1.msra.mxu0 0.0
    %3249 = vmatprep.subr.mxu0 0.0
    %3250 = vmatpush1.msra.mxu0 0.0
    %3251 = vmatprep.subr.mxu0 0.0
    %3252 = vmatpush1.msra.mxu0 0.0
    %3253 = vmatprep.subr.mxu0 0.0
    %3254 = vmatpush1.msra.mxu0 0.0
    %3255 = vmatprep.subr.mxu0 0.0
    %3256 = vmatpush1.msra.mxu0 0.0
    %3257 = vmatprep.mubr.f32.mxu0 0.0
    %3258 = vmatmul.mubr.f32.gmra.mrb[0].mxu0 %v2613
    %v3259 = vpop.f32.mrb[0].mxu0
    %v3260 = vadd.f32 0.0, %v3259
    %v3261 = vpop.f32.mrb[0].mxu0
    %3262 = vmatprep.mubr.f32.mxu0 0.0
    %3263 = vmatmul.mubr.f32.gmra.mrb[0].mxu0 %v2616
    %v3264 = vpop.f32.mrb[0].mxu0
    %v3265 = vadd.f32 0.0, %v3264
    %v3266 = vpop.f32.mrb[0].mxu0
    %3267 = vdwg.mxu0
    %v3268 = vpack.c.bf16 %v3265, %v3260
    %v3269 = vld [vmem:[%s7] sm:$0xf]
    %v3270 = vld [vmem:[%s7 + $0x4] sm:$0xf]
    %v3271 = vld [vmem:[%s7 + $0x8] sm:$0xf]
    %v3272 = vld [vmem:[%s7 + $0xc] sm:$0xf]
    %v3273 = vld [vmem:[%s7 + $0x10] sm:$0xf]
    %v3274 = vld [vmem:[%s7 + $0x14] sm:$0xf]
    %v3275 = vld [vmem:[%s7 + $0x18] sm:$0xf]
    %v3276 = vld [vmem:[%s7 + $0x1c] sm:$0xf]
    %v3277 = vld [vmem:[%s7 + $0x20] sm:$0xf]
    %v3278 = vld [vmem:[%s7 + $0x24] sm:$0xf]
    %v3279 = vld [vmem:[%s7 + $0x28] sm:$0xf]
    %v3280 = vld [vmem:[%s7 + $0x2c] sm:$0xf]
    %v3281 = vld [vmem:[%s7 + $0x30] sm:$0xf]
    %v3282 = vld [vmem:[%s7 + $0x34] sm:$0xf]
    %v3283 = vld [vmem:[%s7 + $0x38] sm:$0xf]
    %v3284 = vld [vmem:[%s7 + $0x3c] sm:$0xf]
    %s3285 = scalar_lea.vmem %s7, 64
    %v3286 = vld [vmem:[%s3285] sm:$0xf]
    %v3287 = vld [vmem:[%s3285 + $0x4] sm:$0xf]
    %v3288 = vld [vmem:[%s3285 + $0x8] sm:$0xf]
    %v3289 = vld [vmem:[%s3285 + $0xc] sm:$0xf]
    %v3290 = vld [vmem:[%s3285 + $0x10] sm:$0xf]
    %v3291 = vld [vmem:[%s3285 + $0x14] sm:$0xf]
    %v3292 = vld [vmem:[%s3285 + $0x18] sm:$0xf]
    %v3293 = vld [vmem:[%s3285 + $0x1c] sm:$0xf]
    %v3294 = vld [vmem:[%s3285 + $0x20] sm:$0xf]
    %v3295 = vld [vmem:[%s3285 + $0x24] sm:$0xf]
    %v3296 = vld [vmem:[%s3285 + $0x28] sm:$0xf]
    %v3297 = vld [vmem:[%s3285 + $0x2c] sm:$0xf]
    %v3298 = vld [vmem:[%s3285 + $0x30] sm:$0xf]
    %v3299 = vld [vmem:[%s3285 + $0x34] sm:$0xf]
    %v3300 = vld [vmem:[%s3285 + $0x38] sm:$0xf]
    %v3301 = vld [vmem:[%s3285 + $0x3c] sm:$0xf]
    %v3318 = vunpack.c.l.b16 %v3286
    %v3319 = vunpack.c.l.b16 %v3287
    %v3320 = vunpack.c.l.b16 %v3288
    %v3321 = vunpack.c.l.b16 %v3289
    %v3322 = vunpack.c.l.b16 %v3290
    %v3323 = vunpack.c.l.b16 %v3291
    %v3324 = vunpack.c.l.b16 %v3292
    %v3325 = vunpack.c.l.b16 %v3293
    %v3326 = vunpack.c.l.b16 %v3294
    %v3327 = vunpack.c.l.b16 %v3295
    %v3328 = vunpack.c.l.b16 %v3296
    %v3329 = vunpack.c.l.b16 %v3297
    %v3330 = vunpack.c.l.b16 %v3298
    %v3331 = vunpack.c.l.b16 %v3299
    %v3332 = vunpack.c.l.b16 %v3300
    %v3333 = vunpack.c.l.b16 %v3301
    %v3334 = vpack.c.b16 %v3319, %v3318
    %v3335 = vpack.c.b16 %v3321, %v3320
    %v3336 = vpack.c.b16 %v3323, %v3322
    %v3337 = vpack.c.b16 %v3325, %v3324
    %v3338 = vpack.c.b16 %v3327, %v3326
    %v3339 = vpack.c.b16 %v3329, %v3328
    %v3340 = vpack.c.b16 %v3331, %v3330
    %v3341 = vpack.c.b16 %v3333, %v3332
    %3350 = vmatprep.subr.bf16.mxu0 0
    %3351 = vmatpush1.bf16.msra.mxu0 %v3334
    %3352 = vmatprep.subr.bf16.mxu0 0
    %3353 = vmatpush1.bf16.msra.mxu0 %v3335
    %3354 = vmatprep.subr.bf16.mxu0 0
    %3355 = vmatpush1.bf16.msra.mxu0 %v3336
    %3356 = vmatprep.subr.bf16.mxu0 0
    %3357 = vmatpush1.bf16.msra.mxu0 %v3337
    %3358 = vmatprep.subr.bf16.mxu0 0
    %3359 = vmatpush1.bf16.msra.mxu0 %v3338
    %3360 = vmatprep.subr.bf16.mxu0 0
    %3361 = vmatpush1.bf16.msra.mxu0 %v3339
    %3362 = vmatprep.subr.bf16.mxu0 0
    %3363 = vmatpush1.bf16.msra.mxu0 %v3340
    %3364 = vmatprep.subr.bf16.mxu0 0
    %3365 = vmatpush1.bf16.msra.mxu0 %v3341
    %3366 = vmatprep.subr.bf16.mxu0 0
    %3367 = vmatpush1.bf16.msra.mxu0 0
    %3368 = vmatprep.subr.bf16.mxu0 0
    %3369 = vmatpush1.bf16.msra.mxu0 0
    %3370 = vmatprep.subr.bf16.mxu0 0
    %3371 = vmatpush1.bf16.msra.mxu0 0
    %3372 = vmatprep.subr.bf16.mxu0 0
    %3373 = vmatpush1.bf16.msra.mxu0 0
    %3374 = vmatprep.subr.bf16.mxu0 0
    %3375 = vmatpush1.bf16.msra.mxu0 0
    %3376 = vmatprep.subr.bf16.mxu0 0
    %3377 = vmatpush1.bf16.msra.mxu0 0
    %3378 = vmatprep.subr.bf16.mxu0 0
    %3379 = vmatpush1.bf16.msra.mxu0 0
    %3380 = vmatprep.subr.bf16.mxu0 0
    %3381 = vmatpush1.bf16.msra.mxu0 0
    %3382 = vmatprep.mubr.bf16.mxu0 0
    %3383 = vmatmul.mubr.bf16.gmra.mrb[0].mxu0 %v3192
    %v3384 = vpop.f32.mrb[0].mxu0
    %v3385 = vadd.f32 0.0, %v3384
    %v3386 = vpop.f32.mrb[0].mxu0
    %v3387 = vpop.f32.mrb[0].mxu0
    %v3388 = vadd.f32 0.0, %v3387
    %v3389 = vpop.f32.mrb[0].mxu0
    %3390 = vdwg.mxu0
    %v3407 = vunpack.c.l.b16 %v3269
    %v3408 = vunpack.c.l.b16 %v3270
    %v3409 = vunpack.c.l.b16 %v3271
    %v3410 = vunpack.c.l.b16 %v3272
    %v3411 = vunpack.c.l.b16 %v3273
    %v3412 = vunpack.c.l.b16 %v3274
    %v3413 = vunpack.c.l.b16 %v3275
    %v3414 = vunpack.c.l.b16 %v3276
    %v3415 = vunpack.c.l.b16 %v3277
    %v3416 = vunpack.c.l.b16 %v3278
    %v3417 = vunpack.c.l.b16 %v3279
    %v3418 = vunpack.c.l.b16 %v3280
    %v3419 = vunpack.c.l.b16 %v3281
    %v3420 = vunpack.c.l.b16 %v3282
    %v3421 = vunpack.c.l.b16 %v3283
    %v3422 = vunpack.c.l.b16 %v3284
    %v3423 = vpack.c.b16 %v3408, %v3407
    %v3424 = vpack.c.b16 %v3410, %v3409
    %v3425 = vpack.c.b16 %v3412, %v3411
    %v3426 = vpack.c.b16 %v3414, %v3413
    %v3427 = vpack.c.b16 %v3416, %v3415
    %v3428 = vpack.c.b16 %v3418, %v3417
    %v3429 = vpack.c.b16 %v3420, %v3419
    %v3430 = vpack.c.b16 %v3422, %v3421
    %3439 = vmatprep.subr.bf16.mxu0 0
    %3440 = vmatpush1.bf16.msra.mxu0 %v3423
    %3441 = vmatprep.subr.bf16.mxu0 0
    %3442 = vmatpush1.bf16.msra.mxu0 %v3424
    %3443 = vmatprep.subr.bf16.mxu0 0
    %3444 = vmatpush1.bf16.msra.mxu0 %v3425
    %3445 = vmatprep.subr.bf16.mxu0 0
    %3446 = vmatpush1.bf16.msra.mxu0 %v3426
    %3447 = vmatprep.subr.bf16.mxu0 0
    %3448 = vmatpush1.bf16.msra.mxu0 %v3427
    %3449 = vmatprep.subr.bf16.mxu0 0
    %3450 = vmatpush1.bf16.msra.mxu0 %v3428
    %3451 = vmatprep.subr.bf16.mxu0 0
    %3452 = vmatpush1.bf16.msra.mxu0 %v3429
    %3453 = vmatprep.subr.bf16.mxu0 0
    %3454 = vmatpush1.bf16.msra.mxu0 %v3430
    %3455 = vmatprep.subr.bf16.mxu0 0
    %3456 = vmatpush1.bf16.msra.mxu0 0
    %3457 = vmatprep.subr.bf16.mxu0 0
    %3458 = vmatpush1.bf16.msra.mxu0 0
    %3459 = vmatprep.subr.bf16.mxu0 0
    %3460 = vmatpush1.bf16.msra.mxu0 0
    %3461 = vmatprep.subr.bf16.mxu0 0
    %3462 = vmatpush1.bf16.msra.mxu0 0
    %3463 = vmatprep.subr.bf16.mxu0 0
    %3464 = vmatpush1.bf16.msra.mxu0 0
    %3465 = vmatprep.subr.bf16.mxu0 0
    %3466 = vmatpush1.bf16.msra.mxu0 0
    %3467 = vmatprep.subr.bf16.mxu0 0
    %3468 = vmatpush1.bf16.msra.mxu0 0
    %3469 = vmatprep.subr.bf16.mxu0 0
    %3470 = vmatpush1.bf16.msra.mxu0 0
    %3471 = vmatprep.mubr.bf16.mxu0 0
    %3472 = vmatmul.mubr.bf16.gmra.mrb[0].mxu0 %v3191
    %v3473 = vpop.f32.mrb[0].mxu0
    %v3474 = vadd.f32 %v3385, %v3473
    %v3475 = vpop.f32.mrb[0].mxu0
    %v3476 = vpop.f32.mrb[0].mxu0
    %v3477 = vadd.f32 %v3388, %v3476
    %v3478 = vpop.f32.mrb[0].mxu0
    %3479 = vdwg.mxu0
    %s3480 = scalar_lea.vmem %s7, 128
    %v3481 = vld [vmem:[%s3480] sm:$0xf]
    %v3482 = vld [vmem:[%s3480 + $0x4] sm:$0xf]
    %v3483 = vld [vmem:[%s3480 + $0x8] sm:$0xf]
    %v3484 = vld [vmem:[%s3480 + $0xc] sm:$0xf]
    %v3485 = vld [vmem:[%s3480 + $0x10] sm:$0xf]
    %v3486 = vld [vmem:[%s3480 + $0x14] sm:$0xf]
    %v3487 = vld [vmem:[%s3480 + $0x18] sm:$0xf]
    %v3488 = vld [vmem:[%s3480 + $0x1c] sm:$0xf]
    %v3489 = vld [vmem:[%s3480 + $0x20] sm:$0xf]
    %v3490 = vld [vmem:[%s3480 + $0x24] sm:$0xf]
    %v3491 = vld [vmem:[%s3480 + $0x28] sm:$0xf]
    %v3492 = vld [vmem:[%s3480 + $0x2c] sm:$0xf]
    %v3493 = vld [vmem:[%s3480 + $0x30] sm:$0xf]
    %v3494 = vld [vmem:[%s3480 + $0x34] sm:$0xf]
    %v3495 = vld [vmem:[%s3480 + $0x38] sm:$0xf]
    %v3496 = vld [vmem:[%s3480 + $0x3c] sm:$0xf]
    %v3513 = vunpack.c.l.b16 %v3481
    %v3514 = vunpack.c.l.b16 %v3482
    %v3515 = vunpack.c.l.b16 %v3483
    %v3516 = vunpack.c.l.b16 %v3484
    %v3517 = vunpack.c.l.b16 %v3485
    %v3518 = vunpack.c.l.b16 %v3486
    %v3519 = vunpack.c.l.b16 %v3487
    %v3520 = vunpack.c.l.b16 %v3488
    %v3521 = vunpack.c.l.b16 %v3489
    %v3522 = vunpack.c.l.b16 %v3490
    %v3523 = vunpack.c.l.b16 %v3491
    %v3524 = vunpack.c.l.b16 %v3492
    %v3525 = vunpack.c.l.b16 %v3493
    %v3526 = vunpack.c.l.b16 %v3494
    %v3527 = vunpack.c.l.b16 %v3495
    %v3528 = vunpack.c.l.b16 %v3496
    %v3529 = vpack.c.b16 %v3514, %v3513
    %v3530 = vpack.c.b16 %v3516, %v3515
    %v3531 = vpack.c.b16 %v3518, %v3517
    %v3532 = vpack.c.b16 %v3520, %v3519
    %v3533 = vpack.c.b16 %v3522, %v3521
    %v3534 = vpack.c.b16 %v3524, %v3523
    %v3535 = vpack.c.b16 %v3526, %v3525
    %v3536 = vpack.c.b16 %v3528, %v3527
    %3545 = vmatprep.subr.bf16.mxu0 0
    %3546 = vmatpush1.bf16.msra.mxu0 %v3529
    %3547 = vmatprep.subr.bf16.mxu0 0
    %3548 = vmatpush1.bf16.msra.mxu0 %v3530
    %3549 = vmatprep.subr.bf16.mxu0 0
    %3550 = vmatpush1.bf16.msra.mxu0 %v3531
    %3551 = vmatprep.subr.bf16.mxu0 0
    %3552 = vmatpush1.bf16.msra.mxu0 %v3532
    %3553 = vmatprep.subr.bf16.mxu0 0
    %3554 = vmatpush1.bf16.msra.mxu0 %v3533
    %3555 = vmatprep.subr.bf16.mxu0 0
    %3556 = vmatpush1.bf16.msra.mxu0 %v3534
    %3557 = vmatprep.subr.bf16.mxu0 0
    %3558 = vmatpush1.bf16.msra.mxu0 %v3535
    %3559 = vmatprep.subr.bf16.mxu0 0
    %3560 = vmatpush1.bf16.msra.mxu0 %v3536
    %3561 = vmatprep.subr.bf16.mxu0 0
    %3562 = vmatpush1.bf16.msra.mxu0 0
    %3563 = vmatprep.subr.bf16.mxu0 0
    %3564 = vmatpush1.bf16.msra.mxu0 0
    %3565 = vmatprep.subr.bf16.mxu0 0
    %3566 = vmatpush1.bf16.msra.mxu0 0
    %3567 = vmatprep.subr.bf16.mxu0 0
    %3568 = vmatpush1.bf16.msra.mxu0 0
    %3569 = vmatprep.subr.bf16.mxu0 0
    %3570 = vmatpush1.bf16.msra.mxu0 0
    %3571 = vmatprep.subr.bf16.mxu0 0
    %3572 = vmatpush1.bf16.msra.mxu0 0
    %3573 = vmatprep.subr.bf16.mxu0 0
    %3574 = vmatpush1.bf16.msra.mxu0 0
    %3575 = vmatprep.subr.bf16.mxu0 0
    %3576 = vmatpush1.bf16.msra.mxu0 0
    %3577 = vmatprep.mubr.bf16.mxu0 0
    %3578 = vmatmul.mubr.bf16.gmra.mrb[0].mxu0 %v3268
    %v3579 = vpop.f32.mrb[0].mxu0
    %v3580 = vadd.f32 0.0, %v3579
    %v3581 = vpop.f32.mrb[0].mxu0
    %v3582 = vpop.f32.mrb[0].mxu0
    %v3583 = vadd.f32 0.0, %v3582
    %v3584 = vpop.f32.mrb[0].mxu0
    %3585 = vdwg.mxu0
    %v3586 = vadd.f32 %v3474, %v3580
    %v3587 = vadd.f32 %v3477, %v3583
    %v3588 = vld [vmem:[%s8] sm:$0x1]
    %v3589 = vlaneseq
    %v3590 = vshrl.u32 %v3589, 7
    %v3591 = vsub.s32 0, %v3590
    %v3592 = vrot.slane %v3588, %v3591
    %v3593 = vadd.f32 %v3586, %v3592
    %v3594 = vadd.f32 %v3587, %v3592
    %v3595 = vadd.f32 %v3593, %v3594
    %v3596 = vrot.slane %v3595, 4
    %v3597 = vadd.f32 %v3595, %v3596
    %v3598 = vrot.slane %v3597, 2
    %v3599 = vadd.f32 %v3597, %v3598
    %v3600 = vrot.slane %v3599, 1
    %v3601 = vadd.f32 %v3599, %v3600
    %3602 = vmatprep.subr.mxu0 0.0
    %3603 = vmatpush1.msra.mxu0 %v2512
    %3604 = vmatprep.subr.mxu0 0.0
    %3605 = vmatpush1.msra.mxu0 %v2513
    %3606 = vmatprep.subr.mxu0 0.0
    %3607 = vmatpush1.msra.mxu0 %v2514
    %3608 = vmatprep.subr.mxu0 0.0
    %3609 = vmatpush1.msra.mxu0 %v2515
    %3610 = vmatprep.subr.mxu0 0.0
    %3611 = vmatpush1.msra.mxu0 %v2516
    %3612 = vmatprep.subr.mxu0 0.0
    %3613 = vmatpush1.msra.mxu0 %v2517
    %3614 = vmatprep.subr.mxu0 0.0
    %3615 = vmatpush1.msra.mxu0 %v2518
    %3616 = vmatprep.subr.mxu0 0.0
    %3617 = vmatpush1.msra.mxu0 %v2519
    %3618 = vmatprep.subr.mxu0 0.0
    %3619 = vmatpush1.msra.mxu0 %v2520
    %3620 = vmatprep.subr.mxu0 0.0
    %3621 = vmatpush1.msra.mxu0 %v2521
    %3622 = vmatprep.subr.mxu0 0.0
    %3623 = vmatpush1.msra.mxu0 %v2522
    %3624 = vmatprep.subr.mxu0 0.0
    %3625 = vmatpush1.msra.mxu0 %v2523
    %3626 = vmatprep.subr.mxu0 0.0
    %3627 = vmatpush1.msra.mxu0 %v2524
    %3628 = vmatprep.subr.mxu0 0.0
    %3629 = vmatpush1.msra.mxu0 %v2525
    %3630 = vmatprep.subr.mxu0 0.0
    %3631 = vmatpush1.msra.mxu0 %v2526
    %3632 = vmatprep.subr.mxu0 0.0
    %3633 = vmatpush1.msra.mxu0 %v2527
    %3634 = vmatprep.subr.mxu0 0.0
    %3635 = vmatpush1.msra.mxu0 0.0
    %3636 = vmatprep.subr.mxu0 0.0
    %3637 = vmatpush1.msra.mxu0 0.0
    %3638 = vmatprep.subr.mxu0 0.0
    %3639 = vmatpush1.msra.mxu0 0.0
    %3640 = vmatprep.subr.mxu0 0.0
    %3641 = vmatpush1.msra.mxu0 0.0
    %3642 = vmatprep.subr.mxu0 0.0
    %3643 = vmatpush1.msra.mxu0 0.0
    %3644 = vmatprep.subr.mxu0 0.0
    %3645 = vmatpush1.msra.mxu0 0.0
    %3646 = vmatprep.subr.mxu0 0.0
    %3647 = vmatpush1.msra.mxu0 0.0
    %3648 = vmatprep.subr.mxu0 0.0
    %3649 = vmatpush1.msra.mxu0 0.0
    %3650 = vmatprep.subr.mxu0 0.0
    %3651 = vmatpush1.msra.mxu0 0.0
    %3652 = vmatprep.subr.mxu0 0.0
    %3653 = vmatpush1.msra.mxu0 0.0
    %3654 = vmatprep.subr.mxu0 0.0
    %3655 = vmatpush1.msra.mxu0 0.0
    %3656 = vmatprep.subr.mxu0 0.0
    %3657 = vmatpush1.msra.mxu0 0.0
    %3658 = vmatprep.subr.mxu0 0.0
    %3659 = vmatpush1.msra.mxu0 0.0
    %3660 = vmatprep.subr.mxu0 0.0
    %3661 = vmatpush1.msra.mxu0 0.0
    %3662 = vmatprep.subr.mxu0 0.0
    %3663 = vmatpush1.msra.mxu0 0.0
    %3664 = vmatprep.subr.mxu0 0.0
    %3665 = vmatpush1.msra.mxu0 0.0
    %3666 = vmatprep.mubr.f32.mxu0 0.0
    %3667 = vmatmul.mubr.f32.gmra.mrb[0].mxu0 %v3601
    %v3668 = vpop.f32.mrb[0].mxu0
    %v3669 = vadd.f32 0.0, %v3668
    %v3670 = vpop.f32.mrb[0].mxu0
    %3671 = vdwg.mxu0
    %v3672 = vmul.f32 %v3669, 0.0078125
    %v3673 = vlaneseq
    %v3674 = vshrl.u32 %v3673, 7
    %v3675 = vsub.s32 0, %v3674
    %v3676 = vrot.slane %v3672, %v3675
    %v3677 = vsub.f32 %v3593, %v3676
    %v3678 = vsub.f32 %v3594, %v3676
    %v3679 = vmul.f32 %v3677, %v3677
    %v3680 = vmul.f32 %v3678, %v3678
    %v3681 = vadd.f32 %v3679, %v3680
    %v3682 = vrot.slane %v3681, 4
    %v3683 = vadd.f32 %v3681, %v3682
    %v3684 = vrot.slane %v3683, 2
    %v3685 = vadd.f32 %v3683, %v3684
    %v3686 = vrot.slane %v3685, 1
    %v3687 = vadd.f32 %v3685, %v3686
    %3688 = vmatprep.subr.mxu0 0.0
    %3689 = vmatpush1.msra.mxu0 %v2512
    %3690 = vmatprep.subr.mxu0 0.0
    %3691 = vmatpush1.msra.mxu0 %v2513
    %3692 = vmatprep.subr.mxu0 0.0
    %3693 = vmatpush1.msra.mxu0 %v2514
    %3694 = vmatprep.subr.mxu0 0.0
    %3695 = vmatpush1.msra.mxu0 %v2515
    %3696 = vmatprep.subr.mxu0 0.0
    %3697 = vmatpush1.msra.mxu0 %v2516
    %3698 = vmatprep.subr.mxu0 0.0
    %3699 = vmatpush1.msra.mxu0 %v2517
    %3700 = vmatprep.subr.mxu0 0.0
    %3701 = vmatpush1.msra.mxu0 %v2518
    %3702 = vmatprep.subr.mxu0 0.0
    %3703 = vmatpush1.msra.mxu0 %v2519
    %3704 = vmatprep.subr.mxu0 0.0
    %3705 = vmatpush1.msra.mxu0 %v2520
    %3706 = vmatprep.subr.mxu0 0.0
    %3707 = vmatpush1.msra.mxu0 %v2521
    %3708 = vmatprep.subr.mxu0 0.0
    %3709 = vmatpush1.msra.mxu0 %v2522
    %3710 = vmatprep.subr.mxu0 0.0
    %3711 = vmatpush1.msra.mxu0 %v2523
    %3712 = vmatprep.subr.mxu0 0.0
    %3713 = vmatpush1.msra.mxu0 %v2524
    %3714 = vmatprep.subr.mxu0 0.0
    %3715 = vmatpush1.msra.mxu0 %v2525
    %3716 = vmatprep.subr.mxu0 0.0
    %3717 = vmatpush1.msra.mxu0 %v2526
    %3718 = vmatprep.subr.mxu0 0.0
    %3719 = vmatpush1.msra.mxu0 %v2527
    %3720 = vmatprep.subr.mxu0 0.0
    %3721 = vmatpush1.msra.mxu0 0.0
    %3722 = vmatprep.subr.mxu0 0.0
    %3723 = vmatpush1.msra.mxu0 0.0
    %3724 = vmatprep.subr.mxu0 0.0
    %3725 = vmatpush1.msra.mxu0 0.0
    %3726 = vmatprep.subr.mxu0 0.0
    %3727 = vmatpush1.msra.mxu0 0.0
    %3728 = vmatprep.subr.mxu0 0.0
    %3729 = vmatpush1.msra.mxu0 0.0
    %3730 = vmatprep.subr.mxu0 0.0
    %3731 = vmatpush1.msra.mxu0 0.0
    %3732 = vmatprep.subr.mxu0 0.0
    %3733 = vmatpush1.msra.mxu0 0.0
    %3734 = vmatprep.subr.mxu0 0.0
    %3735 = vmatpush1.msra.mxu0 0.0
    %3736 = vmatprep.subr.mxu0 0.0
    %3737 = vmatpush1.msra.mxu0 0.0
    %3738 = vmatprep.subr.mxu0 0.0
    %3739 = vmatpush1.msra.mxu0 0.0
    %3740 = vmatprep.subr.mxu0 0.0
    %3741 = vmatpush1.msra.mxu0 0.0
    %3742 = vmatprep.subr.mxu0 0.0
    %3743 = vmatpush1.msra.mxu0 0.0
    %3744 = vmatprep.subr.mxu0 0.0
    %3745 = vmatpush1.msra.mxu0 0.0
    %3746 = vmatprep.subr.mxu0 0.0
    %3747 = vmatpush1.msra.mxu0 0.0
    %3748 = vmatprep.subr.mxu0 0.0
    %3749 = vmatpush1.msra.mxu0 0.0
    %3750 = vmatprep.subr.mxu0 0.0
    %3751 = vmatpush1.msra.mxu0 0.0
    %3752 = vmatprep.mubr.f32.mxu0 0.0
    %3753 = vmatmul.mubr.f32.gmra.mrb[0].mxu0 %v3687
    %v3754 = vpop.f32.mrb[0].mxu0
    %v3755 = vadd.f32 0.0, %v3754
    %v3756 = vpop.f32.mrb[0].mxu0
    %3757 = vdwg.mxu0
    %v3758 = vmul.f32 %v3755, 0.0078125
    %v3759 = vld [vmem:[%s8 + $0x1] sm:$0x1]
    %v3760 = vadd.f32 %v3758, 1e-05
    %v3761 = vrsqrt.pop %v3760
    %v3762 = vmul.f32 %v3759, %v3761
    %v3763 = vlaneseq
    %v3764 = vshrl.u32 %v3763, 7
    %v3765 = vsub.s32 0, %v3764
    %v3766 = vrot.slane %v3762, %v3765
    %v3767 = vmul.f32 %v3677, %v3766
    %v3768 = vmul.f32 %v3678, %v3766
    %v3769 = vld [vmem:[%s8 + $0x2] sm:$0x1]
    %v3770 = vlaneseq
    %v3771 = vshrl.u32 %v3770, 7
    %v3772 = vsub.s32 0, %v3771
    %v3773 = vrot.slane %v3769, %v3772
    %v3774 = vadd.f32 %v3767, %v3773
    %v3775 = vadd.f32 %v3768, %v3773
    %v3776 = vmax.f32 %v3774, 0.0
    %v3777 = vmax.f32 %v3775, 0.0
    %3778 = vmatprep.subr.mxu0 0.0
    %3779 = vmatpush1.msra.mxu0 %v3776
    %3780 = vmatprep.subr.mxu0 0.0
    %3781 = vmatpush1.msra.mxu0 %v3777
    %3782 = vmatprep.subr.mxu0 0.0
    %3783 = vmatpush1.msra.mxu0 0.0
    %3784 = vmatprep.subr.mxu0 0.0
    %3785 = vmatpush1.msra.mxu0 0.0
    %3786 = vmatprep.subr.mxu0 0.0
    %3787 = vmatpush1.msra.mxu0 0.0
    %3788 = vmatprep.subr.mxu0 0.0
    %3789 = vmatpush1.msra.mxu0 0.0
    %3790 = vmatprep.subr.mxu0 0.0
    %3791 = vmatpush1.msra.mxu0 0.0
    %3792 = vmatprep.subr.mxu0 0.0
    %3793 = vmatpush1.msra.mxu0 0.0
    %3794 = vmatprep.subr.mxu0 0.0
    %3795 = vmatpush1.msra.mxu0 0.0
    %3796 = vmatprep.subr.mxu0 0.0
    %3797 = vmatpush1.msra.mxu0 0.0
    %3798 = vmatprep.subr.mxu0 0.0
    %3799 = vmatpush1.msra.mxu0 0.0
    %3800 = vmatprep.subr.mxu0 0.0
    %3801 = vmatpush1.msra.mxu0 0.0
    %3802 = vmatprep.subr.mxu0 0.0
    %3803 = vmatpush1.msra.mxu0 0.0
    %3804 = vmatprep.subr.mxu0 0.0
    %3805 = vmatpush1.msra.mxu0 0.0
    %3806 = vmatprep.subr.mxu0 0.0
    %3807 = vmatpush1.msra.mxu0 0.0
    %3808 = vmatprep.subr.mxu0 0.0
    %3809 = vmatpush1.msra.mxu0 0.0
    %3810 = vmatprep.subr.mxu0 0.0
    %3811 = vmatpush1.msra.mxu0 0.0
    %3812 = vmatprep.subr.mxu0 0.0
    %3813 = vmatpush1.msra.mxu0 0.0
    %3814 = vmatprep.subr.mxu0 0.0
    %3815 = vmatpush1.msra.mxu0 0.0
    %3816 = vmatprep.subr.mxu0 0.0
    %3817 = vmatpush1.msra.mxu0 0.0
    %3818 = vmatprep.subr.mxu0 0.0
    %3819 = vmatpush1.msra.mxu0 0.0
    %3820 = vmatprep.subr.mxu0 0.0
    %3821 = vmatpush1.msra.mxu0 0.0
    %3822 = vmatprep.subr.mxu0 0.0
    %3823 = vmatpush1.msra.mxu0 0.0
    %3824 = vmatprep.subr.mxu0 0.0
    %3825 = vmatpush1.msra.mxu0 0.0
    %3826 = vmatprep.subr.mxu0 0.0
    %3827 = vmatpush1.msra.mxu0 0.0
    %3828 = vmatprep.subr.mxu0 0.0
    %3829 = vmatpush1.msra.mxu0 0.0
    %3830 = vmatprep.subr.mxu0 0.0
    %3831 = vmatpush1.msra.mxu0 0.0
    %3832 = vmatprep.subr.mxu0 0.0
    %3833 = vmatpush1.msra.mxu0 0.0
    %3834 = vmatprep.subr.mxu0 0.0
    %3835 = vmatpush1.msra.mxu0 0.0
    %3836 = vmatprep.subr.mxu0 0.0
    %3837 = vmatpush1.msra.mxu0 0.0
    %3838 = vmatprep.subr.mxu0 0.0
    %3839 = vmatpush1.msra.mxu0 0.0
    %3840 = vmatprep.subr.mxu0 0.0
    %3841 = vmatpush1.msra.mxu0 0.0
    %3842 = vmatprep.mubr.f32.mxu0 0.0
    %3843 = vmatmul.mubr.f32.gmra.mrb[0].mxu0 %v2613
    %v3844 = vpop.f32.mrb[0].mxu0
    %v3845 = vadd.f32 0.0, %v3844
    %v3846 = vpop.f32.mrb[0].mxu0
    %3847 = vmatprep.mubr.f32.mxu0 0.0
    %3848 = vmatmul.mubr.f32.gmra.mrb[0].mxu0 %v2616
    %v3849 = vpop.f32.mrb[0].mxu0
    %v3850 = vadd.f32 0.0, %v3849
    %v3851 = vpop.f32.mrb[0].mxu0
    %3852 = vdwg.mxu0
    %v3853 = vmax.f32 %v3776, %v3845
    %v3854 = vmax.f32 %v3777, %v3850
    %v3855 = vsel %vm2528, %v1974, 0
    %3857 = vmatprep.subr.mxu0 0.0
    %3858 = vmatpush1.msra.mxu0 %v3853
    %3859 = vmatprep.subr.mxu0 0.0
    %3860 = vmatpush1.msra.mxu0 %v3854
    %3861 = vmatprep.subr.mxu0 0.0
    %3862 = vmatpush1.msra.mxu0 0.0
    %3863 = vmatprep.subr.mxu0 0.0
    %3864 = vmatpush1.msra.mxu0 0.0
    %3865 = vmatprep.subr.mxu0 0.0
    %3866 = vmatpush1.msra.mxu0 0.0
    %3867 = vmatprep.subr.mxu0 0.0
    %3868 = vmatpush1.msra.mxu0 0.0
    %3869 = vmatprep.subr.mxu0 0.0
    %3870 = vmatpush1.msra.mxu0 0.0
    %3871 = vmatprep.subr.mxu0 0.0
    %3872 = vmatpush1.msra.mxu0 0.0
    %3873 = vmatprep.subr.mxu0 0.0
    %3874 = vmatpush1.msra.mxu0 0.0
    %3875 = vmatprep.subr.mxu0 0.0
    %3876 = vmatpush1.msra.mxu0 0.0
    %3877 = vmatprep.subr.mxu0 0.0
    %3878 = vmatpush1.msra.mxu0 0.0
    %3879 = vmatprep.subr.mxu0 0.0
    %3880 = vmatpush1.msra.mxu0 0.0
    %3881 = vmatprep.subr.mxu0 0.0
    %3882 = vmatpush1.msra.mxu0 0.0
    %3883 = vmatprep.subr.mxu0 0.0
    %3884 = vmatpush1.msra.mxu0 0.0
    %3885 = vmatprep.subr.mxu0 0.0
    %3886 = vmatpush1.msra.mxu0 0.0
    %3887 = vmatprep.subr.mxu0 0.0
    %3888 = vmatpush1.msra.mxu0 0.0
    %3889 = vmatprep.subr.mxu0 0.0
    %3890 = vmatpush1.msra.mxu0 0.0
    %3891 = vmatprep.subr.mxu0 0.0
    %3892 = vmatpush1.msra.mxu0 0.0
    %3893 = vmatprep.subr.mxu0 0.0
    %3894 = vmatpush1.msra.mxu0 0.0
    %3895 = vmatprep.subr.mxu0 0.0
    %3896 = vmatpush1.msra.mxu0 0.0
    %3897 = vmatprep.subr.mxu0 0.0
    %3898 = vmatpush1.msra.mxu0 0.0
    %3899 = vmatprep.subr.mxu0 0.0
    %3900 = vmatpush1.msra.mxu0 0.0
    %3901 = vmatprep.subr.mxu0 0.0
    %3902 = vmatpush1.msra.mxu0 0.0
    %3903 = vmatprep.subr.mxu0 0.0
    %3904 = vmatpush1.msra.mxu0 0.0
    %3905 = vmatprep.subr.mxu0 0.0
    %3906 = vmatpush1.msra.mxu0 0.0
    %3907 = vmatprep.subr.mxu0 0.0
    %3908 = vmatpush1.msra.mxu0 0.0
    %3909 = vmatprep.subr.mxu0 0.0
    %3910 = vmatpush1.msra.mxu0 0.0
    %3911 = vmatprep.subr.mxu0 0.0
    %3912 = vmatpush1.msra.mxu0 0.0
    %3913 = vmatprep.subr.mxu0 0.0
    %3914 = vmatpush1.msra.mxu0 0.0
    %3915 = vmatprep.subr.mxu0 0.0
    %3916 = vmatpush1.msra.mxu0 0.0
    %3917 = vmatprep.subr.mxu0 0.0
    %3918 = vmatpush1.msra.mxu0 0.0
    %3919 = vmatprep.subr.mxu0 0.0
    %3920 = vmatpush1.msra.mxu0 0.0
    %3921 = vmatprep.mubr.f32.mxu0 0.0
    %3922 = vmatmul.mubr.f32.gmra.mrb[0].mxu0 %v3855
    %v3923 = vpop.f32.mrb[0].mxu0
    %v3924 = vadd.f32 0.0, %v3923
    %v3925 = vpop.f32.mrb[0].mxu0
    %3926 = vdwg.mxu0
    %v3927 = vsub.s32 %v2057, %v2479
    %vm3928 = vcmp.eq.s32.totalorder %v111, %v3927
    %vm3929 = vcmp.eq.s32.totalorder %v112, %v3927
    %vm3930 = vcmp.eq.s32.totalorder %v113, %v3927
    %vm3931 = vcmp.eq.s32.totalorder %v114, %v3927
    %vm3932 = vcmp.eq.s32.totalorder %v213, %v3927
    %vm3933 = vcmp.eq.s32.totalorder %v214, %v3927
    %vm3934 = vcmp.eq.s32.totalorder %v215, %v3927
    %vm3935 = vcmp.eq.s32.totalorder %v216, %v3927
    %vm3936 = vcmp.eq.s32.totalorder %v217, %v3927
    %vm3937 = vcmp.eq.s32.totalorder %v218, %v3927
    %vm3938 = vcmp.eq.s32.totalorder %v219, %v3927
    %vm3939 = vcmp.eq.s32.totalorder %v220, %v3927
    %vm3940 = vcmp.eq.s32.totalorder %v221, %v3927
    %vm3941 = vcmp.eq.s32.totalorder %v222, %v3927
    %vm3942 = vcmp.eq.s32.totalorder %v223, %v3927
    %vm3943 = vcmp.eq.s32.totalorder %v224, %v3927
    %v3944 = vsel %vm3928, 1, 0
    %v3945 = vsel %vm3929, 1, 0
    %v3946 = vsel %vm3930, 1, 0
    %v3947 = vsel %vm3931, 1, 0
    %v3948 = vsel %vm3932, 1, 0
    %v3949 = vsel %vm3933, 1, 0
    %v3950 = vsel %vm3934, 1, 0
    %v3951 = vsel %vm3935, 1, 0
    %v3952 = vsel %vm3936, 1, 0
    %v3953 = vsel %vm3937, 1, 0
    %v3954 = vsel %vm3938, 1, 0
    %v3955 = vsel %vm3939, 1, 0
    %v3956 = vsel %vm3940, 1, 0
    %v3957 = vsel %vm3941, 1, 0
    %v3958 = vsel %vm3942, 1, 0
    %v3959 = vsel %vm3943, 1, 0
    %v3960 = vcvt.s32.f32 %v3944
    %v3961 = vcvt.s32.f32 %v3945
    %v3962 = vcvt.s32.f32 %v3946
    %v3963 = vcvt.s32.f32 %v3947
    %v3964 = vcvt.s32.f32 %v3948
    %v3965 = vcvt.s32.f32 %v3949
    %v3966 = vcvt.s32.f32 %v3950
    %v3967 = vcvt.s32.f32 %v3951
    %v3968 = vcvt.s32.f32 %v3952
    %v3969 = vcvt.s32.f32 %v3953
    %v3970 = vcvt.s32.f32 %v3954
    %v3971 = vcvt.s32.f32 %v3955
    %v3972 = vcvt.s32.f32 %v3956
    %v3973 = vcvt.s32.f32 %v3957
    %v3974 = vcvt.s32.f32 %v3958
    %v3975 = vcvt.s32.f32 %v3959
    %v3976 = vadd.s32 %v3927, 16
    %vm3977 = vcmp.eq.s32.totalorder %v111, %v3976
    %vm3978 = vcmp.eq.s32.totalorder %v112, %v3976
    %vm3979 = vcmp.eq.s32.totalorder %v113, %v3976
    %vm3980 = vcmp.eq.s32.totalorder %v114, %v3976
    %vm3981 = vcmp.eq.s32.totalorder %v213, %v3976
    %vm3982 = vcmp.eq.s32.totalorder %v214, %v3976
    %vm3983 = vcmp.eq.s32.totalorder %v215, %v3976
    %vm3984 = vcmp.eq.s32.totalorder %v216, %v3976
    %vm3985 = vcmp.eq.s32.totalorder %v217, %v3976
    %vm3986 = vcmp.eq.s32.totalorder %v218, %v3976
    %vm3987 = vcmp.eq.s32.totalorder %v219, %v3976
    %vm3988 = vcmp.eq.s32.totalorder %v220, %v3976
    %vm3989 = vcmp.eq.s32.totalorder %v221, %v3976
    %vm3990 = vcmp.eq.s32.totalorder %v222, %v3976
    %vm3991 = vcmp.eq.s32.totalorder %v223, %v3976
    %vm3992 = vcmp.eq.s32.totalorder %v224, %v3976
    %v3993 = vsel %vm3977, 1, 0
    %v3994 = vsel %vm3978, 1, 0
    %v3995 = vsel %vm3979, 1, 0
    %v3996 = vsel %vm3980, 1, 0
    %v3997 = vsel %vm3981, 1, 0
    %v3998 = vsel %vm3982, 1, 0
    %v3999 = vsel %vm3983, 1, 0
    %v4000 = vsel %vm3984, 1, 0
    %v4001 = vsel %vm3985, 1, 0
    %v4002 = vsel %vm3986, 1, 0
    %v4003 = vsel %vm3987, 1, 0
    %v4004 = vsel %vm3988, 1, 0
    %v4005 = vsel %vm3989, 1, 0
    %v4006 = vsel %vm3990, 1, 0
    %v4007 = vsel %vm3991, 1, 0
    %v4008 = vsel %vm3992, 1, 0
    %v4009 = vcvt.s32.f32 %v3993
    %v4010 = vcvt.s32.f32 %v3994
    %v4011 = vcvt.s32.f32 %v3995
    %v4012 = vcvt.s32.f32 %v3996
    %v4013 = vcvt.s32.f32 %v3997
    %v4014 = vcvt.s32.f32 %v3998
    %v4015 = vcvt.s32.f32 %v3999
    %v4016 = vcvt.s32.f32 %v4000
    %v4017 = vcvt.s32.f32 %v4001
    %v4018 = vcvt.s32.f32 %v4002
    %v4019 = vcvt.s32.f32 %v4003
    %v4020 = vcvt.s32.f32 %v4004
    %v4021 = vcvt.s32.f32 %v4005
    %v4022 = vcvt.s32.f32 %v4006
    %v4023 = vcvt.s32.f32 %v4007
    %v4024 = vcvt.s32.f32 %v4008
    %4025 = vmatprep.subr.mxu0 0.0
    %4026 = vmatpush1.msra.mxu0 %v3960
    %4027 = vmatprep.subr.mxu0 0.0
    %4028 = vmatpush1.msra.mxu0 %v3961
    %4029 = vmatprep.subr.mxu0 0.0
    %4030 = vmatpush1.msra.mxu0 %v3962
    %4031 = vmatprep.subr.mxu0 0.0
    %4032 = vmatpush1.msra.mxu0 %v3963
    %4033 = vmatprep.subr.mxu0 0.0
    %4034 = vmatpush1.msra.mxu0 %v3964
    %4035 = vmatprep.subr.mxu0 0.0
    %4036 = vmatpush1.msra.mxu0 %v3965
    %4037 = vmatprep.subr.mxu0 0.0
    %4038 = vmatpush1.msra.mxu0 %v3966
    %4039 = vmatprep.subr.mxu0 0.0
    %4040 = vmatpush1.msra.mxu0 %v3967
    %4041 = vmatprep.subr.mxu0 0.0
    %4042 = vmatpush1.msra.mxu0 %v3968
    %4043 = vmatprep.subr.mxu0 0.0
    %4044 = vmatpush1.msra.mxu0 %v3969
    %4045 = vmatprep.subr.mxu0 0.0
    %4046 = vmatpush1.msra.mxu0 %v3970
    %4047 = vmatprep.subr.mxu0 0.0
    %4048 = vmatpush1.msra.mxu0 %v3971
    %4049 = vmatprep.subr.mxu0 0.0
    %4050 = vmatpush1.msra.mxu0 %v3972
    %4051 = vmatprep.subr.mxu0 0.0
    %4052 = vmatpush1.msra.mxu0 %v3973
    %4053 = vmatprep.subr.mxu0 0.0
    %4054 = vmatpush1.msra.mxu0 %v3974
    %4055 = vmatprep.subr.mxu0 0.0
    %4056 = vmatpush1.msra.mxu0 %v3975
    %4057 = vmatprep.subr.mxu0 0.0
    %4058 = vmatpush1.msra.mxu0 0.0
    %4059 = vmatprep.subr.mxu0 0.0
    %4060 = vmatpush1.msra.mxu0 0.0
    %4061 = vmatprep.subr.mxu0 0.0
    %4062 = vmatpush1.msra.mxu0 0.0
    %4063 = vmatprep.subr.mxu0 0.0
    %4064 = vmatpush1.msra.mxu0 0.0
    %4065 = vmatprep.subr.mxu0 0.0
    %4066 = vmatpush1.msra.mxu0 0.0
    %4067 = vmatprep.subr.mxu0 0.0
    %4068 = vmatpush1.msra.mxu0 0.0
    %4069 = vmatprep.subr.mxu0 0.0
    %4070 = vmatpush1.msra.mxu0 0.0
    %4071 = vmatprep.subr.mxu0 0.0
    %4072 = vmatpush1.msra.mxu0 0.0
    %4073 = vmatprep.subr.mxu0 0.0
    %4074 = vmatpush1.msra.mxu0 0.0
    %4075 = vmatprep.subr.mxu0 0.0
    %4076 = vmatpush1.msra.mxu0 0.0
    %4077 = vmatprep.subr.mxu0 0.0
    %4078 = vmatpush1.msra.mxu0 0.0
    %4079 = vmatprep.subr.mxu0 0.0
    %4080 = vmatpush1.msra.mxu0 0.0
    %4081 = vmatprep.subr.mxu0 0.0
    %4082 = vmatpush1.msra.mxu0 0.0
    %4083 = vmatprep.subr.mxu0 0.0
    %4084 = vmatpush1.msra.mxu0 0.0
    %4085 = vmatprep.subr.mxu0 0.0
    %4086 = vmatpush1.msra.mxu0 0.0
    %4087 = vmatprep.subr.mxu0 0.0
    %4088 = vmatpush1.msra.mxu0 0.0
    %4089 = vmatprep.mubr.f32.mxu0 0.0
    %4090 = vmatmul.mubr.f32.gmra.mrb[0].mxu0 %v3924
    %v4091 = vpop.f32.mrb[0].mxu0
    %v4092 = vadd.f32 0.0, %v4091
    %v4093 = vpop.f32.mrb[0].mxu0
    %4094 = vdwg.mxu0
    %4095 = vmatprep.subr.mxu0 0.0
    %4096 = vmatpush1.msra.mxu0 %v4009
    %4097 = vmatprep.subr.mxu0 0.0
    %4098 = vmatpush1.msra.mxu0 %v4010
    %4099 = vmatprep.subr.mxu0 0.0
    %4100 = vmatpush1.msra.mxu0 %v4011
    %4101 = vmatprep.subr.mxu0 0.0
    %4102 = vmatpush1.msra.mxu0 %v4012
    %4103 = vmatprep.subr.mxu0 0.0
    %4104 = vmatpush1.msra.mxu0 %v4013
    %4105 = vmatprep.subr.mxu0 0.0
    %4106 = vmatpush1.msra.mxu0 %v4014
    %4107 = vmatprep.subr.mxu0 0.0
    %4108 = vmatpush1.msra.mxu0 %v4015
    %4109 = vmatprep.subr.mxu0 0.0
    %4110 = vmatpush1.msra.mxu0 %v4016
    %4111 = vmatprep.subr.mxu0 0.0
    %4112 = vmatpush1.msra.mxu0 %v4017
    %4113 = vmatprep.subr.mxu0 0.0
    %4114 = vmatpush1.msra.mxu0 %v4018
    %4115 = vmatprep.subr.mxu0 0.0
    %4116 = vmatpush1.msra.mxu0 %v4019
    %4117 = vmatprep.subr.mxu0 0.0
    %4118 = vmatpush1.msra.mxu0 %v4020
    %4119 = vmatprep.subr.mxu0 0.0
    %4120 = vmatpush1.msra.mxu0 %v4021
    %4121 = vmatprep.subr.mxu0 0.0
    %4122 = vmatpush1.msra.mxu0 %v4022
    %4123 = vmatprep.subr.mxu0 0.0
    %4124 = vmatpush1.msra.mxu0 %v4023
    %4125 = vmatprep.subr.mxu0 0.0
    %4126 = vmatpush1.msra.mxu0 %v4024
    %4127 = vmatprep.subr.mxu0 0.0
    %4128 = vmatpush1.msra.mxu0 0.0
    %4129 = vmatprep.subr.mxu0 0.0
    %4130 = vmatpush1.msra.mxu0 0.0
    %4131 = vmatprep.subr.mxu0 0.0
    %4132 = vmatpush1.msra.mxu0 0.0
    %4133 = vmatprep.subr.mxu0 0.0
    %4134 = vmatpush1.msra.mxu0 0.0
    %4135 = vmatprep.subr.mxu0 0.0
    %4136 = vmatpush1.msra.mxu0 0.0
    %4137 = vmatprep.subr.mxu0 0.0
    %4138 = vmatpush1.msra.mxu0 0.0
    %4139 = vmatprep.subr.mxu0 0.0
    %4140 = vmatpush1.msra.mxu0 0.0
    %4141 = vmatprep.subr.mxu0 0.0
    %4142 = vmatpush1.msra.mxu0 0.0
    %4143 = vmatprep.subr.mxu0 0.0
    %4144 = vmatpush1.msra.mxu0 0.0
    %4145 = vmatprep.subr.mxu0 0.0
    %4146 = vmatpush1.msra.mxu0 0.0
    %4147 = vmatprep.subr.mxu0 0.0
    %4148 = vmatpush1.msra.mxu0 0.0
    %4149 = vmatprep.subr.mxu0 0.0
    %4150 = vmatpush1.msra.mxu0 0.0
    %4151 = vmatprep.subr.mxu0 0.0
    %4152 = vmatpush1.msra.mxu0 0.0
    %4153 = vmatprep.subr.mxu0 0.0
    %4154 = vmatpush1.msra.mxu0 0.0
    %4155 = vmatprep.subr.mxu0 0.0
    %4156 = vmatpush1.msra.mxu0 0.0
    %4157 = vmatprep.subr.mxu0 0.0
    %4158 = vmatpush1.msra.mxu0 0.0
    %4159 = vmatprep.mubr.f32.mxu0 0.0
    %4160 = vmatmul.mubr.f32.gmra.mrb[0].mxu0 %v3924
    %v4161 = vpop.f32.mrb[0].mxu0
    %v4162 = vadd.f32 0.0, %v4161
    %v4163 = vpop.f32.mrb[0].mxu0
    %4164 = vdwg.mxu0
    %v4165 = vmax.f32 %v4092, %v4162
    %4166 = vst.msk [vmem:[%s21] sm:$0xff] %vm719, %v4165
    %vm4167 = vcmp.lt.s32.totalorder %v111, 0
    %v4168 = vsub.s32 0, %v111
    %v4169 = vsel %vm4167, %v4168, %v111
    %v4170 = vshrl.u32 %v4169, 2
    %v4171 = vand.u32 %v4169, 3
    %v4172 = vsub.s32 0, %v4171
    %v4173 = vsel %vm4167, %v4172, %v4171
    %vm4174 = vcmp.ne.s32.totalorder %v4173, 0
    %vm4175 = vcmp.lt.s32.totalorder %v4173, 0
    %vm4176 = vmand %vm4175, %vm4174
    %v4177 = vadd.s32 %v4173, 4
    %v4178 = vsel %vm4176, %v4177, %v4173
    %vm4179 = vcmp.ne.s32.totalorder %v4178, 0
    %vm4180 = vmand %vm121, %vm4179
    %v4181 = vsel %vm4180, 1, 0
    %v4182 = vcvt.s32.f32 %v4181
    %vm4183 = vcmp.ne.s32.totalorder %v4178, 3
    %vm4184 = vmand %vm193, %vm4183
    %v4185 = vsel %vm4184, 1, 0
    %v4186 = vcvt.s32.f32 %v4185
    %vm4187 = vcmask 64512
    %v4189 = vsel %vm4187, %v4182, 0
    %4191 = vmatprep.subr.mxu0 0.0
    %4192 = vmatpush1.msra.mxu0 %v4165
    %4193 = vmatprep.subr.mxu0 0.0
    %4194 = vmatpush1.msra.mxu0 0.0
    %4195 = vmatprep.subr.mxu0 0.0
    %4196 = vmatpush1.msra.mxu0 0.0
    %4197 = vmatprep.subr.mxu0 0.0
    %4198 = vmatpush1.msra.mxu0 0.0
    %4199 = vmatprep.subr.mxu0 0.0
    %4200 = vmatpush1.msra.mxu0 0.0
    %4201 = vmatprep.subr.mxu0 0.0
    %4202 = vmatpush1.msra.mxu0 0.0
    %4203 = vmatprep.subr.mxu0 0.0
    %4204 = vmatpush1.msra.mxu0 0.0
    %4205 = vmatprep.subr.mxu0 0.0
    %4206 = vmatpush1.msra.mxu0 0.0
    %4207 = vmatprep.subr.mxu0 0.0
    %4208 = vmatpush1.msra.mxu0 0.0
    %4209 = vmatprep.subr.mxu0 0.0
    %4210 = vmatpush1.msra.mxu0 0.0
    %4211 = vmatprep.subr.mxu0 0.0
    %4212 = vmatpush1.msra.mxu0 0.0
    %4213 = vmatprep.subr.mxu0 0.0
    %4214 = vmatpush1.msra.mxu0 0.0
    %4215 = vmatprep.subr.mxu0 0.0
    %4216 = vmatpush1.msra.mxu0 0.0
    %4217 = vmatprep.subr.mxu0 0.0
    %4218 = vmatpush1.msra.mxu0 0.0
    %4219 = vmatprep.subr.mxu0 0.0
    %4220 = vmatpush1.msra.mxu0 0.0
    %4221 = vmatprep.subr.mxu0 0.0
    %4222 = vmatpush1.msra.mxu0 0.0
    %4223 = vmatprep.subr.mxu0 0.0
    %4224 = vmatpush1.msra.mxu0 0.0
    %4225 = vmatprep.subr.mxu0 0.0
    %4226 = vmatpush1.msra.mxu0 0.0
    %4227 = vmatprep.subr.mxu0 0.0
    %4228 = vmatpush1.msra.mxu0 0.0
    %4229 = vmatprep.subr.mxu0 0.0
    %4230 = vmatpush1.msra.mxu0 0.0
    %4231 = vmatprep.subr.mxu0 0.0
    %4232 = vmatpush1.msra.mxu0 0.0
    %4233 = vmatprep.subr.mxu0 0.0
    %4234 = vmatpush1.msra.mxu0 0.0
    %4235 = vmatprep.subr.mxu0 0.0
    %4236 = vmatpush1.msra.mxu0 0.0
    %4237 = vmatprep.subr.mxu0 0.0
    %4238 = vmatpush1.msra.mxu0 0.0
    %4239 = vmatprep.subr.mxu0 0.0
    %4240 = vmatpush1.msra.mxu0 0.0
    %4241 = vmatprep.subr.mxu0 0.0
    %4242 = vmatpush1.msra.mxu0 0.0
    %4243 = vmatprep.subr.mxu0 0.0
    %4244 = vmatpush1.msra.mxu0 0.0
    %4245 = vmatprep.subr.mxu0 0.0
    %4246 = vmatpush1.msra.mxu0 0.0
    %4247 = vmatprep.subr.mxu0 0.0
    %4248 = vmatpush1.msra.mxu0 0.0
    %4249 = vmatprep.subr.mxu0 0.0
    %4250 = vmatpush1.msra.mxu0 0.0
    %4251 = vmatprep.subr.mxu0 0.0
    %4252 = vmatpush1.msra.mxu0 0.0
    %4253 = vmatprep.subr.mxu0 0.0
    %4254 = vmatpush1.msra.mxu0 0.0
    %4255 = vmatprep.mubr.f32.mxu0 0.0
    %4256 = vmatmul.mubr.f32.gmra.mrb[0].mxu0 %v4189
    %v4257 = vpop.f32.mrb[0].mxu0
    %v4258 = vadd.f32 0.0, %v4257
    %v4259 = vpop.f32.mrb[0].mxu0
    %4260 = vdwg.mxu0
    %v4261 = vpack.c.bf16 %v4258, %v4258
    %v4262 = vpack.c.bf16 %v4165, %v4165
    %v4264 = vsel %vm4187, %v4186, 0
    %4266 = vmatprep.subr.mxu0 0.0
    %4267 = vmatpush1.msra.mxu0 %v4165
    %4268 = vmatprep.subr.mxu0 0.0
    %4269 = vmatpush1.msra.mxu0 0.0
    %4270 = vmatprep.subr.mxu0 0.0
    %4271 = vmatpush1.msra.mxu0 0.0
    %4272 = vmatprep.subr.mxu0 0.0
    %4273 = vmatpush1.msra.mxu0 0.0
    %4274 = vmatprep.subr.mxu0 0.0
    %4275 = vmatpush1.msra.mxu0 0.0
    %4276 = vmatprep.subr.mxu0 0.0
    %4277 = vmatpush1.msra.mxu0 0.0
    %4278 = vmatprep.subr.mxu0 0.0
    %4279 = vmatpush1.msra.mxu0 0.0
    %4280 = vmatprep.subr.mxu0 0.0
    %4281 = vmatpush1.msra.mxu0 0.0
    %4282 = vmatprep.subr.mxu0 0.0
    %4283 = vmatpush1.msra.mxu0 0.0
    %4284 = vmatprep.subr.mxu0 0.0
    %4285 = vmatpush1.msra.mxu0 0.0
    %4286 = vmatprep.subr.mxu0 0.0
    %4287 = vmatpush1.msra.mxu0 0.0
    %4288 = vmatprep.subr.mxu0 0.0
    %4289 = vmatpush1.msra.mxu0 0.0
    %4290 = vmatprep.subr.mxu0 0.0
    %4291 = vmatpush1.msra.mxu0 0.0
    %4292 = vmatprep.subr.mxu0 0.0
    %4293 = vmatpush1.msra.mxu0 0.0
    %4294 = vmatprep.subr.mxu0 0.0
    %4295 = vmatpush1.msra.mxu0 0.0
    %4296 = vmatprep.subr.mxu0 0.0
    %4297 = vmatpush1.msra.mxu0 0.0
    %4298 = vmatprep.subr.mxu0 0.0
    %4299 = vmatpush1.msra.mxu0 0.0
    %4300 = vmatprep.subr.mxu0 0.0
    %4301 = vmatpush1.msra.mxu0 0.0
    %4302 = vmatprep.subr.mxu0 0.0
    %4303 = vmatpush1.msra.mxu0 0.0
    %4304 = vmatprep.subr.mxu0 0.0
    %4305 = vmatpush1.msra.mxu0 0.0
    %4306 = vmatprep.subr.mxu0 0.0
    %4307 = vmatpush1.msra.mxu0 0.0
    %4308 = vmatprep.subr.mxu0 0.0
    %4309 = vmatpush1.msra.mxu0 0.0
    %4310 = vmatprep.subr.mxu0 0.0
    %4311 = vmatpush1.msra.mxu0 0.0
    %4312 = vmatprep.subr.mxu0 0.0
    %4313 = vmatpush1.msra.mxu0 0.0
    %4314 = vmatprep.subr.mxu0 0.0
    %4315 = vmatpush1.msra.mxu0 0.0
    %4316 = vmatprep.subr.mxu0 0.0
    %4317 = vmatpush1.msra.mxu0 0.0
    %4318 = vmatprep.subr.mxu0 0.0
    %4319 = vmatpush1.msra.mxu0 0.0
    %4320 = vmatprep.subr.mxu0 0.0
    %4321 = vmatpush1.msra.mxu0 0.0
    %4322 = vmatprep.subr.mxu0 0.0
    %4323 = vmatpush1.msra.mxu0 0.0
    %4324 = vmatprep.subr.mxu0 0.0
    %4325 = vmatpush1.msra.mxu0 0.0
    %4326 = vmatprep.subr.mxu0 0.0
    %4327 = vmatpush1.msra.mxu0 0.0
    %4328 = vmatprep.subr.mxu0 0.0
    %4329 = vmatpush1.msra.mxu0 0.0
    %4330 = vmatprep.mubr.f32.mxu0 0.0
    %4331 = vmatmul.mubr.f32.gmra.mrb[0].mxu0 %v4264
    %v4332 = vpop.f32.mrb[0].mxu0
    %v4333 = vadd.f32 0.0, %v4332
    %v4334 = vpop.f32.mrb[0].mxu0
    %4335 = vdwg.mxu0
    %v4336 = vpack.c.bf16 %v4333, %v4333
    %v4337 = vld [vmem:[%s9] sm:$0xf]
    %v4338 = vld [vmem:[%s9 + $0x4] sm:$0xf]
    %v4339 = vld [vmem:[%s9 + $0x8] sm:$0xf]
    %v4340 = vld [vmem:[%s9 + $0xc] sm:$0xf]
    %v4341 = vld [vmem:[%s9 + $0x10] sm:$0xf]
    %v4342 = vld [vmem:[%s9 + $0x14] sm:$0xf]
    %v4343 = vld [vmem:[%s9 + $0x18] sm:$0xf]
    %v4344 = vld [vmem:[%s9 + $0x1c] sm:$0xf]
    %s4345 = scalar_lea.vmem %s9, 32
    %v4346 = vld [vmem:[%s4345] sm:$0xf]
    %v4347 = vld [vmem:[%s4345 + $0x4] sm:$0xf]
    %v4348 = vld [vmem:[%s4345 + $0x8] sm:$0xf]
    %v4349 = vld [vmem:[%s4345 + $0xc] sm:$0xf]
    %v4350 = vld [vmem:[%s4345 + $0x10] sm:$0xf]
    %v4351 = vld [vmem:[%s4345 + $0x14] sm:$0xf]
    %v4352 = vld [vmem:[%s4345 + $0x18] sm:$0xf]
    %v4353 = vld [vmem:[%s4345 + $0x1c] sm:$0xf]
    %v4362 = vunpack.c.l.b16 %v4346
    %v4363 = vunpack.c.l.b16 %v4347
    %v4364 = vunpack.c.l.b16 %v4348
    %v4365 = vunpack.c.l.b16 %v4349
    %v4366 = vunpack.c.l.b16 %v4350
    %v4367 = vunpack.c.l.b16 %v4351
    %v4368 = vunpack.c.l.b16 %v4352
    %v4369 = vunpack.c.l.b16 %v4353
    %v4370 = vpack.c.b16 %v4363, %v4362
    %v4371 = vpack.c.b16 %v4365, %v4364
    %v4372 = vpack.c.b16 %v4367, %v4366
    %v4373 = vpack.c.b16 %v4369, %v4368
    %v4379 = vsel %vm719, %v4262, 0
    %4381 = vmatprep.subr.bf16.mxu0 0
    %4382 = vmatpush1.bf16.msra.mxu0 %v4370
    %4383 = vmatprep.subr.bf16.mxu0 0
    %4384 = vmatpush1.bf16.msra.mxu0 %v4371
    %4385 = vmatprep.subr.bf16.mxu0 0
    %4386 = vmatpush1.bf16.msra.mxu0 %v4372
    %4387 = vmatprep.subr.bf16.mxu0 0
    %4388 = vmatpush1.bf16.msra.mxu0 %v4373
    %4389 = vmatprep.subr.bf16.mxu0 0
    %4390 = vmatpush1.bf16.msra.mxu0 0
    %4391 = vmatprep.subr.bf16.mxu0 0
    %4392 = vmatpush1.bf16.msra.mxu0 0
    %4393 = vmatprep.subr.bf16.mxu0 0
    %4394 = vmatpush1.bf16.msra.mxu0 0
    %4395 = vmatprep.subr.bf16.mxu0 0
    %4396 = vmatpush1.bf16.msra.mxu0 0
    %4397 = vmatprep.subr.bf16.mxu0 0
    %4398 = vmatpush1.bf16.msra.mxu0 0
    %4399 = vmatprep.subr.bf16.mxu0 0
    %4400 = vmatpush1.bf16.msra.mxu0 0
    %4401 = vmatprep.subr.bf16.mxu0 0
    %4402 = vmatpush1.bf16.msra.mxu0 0
    %4403 = vmatprep.subr.bf16.mxu0 0
    %4404 = vmatpush1.bf16.msra.mxu0 0
    %4405 = vmatprep.subr.bf16.mxu0 0
    %4406 = vmatpush1.bf16.msra.mxu0 0
    %4407 = vmatprep.subr.bf16.mxu0 0
    %4408 = vmatpush1.bf16.msra.mxu0 0
    %4409 = vmatprep.subr.bf16.mxu0 0
    %4410 = vmatpush1.bf16.msra.mxu0 0
    %4411 = vmatprep.subr.bf16.mxu0 0
    %4412 = vmatpush1.bf16.msra.mxu0 0
    %4413 = vmatprep.mubr.bf16.mxu0 0
    %4414 = vmatmul.mubr.bf16.gmra.mrb[0].mxu0 %v4379
    %v4415 = vpop.f32.mrb[0].mxu0
    %v4416 = vadd.f32 0.0, %v4415
    %v4417 = vpop.f32.mrb[0].mxu0
    %v4418 = vpop.f32.mrb[0].mxu0
    %v4419 = vpop.f32.mrb[0].mxu0
    %4420 = vdwg.mxu0
    %v4429 = vunpack.c.l.b16 %v4337
    %v4430 = vunpack.c.l.b16 %v4338
    %v4431 = vunpack.c.l.b16 %v4339
    %v4432 = vunpack.c.l.b16 %v4340
    %v4433 = vunpack.c.l.b16 %v4341
    %v4434 = vunpack.c.l.b16 %v4342
    %v4435 = vunpack.c.l.b16 %v4343
    %v4436 = vunpack.c.l.b16 %v4344
    %v4437 = vpack.c.b16 %v4430, %v4429
    %v4438 = vpack.c.b16 %v4432, %v4431
    %v4439 = vpack.c.b16 %v4434, %v4433
    %v4440 = vpack.c.b16 %v4436, %v4435
    %v4446 = vsel %vm719, %v4261, 0
    %4448 = vmatprep.subr.bf16.mxu0 0
    %4449 = vmatpush1.bf16.msra.mxu0 %v4437
    %4450 = vmatprep.subr.bf16.mxu0 0
    %4451 = vmatpush1.bf16.msra.mxu0 %v4438
    %4452 = vmatprep.subr.bf16.mxu0 0
    %4453 = vmatpush1.bf16.msra.mxu0 %v4439
    %4454 = vmatprep.subr.bf16.mxu0 0
    %4455 = vmatpush1.bf16.msra.mxu0 %v4440
    %4456 = vmatprep.subr.bf16.mxu0 0
    %4457 = vmatpush1.bf16.msra.mxu0 0
    %4458 = vmatprep.subr.bf16.mxu0 0
    %4459 = vmatpush1.bf16.msra.mxu0 0
    %4460 = vmatprep.subr.bf16.mxu0 0
    %4461 = vmatpush1.bf16.msra.mxu0 0
    %4462 = vmatprep.subr.bf16.mxu0 0
    %4463 = vmatpush1.bf16.msra.mxu0 0
    %4464 = vmatprep.subr.bf16.mxu0 0
    %4465 = vmatpush1.bf16.msra.mxu0 0
    %4466 = vmatprep.subr.bf16.mxu0 0
    %4467 = vmatpush1.bf16.msra.mxu0 0
    %4468 = vmatprep.subr.bf16.mxu0 0
    %4469 = vmatpush1.bf16.msra.mxu0 0
    %4470 = vmatprep.subr.bf16.mxu0 0
    %4471 = vmatpush1.bf16.msra.mxu0 0
    %4472 = vmatprep.subr.bf16.mxu0 0
    %4473 = vmatpush1.bf16.msra.mxu0 0
    %4474 = vmatprep.subr.bf16.mxu0 0
    %4475 = vmatpush1.bf16.msra.mxu0 0
    %4476 = vmatprep.subr.bf16.mxu0 0
    %4477 = vmatpush1.bf16.msra.mxu0 0
    %4478 = vmatprep.subr.bf16.mxu0 0
    %4479 = vmatpush1.bf16.msra.mxu0 0
    %4480 = vmatprep.mubr.bf16.mxu0 0
    %4481 = vmatmul.mubr.bf16.gmra.mrb[0].mxu0 %v4446
    %v4482 = vpop.f32.mrb[0].mxu0
    %v4483 = vadd.f32 %v4416, %v4482
    %v4484 = vpop.f32.mrb[0].mxu0
    %v4485 = vpop.f32.mrb[0].mxu0
    %v4486 = vpop.f32.mrb[0].mxu0
    %4487 = vdwg.mxu0
    %s4488 = scalar_lea.vmem %s9, 64
    %v4489 = vld [vmem:[%s4488] sm:$0xf]
    %v4490 = vld [vmem:[%s4488 + $0x4] sm:$0xf]
    %v4491 = vld [vmem:[%s4488 + $0x8] sm:$0xf]
    %v4492 = vld [vmem:[%s4488 + $0xc] sm:$0xf]
    %v4493 = vld [vmem:[%s4488 + $0x10] sm:$0xf]
    %v4494 = vld [vmem:[%s4488 + $0x14] sm:$0xf]
    %v4495 = vld [vmem:[%s4488 + $0x18] sm:$0xf]
    %v4496 = vld [vmem:[%s4488 + $0x1c] sm:$0xf]
    %v4505 = vunpack.c.l.b16 %v4489
    %v4506 = vunpack.c.l.b16 %v4490
    %v4507 = vunpack.c.l.b16 %v4491
    %v4508 = vunpack.c.l.b16 %v4492
    %v4509 = vunpack.c.l.b16 %v4493
    %v4510 = vunpack.c.l.b16 %v4494
    %v4511 = vunpack.c.l.b16 %v4495
    %v4512 = vunpack.c.l.b16 %v4496
    %v4513 = vpack.c.b16 %v4506, %v4505
    %v4514 = vpack.c.b16 %v4508, %v4507
    %v4515 = vpack.c.b16 %v4510, %v4509
    %v4516 = vpack.c.b16 %v4512, %v4511
    %v4522 = vsel %vm719, %v4336, 0
    %4524 = vmatprep.subr.bf16.mxu0 0
    %4525 = vmatpush1.bf16.msra.mxu0 %v4513
    %4526 = vmatprep.subr.bf16.mxu0 0
    %4527 = vmatpush1.bf16.msra.mxu0 %v4514
    %4528 = vmatprep.subr.bf16.mxu0 0
    %4529 = vmatpush1.bf16.msra.mxu0 %v4515
    %4530 = vmatprep.subr.bf16.mxu0 0
    %4531 = vmatpush1.bf16.msra.mxu0 %v4516
    %4532 = vmatprep.subr.bf16.mxu0 0
    %4533 = vmatpush1.bf16.msra.mxu0 0
    %4534 = vmatprep.subr.bf16.mxu0 0
    %4535 = vmatpush1.bf16.msra.mxu0 0
    %4536 = vmatprep.subr.bf16.mxu0 0
    %4537 = vmatpush1.bf16.msra.mxu0 0
    %4538 = vmatprep.subr.bf16.mxu0 0
    %4539 = vmatpush1.bf16.msra.mxu0 0
    %4540 = vmatprep.subr.bf16.mxu0 0
    %4541 = vmatpush1.bf16.msra.mxu0 0
    %4542 = vmatprep.subr.bf16.mxu0 0
    %4543 = vmatpush1.bf16.msra.mxu0 0
    %4544 = vmatprep.subr.bf16.mxu0 0
    %4545 = vmatpush1.bf16.msra.mxu0 0
    %4546 = vmatprep.subr.bf16.mxu0 0
    %4547 = vmatpush1.bf16.msra.mxu0 0
    %4548 = vmatprep.subr.bf16.mxu0 0
    %4549 = vmatpush1.bf16.msra.mxu0 0
    %4550 = vmatprep.subr.bf16.mxu0 0
    %4551 = vmatpush1.bf16.msra.mxu0 0
    %4552 = vmatprep.subr.bf16.mxu0 0
    %4553 = vmatpush1.bf16.msra.mxu0 0
    %4554 = vmatprep.subr.bf16.mxu0 0
    %4555 = vmatpush1.bf16.msra.mxu0 0
    %4556 = vmatprep.mubr.bf16.mxu0 0
    %4557 = vmatmul.mubr.bf16.gmra.mrb[0].mxu0 %v4522
    %v4558 = vpop.f32.mrb[0].mxu0
    %v4559 = vadd.f32 0.0, %v4558
    %v4560 = vpop.f32.mrb[0].mxu0
    %v4561 = vpop.f32.mrb[0].mxu0
    %v4562 = vpop.f32.mrb[0].mxu0
    %4563 = vdwg.mxu0
    %v4564 = vadd.f32 %v4483, %v4559
    %v4565 = vld [vmem:[%s10] sm:$0x1]
    %v4566 = vlaneseq
    %v4567 = vshrl.u32 %v4566, 7
    %v4568 = vsub.s32 0, %v4567
    %v4569 = vrot.slane %v4565, %v4568
    %v4570 = vadd.f32 %v4564, %v4569
    %v4571 = vsel %vm477, %v4570, 0.0
    %v4572 = vrot.slane %v4571, 4
    %v4573 = vadd.f32 %v4571, %v4572
    %v4574 = vrot.slane %v4573, 2
    %v4575 = vadd.f32 %v4573, %v4574
    %v4576 = vrot.slane %v4575, 1
    %v4577 = vadd.f32 %v4575, %v4576
    %v4579 = vsel %vm477, %v4577, 0
    %4581 = vmatprep.subr.mxu0 0.0
    %4582 = vmatpush1.msra.mxu0 %v461
    %4583 = vmatprep.subr.mxu0 0.0
    %4584 = vmatpush1.msra.mxu0 %v462
    %4585 = vmatprep.subr.mxu0 0.0
    %4586 = vmatpush1.msra.mxu0 %v463
    %4587 = vmatprep.subr.mxu0 0.0
    %4588 = vmatpush1.msra.mxu0 %v464
    %4589 = vmatprep.subr.mxu0 0.0
    %4590 = vmatpush1.msra.mxu0 0.0
    %4591 = vmatprep.subr.mxu0 0.0
    %4592 = vmatpush1.msra.mxu0 0.0
    %4593 = vmatprep.subr.mxu0 0.0
    %4594 = vmatpush1.msra.mxu0 0.0
    %4595 = vmatprep.subr.mxu0 0.0
    %4596 = vmatpush1.msra.mxu0 0.0
    %4597 = vmatprep.subr.mxu0 0.0
    %4598 = vmatpush1.msra.mxu0 0.0
    %4599 = vmatprep.subr.mxu0 0.0
    %4600 = vmatpush1.msra.mxu0 0.0
    %4601 = vmatprep.subr.mxu0 0.0
    %4602 = vmatpush1.msra.mxu0 0.0
    %4603 = vmatprep.subr.mxu0 0.0
    %4604 = vmatpush1.msra.mxu0 0.0
    %4605 = vmatprep.subr.mxu0 0.0
    %4606 = vmatpush1.msra.mxu0 0.0
    %4607 = vmatprep.subr.mxu0 0.0
    %4608 = vmatpush1.msra.mxu0 0.0
    %4609 = vmatprep.subr.mxu0 0.0
    %4610 = vmatpush1.msra.mxu0 0.0
    %4611 = vmatprep.subr.mxu0 0.0
    %4612 = vmatpush1.msra.mxu0 0.0
    %4613 = vmatprep.subr.mxu0 0.0
    %4614 = vmatpush1.msra.mxu0 0.0
    %4615 = vmatprep.subr.mxu0 0.0
    %4616 = vmatpush1.msra.mxu0 0.0
    %4617 = vmatprep.subr.mxu0 0.0
    %4618 = vmatpush1.msra.mxu0 0.0
    %4619 = vmatprep.subr.mxu0 0.0
    %4620 = vmatpush1.msra.mxu0 0.0
    %4621 = vmatprep.subr.mxu0 0.0
    %4622 = vmatpush1.msra.mxu0 0.0
    %4623 = vmatprep.subr.mxu0 0.0
    %4624 = vmatpush1.msra.mxu0 0.0
    %4625 = vmatprep.subr.mxu0 0.0
    %4626 = vmatpush1.msra.mxu0 0.0
    %4627 = vmatprep.subr.mxu0 0.0
    %4628 = vmatpush1.msra.mxu0 0.0
    %4629 = vmatprep.subr.mxu0 0.0
    %4630 = vmatpush1.msra.mxu0 0.0
    %4631 = vmatprep.subr.mxu0 0.0
    %4632 = vmatpush1.msra.mxu0 0.0
    %4633 = vmatprep.subr.mxu0 0.0
    %4634 = vmatpush1.msra.mxu0 0.0
    %4635 = vmatprep.subr.mxu0 0.0
    %4636 = vmatpush1.msra.mxu0 0.0
    %4637 = vmatprep.subr.mxu0 0.0
    %4638 = vmatpush1.msra.mxu0 0.0
    %4639 = vmatprep.subr.mxu0 0.0
    %4640 = vmatpush1.msra.mxu0 0.0
    %4641 = vmatprep.subr.mxu0 0.0
    %4642 = vmatpush1.msra.mxu0 0.0
    %4643 = vmatprep.subr.mxu0 0.0
    %4644 = vmatpush1.msra.mxu0 0.0
    %4645 = vmatprep.mubr.f32.mxu0 0.0
    %4646 = vmatmul.mubr.f32.gmra.mrb[0].mxu0 %v4579
    %v4647 = vpop.f32.mrb[0].mxu0
    %v4648 = vadd.f32 0.0, %v4647
    %v4649 = vpop.f32.mrb[0].mxu0
    %4650 = vdwg.mxu0
    %v4651 = vmul.f32 %v4648, 0.03125
    %v4652 = vlaneseq
    %v4653 = vshrl.u32 %v4652, 7
    %v4654 = vsub.s32 0, %v4653
    %v4655 = vrot.slane %v4651, %v4654
    %v4656 = vsub.f32 %v4570, %v4655
    %v4657 = vmul.f32 %v4656, %v4656
    %v4658 = vsel %vm477, %v4657, 0.0
    %v4659 = vrot.slane %v4658, 4
    %v4660 = vadd.f32 %v4658, %v4659
    %v4661 = vrot.slane %v4660, 2
    %v4662 = vadd.f32 %v4660, %v4661
    %v4663 = vrot.slane %v4662, 1
    %v4664 = vadd.f32 %v4662, %v4663
    %v4666 = vsel %vm477, %v4664, 0
    %4668 = vmatprep.subr.mxu0 0.0
    %4669 = vmatpush1.msra.mxu0 %v461
    %4670 = vmatprep.subr.mxu0 0.0
    %4671 = vmatpush1.msra.mxu0 %v462
    %4672 = vmatprep.subr.mxu0 0.0
    %4673 = vmatpush1.msra.mxu0 %v463
    %4674 = vmatprep.subr.mxu0 0.0
    %4675 = vmatpush1.msra.mxu0 %v464
    %4676 = vmatprep.subr.mxu0 0.0
    %4677 = vmatpush1.msra.mxu0 0.0
    %4678 = vmatprep.subr.mxu0 0.0
    %4679 = vmatpush1.msra.mxu0 0.0
    %4680 = vmatprep.subr.mxu0 0.0
    %4681 = vmatpush1.msra.mxu0 0.0
    %4682 = vmatprep.subr.mxu0 0.0
    %4683 = vmatpush1.msra.mxu0 0.0
    %4684 = vmatprep.subr.mxu0 0.0
    %4685 = vmatpush1.msra.mxu0 0.0
    %4686 = vmatprep.subr.mxu0 0.0
    %4687 = vmatpush1.msra.mxu0 0.0
    %4688 = vmatprep.subr.mxu0 0.0
    %4689 = vmatpush1.msra.mxu0 0.0
    %4690 = vmatprep.subr.mxu0 0.0
    %4691 = vmatpush1.msra.mxu0 0.0
    %4692 = vmatprep.subr.mxu0 0.0
    %4693 = vmatpush1.msra.mxu0 0.0
    %4694 = vmatprep.subr.mxu0 0.0
    %4695 = vmatpush1.msra.mxu0 0.0
    %4696 = vmatprep.subr.mxu0 0.0
    %4697 = vmatpush1.msra.mxu0 0.0
    %4698 = vmatprep.subr.mxu0 0.0
    %4699 = vmatpush1.msra.mxu0 0.0
    %4700 = vmatprep.subr.mxu0 0.0
    %4701 = vmatpush1.msra.mxu0 0.0
    %4702 = vmatprep.subr.mxu0 0.0
    %4703 = vmatpush1.msra.mxu0 0.0
    %4704 = vmatprep.subr.mxu0 0.0
    %4705 = vmatpush1.msra.mxu0 0.0
    %4706 = vmatprep.subr.mxu0 0.0
    %4707 = vmatpush1.msra.mxu0 0.0
    %4708 = vmatprep.subr.mxu0 0.0
    %4709 = vmatpush1.msra.mxu0 0.0
    %4710 = vmatprep.subr.mxu0 0.0
    %4711 = vmatpush1.msra.mxu0 0.0
    %4712 = vmatprep.subr.mxu0 0.0
    %4713 = vmatpush1.msra.mxu0 0.0
    %4714 = vmatprep.subr.mxu0 0.0
    %4715 = vmatpush1.msra.mxu0 0.0
    %4716 = vmatprep.subr.mxu0 0.0
    %4717 = vmatpush1.msra.mxu0 0.0
    %4718 = vmatprep.subr.mxu0 0.0
    %4719 = vmatpush1.msra.mxu0 0.0
    %4720 = vmatprep.subr.mxu0 0.0
    %4721 = vmatpush1.msra.mxu0 0.0
    %4722 = vmatprep.subr.mxu0 0.0
    %4723 = vmatpush1.msra.mxu0 0.0
    %4724 = vmatprep.subr.mxu0 0.0
    %4725 = vmatpush1.msra.mxu0 0.0
    %4726 = vmatprep.subr.mxu0 0.0
    %4727 = vmatpush1.msra.mxu0 0.0
    %4728 = vmatprep.subr.mxu0 0.0
    %4729 = vmatpush1.msra.mxu0 0.0
    %4730 = vmatprep.subr.mxu0 0.0
    %4731 = vmatpush1.msra.mxu0 0.0
    %4732 = vmatprep.mubr.f32.mxu0 0.0
    %4733 = vmatmul.mubr.f32.gmra.mrb[0].mxu0 %v4666
    %v4734 = vpop.f32.mrb[0].mxu0
    %v4735 = vadd.f32 0.0, %v4734
    %v4736 = vpop.f32.mrb[0].mxu0
    %4737 = vdwg.mxu0
    %v4738 = vmul.f32 %v4735, 0.03125
    %v4739 = vld [vmem:[%s10 + $0x1] sm:$0x1]
    %v4740 = vadd.f32 %v4738, 1e-05
    %v4741 = vrsqrt.pop %v4740
    %v4742 = vmul.f32 %v4739, %v4741
    %v4743 = vlaneseq
    %v4744 = vshrl.u32 %v4743, 7
    %v4745 = vsub.s32 0, %v4744
    %v4746 = vrot.slane %v4742, %v4745
    %v4747 = vmul.f32 %v4656, %v4746
    %v4748 = vld [vmem:[%s10 + $0x2] sm:$0x1]
    %v4749 = vlaneseq
    %v4750 = vshrl.u32 %v4749, 7
    %v4751 = vsub.s32 0, %v4750
    %v4752 = vrot.slane %v4748, %v4751
    %v4753 = vadd.f32 %v4747, %v4752
    %v4754 = vmax.f32 %v4753, 0.0
    %4755 = vmatprep.subr.mxu0 0.0
    %4756 = vmatpush1.msra.mxu0 %v4754
    %4757 = vmatprep.subr.mxu0 0.0
    %4758 = vmatpush1.msra.mxu0 0.0
    %4759 = vmatprep.subr.mxu0 0.0
    %4760 = vmatpush1.msra.mxu0 0.0
    %4761 = vmatprep.subr.mxu0 0.0
    %4762 = vmatpush1.msra.mxu0 0.0
    %4763 = vmatprep.subr.mxu0 0.0
    %4764 = vmatpush1.msra.mxu0 0.0
    %4765 = vmatprep.subr.mxu0 0.0
    %4766 = vmatpush1.msra.mxu0 0.0
    %4767 = vmatprep.subr.mxu0 0.0
    %4768 = vmatpush1.msra.mxu0 0.0
    %4769 = vmatprep.subr.mxu0 0.0
    %4770 = vmatpush1.msra.mxu0 0.0
    %4771 = vmatprep.subr.mxu0 0.0
    %4772 = vmatpush1.msra.mxu0 0.0
    %4773 = vmatprep.subr.mxu0 0.0
    %4774 = vmatpush1.msra.mxu0 0.0
    %4775 = vmatprep.subr.mxu0 0.0
    %4776 = vmatpush1.msra.mxu0 0.0
    %4777 = vmatprep.subr.mxu0 0.0
    %4778 = vmatpush1.msra.mxu0 0.0
    %4779 = vmatprep.subr.mxu0 0.0
    %4780 = vmatpush1.msra.mxu0 0.0
    %4781 = vmatprep.subr.mxu0 0.0
    %4782 = vmatpush1.msra.mxu0 0.0
    %4783 = vmatprep.subr.mxu0 0.0
    %4784 = vmatpush1.msra.mxu0 0.0
    %4785 = vmatprep.subr.mxu0 0.0
    %4786 = vmatpush1.msra.mxu0 0.0
    %4787 = vmatprep.subr.mxu0 0.0
    %4788 = vmatpush1.msra.mxu0 0.0
    %4789 = vmatprep.subr.mxu0 0.0
    %4790 = vmatpush1.msra.mxu0 0.0
    %4791 = vmatprep.subr.mxu0 0.0
    %4792 = vmatpush1.msra.mxu0 0.0
    %4793 = vmatprep.subr.mxu0 0.0
    %4794 = vmatpush1.msra.mxu0 0.0
    %4795 = vmatprep.subr.mxu0 0.0
    %4796 = vmatpush1.msra.mxu0 0.0
    %4797 = vmatprep.subr.mxu0 0.0
    %4798 = vmatpush1.msra.mxu0 0.0
    %4799 = vmatprep.subr.mxu0 0.0
    %4800 = vmatpush1.msra.mxu0 0.0
    %4801 = vmatprep.subr.mxu0 0.0
    %4802 = vmatpush1.msra.mxu0 0.0
    %4803 = vmatprep.subr.mxu0 0.0
    %4804 = vmatpush1.msra.mxu0 0.0
    %4805 = vmatprep.subr.mxu0 0.0
    %4806 = vmatpush1.msra.mxu0 0.0
    %4807 = vmatprep.subr.mxu0 0.0
    %4808 = vmatpush1.msra.mxu0 0.0
    %4809 = vmatprep.subr.mxu0 0.0
    %4810 = vmatpush1.msra.mxu0 0.0
    %4811 = vmatprep.subr.mxu0 0.0
    %4812 = vmatpush1.msra.mxu0 0.0
    %4813 = vmatprep.subr.mxu0 0.0
    %4814 = vmatpush1.msra.mxu0 0.0
    %4815 = vmatprep.subr.mxu0 0.0
    %4816 = vmatpush1.msra.mxu0 0.0
    %4817 = vmatprep.subr.mxu0 0.0
    %4818 = vmatpush1.msra.mxu0 0.0
    %4819 = vmatprep.mubr.f32.mxu0 0.0
    %4820 = vmatmul.mubr.f32.gmra.mrb[0].mxu0 %v4189
    %v4821 = vpop.f32.mrb[0].mxu0
    %v4822 = vadd.f32 0.0, %v4821
    %v4823 = vpop.f32.mrb[0].mxu0
    %4824 = vdwg.mxu0
    %v4825 = vpack.c.bf16 %v4822, %v4822
    %v4826 = vpack.c.bf16 %v4754, %v4754
    %4827 = vmatprep.subr.mxu0 0.0
    %4828 = vmatpush1.msra.mxu0 %v4754
    %4829 = vmatprep.subr.mxu0 0.0
    %4830 = vmatpush1.msra.mxu0 0.0
    %4831 = vmatprep.subr.mxu0 0.0
    %4832 = vmatpush1.msra.mxu0 0.0
    %4833 = vmatprep.subr.mxu0 0.0
    %4834 = vmatpush1.msra.mxu0 0.0
    %4835 = vmatprep.subr.mxu0 0.0
    %4836 = vmatpush1.msra.mxu0 0.0
    %4837 = vmatprep.subr.mxu0 0.0
    %4838 = vmatpush1.msra.mxu0 0.0
    %4839 = vmatprep.subr.mxu0 0.0
    %4840 = vmatpush1.msra.mxu0 0.0
    %4841 = vmatprep.subr.mxu0 0.0
    %4842 = vmatpush1.msra.mxu0 0.0
    %4843 = vmatprep.subr.mxu0 0.0
    %4844 = vmatpush1.msra.mxu0 0.0
    %4845 = vmatprep.subr.mxu0 0.0
    %4846 = vmatpush1.msra.mxu0 0.0
    %4847 = vmatprep.subr.mxu0 0.0
    %4848 = vmatpush1.msra.mxu0 0.0
    %4849 = vmatprep.subr.mxu0 0.0
    %4850 = vmatpush1.msra.mxu0 0.0
    %4851 = vmatprep.subr.mxu0 0.0
    %4852 = vmatpush1.msra.mxu0 0.0
    %4853 = vmatprep.subr.mxu0 0.0
    %4854 = vmatpush1.msra.mxu0 0.0
    %4855 = vmatprep.subr.mxu0 0.0
    %4856 = vmatpush1.msra.mxu0 0.0
    %4857 = vmatprep.subr.mxu0 0.0
    %4858 = vmatpush1.msra.mxu0 0.0
    %4859 = vmatprep.subr.mxu0 0.0
    %4860 = vmatpush1.msra.mxu0 0.0
    %4861 = vmatprep.subr.mxu0 0.0
    %4862 = vmatpush1.msra.mxu0 0.0
    %4863 = vmatprep.subr.mxu0 0.0
    %4864 = vmatpush1.msra.mxu0 0.0
    %4865 = vmatprep.subr.mxu0 0.0
    %4866 = vmatpush1.msra.mxu0 0.0
    %4867 = vmatprep.subr.mxu0 0.0
    %4868 = vmatpush1.msra.mxu0 0.0
    %4869 = vmatprep.subr.mxu0 0.0
    %4870 = vmatpush1.msra.mxu0 0.0
    %4871 = vmatprep.subr.mxu0 0.0
    %4872 = vmatpush1.msra.mxu0 0.0
    %4873 = vmatprep.subr.mxu0 0.0
    %4874 = vmatpush1.msra.mxu0 0.0
    %4875 = vmatprep.subr.mxu0 0.0
    %4876 = vmatpush1.msra.mxu0 0.0
    %4877 = vmatprep.subr.mxu0 0.0
    %4878 = vmatpush1.msra.mxu0 0.0
    %4879 = vmatprep.subr.mxu0 0.0
    %4880 = vmatpush1.msra.mxu0 0.0
    %4881 = vmatprep.subr.mxu0 0.0
    %4882 = vmatpush1.msra.mxu0 0.0
    %4883 = vmatprep.subr.mxu0 0.0
    %4884 = vmatpush1.msra.mxu0 0.0
    %4885 = vmatprep.subr.mxu0 0.0
    %4886 = vmatpush1.msra.mxu0 0.0
    %4887 = vmatprep.subr.mxu0 0.0
    %4888 = vmatpush1.msra.mxu0 0.0
    %4889 = vmatprep.subr.mxu0 0.0
    %4890 = vmatpush1.msra.mxu0 0.0
    %4891 = vmatprep.mubr.f32.mxu0 0.0
    %4892 = vmatmul.mubr.f32.gmra.mrb[0].mxu0 %v4264
    %v4893 = vpop.f32.mrb[0].mxu0
    %v4894 = vadd.f32 0.0, %v4893
    %v4895 = vpop.f32.mrb[0].mxu0
    %4896 = vdwg.mxu0
    %v4897 = vpack.c.bf16 %v4894, %v4894
    %v4898 = vld [vmem:[%s11] sm:$0xf]
    %v4899 = vld [vmem:[%s11 + $0x4] sm:$0xf]
    %v4900 = vld [vmem:[%s11 + $0x8] sm:$0xf]
    %v4901 = vld [vmem:[%s11 + $0xc] sm:$0xf]
    %s4902 = scalar_lea.vmem %s11, 16
    %v4903 = vld [vmem:[%s4902] sm:$0xf]
    %v4904 = vld [vmem:[%s4902 + $0x4] sm:$0xf]
    %v4905 = vld [vmem:[%s4902 + $0x8] sm:$0xf]
    %v4906 = vld [vmem:[%s4902 + $0xc] sm:$0xf]
    %v4911 = vunpack.c.l.b16 %v4903
    %v4912 = vunpack.c.l.b16 %v4904
    %v4913 = vunpack.c.l.b16 %v4905
    %v4914 = vunpack.c.l.b16 %v4906
    %v4915 = vpack.c.b16 %v4912, %v4911
    %v4916 = vpack.c.b16 %v4914, %v4913
    %v4920 = vsel %vm477, %v4826, 0
    %4922 = vmatprep.subr.bf16.mxu0 0
    %4923 = vmatpush1.bf16.msra.mxu0 %v4915
    %4924 = vmatprep.subr.bf16.mxu0 0
    %4925 = vmatpush1.bf16.msra.mxu0 %v4916
    %4926 = vmatprep.subr.bf16.mxu0 0
    %4927 = vmatpush1.bf16.msra.mxu0 0
    %4928 = vmatprep.subr.bf16.mxu0 0
    %4929 = vmatpush1.bf16.msra.mxu0 0
    %4930 = vmatprep.subr.bf16.mxu0 0
    %4931 = vmatpush1.bf16.msra.mxu0 0
    %4932 = vmatprep.subr.bf16.mxu0 0
    %4933 = vmatpush1.bf16.msra.mxu0 0
    %4934 = vmatprep.subr.bf16.mxu0 0
    %4935 = vmatpush1.bf16.msra.mxu0 0
    %4936 = vmatprep.subr.bf16.mxu0 0
    %4937 = vmatpush1.bf16.msra.mxu0 0
    %4938 = vmatprep.subr.bf16.mxu0 0
    %4939 = vmatpush1.bf16.msra.mxu0 0
    %4940 = vmatprep.subr.bf16.mxu0 0
    %4941 = vmatpush1.bf16.msra.mxu0 0
    %4942 = vmatprep.subr.bf16.mxu0 0
    %4943 = vmatpush1.bf16.msra.mxu0 0
    %4944 = vmatprep.subr.bf16.mxu0 0
    %4945 = vmatpush1.bf16.msra.mxu0 0
    %4946 = vmatprep.subr.bf16.mxu0 0
    %4947 = vmatpush1.bf16.msra.mxu0 0
    %4948 = vmatprep.subr.bf16.mxu0 0
    %4949 = vmatpush1.bf16.msra.mxu0 0
    %4950 = vmatprep.subr.bf16.mxu0 0
    %4951 = vmatpush1.bf16.msra.mxu0 0
    %4952 = vmatprep.subr.bf16.mxu0 0
    %4953 = vmatpush1.bf16.msra.mxu0 0
    %4954 = vmatprep.mubr.bf16.mxu0 0
    %4955 = vmatmul.mubr.bf16.gmra.mrb[0].mxu0 %v4920
    %v4956 = vpop.f32.mrb[0].mxu0
    %v4957 = vadd.f32 0.0, %v4956
    %v4958 = vpop.f32.mrb[0].mxu0
    %v4959 = vpop.f32.mrb[0].mxu0
    %v4960 = vpop.f32.mrb[0].mxu0
    %4961 = vdwg.mxu0
    %v4966 = vunpack.c.l.b16 %v4898
    %v4967 = vunpack.c.l.b16 %v4899
    %v4968 = vunpack.c.l.b16 %v4900
    %v4969 = vunpack.c.l.b16 %v4901
    %v4970 = vpack.c.b16 %v4967, %v4966
    %v4971 = vpack.c.b16 %v4969, %v4968
    %v4975 = vsel %vm477, %v4825, 0
    %4977 = vmatprep.subr.bf16.mxu0 0
    %4978 = vmatpush1.bf16.msra.mxu0 %v4970
    %4979 = vmatprep.subr.bf16.mxu0 0
    %4980 = vmatpush1.bf16.msra.mxu0 %v4971
    %4981 = vmatprep.subr.bf16.mxu0 0
    %4982 = vmatpush1.bf16.msra.mxu0 0
    %4983 = vmatprep.subr.bf16.mxu0 0
    %4984 = vmatpush1.bf16.msra.mxu0 0
    %4985 = vmatprep.subr.bf16.mxu0 0
    %4986 = vmatpush1.bf16.msra.mxu0 0
    %4987 = vmatprep.subr.bf16.mxu0 0
    %4988 = vmatpush1.bf16.msra.mxu0 0
    %4989 = vmatprep.subr.bf16.mxu0 0
    %4990 = vmatpush1.bf16.msra.mxu0 0
    %4991 = vmatprep.subr.bf16.mxu0 0
    %4992 = vmatpush1.bf16.msra.mxu0 0
    %4993 = vmatprep.subr.bf16.mxu0 0
    %4994 = vmatpush1.bf16.msra.mxu0 0
    %4995 = vmatprep.subr.bf16.mxu0 0
    %4996 = vmatpush1.bf16.msra.mxu0 0
    %4997 = vmatprep.subr.bf16.mxu0 0
    %4998 = vmatpush1.bf16.msra.mxu0 0
    %4999 = vmatprep.subr.bf16.mxu0 0
    %5000 = vmatpush1.bf16.msra.mxu0 0
    %5001 = vmatprep.subr.bf16.mxu0 0
    %5002 = vmatpush1.bf16.msra.mxu0 0
    %5003 = vmatprep.subr.bf16.mxu0 0
    %5004 = vmatpush1.bf16.msra.mxu0 0
    %5005 = vmatprep.subr.bf16.mxu0 0
    %5006 = vmatpush1.bf16.msra.mxu0 0
    %5007 = vmatprep.subr.bf16.mxu0 0
    %5008 = vmatpush1.bf16.msra.mxu0 0
    %5009 = vmatprep.mubr.bf16.mxu0 0
    %5010 = vmatmul.mubr.bf16.gmra.mrb[0].mxu0 %v4975
    %v5011 = vpop.f32.mrb[0].mxu0
    %v5012 = vadd.f32 %v4957, %v5011
    %v5013 = vpop.f32.mrb[0].mxu0
    %v5014 = vpop.f32.mrb[0].mxu0
    %v5015 = vpop.f32.mrb[0].mxu0
    %5016 = vdwg.mxu0
    %s5017 = scalar_lea.vmem %s11, 32
    %v5018 = vld [vmem:[%s5017] sm:$0xf]
    %v5019 = vld [vmem:[%s5017 + $0x4] sm:$0xf]
    %v5020 = vld [vmem:[%s5017 + $0x8] sm:$0xf]
    %v5021 = vld [vmem:[%s5017 + $0xc] sm:$0xf]
    %v5026 = vunpack.c.l.b16 %v5018
    %v5027 = vunpack.c.l.b16 %v5019
    %v5028 = vunpack.c.l.b16 %v5020
    %v5029 = vunpack.c.l.b16 %v5021
    %v5030 = vpack.c.b16 %v5027, %v5026
    %v5031 = vpack.c.b16 %v5029, %v5028
    %v5035 = vsel %vm477, %v4897, 0
    %5037 = vmatprep.subr.bf16.mxu0 0
    %5038 = vmatpush1.bf16.msra.mxu0 %v5030
    %5039 = vmatprep.subr.bf16.mxu0 0
    %5040 = vmatpush1.bf16.msra.mxu0 %v5031
    %5041 = vmatprep.subr.bf16.mxu0 0
    %5042 = vmatpush1.bf16.msra.mxu0 0
    %5043 = vmatprep.subr.bf16.mxu0 0
    %5044 = vmatpush1.bf16.msra.mxu0 0
    %5045 = vmatprep.subr.bf16.mxu0 0
    %5046 = vmatpush1.bf16.msra.mxu0 0
    %5047 = vmatprep.subr.bf16.mxu0 0
    %5048 = vmatpush1.bf16.msra.mxu0 0
    %5049 = vmatprep.subr.bf16.mxu0 0
    %5050 = vmatpush1.bf16.msra.mxu0 0
    %5051 = vmatprep.subr.bf16.mxu0 0
    %5052 = vmatpush1.bf16.msra.mxu0 0
    %5053 = vmatprep.subr.bf16.mxu0 0
    %5054 = vmatpush1.bf16.msra.mxu0 0
    %5055 = vmatprep.subr.bf16.mxu0 0
    %5056 = vmatpush1.bf16.msra.mxu0 0
    %5057 = vmatprep.subr.bf16.mxu0 0
    %5058 = vmatpush1.bf16.msra.mxu0 0
    %5059 = vmatprep.subr.bf16.mxu0 0
    %5060 = vmatpush1.bf16.msra.mxu0 0
    %5061 = vmatprep.subr.bf16.mxu0 0
    %5062 = vmatpush1.bf16.msra.mxu0 0
    %5063 = vmatprep.subr.bf16.mxu0 0
    %5064 = vmatpush1.bf16.msra.mxu0 0
    %5065 = vmatprep.subr.bf16.mxu0 0
    %5066 = vmatpush1.bf16.msra.mxu0 0
    %5067 = vmatprep.subr.bf16.mxu0 0
    %5068 = vmatpush1.bf16.msra.mxu0 0
    %5069 = vmatprep.mubr.bf16.mxu0 0
    %5070 = vmatmul.mubr.bf16.gmra.mrb[0].mxu0 %v5035
    %v5071 = vpop.f32.mrb[0].mxu0
    %v5072 = vadd.f32 0.0, %v5071
    %v5073 = vpop.f32.mrb[0].mxu0
    %v5074 = vpop.f32.mrb[0].mxu0
    %v5075 = vpop.f32.mrb[0].mxu0
    %5076 = vdwg.mxu0
    %v5077 = vadd.f32 %v5012, %v5072
    %v5078 = vld [vmem:[%s12] sm:$0x1]
    %v5079 = vlaneseq
    %v5080 = vshrl.u32 %v5079, 7
    %v5081 = vsub.s32 0, %v5080
    %v5082 = vrot.slane %v5078, %v5081
    %v5083 = vadd.f32 %v5077, %v5082
    %v5084 = vsel %vm477, %v5083, 0.0
    %v5085 = vrot.slane %v5084, 4
    %v5086 = vadd.f32 %v5084, %v5085
    %v5087 = vrot.slane %v5086, 2
    %v5088 = vadd.f32 %v5086, %v5087
    %v5089 = vrot.slane %v5088, 1
    %v5090 = vadd.f32 %v5088, %v5089
    %v5092 = vsel %vm477, %v5090, 0
    %5094 = vmatprep.subr.mxu0 0.0
    %5095 = vmatpush1.msra.mxu0 %v461
    %5096 = vmatprep.subr.mxu0 0.0
    %5097 = vmatpush1.msra.mxu0 %v462
    %5098 = vmatprep.subr.mxu0 0.0
    %5099 = vmatpush1.msra.mxu0 %v463
    %5100 = vmatprep.subr.mxu0 0.0
    %5101 = vmatpush1.msra.mxu0 %v464
    %5102 = vmatprep.subr.mxu0 0.0
    %5103 = vmatpush1.msra.mxu0 0.0
    %5104 = vmatprep.subr.mxu0 0.0
    %5105 = vmatpush1.msra.mxu0 0.0
    %5106 = vmatprep.subr.mxu0 0.0
    %5107 = vmatpush1.msra.mxu0 0.0
    %5108 = vmatprep.subr.mxu0 0.0
    %5109 = vmatpush1.msra.mxu0 0.0
    %5110 = vmatprep.subr.mxu0 0.0
    %5111 = vmatpush1.msra.mxu0 0.0
    %5112 = vmatprep.subr.mxu0 0.0
    %5113 = vmatpush1.msra.mxu0 0.0
    %5114 = vmatprep.subr.mxu0 0.0
    %5115 = vmatpush1.msra.mxu0 0.0
    %5116 = vmatprep.subr.mxu0 0.0
    %5117 = vmatpush1.msra.mxu0 0.0
    %5118 = vmatprep.subr.mxu0 0.0
    %5119 = vmatpush1.msra.mxu0 0.0
    %5120 = vmatprep.subr.mxu0 0.0
    %5121 = vmatpush1.msra.mxu0 0.0
    %5122 = vmatprep.subr.mxu0 0.0
    %5123 = vmatpush1.msra.mxu0 0.0
    %5124 = vmatprep.subr.mxu0 0.0
    %5125 = vmatpush1.msra.mxu0 0.0
    %5126 = vmatprep.subr.mxu0 0.0
    %5127 = vmatpush1.msra.mxu0 0.0
    %5128 = vmatprep.subr.mxu0 0.0
    %5129 = vmatpush1.msra.mxu0 0.0
    %5130 = vmatprep.subr.mxu0 0.0
    %5131 = vmatpush1.msra.mxu0 0.0
    %5132 = vmatprep.subr.mxu0 0.0
    %5133 = vmatpush1.msra.mxu0 0.0
    %5134 = vmatprep.subr.mxu0 0.0
    %5135 = vmatpush1.msra.mxu0 0.0
    %5136 = vmatprep.subr.mxu0 0.0
    %5137 = vmatpush1.msra.mxu0 0.0
    %5138 = vmatprep.subr.mxu0 0.0
    %5139 = vmatpush1.msra.mxu0 0.0
    %5140 = vmatprep.subr.mxu0 0.0
    %5141 = vmatpush1.msra.mxu0 0.0
    %5142 = vmatprep.subr.mxu0 0.0
    %5143 = vmatpush1.msra.mxu0 0.0
    %5144 = vmatprep.subr.mxu0 0.0
    %5145 = vmatpush1.msra.mxu0 0.0
    %5146 = vmatprep.subr.mxu0 0.0
    %5147 = vmatpush1.msra.mxu0 0.0
    %5148 = vmatprep.subr.mxu0 0.0
    %5149 = vmatpush1.msra.mxu0 0.0
    %5150 = vmatprep.subr.mxu0 0.0
    %5151 = vmatpush1.msra.mxu0 0.0
    %5152 = vmatprep.subr.mxu0 0.0
    %5153 = vmatpush1.msra.mxu0 0.0
    %5154 = vmatprep.subr.mxu0 0.0
    %5155 = vmatpush1.msra.mxu0 0.0
    %5156 = vmatprep.subr.mxu0 0.0
    %5157 = vmatpush1.msra.mxu0 0.0
    %5158 = vmatprep.mubr.f32.mxu0 0.0
    %5159 = vmatmul.mubr.f32.gmra.mrb[0].mxu0 %v5092
    %v5160 = vpop.f32.mrb[0].mxu0
    %v5161 = vadd.f32 0.0, %v5160
    %v5162 = vpop.f32.mrb[0].mxu0
    %5163 = vdwg.mxu0
    %v5164 = vmul.f32 %v5161, 0.03125
    %v5165 = vlaneseq
    %v5166 = vshrl.u32 %v5165, 7
    %v5167 = vsub.s32 0, %v5166
    %v5168 = vrot.slane %v5164, %v5167
    %v5169 = vsub.f32 %v5083, %v5168
    %v5170 = vmul.f32 %v5169, %v5169
    %v5171 = vsel %vm477, %v5170, 0.0
    %v5172 = vrot.slane %v5171, 4
    %v5173 = vadd.f32 %v5171, %v5172
    %v5174 = vrot.slane %v5173, 2
    %v5175 = vadd.f32 %v5173, %v5174
    %v5176 = vrot.slane %v5175, 1
    %v5177 = vadd.f32 %v5175, %v5176
    %v5179 = vsel %vm477, %v5177, 0
    %5181 = vmatprep.subr.mxu0 0.0
    %5182 = vmatpush1.msra.mxu0 %v461
    %5183 = vmatprep.subr.mxu0 0.0
    %5184 = vmatpush1.msra.mxu0 %v462
    %5185 = vmatprep.subr.mxu0 0.0
    %5186 = vmatpush1.msra.mxu0 %v463
    %5187 = vmatprep.subr.mxu0 0.0
    %5188 = vmatpush1.msra.mxu0 %v464
    %5189 = vmatprep.subr.mxu0 0.0
    %5190 = vmatpush1.msra.mxu0 0.0
    %5191 = vmatprep.subr.mxu0 0.0
    %5192 = vmatpush1.msra.mxu0 0.0
    %5193 = vmatprep.subr.mxu0 0.0
    %5194 = vmatpush1.msra.mxu0 0.0
    %5195 = vmatprep.subr.mxu0 0.0
    %5196 = vmatpush1.msra.mxu0 0.0
    %5197 = vmatprep.subr.mxu0 0.0
    %5198 = vmatpush1.msra.mxu0 0.0
    %5199 = vmatprep.subr.mxu0 0.0
    %5200 = vmatpush1.msra.mxu0 0.0
    %5201 = vmatprep.subr.mxu0 0.0
    %5202 = vmatpush1.msra.mxu0 0.0
    %5203 = vmatprep.subr.mxu0 0.0
    %5204 = vmatpush1.msra.mxu0 0.0
    %5205 = vmatprep.subr.mxu0 0.0
    %5206 = vmatpush1.msra.mxu0 0.0
    %5207 = vmatprep.subr.mxu0 0.0
    %5208 = vmatpush1.msra.mxu0 0.0
    %5209 = vmatprep.subr.mxu0 0.0
    %5210 = vmatpush1.msra.mxu0 0.0
    %5211 = vmatprep.subr.mxu0 0.0
    %5212 = vmatpush1.msra.mxu0 0.0
    %5213 = vmatprep.subr.mxu0 0.0
    %5214 = vmatpush1.msra.mxu0 0.0
    %5215 = vmatprep.subr.mxu0 0.0
    %5216 = vmatpush1.msra.mxu0 0.0
    %5217 = vmatprep.subr.mxu0 0.0
    %5218 = vmatpush1.msra.mxu0 0.0
    %5219 = vmatprep.subr.mxu0 0.0
    %5220 = vmatpush1.msra.mxu0 0.0
    %5221 = vmatprep.subr.mxu0 0.0
    %5222 = vmatpush1.msra.mxu0 0.0
    %5223 = vmatprep.subr.mxu0 0.0
    %5224 = vmatpush1.msra.mxu0 0.0
    %5225 = vmatprep.subr.mxu0 0.0
    %5226 = vmatpush1.msra.mxu0 0.0
    %5227 = vmatprep.subr.mxu0 0.0
    %5228 = vmatpush1.msra.mxu0 0.0
    %5229 = vmatprep.subr.mxu0 0.0
    %5230 = vmatpush1.msra.mxu0 0.0
    %5231 = vmatprep.subr.mxu0 0.0
    %5232 = vmatpush1.msra.mxu0 0.0
    %5233 = vmatprep.subr.mxu0 0.0
    %5234 = vmatpush1.msra.mxu0 0.0
    %5235 = vmatprep.subr.mxu0 0.0
    %5236 = vmatpush1.msra.mxu0 0.0
    %5237 = vmatprep.subr.mxu0 0.0
    %5238 = vmatpush1.msra.mxu0 0.0
    %5239 = vmatprep.subr.mxu0 0.0
    %5240 = vmatpush1.msra.mxu0 0.0
    %5241 = vmatprep.subr.mxu0 0.0
    %5242 = vmatpush1.msra.mxu0 0.0
    %5243 = vmatprep.subr.mxu0 0.0
    %5244 = vmatpush1.msra.mxu0 0.0
    %5245 = vmatprep.mubr.f32.mxu0 0.0
    %5246 = vmatmul.mubr.f32.gmra.mrb[0].mxu0 %v5179
    %v5247 = vpop.f32.mrb[0].mxu0
    %v5248 = vadd.f32 0.0, %v5247
    %v5249 = vpop.f32.mrb[0].mxu0
    %5250 = vdwg.mxu0
    %v5251 = vmul.f32 %v5248, 0.03125
    %v5252 = vld [vmem:[%s12 + $0x1] sm:$0x1]
    %v5253 = vadd.f32 %v5251, 1e-05
    %v5254 = vrsqrt.pop %v5253
    %v5255 = vmul.f32 %v5252, %v5254
    %v5256 = vlaneseq
    %v5257 = vshrl.u32 %v5256, 7
    %v5258 = vsub.s32 0, %v5257
    %v5259 = vrot.slane %v5255, %v5258
    %v5260 = vmul.f32 %v5169, %v5259
    %v5261 = vld [vmem:[%s12 + $0x2] sm:$0x1]
    %v5262 = vlaneseq
    %v5263 = vshrl.u32 %v5262, 7
    %v5264 = vsub.s32 0, %v5263
    %v5265 = vrot.slane %v5261, %v5264
    %v5266 = vadd.f32 %v5260, %v5265
    %v5267 = vmax.f32 %v5266, 0.0
    %v5268 = vpack.c.bf16 %v5267, %v5267
    %v5269 = vld [vmem:[%s14] sm:$0x1]
    %v5270 = vld [vmem:[%s13] sm:$0xf]
    %v5271 = vld [vmem:[%s13 + $0x4] sm:$0xf]
    %v5272 = vld [vmem:[%s13 + $0x8] sm:$0xf]
    %v5273 = vld [vmem:[%s13 + $0xc] sm:$0xf]
    %v5275 = vlaneseq
    %v5276 = vshrl.u32 %v5275, 7
    %v5277 = vsub.s32 0, %v5276
    %v5278 = vrot.slane %v5269, %v5277
    %v5284 = vunpack.c.l.b16 %v5270
    %v5285 = vunpack.c.l.b16 %v5271
    %v5286 = vunpack.c.l.b16 %v5272
    %v5287 = vunpack.c.l.b16 %v5273
    %v5288 = vpack.c.b16 %v5285, %v5284
    %v5289 = vpack.c.b16 %v5287, %v5286
    %v5293 = vsel %vm477, %v5268, 0
    %5295 = vmatprep.subr.bf16.mxu0 0
    %5296 = vmatpush1.bf16.msra.mxu0 %v5288
    %5297 = vmatprep.subr.bf16.mxu0 0
    %5298 = vmatpush1.bf16.msra.mxu0 %v5289
    %5299 = vmatprep.subr.bf16.mxu0 0
    %5300 = vmatpush1.bf16.msra.mxu0 0
    %5301 = vmatprep.subr.bf16.mxu0 0
    %5302 = vmatpush1.bf16.msra.mxu0 0
    %5303 = vmatprep.subr.bf16.mxu0 0
    %5304 = vmatpush1.bf16.msra.mxu0 0
    %5305 = vmatprep.subr.bf16.mxu0 0
    %5306 = vmatpush1.bf16.msra.mxu0 0
    %5307 = vmatprep.subr.bf16.mxu0 0
    %5308 = vmatpush1.bf16.msra.mxu0 0
    %5309 = vmatprep.subr.bf16.mxu0 0
    %5310 = vmatpush1.bf16.msra.mxu0 0
    %5311 = vmatprep.subr.bf16.mxu0 0
    %5312 = vmatpush1.bf16.msra.mxu0 0
    %5313 = vmatprep.subr.bf16.mxu0 0
    %5314 = vmatpush1.bf16.msra.mxu0 0
    %5315 = vmatprep.subr.bf16.mxu0 0
    %5316 = vmatpush1.bf16.msra.mxu0 0
    %5317 = vmatprep.subr.bf16.mxu0 0
    %5318 = vmatpush1.bf16.msra.mxu0 0
    %5319 = vmatprep.subr.bf16.mxu0 0
    %5320 = vmatpush1.bf16.msra.mxu0 0
    %5321 = vmatprep.subr.bf16.mxu0 0
    %5322 = vmatpush1.bf16.msra.mxu0 0
    %5323 = vmatprep.subr.bf16.mxu0 0
    %5324 = vmatpush1.bf16.msra.mxu0 0
    %5325 = vmatprep.subr.bf16.mxu0 0
    %5326 = vmatpush1.bf16.msra.mxu0 0
    %5327 = vmatprep.mubr.bf16.mxu0 0
    %5328 = vmatmul.mubr.bf16.gmra.mrb[0].mxu0 %v5293
    %v5329 = vpop.f32.mrb[0].mxu0
    %v5330 = vadd.f32 %v5278, %v5329
    %v5331 = vpop.f32.mrb[0].mxu0
    %v5332 = vpop.f32.mrb[0].mxu0
    %v5333 = vpop.f32.mrb[0].mxu0
    %5334 = vdwg.mxu0
    %s5335 = scalar_lea.vmem %s13, 16
    %v5336 = vld [vmem:[%s5335] sm:$0xf]
    %v5337 = vld [vmem:[%s5335 + $0x4] sm:$0xf]
    %v5338 = vld [vmem:[%s5335 + $0x8] sm:$0xf]
    %v5339 = vld [vmem:[%s5335 + $0xc] sm:$0xf]
    %v5344 = vunpack.c.l.b16 %v5336
    %v5345 = vunpack.c.l.b16 %v5337
    %v5346 = vunpack.c.l.b16 %v5338
    %v5347 = vunpack.c.l.b16 %v5339
    %v5348 = vpack.c.b16 %v5345, %v5344
    %v5349 = vpack.c.b16 %v5347, %v5346
    %5352 = vmatprep.subr.bf16.mxu0 0
    %5353 = vmatpush1.bf16.msra.mxu0 %v5348
    %5354 = vmatprep.subr.bf16.mxu0 0
    %5355 = vmatpush1.bf16.msra.mxu0 %v5349
    %5356 = vmatprep.subr.bf16.mxu0 0
    %5357 = vmatpush1.bf16.msra.mxu0 0
    %5358 = vmatprep.subr.bf16.mxu0 0
    %5359 = vmatpush1.bf16.msra.mxu0 0
    %5360 = vmatprep.subr.bf16.mxu0 0
    %5361 = vmatpush1.bf16.msra.mxu0 0
    %5362 = vmatprep.subr.bf16.mxu0 0
    %5363 = vmatpush1.bf16.msra.mxu0 0
    %5364 = vmatprep.subr.bf16.mxu0 0
    %5365 = vmatpush1.bf16.msra.mxu0 0
    %5366 = vmatprep.subr.bf16.mxu0 0
    %5367 = vmatpush1.bf16.msra.mxu0 0
    %5368 = vmatprep.subr.bf16.mxu0 0
    %5369 = vmatpush1.bf16.msra.mxu0 0
    %5370 = vmatprep.subr.bf16.mxu0 0
    %5371 = vmatpush1.bf16.msra.mxu0 0
    %5372 = vmatprep.subr.bf16.mxu0 0
    %5373 = vmatpush1.bf16.msra.mxu0 0
    %5374 = vmatprep.subr.bf16.mxu0 0
    %5375 = vmatpush1.bf16.msra.mxu0 0
    %5376 = vmatprep.subr.bf16.mxu0 0
    %5377 = vmatpush1.bf16.msra.mxu0 0
    %5378 = vmatprep.subr.bf16.mxu0 0
    %5379 = vmatpush1.bf16.msra.mxu0 0
    %5380 = vmatprep.subr.bf16.mxu0 0
    %5381 = vmatpush1.bf16.msra.mxu0 0
    %5382 = vmatprep.subr.bf16.mxu0 0
    %5383 = vmatpush1.bf16.msra.mxu0 0
    %5384 = vmatprep.mubr.bf16.mxu0 0
    %5385 = vmatmul.mubr.bf16.gmra.mrb[0].mxu0 %v5293
    %v5386 = vpop.f32.mrb[0].mxu0
    %v5387 = vadd.f32 %v5278, %v5386
    %v5388 = vpop.f32.mrb[0].mxu0
    %v5389 = vpop.f32.mrb[0].mxu0
    %v5390 = vpop.f32.mrb[0].mxu0
    %5391 = vdwg.mxu0
    %vm5392 = vcmp.eq.s32.totalorder %v111, %v2057
    %vm5393 = vcmp.eq.s32.totalorder %v112, %v2057
    %v5394 = vsel %vm5392, 1, 0
    %v5395 = vsel %vm5393, 1, 0
    %v5396 = vcvt.s32.f32 %v5394
    %v5397 = vcvt.s32.f32 %v5395
    %v5398 = vadd.s32 %v2057, 1
    %vm5399 = vcmp.eq.s32.totalorder %v111, %v5398
    %vm5400 = vcmp.eq.s32.totalorder %v112, %v5398
    %v5401 = vsel %vm5399, 1, 0
    %v5402 = vsel %vm5400, 1, 0
    %v5403 = vcvt.s32.f32 %v5401
    %v5404 = vcvt.s32.f32 %v5402
    %v5406 = vsel %vm4187, %v5403, 0
    %v5409 = vsel %vm4187, %v5404, 0
    %5411 = vmatprep.subr.mxu0 0.0
    %5412 = vmatpush1.msra.mxu0 %v5387
    %5413 = vmatprep.subr.mxu0 0.0
    %5414 = vmatpush1.msra.mxu0 0.0
    %5415 = vmatprep.subr.mxu0 0.0
    %5416 = vmatpush1.msra.mxu0 0.0
    %5417 = vmatprep.subr.mxu0 0.0
    %5418 = vmatpush1.msra.mxu0 0.0
    %5419 = vmatprep.subr.mxu0 0.0
    %5420 = vmatpush1.msra.mxu0 0.0
    %5421 = vmatprep.subr.mxu0 0.0
    %5422 = vmatpush1.msra.mxu0 0.0
    %5423 = vmatprep.subr.mxu0 0.0
    %5424 = vmatpush1.msra.mxu0 0.0
    %5425 = vmatprep.subr.mxu0 0.0
    %5426 = vmatpush1.msra.mxu0 0.0
    %5427 = vmatprep.subr.mxu0 0.0
    %5428 = vmatpush1.msra.mxu0 0.0
    %5429 = vmatprep.subr.mxu0 0.0
    %5430 = vmatpush1.msra.mxu0 0.0
    %5431 = vmatprep.subr.mxu0 0.0
    %5432 = vmatpush1.msra.mxu0 0.0
    %5433 = vmatprep.subr.mxu0 0.0
    %5434 = vmatpush1.msra.mxu0 0.0
    %5435 = vmatprep.subr.mxu0 0.0
    %5436 = vmatpush1.msra.mxu0 0.0
    %5437 = vmatprep.subr.mxu0 0.0
    %5438 = vmatpush1.msra.mxu0 0.0
    %5439 = vmatprep.subr.mxu0 0.0
    %5440 = vmatpush1.msra.mxu0 0.0
    %5441 = vmatprep.subr.mxu0 0.0
    %5442 = vmatpush1.msra.mxu0 0.0
    %5443 = vmatprep.subr.mxu0 0.0
    %5444 = vmatpush1.msra.mxu0 0.0
    %5445 = vmatprep.subr.mxu0 0.0
    %5446 = vmatpush1.msra.mxu0 0.0
    %5447 = vmatprep.subr.mxu0 0.0
    %5448 = vmatpush1.msra.mxu0 0.0
    %5449 = vmatprep.subr.mxu0 0.0
    %5450 = vmatpush1.msra.mxu0 0.0
    %5451 = vmatprep.subr.mxu0 0.0
    %5452 = vmatpush1.msra.mxu0 0.0
    %5453 = vmatprep.subr.mxu0 0.0
    %5454 = vmatpush1.msra.mxu0 0.0
    %5455 = vmatprep.subr.mxu0 0.0
    %5456 = vmatpush1.msra.mxu0 0.0
    %5457 = vmatprep.subr.mxu0 0.0
    %5458 = vmatpush1.msra.mxu0 0.0
    %5459 = vmatprep.subr.mxu0 0.0
    %5460 = vmatpush1.msra.mxu0 0.0
    %5461 = vmatprep.subr.mxu0 0.0
    %5462 = vmatpush1.msra.mxu0 0.0
    %5463 = vmatprep.subr.mxu0 0.0
    %5464 = vmatpush1.msra.mxu0 0.0
    %5465 = vmatprep.subr.mxu0 0.0
    %5466 = vmatpush1.msra.mxu0 0.0
    %5467 = vmatprep.subr.mxu0 0.0
    %5468 = vmatpush1.msra.mxu0 0.0
    %5469 = vmatprep.subr.mxu0 0.0
    %5470 = vmatpush1.msra.mxu0 0.0
    %5471 = vmatprep.subr.mxu0 0.0
    %5472 = vmatpush1.msra.mxu0 0.0
    %5473 = vmatprep.subr.mxu0 0.0
    %5474 = vmatpush1.msra.mxu0 0.0
    %5475 = vmatprep.mubr.f32.mxu0 0.0
    %5476 = vmatmul.mubr.f32.gmra.mrb[0].mxu0 %v5406
    %v5477 = vpop.f32.mrb[0].mxu0
    %v5478 = vadd.f32 0.0, %v5477
    %v5479 = vpop.f32.mrb[0].mxu0
    %5480 = vmatprep.mubr.f32.mxu0 0.0
    %5481 = vmatmul.mubr.f32.gmra.mrb[0].mxu0 %v5409
    %v5482 = vpop.f32.mrb[0].mxu0
    %v5483 = vadd.f32 0.0, %v5482
    %v5484 = vpop.f32.mrb[0].mxu0
    %5485 = vdwg.mxu0
    %v5487 = vsel %vm4187, %v5396, 0
    %v5490 = vsel %vm4187, %v5397, 0
    %5492 = vmatprep.subr.mxu0 0.0
    %5493 = vmatpush1.msra.mxu0 %v5330
    %5494 = vmatprep.subr.mxu0 0.0
    %5495 = vmatpush1.msra.mxu0 0.0
    %5496 = vmatprep.subr.mxu0 0.0
    %5497 = vmatpush1.msra.mxu0 0.0
    %5498 = vmatprep.subr.mxu0 0.0
    %5499 = vmatpush1.msra.mxu0 0.0
    %5500 = vmatprep.subr.mxu0 0.0
    %5501 = vmatpush1.msra.mxu0 0.0
    %5502 = vmatprep.subr.mxu0 0.0
    %5503 = vmatpush1.msra.mxu0 0.0
    %5504 = vmatprep.subr.mxu0 0.0
    %5505 = vmatpush1.msra.mxu0 0.0
    %5506 = vmatprep.subr.mxu0 0.0
    %5507 = vmatpush1.msra.mxu0 0.0
    %5508 = vmatprep.subr.mxu0 0.0
    %5509 = vmatpush1.msra.mxu0 0.0
    %5510 = vmatprep.subr.mxu0 0.0
    %5511 = vmatpush1.msra.mxu0 0.0
    %5512 = vmatprep.subr.mxu0 0.0
    %5513 = vmatpush1.msra.mxu0 0.0
    %5514 = vmatprep.subr.mxu0 0.0
    %5515 = vmatpush1.msra.mxu0 0.0
    %5516 = vmatprep.subr.mxu0 0.0
    %5517 = vmatpush1.msra.mxu0 0.0
    %5518 = vmatprep.subr.mxu0 0.0
    %5519 = vmatpush1.msra.mxu0 0.0
    %5520 = vmatprep.subr.mxu0 0.0
    %5521 = vmatpush1.msra.mxu0 0.0
    %5522 = vmatprep.subr.mxu0 0.0
    %5523 = vmatpush1.msra.mxu0 0.0
    %5524 = vmatprep.subr.mxu0 0.0
    %5525 = vmatpush1.msra.mxu0 0.0
    %5526 = vmatprep.subr.mxu0 0.0
    %5527 = vmatpush1.msra.mxu0 0.0
    %5528 = vmatprep.subr.mxu0 0.0
    %5529 = vmatpush1.msra.mxu0 0.0
    %5530 = vmatprep.subr.mxu0 0.0
    %5531 = vmatpush1.msra.mxu0 0.0
    %5532 = vmatprep.subr.mxu0 0.0
    %5533 = vmatpush1.msra.mxu0 0.0
    %5534 = vmatprep.subr.mxu0 0.0
    %5535 = vmatpush1.msra.mxu0 0.0
    %5536 = vmatprep.subr.mxu0 0.0
    %5537 = vmatpush1.msra.mxu0 0.0
    %5538 = vmatprep.subr.mxu0 0.0
    %5539 = vmatpush1.msra.mxu0 0.0
    %5540 = vmatprep.subr.mxu0 0.0
    %5541 = vmatpush1.msra.mxu0 0.0
    %5542 = vmatprep.subr.mxu0 0.0
    %5543 = vmatpush1.msra.mxu0 0.0
    %5544 = vmatprep.subr.mxu0 0.0
    %5545 = vmatpush1.msra.mxu0 0.0
    %5546 = vmatprep.subr.mxu0 0.0
    %5547 = vmatpush1.msra.mxu0 0.0
    %5548 = vmatprep.subr.mxu0 0.0
    %5549 = vmatpush1.msra.mxu0 0.0
    %5550 = vmatprep.subr.mxu0 0.0
    %5551 = vmatpush1.msra.mxu0 0.0
    %5552 = vmatprep.subr.mxu0 0.0
    %5553 = vmatpush1.msra.mxu0 0.0
    %5554 = vmatprep.subr.mxu0 0.0
    %5555 = vmatpush1.msra.mxu0 0.0
    %5556 = vmatprep.mubr.f32.mxu0 0.0
    %5557 = vmatmul.mubr.f32.gmra.mrb[0].mxu0 %v5487
    %v5558 = vpop.f32.mrb[0].mxu0
    %v5559 = vadd.f32 %v5478, %v5558
    %v5560 = vpop.f32.mrb[0].mxu0
    %5561 = vmatprep.mubr.f32.mxu0 0.0
    %5562 = vmatmul.mubr.f32.gmra.mrb[0].mxu0 %v5490
    %v5563 = vpop.f32.mrb[0].mxu0
    %v5564 = vadd.f32 %v5483, %v5563
    %v5565 = vpop.f32.mrb[0].mxu0
    %5566 = vdwg.mxu0
    %vm5567 = vcmp.lt.s32.totalorder %v112, 0
    %v5568 = vsub.s32 0, %v112
    %v5569 = vsel %vm5567, %v5568, %v112
    %v5570 = vshrl.u32 %v5569, 2
    %v5571 = vand.u32 %v5569, 3
    %v5572 = vsub.s32 0, %v5571
    %v5573 = vsel %vm5567, %v5572, %v5571
    %vm5574 = vcmp.lt.s32.totalorder %v113, 0
    %v5575 = vsub.s32 0, %v113
    %v5576 = vsel %vm5574, %v5575, %v113
    %v5577 = vshrl.u32 %v5576, 2
    %v5578 = vand.u32 %v5576, 3
    %v5579 = vsub.s32 0, %v5578
    %v5580 = vsel %vm5574, %v5579, %v5578
    %vm5581 = vcmp.lt.s32.totalorder %v114, 0
    %v5582 = vsub.s32 0, %v114
    %v5583 = vsel %vm5581, %v5582, %v114
    %v5584 = vshrl.u32 %v5583, 2
    %v5585 = vand.u32 %v5583, 3
    %v5586 = vsub.s32 0, %v5585
    %v5587 = vsel %vm5581, %v5586, %v5585
    %vm5588 = vcmp.ne.s32.totalorder %v5573, 0
    %vm5589 = vcmp.ne.s32.totalorder %v5580, 0
    %vm5590 = vcmp.ne.s32.totalorder %v5587, 0
    %vm5591 = vcmp.lt.s32.totalorder %v5573, 0
    %vm5592 = vcmp.lt.s32.totalorder %v5580, 0
    %vm5593 = vcmp.lt.s32.totalorder %v5587, 0
    %vm5594 = vmand %vm5591, %vm5588
    %vm5595 = vmand %vm5592, %vm5589
    %vm5596 = vmand %vm5593, %vm5590
    %v5597 = vadd.s32 %v5573, 4
    %v5598 = vadd.s32 %v5580, 4
    %v5599 = vadd.s32 %v5587, 4
    %v5600 = vsel %vm5594, %v5597, %v5573
    %v5601 = vsel %vm5595, %v5598, %v5580
    %v5602 = vsel %vm5596, %v5599, %v5587
    %vm5603 = vcmp.lt.s32.totalorder %v116, 0
    %v5604 = vsub.s32 0, %v116
    %v5605 = vsel %vm5603, %v5604, %v116
    %v5606 = vshrl.u32 %v5605, 2
    %v5607 = vand.u32 %v5605, 3
    %v5608 = vsub.s32 0, %v5607
    %v5609 = vsel %vm5603, %v5608, %v5607
    %vm5610 = vcmp.ne.s32.totalorder %v5609, 0
    %vm5611 = vcmp.lt.s32.totalorder %v5609, 0
    %vm5612 = vmand %vm5611, %vm5610
    %v5613 = vadd.s32 %v5609, 4
    %v5614 = vsel %vm5612, %v5613, %v5609
    %vm5615 = vcmp.eq.s32.totalorder %v4178, %v5614
    %vm5616 = vcmp.eq.s32.totalorder %v5600, %v5614
    %vm5617 = vcmp.eq.s32.totalorder %v5601, %v5614
    %vm5618 = vcmp.eq.s32.totalorder %v5602, %v5614
    %v5619 = vsel %vm5615, 1, 0
    %v5620 = vsel %vm5616, 1, 0
    %v5621 = vsel %vm5617, 1, 0
    %v5622 = vsel %vm5618, 1, 0
    %v5623 = vcvt.s32.f32 %v5619
    %v5624 = vcvt.s32.f32 %v5620
    %v5625 = vcvt.s32.f32 %v5621
    %v5626 = vcvt.s32.f32 %v5622
    %5627 = vmatprep.subr.mxu0 0.0
    %5628 = vmatpush1.msra.mxu0 %v5559
    %5629 = vmatprep.subr.mxu0 0.0
    %5630 = vmatpush1.msra.mxu0 %v5564
    %5631 = vmatprep.subr.mxu0 0.0
    %5632 = vmatpush1.msra.mxu0 0.0
    %5633 = vmatprep.subr.mxu0 0.0
    %5634 = vmatpush1.msra.mxu0 0.0
    %5635 = vmatprep.subr.mxu0 0.0
    %5636 = vmatpush1.msra.mxu0 0.0
    %5637 = vmatprep.subr.mxu0 0.0
    %5638 = vmatpush1.msra.mxu0 0.0
    %5639 = vmatprep.subr.mxu0 0.0
    %5640 = vmatpush1.msra.mxu0 0.0
    %5641 = vmatprep.subr.mxu0 0.0
    %5642 = vmatpush1.msra.mxu0 0.0
    %5643 = vmatprep.subr.mxu0 0.0
    %5644 = vmatpush1.msra.mxu0 0.0
    %5645 = vmatprep.subr.mxu0 0.0
    %5646 = vmatpush1.msra.mxu0 0.0
    %5647 = vmatprep.subr.mxu0 0.0
    %5648 = vmatpush1.msra.mxu0 0.0
    %5649 = vmatprep.subr.mxu0 0.0
    %5650 = vmatpush1.msra.mxu0 0.0
    %5651 = vmatprep.subr.mxu0 0.0
    %5652 = vmatpush1.msra.mxu0 0.0
    %5653 = vmatprep.subr.mxu0 0.0
    %5654 = vmatpush1.msra.mxu0 0.0
    %5655 = vmatprep.subr.mxu0 0.0
    %5656 = vmatpush1.msra.mxu0 0.0
    %5657 = vmatprep.subr.mxu0 0.0
    %5658 = vmatpush1.msra.mxu0 0.0
    %5659 = vmatprep.subr.mxu0 0.0
    %5660 = vmatpush1.msra.mxu0 0.0
    %5661 = vmatprep.subr.mxu0 0.0
    %5662 = vmatpush1.msra.mxu0 0.0
    %5663 = vmatprep.subr.mxu0 0.0
    %5664 = vmatpush1.msra.mxu0 0.0
    %5665 = vmatprep.subr.mxu0 0.0
    %5666 = vmatpush1.msra.mxu0 0.0
    %5667 = vmatprep.subr.mxu0 0.0
    %5668 = vmatpush1.msra.mxu0 0.0
    %5669 = vmatprep.subr.mxu0 0.0
    %5670 = vmatpush1.msra.mxu0 0.0
    %5671 = vmatprep.subr.mxu0 0.0
    %5672 = vmatpush1.msra.mxu0 0.0
    %5673 = vmatprep.subr.mxu0 0.0
    %5674 = vmatpush1.msra.mxu0 0.0
    %5675 = vmatprep.subr.mxu0 0.0
    %5676 = vmatpush1.msra.mxu0 0.0
    %5677 = vmatprep.subr.mxu0 0.0
    %5678 = vmatpush1.msra.mxu0 0.0
    %5679 = vmatprep.subr.mxu0 0.0
    %5680 = vmatpush1.msra.mxu0 0.0
    %5681 = vmatprep.subr.mxu0 0.0
    %5682 = vmatpush1.msra.mxu0 0.0
    %5683 = vmatprep.subr.mxu0 0.0
    %5684 = vmatpush1.msra.mxu0 0.0
    %5685 = vmatprep.subr.mxu0 0.0
    %5686 = vmatpush1.msra.mxu0 0.0
    %5687 = vmatprep.subr.mxu0 0.0
    %5688 = vmatpush1.msra.mxu0 0.0
    %5689 = vmatprep.subr.mxu0 0.0
    %5690 = vmatpush1.msra.mxu0 0.0
    %5691 = vmatprep.mubr.f32.mxu0 0.0
    %5692 = vmatmul.mubr.f32.gmra.mrb[0].mxu0 %v2530
    %v5693 = vpop.f32.mrb[0].mxu0
    %v5694 = vadd.f32 0.0, %v5693
    %v5695 = vpop.f32.mrb[0].mxu0
    %5696 = vmatprep.mubr.f32.mxu0 0.0
    %5697 = vmatmul.mubr.f32.gmra.mrb[0].mxu0 %v2533
    %v5698 = vpop.f32.mrb[0].mxu0
    %v5699 = vadd.f32 0.0, %v5698
    %v5700 = vpop.f32.mrb[0].mxu0
    %5701 = vdwg.mxu0
    %v5702 = vpack.c.bf16 %v5699, %v5694
    %v5703 = vpack.c.bf16 %v5564, %v5559
    %5704 = vmatprep.subr.mxu0 0.0
    %5705 = vmatpush1.msra.mxu0 %v5559
    %5706 = vmatprep.subr.mxu0 0.0
    %5707 = vmatpush1.msra.mxu0 %v5564
    %5708 = vmatprep.subr.mxu0 0.0
    %5709 = vmatpush1.msra.mxu0 0.0
    %5710 = vmatprep.subr.mxu0 0.0
    %5711 = vmatpush1.msra.mxu0 0.0
    %5712 = vmatprep.subr.mxu0 0.0
    %5713 = vmatpush1.msra.mxu0 0.0
    %5714 = vmatprep.subr.mxu0 0.0
    %5715 = vmatpush1.msra.mxu0 0.0
    %5716 = vmatprep.subr.mxu0 0.0
    %5717 = vmatpush1.msra.mxu0 0.0
    %5718 = vmatprep.subr.mxu0 0.0
    %5719 = vmatpush1.msra.mxu0 0.0
    %5720 = vmatprep.subr.mxu0 0.0
    %5721 = vmatpush1.msra.mxu0 0.0
    %5722 = vmatprep.subr.mxu0 0.0
    %5723 = vmatpush1.msra.mxu0 0.0
    %5724 = vmatprep.subr.mxu0 0.0
    %5725 = vmatpush1.msra.mxu0 0.0
    %5726 = vmatprep.subr.mxu0 0.0
    %5727 = vmatpush1.msra.mxu0 0.0
    %5728 = vmatprep.subr.mxu0 0.0
    %5729 = vmatpush1.msra.mxu0 0.0
    %5730 = vmatprep.subr.mxu0 0.0
    %5731 = vmatpush1.msra.mxu0 0.0
    %5732 = vmatprep.subr.mxu0 0.0
    %5733 = vmatpush1.msra.mxu0 0.0
    %5734 = vmatprep.subr.mxu0 0.0
    %5735 = vmatpush1.msra.mxu0 0.0
    %5736 = vmatprep.subr.mxu0 0.0
    %5737 = vmatpush1.msra.mxu0 0.0
    %5738 = vmatprep.subr.mxu0 0.0
    %5739 = vmatpush1.msra.mxu0 0.0
    %5740 = vmatprep.subr.mxu0 0.0
    %5741 = vmatpush1.msra.mxu0 0.0
    %5742 = vmatprep.subr.mxu0 0.0
    %5743 = vmatpush1.msra.mxu0 0.0
    %5744 = vmatprep.subr.mxu0 0.0
    %5745 = vmatpush1.msra.mxu0 0.0
    %5746 = vmatprep.subr.mxu0 0.0
    %5747 = vmatpush1.msra.mxu0 0.0
    %5748 = vmatprep.subr.mxu0 0.0
    %5749 = vmatpush1.msra.mxu0 0.0
    %5750 = vmatprep.subr.mxu0 0.0
    %5751 = vmatpush1.msra.mxu0 0.0
    %5752 = vmatprep.subr.mxu0 0.0
    %5753 = vmatpush1.msra.mxu0 0.0
    %5754 = vmatprep.subr.mxu0 0.0
    %5755 = vmatpush1.msra.mxu0 0.0
    %5756 = vmatprep.subr.mxu0 0.0
    %5757 = vmatpush1.msra.mxu0 0.0
    %5758 = vmatprep.subr.mxu0 0.0
    %5759 = vmatpush1.msra.mxu0 0.0
    %5760 = vmatprep.subr.mxu0 0.0
    %5761 = vmatpush1.msra.mxu0 0.0
    %5762 = vmatprep.subr.mxu0 0.0
    %5763 = vmatpush1.msra.mxu0 0.0
    %5764 = vmatprep.subr.mxu0 0.0
    %5765 = vmatpush1.msra.mxu0 0.0
    %5766 = vmatprep.subr.mxu0 0.0
    %5767 = vmatpush1.msra.mxu0 0.0
    %5768 = vmatprep.mubr.f32.mxu0 0.0
    %5769 = vmatmul.mubr.f32.gmra.mrb[0].mxu0 %v2613
    %v5770 = vpop.f32.mrb[0].mxu0
    %v5771 = vadd.f32 0.0, %v5770
    %v5772 = vpop.f32.mrb[0].mxu0
    %5773 = vmatprep.mubr.f32.mxu0 0.0
    %5774 = vmatmul.mubr.f32.gmra.mrb[0].mxu0 %v2616
    %v5775 = vpop.f32.mrb[0].mxu0
    %v5776 = vadd.f32 0.0, %v5775
    %v5777 = vpop.f32.mrb[0].mxu0
    %5778 = vdwg.mxu0
    %v5779 = vpack.c.bf16 %v5776, %v5771
    %v5780 = vld [vmem:[%s15] sm:$0xf]
    %v5781 = vld [vmem:[%s15 + $0x4] sm:$0xf]
    %v5782 = vld [vmem:[%s15 + $0x8] sm:$0xf]
    %v5783 = vld [vmem:[%s15 + $0xc] sm:$0xf]
    %v5784 = vld [vmem:[%s15 + $0x10] sm:$0xf]
    %v5785 = vld [vmem:[%s15 + $0x14] sm:$0xf]
    %v5786 = vld [vmem:[%s15 + $0x18] sm:$0xf]
    %v5787 = vld [vmem:[%s15 + $0x1c] sm:$0xf]
    %s5788 = scalar_lea.vmem %s15, 32
    %v5789 = vld [vmem:[%s5788] sm:$0xf]
    %v5790 = vld [vmem:[%s5788 + $0x4] sm:$0xf]
    %v5791 = vld [vmem:[%s5788 + $0x8] sm:$0xf]
    %v5792 = vld [vmem:[%s5788 + $0xc] sm:$0xf]
    %v5793 = vld [vmem:[%s5788 + $0x10] sm:$0xf]
    %v5794 = vld [vmem:[%s5788 + $0x14] sm:$0xf]
    %v5795 = vld [vmem:[%s5788 + $0x18] sm:$0xf]
    %v5796 = vld [vmem:[%s5788 + $0x1c] sm:$0xf]
    %v5805 = vunpack.c.l.b16 %v5789
    %v5806 = vunpack.c.l.b16 %v5790
    %v5807 = vunpack.c.l.b16 %v5791
    %v5808 = vunpack.c.l.b16 %v5792
    %v5809 = vunpack.c.l.b16 %v5793
    %v5810 = vunpack.c.l.b16 %v5794
    %v5811 = vunpack.c.l.b16 %v5795
    %v5812 = vunpack.c.l.b16 %v5796
    %v5813 = vpack.c.b16 %v5806, %v5805
    %v5814 = vpack.c.b16 %v5808, %v5807
    %v5815 = vpack.c.b16 %v5810, %v5809
    %v5816 = vpack.c.b16 %v5812, %v5811
    %v5822 = vsel %vm719, %v5703, 0
    %5824 = vmatprep.subr.bf16.mxu0 0
    %5825 = vmatpush1.bf16.msra.mxu0 %v5813
    %5826 = vmatprep.subr.bf16.mxu0 0
    %5827 = vmatpush1.bf16.msra.mxu0 %v5814
    %5828 = vmatprep.subr.bf16.mxu0 0
    %5829 = vmatpush1.bf16.msra.mxu0 %v5815
    %5830 = vmatprep.subr.bf16.mxu0 0
    %5831 = vmatpush1.bf16.msra.mxu0 %v5816
    %5832 = vmatprep.subr.bf16.mxu0 0
    %5833 = vmatpush1.bf16.msra.mxu0 0
    %5834 = vmatprep.subr.bf16.mxu0 0
    %5835 = vmatpush1.bf16.msra.mxu0 0
    %5836 = vmatprep.subr.bf16.mxu0 0
    %5837 = vmatpush1.bf16.msra.mxu0 0
    %5838 = vmatprep.subr.bf16.mxu0 0
    %5839 = vmatpush1.bf16.msra.mxu0 0
    %5840 = vmatprep.subr.bf16.mxu0 0
    %5841 = vmatpush1.bf16.msra.mxu0 0
    %5842 = vmatprep.subr.bf16.mxu0 0
    %5843 = vmatpush1.bf16.msra.mxu0 0
    %5844 = vmatprep.subr.bf16.mxu0 0
    %5845 = vmatpush1.bf16.msra.mxu0 0
    %5846 = vmatprep.subr.bf16.mxu0 0
    %5847 = vmatpush1.bf16.msra.mxu0 0
    %5848 = vmatprep.subr.bf16.mxu0 0
    %5849 = vmatpush1.bf16.msra.mxu0 0
    %5850 = vmatprep.subr.bf16.mxu0 0
    %5851 = vmatpush1.bf16.msra.mxu0 0
    %5852 = vmatprep.subr.bf16.mxu0 0
    %5853 = vmatpush1.bf16.msra.mxu0 0
    %5854 = vmatprep.subr.bf16.mxu0 0
    %5855 = vmatpush1.bf16.msra.mxu0 0
    %5856 = vmatprep.mubr.bf16.mxu0 0
    %5857 = vmatmul.mubr.bf16.gmra.mrb[0].mxu0 %v5822
    %v5858 = vpop.f32.mrb[0].mxu0
    %v5859 = vadd.f32 0.0, %v5858
    %v5860 = vpop.f32.mrb[0].mxu0
    %v5861 = vpop.f32.mrb[0].mxu0
    %v5862 = vadd.f32 0.0, %v5861
    %v5863 = vpop.f32.mrb[0].mxu0
    %5864 = vdwg.mxu0
    %v5873 = vunpack.c.l.b16 %v5780
    %v5874 = vunpack.c.l.b16 %v5781
    %v5875 = vunpack.c.l.b16 %v5782
    %v5876 = vunpack.c.l.b16 %v5783
    %v5877 = vunpack.c.l.b16 %v5784
    %v5878 = vunpack.c.l.b16 %v5785
    %v5879 = vunpack.c.l.b16 %v5786
    %v5880 = vunpack.c.l.b16 %v5787
    %v5881 = vpack.c.b16 %v5874, %v5873
    %v5882 = vpack.c.b16 %v5876, %v5875
    %v5883 = vpack.c.b16 %v5878, %v5877
    %v5884 = vpack.c.b16 %v5880, %v5879
    %v5890 = vsel %vm719, %v5702, 0
    %5892 = vmatprep.subr.bf16.mxu0 0
    %5893 = vmatpush1.bf16.msra.mxu0 %v5881
    %5894 = vmatprep.subr.bf16.mxu0 0
    %5895 = vmatpush1.bf16.msra.mxu0 %v5882
    %5896 = vmatprep.subr.bf16.mxu0 0
    %5897 = vmatpush1.bf16.msra.mxu0 %v5883
    %5898 = vmatprep.subr.bf16.mxu0 0
    %5899 = vmatpush1.bf16.msra.mxu0 %v5884
    %5900 = vmatprep.subr.bf16.mxu0 0
    %5901 = vmatpush1.bf16.msra.mxu0 0
    %5902 = vmatprep.subr.bf16.mxu0 0
    %5903 = vmatpush1.bf16.msra.mxu0 0
    %5904 = vmatprep.subr.bf16.mxu0 0
    %5905 = vmatpush1.bf16.msra.mxu0 0
    %5906 = vmatprep.subr.bf16.mxu0 0
    %5907 = vmatpush1.bf16.msra.mxu0 0
    %5908 = vmatprep.subr.bf16.mxu0 0
    %5909 = vmatpush1.bf16.msra.mxu0 0
    %5910 = vmatprep.subr.bf16.mxu0 0
    %5911 = vmatpush1.bf16.msra.mxu0 0
    %5912 = vmatprep.subr.bf16.mxu0 0
    %5913 = vmatpush1.bf16.msra.mxu0 0
    %5914 = vmatprep.subr.bf16.mxu0 0
    %5915 = vmatpush1.bf16.msra.mxu0 0
    %5916 = vmatprep.subr.bf16.mxu0 0
    %5917 = vmatpush1.bf16.msra.mxu0 0
    %5918 = vmatprep.subr.bf16.mxu0 0
    %5919 = vmatpush1.bf16.msra.mxu0 0
    %5920 = vmatprep.subr.bf16.mxu0 0
    %5921 = vmatpush1.bf16.msra.mxu0 0
    %5922 = vmatprep.subr.bf16.mxu0 0
    %5923 = vmatpush1.bf16.msra.mxu0 0
    %5924 = vmatprep.mubr.bf16.mxu0 0
    %5925 = vmatmul.mubr.bf16.gmra.mrb[0].mxu0 %v5890
    %v5926 = vpop.f32.mrb[0].mxu0
    %v5927 = vadd.f32 %v5859, %v5926
    %v5928 = vpop.f32.mrb[0].mxu0
    %v5929 = vpop.f32.mrb[0].mxu0
    %v5930 = vadd.f32 %v5862, %v5929
    %v5931 = vpop.f32.mrb[0].mxu0
    %5932 = vdwg.mxu0
    %s5933 = scalar_lea.vmem %s15, 64
    %v5934 = vld [vmem:[%s5933] sm:$0xf]
    %v5935 = vld [vmem:[%s5933 + $0x4] sm:$0xf]
    %v5936 = vld [vmem:[%s5933 + $0x8] sm:$0xf]
    %v5937 = vld [vmem:[%s5933 + $0xc] sm:$0xf]
    %v5938 = vld [vmem:[%s5933 + $0x10] sm:$0xf]
    %v5939 = vld [vmem:[%s5933 + $0x14] sm:$0xf]
    %v5940 = vld [vmem:[%s5933 + $0x18] sm:$0xf]
    %v5941 = vld [vmem:[%s5933 + $0x1c] sm:$0xf]
    %v5950 = vunpack.c.l.b16 %v5934
    %v5951 = vunpack.c.l.b16 %v5935
    %v5952 = vunpack.c.l.b16 %v5936
    %v5953 = vunpack.c.l.b16 %v5937
    %v5954 = vunpack.c.l.b16 %v5938
    %v5955 = vunpack.c.l.b16 %v5939
    %v5956 = vunpack.c.l.b16 %v5940
    %v5957 = vunpack.c.l.b16 %v5941
    %v5958 = vpack.c.b16 %v5951, %v5950
    %v5959 = vpack.c.b16 %v5953, %v5952
    %v5960 = vpack.c.b16 %v5955, %v5954
    %v5961 = vpack.c.b16 %v5957, %v5956
    %v5967 = vsel %vm719, %v5779, 0
    %5969 = vmatprep.subr.bf16.mxu0 0
    %5970 = vmatpush1.bf16.msra.mxu0 %v5958
    %5971 = vmatprep.subr.bf16.mxu0 0
    %5972 = vmatpush1.bf16.msra.mxu0 %v5959
    %5973 = vmatprep.subr.bf16.mxu0 0
    %5974 = vmatpush1.bf16.msra.mxu0 %v5960
    %5975 = vmatprep.subr.bf16.mxu0 0
    %5976 = vmatpush1.bf16.msra.mxu0 %v5961
    %5977 = vmatprep.subr.bf16.mxu0 0
    %5978 = vmatpush1.bf16.msra.mxu0 0
    %5979 = vmatprep.subr.bf16.mxu0 0
    %5980 = vmatpush1.bf16.msra.mxu0 0
    %5981 = vmatprep.subr.bf16.mxu0 0
    %5982 = vmatpush1.bf16.msra.mxu0 0
    %5983 = vmatprep.subr.bf16.mxu0 0
    %5984 = vmatpush1.bf16.msra.mxu0 0
    %5985 = vmatprep.subr.bf16.mxu0 0
    %5986 = vmatpush1.bf16.msra.mxu0 0
    %5987 = vmatprep.subr.bf16.mxu0 0
    %5988 = vmatpush1.bf16.msra.mxu0 0
    %5989 = vmatprep.subr.bf16.mxu0 0
    %5990 = vmatpush1.bf16.msra.mxu0 0
    %5991 = vmatprep.subr.bf16.mxu0 0
    %5992 = vmatpush1.bf16.msra.mxu0 0
    %5993 = vmatprep.subr.bf16.mxu0 0
    %5994 = vmatpush1.bf16.msra.mxu0 0
    %5995 = vmatprep.subr.bf16.mxu0 0
    %5996 = vmatpush1.bf16.msra.mxu0 0
    %5997 = vmatprep.subr.bf16.mxu0 0
    %5998 = vmatpush1.bf16.msra.mxu0 0
    %5999 = vmatprep.subr.bf16.mxu0 0
    %6000 = vmatpush1.bf16.msra.mxu0 0
    %6001 = vmatprep.mubr.bf16.mxu0 0
    %6002 = vmatmul.mubr.bf16.gmra.mrb[0].mxu0 %v5967
    %v6003 = vpop.f32.mrb[0].mxu0
    %v6004 = vadd.f32 0.0, %v6003
    %v6005 = vpop.f32.mrb[0].mxu0
    %v6006 = vpop.f32.mrb[0].mxu0
    %v6007 = vadd.f32 0.0, %v6006
    %v6008 = vpop.f32.mrb[0].mxu0
    %6009 = vdwg.mxu0
    %v6010 = vadd.f32 %v5927, %v6004
    %v6011 = vadd.f32 %v5930, %v6007
    %v6012 = vld [vmem:[#allocation2] sm:$0x1]
    %v6013 = vlaneseq
    %v6014 = vshrl.u32 %v6013, 7
    %v6015 = vsub.s32 0, %v6014
    %v6016 = vrot.slane %v6012, %v6015
    %v6017 = vadd.f32 %v6010, %v6016
    %v6018 = vadd.f32 %v6011, %v6016
    %v6019 = vsel %vm477, %v6017, 0.0
    %v6020 = vsel %vm477, %v6018, 0.0
    %v6021 = vadd.f32 %v6019, %v6020
    %v6022 = vrot.slane %v6021, 4
    %v6023 = vadd.f32 %v6021, %v6022
    %v6024 = vrot.slane %v6023, 2
    %v6025 = vadd.f32 %v6023, %v6024
    %v6026 = vrot.slane %v6025, 1
    %v6027 = vadd.f32 %v6025, %v6026
    %v6029 = vsel %vm477, %v6027, 0
    %6031 = vmatprep.subr.mxu0 0.0
    %6032 = vmatpush1.msra.mxu0 %v5623
    %6033 = vmatprep.subr.mxu0 0.0
    %6034 = vmatpush1.msra.mxu0 %v5624
    %6035 = vmatprep.subr.mxu0 0.0
    %6036 = vmatpush1.msra.mxu0 %v5625
    %6037 = vmatprep.subr.mxu0 0.0
    %6038 = vmatpush1.msra.mxu0 %v5626
    %6039 = vmatprep.subr.mxu0 0.0
    %6040 = vmatpush1.msra.mxu0 0.0
    %6041 = vmatprep.subr.mxu0 0.0
    %6042 = vmatpush1.msra.mxu0 0.0
    %6043 = vmatprep.subr.mxu0 0.0
    %6044 = vmatpush1.msra.mxu0 0.0
    %6045 = vmatprep.subr.mxu0 0.0
    %6046 = vmatpush1.msra.mxu0 0.0
    %6047 = vmatprep.subr.mxu0 0.0
    %6048 = vmatpush1.msra.mxu0 0.0
    %6049 = vmatprep.subr.mxu0 0.0
    %6050 = vmatpush1.msra.mxu0 0.0
    %6051 = vmatprep.subr.mxu0 0.0
    %6052 = vmatpush1.msra.mxu0 0.0
    %6053 = vmatprep.subr.mxu0 0.0
    %6054 = vmatpush1.msra.mxu0 0.0
    %6055 = vmatprep.subr.mxu0 0.0
    %6056 = vmatpush1.msra.mxu0 0.0
    %6057 = vmatprep.subr.mxu0 0.0
    %6058 = vmatpush1.msra.mxu0 0.0
    %6059 = vmatprep.subr.mxu0 0.0
    %6060 = vmatpush1.msra.mxu0 0.0
    %6061 = vmatprep.subr.mxu0 0.0
    %6062 = vmatpush1.msra.mxu0 0.0
    %6063 = vmatprep.subr.mxu0 0.0
    %6064 = vmatpush1.msra.mxu0 0.0
    %6065 = vmatprep.subr.mxu0 0.0
    %6066 = vmatpush1.msra.mxu0 0.0
    %6067 = vmatprep.subr.mxu0 0.0
    %6068 = vmatpush1.msra.mxu0 0.0
    %6069 = vmatprep.subr.mxu0 0.0
    %6070 = vmatpush1.msra.mxu0 0.0
    %6071 = vmatprep.subr.mxu0 0.0
    %6072 = vmatpush1.msra.mxu0 0.0
    %6073 = vmatprep.subr.mxu0 0.0
    %6074 = vmatpush1.msra.mxu0 0.0
    %6075 = vmatprep.subr.mxu0 0.0
    %6076 = vmatpush1.msra.mxu0 0.0
    %6077 = vmatprep.subr.mxu0 0.0
    %6078 = vmatpush1.msra.mxu0 0.0
    %6079 = vmatprep.subr.mxu0 0.0
    %6080 = vmatpush1.msra.mxu0 0.0
    %6081 = vmatprep.subr.mxu0 0.0
    %6082 = vmatpush1.msra.mxu0 0.0
    %6083 = vmatprep.subr.mxu0 0.0
    %6084 = vmatpush1.msra.mxu0 0.0
    %6085 = vmatprep.subr.mxu0 0.0
    %6086 = vmatpush1.msra.mxu0 0.0
    %6087 = vmatprep.subr.mxu0 0.0
    %6088 = vmatpush1.msra.mxu0 0.0
    %6089 = vmatprep.subr.mxu0 0.0
    %6090 = vmatpush1.msra.mxu0 0.0
    %6091 = vmatprep.subr.mxu0 0.0
    %6092 = vmatpush1.msra.mxu0 0.0
    %6093 = vmatprep.subr.mxu0 0.0
    %6094 = vmatpush1.msra.mxu0 0.0
    %6095 = vmatprep.mubr.f32.mxu0 0.0
    %6096 = vmatmul.mubr.f32.gmra.mrb[0].mxu0 %v6029
    %v6097 = vpop.f32.mrb[0].mxu0
    %v6098 = vadd.f32 0.0, %v6097
    %v6099 = vpop.f32.mrb[0].mxu0
    %6100 = vdwg.mxu0
    %v6101 = vmul.f32 %v6098, 0.0078125
    %v6102 = vlaneseq
    %v6103 = vshrl.u32 %v6102, 7
    %v6104 = vsub.s32 0, %v6103
    %v6105 = vrot.slane %v6101, %v6104
    %v6106 = vsub.f32 %v6017, %v6105
    %v6107 = vsub.f32 %v6018, %v6105
    %v6108 = vmul.f32 %v6106, %v6106
    %v6109 = vmul.f32 %v6107, %v6107
    %v6110 = vsel %vm477, %v6108, 0.0
    %v6111 = vsel %vm477, %v6109, 0.0
    %v6112 = vadd.f32 %v6110, %v6111
    %v6113 = vrot.slane %v6112, 4
    %v6114 = vadd.f32 %v6112, %v6113
    %v6115 = vrot.slane %v6114, 2
    %v6116 = vadd.f32 %v6114, %v6115
    %v6117 = vrot.slane %v6116, 1
    %v6118 = vadd.f32 %v6116, %v6117
    %v6120 = vsel %vm477, %v6118, 0
    %6122 = vmatprep.subr.mxu0 0.0
    %6123 = vmatpush1.msra.mxu0 %v5623
    %6124 = vmatprep.subr.mxu0 0.0
    %6125 = vmatpush1.msra.mxu0 %v5624
    %6126 = vmatprep.subr.mxu0 0.0
    %6127 = vmatpush1.msra.mxu0 %v5625
    %6128 = vmatprep.subr.mxu0 0.0
    %6129 = vmatpush1.msra.mxu0 %v5626
    %6130 = vmatprep.subr.mxu0 0.0
    %6131 = vmatpush1.msra.mxu0 0.0
    %6132 = vmatprep.subr.mxu0 0.0
    %6133 = vmatpush1.msra.mxu0 0.0
    %6134 = vmatprep.subr.mxu0 0.0
    %6135 = vmatpush1.msra.mxu0 0.0
    %6136 = vmatprep.subr.mxu0 0.0
    %6137 = vmatpush1.msra.mxu0 0.0
    %6138 = vmatprep.subr.mxu0 0.0
    %6139 = vmatpush1.msra.mxu0 0.0
    %6140 = vmatprep.subr.mxu0 0.0
    %6141 = vmatpush1.msra.mxu0 0.0
    %6142 = vmatprep.subr.mxu0 0.0
    %6143 = vmatpush1.msra.mxu0 0.0
    %6144 = vmatprep.subr.mxu0 0.0
    %6145 = vmatpush1.msra.mxu0 0.0
    %6146 = vmatprep.subr.mxu0 0.0
    %6147 = vmatpush1.msra.mxu0 0.0
    %6148 = vmatprep.subr.mxu0 0.0
    %6149 = vmatpush1.msra.mxu0 0.0
    %6150 = vmatprep.subr.mxu0 0.0
    %6151 = vmatpush1.msra.mxu0 0.0
    %6152 = vmatprep.subr.mxu0 0.0
    %6153 = vmatpush1.msra.mxu0 0.0
    %6154 = vmatprep.subr.mxu0 0.0
    %6155 = vmatpush1.msra.mxu0 0.0
    %6156 = vmatprep.subr.mxu0 0.0
    %6157 = vmatpush1.msra.mxu0 0.0
    %6158 = vmatprep.subr.mxu0 0.0
    %6159 = vmatpush1.msra.mxu0 0.0
    %6160 = vmatprep.subr.mxu0 0.0
    %6161 = vmatpush1.msra.mxu0 0.0
    %6162 = vmatprep.subr.mxu0 0.0
    %6163 = vmatpush1.msra.mxu0 0.0
    %6164 = vmatprep.subr.mxu0 0.0
    %6165 = vmatpush1.msra.mxu0 0.0
    %6166 = vmatprep.subr.mxu0 0.0
    %6167 = vmatpush1.msra.mxu0 0.0
    %6168 = vmatprep.subr.mxu0 0.0
    %6169 = vmatpush1.msra.mxu0 0.0
    %6170 = vmatprep.subr.mxu0 0.0
    %6171 = vmatpush1.msra.mxu0 0.0
    %6172 = vmatprep.subr.mxu0 0.0
    %6173 = vmatpush1.msra.mxu0 0.0
    %6174 = vmatprep.subr.mxu0 0.0
    %6175 = vmatpush1.msra.mxu0 0.0
    %6176 = vmatprep.subr.mxu0 0.0
    %6177 = vmatpush1.msra.mxu0 0.0
    %6178 = vmatprep.subr.mxu0 0.0
    %6179 = vmatpush1.msra.mxu0 0.0
    %6180 = vmatprep.subr.mxu0 0.0
    %6181 = vmatpush1.msra.mxu0 0.0
    %6182 = vmatprep.subr.mxu0 0.0
    %6183 = vmatpush1.msra.mxu0 0.0
    %6184 = vmatprep.subr.mxu0 0.0
    %6185 = vmatpush1.msra.mxu0 0.0
    %6186 = vmatprep.mubr.f32.mxu0 0.0
    %6187 = vmatmul.mubr.f32.gmra.mrb[0].mxu0 %v6120
    %v6188 = vpop.f32.mrb[0].mxu0
    %v6189 = vadd.f32 0.0, %v6188
    %v6190 = vpop.f32.mrb[0].mxu0
    %6191 = vdwg.mxu0
    %v6192 = vmul.f32 %v6189, 0.0078125
    %v6193 = vld [vmem:[#allocation2 + $0x1] sm:$0x1]
    %v6194 = vadd.f32 %v6192, 1e-05
    %v6195 = vrsqrt.pop %v6194
    %v6196 = vmul.f32 %v6193, %v6195
    %v6197 = vlaneseq
    %v6198 = vshrl.u32 %v6197, 7
    %v6199 = vsub.s32 0, %v6198
    %v6200 = vrot.slane %v6196, %v6199
    %v6201 = vmul.f32 %v6106, %v6200
    %v6202 = vmul.f32 %v6107, %v6200
    %v6203 = vld [vmem:[#allocation2 + $0x2] sm:$0x1]
    %v6204 = vlaneseq
    %v6205 = vshrl.u32 %v6204, 7
    %v6206 = vsub.s32 0, %v6205
    %v6207 = vrot.slane %v6203, %v6206
    %v6208 = vadd.f32 %v6201, %v6207
    %v6209 = vadd.f32 %v6202, %v6207
    %v6210 = vmax.f32 %v6208, 0.0
    %v6211 = vmax.f32 %v6209, 0.0
    %6212 = vmatprep.subr.mxu0 0.0
    %6213 = vmatpush1.msra.mxu0 %v6210
    %6214 = vmatprep.subr.mxu0 0.0
    %6215 = vmatpush1.msra.mxu0 %v6211
    %6216 = vmatprep.subr.mxu0 0.0
    %6217 = vmatpush1.msra.mxu0 0.0
    %6218 = vmatprep.subr.mxu0 0.0
    %6219 = vmatpush1.msra.mxu0 0.0
    %6220 = vmatprep.subr.mxu0 0.0
    %6221 = vmatpush1.msra.mxu0 0.0
    %6222 = vmatprep.subr.mxu0 0.0
    %6223 = vmatpush1.msra.mxu0 0.0
    %6224 = vmatprep.subr.mxu0 0.0
    %6225 = vmatpush1.msra.mxu0 0.0
    %6226 = vmatprep.subr.mxu0 0.0
    %6227 = vmatpush1.msra.mxu0 0.0
    %6228 = vmatprep.subr.mxu0 0.0
    %6229 = vmatpush1.msra.mxu0 0.0
    %6230 = vmatprep.subr.mxu0 0.0
    %6231 = vmatpush1.msra.mxu0 0.0
    %6232 = vmatprep.subr.mxu0 0.0
    %6233 = vmatpush1.msra.mxu0 0.0
    %6234 = vmatprep.subr.mxu0 0.0
    %6235 = vmatpush1.msra.mxu0 0.0
    %6236 = vmatprep.subr.mxu0 0.0
    %6237 = vmatpush1.msra.mxu0 0.0
    %6238 = vmatprep.subr.mxu0 0.0
    %6239 = vmatpush1.msra.mxu0 0.0
    %6240 = vmatprep.subr.mxu0 0.0
    %6241 = vmatpush1.msra.mxu0 0.0
    %6242 = vmatprep.subr.mxu0 0.0
    %6243 = vmatpush1.msra.mxu0 0.0
    %6244 = vmatprep.subr.mxu0 0.0
    %6245 = vmatpush1.msra.mxu0 0.0
    %6246 = vmatprep.subr.mxu0 0.0
    %6247 = vmatpush1.msra.mxu0 0.0
    %6248 = vmatprep.subr.mxu0 0.0
    %6249 = vmatpush1.msra.mxu0 0.0
    %6250 = vmatprep.subr.mxu0 0.0
    %6251 = vmatpush1.msra.mxu0 0.0
    %6252 = vmatprep.subr.mxu0 0.0
    %6253 = vmatpush1.msra.mxu0 0.0
    %6254 = vmatprep.subr.mxu0 0.0
    %6255 = vmatpush1.msra.mxu0 0.0
    %6256 = vmatprep.subr.mxu0 0.0
    %6257 = vmatpush1.msra.mxu0 0.0
    %6258 = vmatprep.subr.mxu0 0.0
    %6259 = vmatpush1.msra.mxu0 0.0
    %6260 = vmatprep.subr.mxu0 0.0
    %6261 = vmatpush1.msra.mxu0 0.0
    %6262 = vmatprep.subr.mxu0 0.0
    %6263 = vmatpush1.msra.mxu0 0.0
    %6264 = vmatprep.subr.mxu0 0.0
    %6265 = vmatpush1.msra.mxu0 0.0
    %6266 = vmatprep.subr.mxu0 0.0
    %6267 = vmatpush1.msra.mxu0 0.0
    %6268 = vmatprep.subr.mxu0 0.0
    %6269 = vmatpush1.msra.mxu0 0.0
    %6270 = vmatprep.subr.mxu0 0.0
    %6271 = vmatpush1.msra.mxu0 0.0
    %6272 = vmatprep.subr.mxu0 0.0
    %6273 = vmatpush1.msra.mxu0 0.0
    %6274 = vmatprep.subr.mxu0 0.0
    %6275 = vmatpush1.msra.mxu0 0.0
    %6276 = vmatprep.mubr.f32.mxu0 0.0
    %6277 = vmatmul.mubr.f32.gmra.mrb[0].mxu0 %v2530
    %v6278 = vpop.f32.mrb[0].mxu0
    %v6279 = vadd.f32 0.0, %v6278
    %v6280 = vpop.f32.mrb[0].mxu0
    %6281 = vmatprep.mubr.f32.mxu0 0.0
    %6282 = vmatmul.mubr.f32.gmra.mrb[0].mxu0 %v2533
    %v6283 = vpop.f32.mrb[0].mxu0
    %v6284 = vadd.f32 0.0, %v6283
    %v6285 = vpop.f32.mrb[0].mxu0
    %6286 = vdwg.mxu0
    %v6287 = vpack.c.bf16 %v6284, %v6279
    %v6288 = vpack.c.bf16 %v6211, %v6210
    %6289 = vmatprep.subr.mxu0 0.0
    %6290 = vmatpush1.msra.mxu0 %v6210
    %6291 = vmatprep.subr.mxu0 0.0
    %6292 = vmatpush1.msra.mxu0 %v6211
    %6293 = vmatprep.subr.mxu0 0.0
    %6294 = vmatpush1.msra.mxu0 0.0
    %6295 = vmatprep.subr.mxu0 0.0
    %6296 = vmatpush1.msra.mxu0 0.0
    %6297 = vmatprep.subr.mxu0 0.0
    %6298 = vmatpush1.msra.mxu0 0.0
    %6299 = vmatprep.subr.mxu0 0.0
    %6300 = vmatpush1.msra.mxu0 0.0
    %6301 = vmatprep.subr.mxu0 0.0
    %6302 = vmatpush1.msra.mxu0 0.0
    %6303 = vmatprep.subr.mxu0 0.0
    %6304 = vmatpush1.msra.mxu0 0.0
    %6305 = vmatprep.subr.mxu0 0.0
    %6306 = vmatpush1.msra.mxu0 0.0
    %6307 = vmatprep.subr.mxu0 0.0
    %6308 = vmatpush1.msra.mxu0 0.0
    %6309 = vmatprep.subr.mxu0 0.0
    %6310 = vmatpush1.msra.mxu0 0.0
    %6311 = vmatprep.subr.mxu0 0.0
    %6312 = vmatpush1.msra.mxu0 0.0
    %6313 = vmatprep.subr.mxu0 0.0
    %6314 = vmatpush1.msra.mxu0 0.0
    %6315 = vmatprep.subr.mxu0 0.0
    %6316 = vmatpush1.msra.mxu0 0.0
    %6317 = vmatprep.subr.mxu0 0.0
    %6318 = vmatpush1.msra.mxu0 0.0
    %6319 = vmatprep.subr.mxu0 0.0
    %6320 = vmatpush1.msra.mxu0 0.0
    %6321 = vmatprep.subr.mxu0 0.0
    %6322 = vmatpush1.msra.mxu0 0.0
    %6323 = vmatprep.subr.mxu0 0.0
    %6324 = vmatpush1.msra.mxu0 0.0
    %6325 = vmatprep.subr.mxu0 0.0
    %6326 = vmatpush1.msra.mxu0 0.0
    %6327 = vmatprep.subr.mxu0 0.0
    %6328 = vmatpush1.msra.mxu0 0.0
    %6329 = vmatprep.subr.mxu0 0.0
    %6330 = vmatpush1.msra.mxu0 0.0
    %6331 = vmatprep.subr.mxu0 0.0
    %6332 = vmatpush1.msra.mxu0 0.0
    %6333 = vmatprep.subr.mxu0 0.0
    %6334 = vmatpush1.msra.mxu0 0.0
    %6335 = vmatprep.subr.mxu0 0.0
    %6336 = vmatpush1.msra.mxu0 0.0
    %6337 = vmatprep.subr.mxu0 0.0
    %6338 = vmatpush1.msra.mxu0 0.0
    %6339 = vmatprep.subr.mxu0 0.0
    %6340 = vmatpush1.msra.mxu0 0.0
    %6341 = vmatprep.subr.mxu0 0.0
    %6342 = vmatpush1.msra.mxu0 0.0
    %6343 = vmatprep.subr.mxu0 0.0
    %6344 = vmatpush1.msra.mxu0 0.0
    %6345 = vmatprep.subr.mxu0 0.0
    %6346 = vmatpush1.msra.mxu0 0.0
    %6347 = vmatprep.subr.mxu0 0.0
    %6348 = vmatpush1.msra.mxu0 0.0
    %6349 = vmatprep.subr.mxu0 0.0
    %6350 = vmatpush1.msra.mxu0 0.0
    %6351 = vmatprep.subr.mxu0 0.0
    %6352 = vmatpush1.msra.mxu0 0.0
    %6353 = vmatprep.mubr.f32.mxu0 0.0
    %6354 = vmatmul.mubr.f32.gmra.mrb[0].mxu0 %v2613
    %v6355 = vpop.f32.mrb[0].mxu0
    %v6356 = vadd.f32 0.0, %v6355
    %v6357 = vpop.f32.mrb[0].mxu0
    %6358 = vmatprep.mubr.f32.mxu0 0.0
    %6359 = vmatmul.mubr.f32.gmra.mrb[0].mxu0 %v2616
    %v6360 = vpop.f32.mrb[0].mxu0
    %v6361 = vadd.f32 0.0, %v6360
    %v6362 = vpop.f32.mrb[0].mxu0
    %6363 = vdwg.mxu0
    %v6364 = vpack.c.bf16 %v6361, %v6356
    %v6365 = vld [vmem:[%s17] sm:$0xf]
    %v6366 = vld [vmem:[%s17 + $0x4] sm:$0xf]
    %v6367 = vld [vmem:[%s17 + $0x8] sm:$0xf]
    %v6368 = vld [vmem:[%s17 + $0xc] sm:$0xf]
    %s6369 = scalar_lea.vmem %s17, 16
    %v6370 = vld [vmem:[%s6369] sm:$0xf]
    %v6371 = vld [vmem:[%s6369 + $0x4] sm:$0xf]
    %v6372 = vld [vmem:[%s6369 + $0x8] sm:$0xf]
    %v6373 = vld [vmem:[%s6369 + $0xc] sm:$0xf]
    %v6378 = vunpack.c.l.b16 %v6370
    %v6379 = vunpack.c.l.b16 %v6371
    %v6380 = vunpack.c.l.b16 %v6372
    %v6381 = vunpack.c.l.b16 %v6373
    %v6382 = vpack.c.b16 %v6379, %v6378
    %v6383 = vpack.c.b16 %v6381, %v6380
    %v6387 = vsel %vm477, %v6288, 0
    %6389 = vmatprep.subr.bf16.mxu0 0
    %6390 = vmatpush1.bf16.msra.mxu0 %v6382
    %6391 = vmatprep.subr.bf16.mxu0 0
    %6392 = vmatpush1.bf16.msra.mxu0 %v6383
    %6393 = vmatprep.subr.bf16.mxu0 0
    %6394 = vmatpush1.bf16.msra.mxu0 0
    %6395 = vmatprep.subr.bf16.mxu0 0
    %6396 = vmatpush1.bf16.msra.mxu0 0
    %6397 = vmatprep.subr.bf16.mxu0 0
    %6398 = vmatpush1.bf16.msra.mxu0 0
    %6399 = vmatprep.subr.bf16.mxu0 0
    %6400 = vmatpush1.bf16.msra.mxu0 0
    %6401 = vmatprep.subr.bf16.mxu0 0
    %6402 = vmatpush1.bf16.msra.mxu0 0
    %6403 = vmatprep.subr.bf16.mxu0 0
    %6404 = vmatpush1.bf16.msra.mxu0 0
    %6405 = vmatprep.subr.bf16.mxu0 0
    %6406 = vmatpush1.bf16.msra.mxu0 0
    %6407 = vmatprep.subr.bf16.mxu0 0
    %6408 = vmatpush1.bf16.msra.mxu0 0
    %6409 = vmatprep.subr.bf16.mxu0 0
    %6410 = vmatpush1.bf16.msra.mxu0 0
    %6411 = vmatprep.subr.bf16.mxu0 0
    %6412 = vmatpush1.bf16.msra.mxu0 0
    %6413 = vmatprep.subr.bf16.mxu0 0
    %6414 = vmatpush1.bf16.msra.mxu0 0
    %6415 = vmatprep.subr.bf16.mxu0 0
    %6416 = vmatpush1.bf16.msra.mxu0 0
    %6417 = vmatprep.subr.bf16.mxu0 0
    %6418 = vmatpush1.bf16.msra.mxu0 0
    %6419 = vmatprep.subr.bf16.mxu0 0
    %6420 = vmatpush1.bf16.msra.mxu0 0
    %6421 = vmatprep.mubr.bf16.mxu0 0
    %6422 = vmatmul.mubr.bf16.gmra.mrb[0].mxu0 %v6387
    %v6423 = vpop.f32.mrb[0].mxu0
    %v6424 = vadd.f32 0.0, %v6423
    %v6425 = vpop.f32.mrb[0].mxu0
    %v6426 = vpop.f32.mrb[0].mxu0
    %v6427 = vadd.f32 0.0, %v6426
    %v6428 = vpop.f32.mrb[0].mxu0
    %6429 = vdwg.mxu0
    %v6434 = vunpack.c.l.b16 %v6365
    %v6435 = vunpack.c.l.b16 %v6366
    %v6436 = vunpack.c.l.b16 %v6367
    %v6437 = vunpack.c.l.b16 %v6368
    %v6438 = vpack.c.b16 %v6435, %v6434
    %v6439 = vpack.c.b16 %v6437, %v6436
    %v6443 = vsel %vm477, %v6287, 0
    %6445 = vmatprep.subr.bf16.mxu0 0
    %6446 = vmatpush1.bf16.msra.mxu0 %v6438
    %6447 = vmatprep.subr.bf16.mxu0 0
    %6448 = vmatpush1.bf16.msra.mxu0 %v6439
    %6449 = vmatprep.subr.bf16.mxu0 0
    %6450 = vmatpush1.bf16.msra.mxu0 0
    %6451 = vmatprep.subr.bf16.mxu0 0
    %6452 = vmatpush1.bf16.msra.mxu0 0
    %6453 = vmatprep.subr.bf16.mxu0 0
    %6454 = vmatpush1.bf16.msra.mxu0 0
    %6455 = vmatprep.subr.bf16.mxu0 0
    %6456 = vmatpush1.bf16.msra.mxu0 0
    %6457 = vmatprep.subr.bf16.mxu0 0
    %6458 = vmatpush1.bf16.msra.mxu0 0
    %6459 = vmatprep.subr.bf16.mxu0 0
    %6460 = vmatpush1.bf16.msra.mxu0 0
    %6461 = vmatprep.subr.bf16.mxu0 0
    %6462 = vmatpush1.bf16.msra.mxu0 0
    %6463 = vmatprep.subr.bf16.mxu0 0
    %6464 = vmatpush1.bf16.msra.mxu0 0
    %6465 = vmatprep.subr.bf16.mxu0 0
    %6466 = vmatpush1.bf16.msra.mxu0 0
    %6467 = vmatprep.subr.bf16.mxu0 0
    %6468 = vmatpush1.bf16.msra.mxu0 0
    %6469 = vmatprep.subr.bf16.mxu0 0
    %6470 = vmatpush1.bf16.msra.mxu0 0
    %6471 = vmatprep.subr.bf16.mxu0 0
    %6472 = vmatpush1.bf16.msra.mxu0 0
    %6473 = vmatprep.subr.bf16.mxu0 0
    %6474 = vmatpush1.bf16.msra.mxu0 0
    %6475 = vmatprep.subr.bf16.mxu0 0
    %6476 = vmatpush1.bf16.msra.mxu0 0
    %6477 = vmatprep.mubr.bf16.mxu0 0
    %6478 = vmatmul.mubr.bf16.gmra.mrb[0].mxu0 %v6443
    %v6479 = vpop.f32.mrb[0].mxu0
    %v6480 = vadd.f32 %v6424, %v6479
    %v6481 = vpop.f32.mrb[0].mxu0
    %v6482 = vpop.f32.mrb[0].mxu0
    %v6483 = vadd.f32 %v6427, %v6482
    %v6484 = vpop.f32.mrb[0].mxu0
    %6485 = vdwg.mxu0
    %s6486 = scalar_lea.vmem %s17, 32
    %v6487 = vld [vmem:[%s6486] sm:$0xf]
    %v6488 = vld [vmem:[%s6486 + $0x4] sm:$0xf]
    %v6489 = vld [vmem:[%s6486 + $0x8] sm:$0xf]
    %v6490 = vld [vmem:[%s6486 + $0xc] sm:$0xf]
    %v6495 = vunpack.c.l.b16 %v6487
    %v6496 = vunpack.c.l.b16 %v6488
    %v6497 = vunpack.c.l.b16 %v6489
    %v6498 = vunpack.c.l.b16 %v6490
    %v6499 = vpack.c.b16 %v6496, %v6495
    %v6500 = vpack.c.b16 %v6498, %v6497
    %v6504 = vsel %vm477, %v6364, 0
    %6506 = vmatprep.subr.bf16.mxu0 0
    %6507 = vmatpush1.bf16.msra.mxu0 %v6499
    %6508 = vmatprep.subr.bf16.mxu0 0
    %6509 = vmatpush1.bf16.msra.mxu0 %v6500
    %6510 = vmatprep.subr.bf16.mxu0 0
    %6511 = vmatpush1.bf16.msra.mxu0 0
    %6512 = vmatprep.subr.bf16.mxu0 0
    %6513 = vmatpush1.bf16.msra.mxu0 0
    %6514 = vmatprep.subr.bf16.mxu0 0
    %6515 = vmatpush1.bf16.msra.mxu0 0
    %6516 = vmatprep.subr.bf16.mxu0 0
    %6517 = vmatpush1.bf16.msra.mxu0 0
    %6518 = vmatprep.subr.bf16.mxu0 0
    %6519 = vmatpush1.bf16.msra.mxu0 0
    %6520 = vmatprep.subr.bf16.mxu0 0
    %6521 = vmatpush1.bf16.msra.mxu0 0
    %6522 = vmatprep.subr.bf16.mxu0 0
    %6523 = vmatpush1.bf16.msra.mxu0 0
    %6524 = vmatprep.subr.bf16.mxu0 0
    %6525 = vmatpush1.bf16.msra.mxu0 0
    %6526 = vmatprep.subr.bf16.mxu0 0
    %6527 = vmatpush1.bf16.msra.mxu0 0
    %6528 = vmatprep.subr.bf16.mxu0 0
    %6529 = vmatpush1.bf16.msra.mxu0 0
    %6530 = vmatprep.subr.bf16.mxu0 0
    %6531 = vmatpush1.bf16.msra.mxu0 0
    %6532 = vmatprep.subr.bf16.mxu0 0
    %6533 = vmatpush1.bf16.msra.mxu0 0
    %6534 = vmatprep.subr.bf16.mxu0 0
    %6535 = vmatpush1.bf16.msra.mxu0 0
    %6536 = vmatprep.subr.bf16.mxu0 0
    %6537 = vmatpush1.bf16.msra.mxu0 0
    %6538 = vmatprep.mubr.bf16.mxu0 0
    %6539 = vmatmul.mubr.bf16.gmra.mrb[0].mxu0 %v6504
    %v6540 = vpop.f32.mrb[0].mxu0
    %v6541 = vadd.f32 0.0, %v6540
    %v6542 = vpop.f32.mrb[0].mxu0
    %v6543 = vpop.f32.mrb[0].mxu0
    %v6544 = vadd.f32 0.0, %v6543
    %v6545 = vpop.f32.mrb[0].mxu0
    %6546 = vdwg.mxu0
    %v6547 = vadd.f32 %v6480, %v6541
    %v6548 = vadd.f32 %v6483, %v6544
    %v6549 = vld [vmem:[#allocation4] sm:$0x1]
    %v6550 = vlaneseq
    %v6551 = vshrl.u32 %v6550, 7
    %v6552 = vsub.s32 0, %v6551
    %v6553 = vrot.slane %v6549, %v6552
    %v6554 = vadd.f32 %v6547, %v6553
    %v6555 = vadd.f32 %v6548, %v6553
    %v6556 = vsel %vm477, %v6554, 0.0
    %v6557 = vsel %vm477, %v6555, 0.0
    %v6558 = vadd.f32 %v6556, %v6557
    %v6559 = vrot.slane %v6558, 4
    %v6560 = vadd.f32 %v6558, %v6559
    %v6561 = vrot.slane %v6560, 2
    %v6562 = vadd.f32 %v6560, %v6561
    %v6563 = vrot.slane %v6562, 1
    %v6564 = vadd.f32 %v6562, %v6563
    %v6566 = vsel %vm477, %v6564, 0
    %6568 = vmatprep.subr.mxu0 0.0
    %6569 = vmatpush1.msra.mxu0 %v5623
    %6570 = vmatprep.subr.mxu0 0.0
    %6571 = vmatpush1.msra.mxu0 %v5624
    %6572 = vmatprep.subr.mxu0 0.0
    %6573 = vmatpush1.msra.mxu0 %v5625
    %6574 = vmatprep.subr.mxu0 0.0
    %6575 = vmatpush1.msra.mxu0 %v5626
    %6576 = vmatprep.subr.mxu0 0.0
    %6577 = vmatpush1.msra.mxu0 0.0
    %6578 = vmatprep.subr.mxu0 0.0
    %6579 = vmatpush1.msra.mxu0 0.0
    %6580 = vmatprep.subr.mxu0 0.0
    %6581 = vmatpush1.msra.mxu0 0.0
    %6582 = vmatprep.subr.mxu0 0.0
    %6583 = vmatpush1.msra.mxu0 0.0
    %6584 = vmatprep.subr.mxu0 0.0
    %6585 = vmatpush1.msra.mxu0 0.0
    %6586 = vmatprep.subr.mxu0 0.0
    %6587 = vmatpush1.msra.mxu0 0.0
    %6588 = vmatprep.subr.mxu0 0.0
    %6589 = vmatpush1.msra.mxu0 0.0
    %6590 = vmatprep.subr.mxu0 0.0
    %6591 = vmatpush1.msra.mxu0 0.0
    %6592 = vmatprep.subr.mxu0 0.0
    %6593 = vmatpush1.msra.mxu0 0.0
    %6594 = vmatprep.subr.mxu0 0.0
    %6595 = vmatpush1.msra.mxu0 0.0
    %6596 = vmatprep.subr.mxu0 0.0
    %6597 = vmatpush1.msra.mxu0 0.0
    %6598 = vmatprep.subr.mxu0 0.0
    %6599 = vmatpush1.msra.mxu0 0.0
    %6600 = vmatprep.subr.mxu0 0.0
    %6601 = vmatpush1.msra.mxu0 0.0
    %6602 = vmatprep.subr.mxu0 0.0
    %6603 = vmatpush1.msra.mxu0 0.0
    %6604 = vmatprep.subr.mxu0 0.0
    %6605 = vmatpush1.msra.mxu0 0.0
    %6606 = vmatprep.subr.mxu0 0.0
    %6607 = vmatpush1.msra.mxu0 0.0
    %6608 = vmatprep.subr.mxu0 0.0
    %6609 = vmatpush1.msra.mxu0 0.0
    %6610 = vmatprep.subr.mxu0 0.0
    %6611 = vmatpush1.msra.mxu0 0.0
    %6612 = vmatprep.subr.mxu0 0.0
    %6613 = vmatpush1.msra.mxu0 0.0
    %6614 = vmatprep.subr.mxu0 0.0
    %6615 = vmatpush1.msra.mxu0 0.0
    %6616 = vmatprep.subr.mxu0 0.0
    %6617 = vmatpush1.msra.mxu0 0.0
    %6618 = vmatprep.subr.mxu0 0.0
    %6619 = vmatpush1.msra.mxu0 0.0
    %6620 = vmatprep.subr.mxu0 0.0
    %6621 = vmatpush1.msra.mxu0 0.0
    %6622 = vmatprep.subr.mxu0 0.0
    %6623 = vmatpush1.msra.mxu0 0.0
    %6624 = vmatprep.subr.mxu0 0.0
    %6625 = vmatpush1.msra.mxu0 0.0
    %6626 = vmatprep.subr.mxu0 0.0
    %6627 = vmatpush1.msra.mxu0 0.0
    %6628 = vmatprep.subr.mxu0 0.0
    %6629 = vmatpush1.msra.mxu0 0.0
    %6630 = vmatprep.subr.mxu0 0.0
    %6631 = vmatpush1.msra.mxu0 0.0
    %6632 = vmatprep.mubr.f32.mxu0 0.0
    %6633 = vmatmul.mubr.f32.gmra.mrb[0].mxu0 %v6566
    %v6634 = vpop.f32.mrb[0].mxu0
    %v6635 = vadd.f32 0.0, %v6634
    %v6636 = vpop.f32.mrb[0].mxu0
    %6637 = vdwg.mxu0
    %v6638 = vmul.f32 %v6635, 0.0078125
    %v6639 = vlaneseq
    %v6640 = vshrl.u32 %v6639, 7
    %v6641 = vsub.s32 0, %v6640
    %v6642 = vrot.slane %v6638, %v6641
    %v6643 = vsub.f32 %v6554, %v6642
    %v6644 = vsub.f32 %v6555, %v6642
    %v6645 = vmul.f32 %v6643, %v6643
    %v6646 = vmul.f32 %v6644, %v6644
    %v6647 = vsel %vm477, %v6645, 0.0
    %v6648 = vsel %vm477, %v6646, 0.0
    %v6649 = vadd.f32 %v6647, %v6648
    %v6650 = vrot.slane %v6649, 4
    %v6651 = vadd.f32 %v6649, %v6650
    %v6652 = vrot.slane %v6651, 2
    %v6653 = vadd.f32 %v6651, %v6652
    %v6654 = vrot.slane %v6653, 1
    %v6655 = vadd.f32 %v6653, %v6654
    %v6657 = vsel %vm477, %v6655, 0
    %6659 = vmatprep.subr.mxu0 0.0
    %6660 = vmatpush1.msra.mxu0 %v5623
    %6661 = vmatprep.subr.mxu0 0.0
    %6662 = vmatpush1.msra.mxu0 %v5624
    %6663 = vmatprep.subr.mxu0 0.0
    %6664 = vmatpush1.msra.mxu0 %v5625
    %6665 = vmatprep.subr.mxu0 0.0
    %6666 = vmatpush1.msra.mxu0 %v5626
    %6667 = vmatprep.subr.mxu0 0.0
    %6668 = vmatpush1.msra.mxu0 0.0
    %6669 = vmatprep.subr.mxu0 0.0
    %6670 = vmatpush1.msra.mxu0 0.0
    %6671 = vmatprep.subr.mxu0 0.0
    %6672 = vmatpush1.msra.mxu0 0.0
    %6673 = vmatprep.subr.mxu0 0.0
    %6674 = vmatpush1.msra.mxu0 0.0
    %6675 = vmatprep.subr.mxu0 0.0
    %6676 = vmatpush1.msra.mxu0 0.0
    %6677 = vmatprep.subr.mxu0 0.0
    %6678 = vmatpush1.msra.mxu0 0.0
    %6679 = vmatprep.subr.mxu0 0.0
    %6680 = vmatpush1.msra.mxu0 0.0
    %6681 = vmatprep.subr.mxu0 0.0
    %6682 = vmatpush1.msra.mxu0 0.0
    %6683 = vmatprep.subr.mxu0 0.0
    %6684 = vmatpush1.msra.mxu0 0.0
    %6685 = vmatprep.subr.mxu0 0.0
    %6686 = vmatpush1.msra.mxu0 0.0
    %6687 = vmatprep.subr.mxu0 0.0
    %6688 = vmatpush1.msra.mxu0 0.0
    %6689 = vmatprep.subr.mxu0 0.0
    %6690 = vmatpush1.msra.mxu0 0.0
    %6691 = vmatprep.subr.mxu0 0.0
    %6692 = vmatpush1.msra.mxu0 0.0
    %6693 = vmatprep.subr.mxu0 0.0
    %6694 = vmatpush1.msra.mxu0 0.0
    %6695 = vmatprep.subr.mxu0 0.0
    %6696 = vmatpush1.msra.mxu0 0.0
    %6697 = vmatprep.subr.mxu0 0.0
    %6698 = vmatpush1.msra.mxu0 0.0
    %6699 = vmatprep.subr.mxu0 0.0
    %6700 = vmatpush1.msra.mxu0 0.0
    %6701 = vmatprep.subr.mxu0 0.0
    %6702 = vmatpush1.msra.mxu0 0.0
    %6703 = vmatprep.subr.mxu0 0.0
    %6704 = vmatpush1.msra.mxu0 0.0
    %6705 = vmatprep.subr.mxu0 0.0
    %6706 = vmatpush1.msra.mxu0 0.0
    %6707 = vmatprep.subr.mxu0 0.0
    %6708 = vmatpush1.msra.mxu0 0.0
    %6709 = vmatprep.subr.mxu0 0.0
    %6710 = vmatpush1.msra.mxu0 0.0
    %6711 = vmatprep.subr.mxu0 0.0
    %6712 = vmatpush1.msra.mxu0 0.0
    %6713 = vmatprep.subr.mxu0 0.0
    %6714 = vmatpush1.msra.mxu0 0.0
    %6715 = vmatprep.subr.mxu0 0.0
    %6716 = vmatpush1.msra.mxu0 0.0
    %6717 = vmatprep.subr.mxu0 0.0
    %6718 = vmatpush1.msra.mxu0 0.0
    %6719 = vmatprep.subr.mxu0 0.0
    %6720 = vmatpush1.msra.mxu0 0.0
    %6721 = vmatprep.subr.mxu0 0.0
    %6722 = vmatpush1.msra.mxu0 0.0
    %6723 = vmatprep.mubr.f32.mxu0 0.0
    %6724 = vmatmul.mubr.f32.gmra.mrb[0].mxu0 %v6657
    %v6725 = vpop.f32.mrb[0].mxu0
    %v6726 = vadd.f32 0.0, %v6725
    %v6727 = vpop.f32.mrb[0].mxu0
    %6728 = vdwg.mxu0
    %v6729 = vmul.f32 %v6726, 0.0078125
    %v6730 = vld [vmem:[#allocation4 + $0x1] sm:$0x1]
    %v6731 = vadd.f32 %v6729, 1e-05
    %v6732 = vrsqrt.pop %v6731
    %v6733 = vmul.f32 %v6730, %v6732
    %v6734 = vlaneseq
    %v6735 = vshrl.u32 %v6734, 7
    %v6736 = vsub.s32 0, %v6735
    %v6737 = vrot.slane %v6733, %v6736
    %v6738 = vmul.f32 %v6643, %v6737
    %v6739 = vmul.f32 %v6644, %v6737
    %v6740 = vld [vmem:[#allocation4 + $0x2] sm:$0x1]
    %v6741 = vlaneseq
    %v6742 = vshrl.u32 %v6741, 7
    %v6743 = vsub.s32 0, %v6742
    %v6744 = vrot.slane %v6740, %v6743
    %v6745 = vadd.f32 %v6738, %v6744
    %v6746 = vadd.f32 %v6739, %v6744
    %v6747 = vmax.f32 %v6745, 0.0
    %v6748 = vmax.f32 %v6746, 0.0
    %v6749 = vpack.c.bf16 %v6748, %v6747
    %v6750 = vld [vmem:[#allocation6] sm:$0x1]
    %v6751 = vld [vmem:[%s19] sm:$0xf]
    %v6752 = vld [vmem:[%s19 + $0x4] sm:$0xf]
    %v6753 = vld [vmem:[%s19 + $0x8] sm:$0xf]
    %v6754 = vld [vmem:[%s19 + $0xc] sm:$0xf]
    %v6756 = vlaneseq
    %v6757 = vshrl.u32 %v6756, 7
    %v6758 = vsub.s32 0, %v6757
    %v6759 = vrot.slane %v6750, %v6758
    %v6765 = vunpack.c.l.b16 %v6751
    %v6766 = vunpack.c.l.b16 %v6752
    %v6767 = vunpack.c.l.b16 %v6753
    %v6768 = vunpack.c.l.b16 %v6754
    %v6769 = vpack.c.b16 %v6766, %v6765
    %v6770 = vpack.c.b16 %v6768, %v6767
    %v6774 = vsel %vm477, %v6749, 0
    %6776 = vmatprep.subr.bf16.mxu0 0
    %6777 = vmatpush1.bf16.msra.mxu0 %v6769
    %6778 = vmatprep.subr.bf16.mxu0 0
    %6779 = vmatpush1.bf16.msra.mxu0 %v6770
    %6780 = vmatprep.subr.bf16.mxu0 0
    %6781 = vmatpush1.bf16.msra.mxu0 0
    %6782 = vmatprep.subr.bf16.mxu0 0
    %6783 = vmatpush1.bf16.msra.mxu0 0
    %6784 = vmatprep.subr.bf16.mxu0 0
    %6785 = vmatpush1.bf16.msra.mxu0 0
    %6786 = vmatprep.subr.bf16.mxu0 0
    %6787 = vmatpush1.bf16.msra.mxu0 0
    %6788 = vmatprep.subr.bf16.mxu0 0
    %6789 = vmatpush1.bf16.msra.mxu0 0
    %6790 = vmatprep.subr.bf16.mxu0 0
    %6791 = vmatpush1.bf16.msra.mxu0 0
    %6792 = vmatprep.subr.bf16.mxu0 0
    %6793 = vmatpush1.bf16.msra.mxu0 0
    %6794 = vmatprep.subr.bf16.mxu0 0
    %6795 = vmatpush1.bf16.msra.mxu0 0
    %6796 = vmatprep.subr.bf16.mxu0 0
    %6797 = vmatpush1.bf16.msra.mxu0 0
    %6798 = vmatprep.subr.bf16.mxu0 0
    %6799 = vmatpush1.bf16.msra.mxu0 0
    %6800 = vmatprep.subr.bf16.mxu0 0
    %6801 = vmatpush1.bf16.msra.mxu0 0
    %6802 = vmatprep.subr.bf16.mxu0 0
    %6803 = vmatpush1.bf16.msra.mxu0 0
    %6804 = vmatprep.subr.bf16.mxu0 0
    %6805 = vmatpush1.bf16.msra.mxu0 0
    %6806 = vmatprep.subr.bf16.mxu0 0
    %6807 = vmatpush1.bf16.msra.mxu0 0
    %6808 = vmatprep.mubr.bf16.mxu0 0
    %6809 = vmatmul.mubr.bf16.gmra.mrb[0].mxu0 %v6774
    %v6810 = vpop.f32.mrb[0].mxu0
    %v6811 = vadd.f32 %v6759, %v6810
    %v6812 = vpop.f32.mrb[0].mxu0
    %v6813 = vpop.f32.mrb[0].mxu0
    %v6814 = vadd.f32 %v6759, %v6813
    %v6815 = vpop.f32.mrb[0].mxu0
    %6816 = vdwg.mxu0
    %s6817 = scalar_lea.vmem %s19, 16
    %v6818 = vld [vmem:[%s6817] sm:$0xf]
    %v6819 = vld [vmem:[%s6817 + $0x4] sm:$0xf]
    %v6820 = vld [vmem:[%s6817 + $0x8] sm:$0xf]
    %v6821 = vld [vmem:[%s6817 + $0xc] sm:$0xf]
    %v6826 = vunpack.c.l.b16 %v6818
    %v6827 = vunpack.c.l.b16 %v6819
    %v6828 = vunpack.c.l.b16 %v6820
    %v6829 = vunpack.c.l.b16 %v6821
    %v6830 = vpack.c.b16 %v6827, %v6826
    %v6831 = vpack.c.b16 %v6829, %v6828
    %6834 = vmatprep.subr.bf16.mxu0 0
    %6835 = vmatpush1.bf16.msra.mxu0 %v6830
    %6836 = vmatprep.subr.bf16.mxu0 0
    %6837 = vmatpush1.bf16.msra.mxu0 %v6831
    %6838 = vmatprep.subr.bf16.mxu0 0
    %6839 = vmatpush1.bf16.msra.mxu0 0
    %6840 = vmatprep.subr.bf16.mxu0 0
    %6841 = vmatpush1.bf16.msra.mxu0 0
    %6842 = vmatprep.subr.bf16.mxu0 0
    %6843 = vmatpush1.bf16.msra.mxu0 0
    %6844 = vmatprep.subr.bf16.mxu0 0
    %6845 = vmatpush1.bf16.msra.mxu0 0
    %6846 = vmatprep.subr.bf16.mxu0 0
    %6847 = vmatpush1.bf16.msra.mxu0 0
    %6848 = vmatprep.subr.bf16.mxu0 0
    %6849 = vmatpush1.bf16.msra.mxu0 0
    %6850 = vmatprep.subr.bf16.mxu0 0
    %6851 = vmatpush1.bf16.msra.mxu0 0
    %6852 = vmatprep.subr.bf16.mxu0 0
    %6853 = vmatpush1.bf16.msra.mxu0 0
    %6854 = vmatprep.subr.bf16.mxu0 0
    %6855 = vmatpush1.bf16.msra.mxu0 0
    %6856 = vmatprep.subr.bf16.mxu0 0
    %6857 = vmatpush1.bf16.msra.mxu0 0
    %6858 = vmatprep.subr.bf16.mxu0 0
    %6859 = vmatpush1.bf16.msra.mxu0 0
    %6860 = vmatprep.subr.bf16.mxu0 0
    %6861 = vmatpush1.bf16.msra.mxu0 0
    %6862 = vmatprep.subr.bf16.mxu0 0
    %6863 = vmatpush1.bf16.msra.mxu0 0
    %6864 = vmatprep.subr.bf16.mxu0 0
    %6865 = vmatpush1.bf16.msra.mxu0 0
    %6866 = vmatprep.mubr.bf16.mxu0 0
    %6867 = vmatmul.mubr.bf16.gmra.mrb[0].mxu0 %v6774
    %v6868 = vpop.f32.mrb[0].mxu0
    %v6869 = vadd.f32 %v6759, %v6868
    %v6870 = vpop.f32.mrb[0].mxu0
    %v6871 = vpop.f32.mrb[0].mxu0
    %v6872 = vadd.f32 %v6759, %v6871
    %v6873 = vpop.f32.mrb[0].mxu0
    %6874 = vdwg.mxu0
    %vm6875 = vcmp.eq.s32.totalorder %v113, %v2057
    %vm6876 = vcmp.eq.s32.totalorder %v114, %v2057
    %v6877 = vsel %vm6875, 1, 0
    %v6878 = vsel %vm6876, 1, 0
    %v6879 = vcvt.s32.f32 %v6877
    %v6880 = vcvt.s32.f32 %v6878
    %vm6881 = vcmp.eq.s32.totalorder %v113, %v5398
    %vm6882 = vcmp.eq.s32.totalorder %v114, %v5398
    %v6883 = vsel %vm6881, 1, 0
    %v6884 = vsel %vm6882, 1, 0
    %v6885 = vcvt.s32.f32 %v6883
    %v6886 = vcvt.s32.f32 %v6884
    %v6887 = vsel %vm2528, %v5403, 0
    %v6889 = vsel %vm2528, %v5404, 0
    %v6892 = vsel %vm2528, %v6885, 0
    %v6895 = vsel %vm2528, %v6886, 0
    %6897 = vmatprep.subr.mxu0 0.0
    %6898 = vmatpush1.msra.mxu0 %v6869
    %6899 = vmatprep.subr.mxu0 0.0
    %6900 = vmatpush1.msra.mxu0 %v6872
    %6901 = vmatprep.subr.mxu0 0.0
    %6902 = vmatpush1.msra.mxu0 0.0
    %6903 = vmatprep.subr.mxu0 0.0
    %6904 = vmatpush1.msra.mxu0 0.0
    %6905 = vmatprep.subr.mxu0 0.0
    %6906 = vmatpush1.msra.mxu0 0.0
    %6907 = vmatprep.subr.mxu0 0.0
    %6908 = vmatpush1.msra.mxu0 0.0
    %6909 = vmatprep.subr.mxu0 0.0
    %6910 = vmatpush1.msra.mxu0 0.0
    %6911 = vmatprep.subr.mxu0 0.0
    %6912 = vmatpush1.msra.mxu0 0.0
    %6913 = vmatprep.subr.mxu0 0.0
    %6914 = vmatpush1.msra.mxu0 0.0
    %6915 = vmatprep.subr.mxu0 0.0
    %6916 = vmatpush1.msra.mxu0 0.0
    %6917 = vmatprep.subr.mxu0 0.0
    %6918 = vmatpush1.msra.mxu0 0.0
    %6919 = vmatprep.subr.mxu0 0.0
    %6920 = vmatpush1.msra.mxu0 0.0
    %6921 = vmatprep.subr.mxu0 0.0
    %6922 = vmatpush1.msra.mxu0 0.0
    %6923 = vmatprep.subr.mxu0 0.0
    %6924 = vmatpush1.msra.mxu0 0.0
    %6925 = vmatprep.subr.mxu0 0.0
    %6926 = vmatpush1.msra.mxu0 0.0
    %6927 = vmatprep.subr.mxu0 0.0
    %6928 = vmatpush1.msra.mxu0 0.0
    %6929 = vmatprep.subr.mxu0 0.0
    %6930 = vmatpush1.msra.mxu0 0.0
    %6931 = vmatprep.subr.mxu0 0.0
    %6932 = vmatpush1.msra.mxu0 0.0
    %6933 = vmatprep.subr.mxu0 0.0
    %6934 = vmatpush1.msra.mxu0 0.0
    %6935 = vmatprep.subr.mxu0 0.0
    %6936 = vmatpush1.msra.mxu0 0.0
    %6937 = vmatprep.subr.mxu0 0.0
    %6938 = vmatpush1.msra.mxu0 0.0
    %6939 = vmatprep.subr.mxu0 0.0
    %6940 = vmatpush1.msra.mxu0 0.0
    %6941 = vmatprep.subr.mxu0 0.0
    %6942 = vmatpush1.msra.mxu0 0.0
    %6943 = vmatprep.subr.mxu0 0.0
    %6944 = vmatpush1.msra.mxu0 0.0
    %6945 = vmatprep.subr.mxu0 0.0
    %6946 = vmatpush1.msra.mxu0 0.0
    %6947 = vmatprep.subr.mxu0 0.0
    %6948 = vmatpush1.msra.mxu0 0.0
    %6949 = vmatprep.subr.mxu0 0.0
    %6950 = vmatpush1.msra.mxu0 0.0
    %6951 = vmatprep.subr.mxu0 0.0
    %6952 = vmatpush1.msra.mxu0 0.0
    %6953 = vmatprep.subr.mxu0 0.0
    %6954 = vmatpush1.msra.mxu0 0.0
    %6955 = vmatprep.subr.mxu0 0.0
    %6956 = vmatpush1.msra.mxu0 0.0
    %6957 = vmatprep.subr.mxu0 0.0
    %6958 = vmatpush1.msra.mxu0 0.0
    %6959 = vmatprep.subr.mxu0 0.0
    %6960 = vmatpush1.msra.mxu0 0.0
    %6961 = vmatprep.mubr.f32.mxu0 0.0
    %6962 = vmatmul.mubr.f32.gmra.mrb[0].mxu0 %v6887
    %v6963 = vpop.f32.mrb[0].mxu0
    %v6964 = vadd.f32 0.0, %v6963
    %v6965 = vpop.f32.mrb[0].mxu0
    %6966 = vmatprep.mubr.f32.mxu0 0.0
    %6967 = vmatmul.mubr.f32.gmra.mrb[0].mxu0 %v6889
    %v6968 = vpop.f32.mrb[0].mxu0
    %v6969 = vadd.f32 0.0, %v6968
    %v6970 = vpop.f32.mrb[0].mxu0
    %6971 = vmatprep.mubr.f32.mxu0 0.0
    %6972 = vmatmul.mubr.f32.gmra.mrb[0].mxu0 %v6892
    %v6973 = vpop.f32.mrb[0].mxu0
    %v6974 = vadd.f32 0.0, %v6973
    %v6975 = vpop.f32.mrb[0].mxu0
    %6976 = vmatprep.mubr.f32.mxu0 0.0
    %6977 = vmatmul.mubr.f32.gmra.mrb[0].mxu0 %v6895
    %v6978 = vpop.f32.mrb[0].mxu0
    %v6979 = vadd.f32 0.0, %v6978
    %v6980 = vpop.f32.mrb[0].mxu0
    %6981 = vdwg.mxu0
    %v6982 = vsel %vm2528, %v5396, 0
    %v6984 = vsel %vm2528, %v5397, 0
    %v6987 = vsel %vm2528, %v6879, 0
    %v6990 = vsel %vm2528, %v6880, 0
    %6992 = vmatprep.subr.mxu0 0.0
    %6993 = vmatpush1.msra.mxu0 %v6811
    %6994 = vmatprep.subr.mxu0 0.0
    %6995 = vmatpush1.msra.mxu0 %v6814
    %6996 = vmatprep.subr.mxu0 0.0
    %6997 = vmatpush1.msra.mxu0 0.0
    %6998 = vmatprep.subr.mxu0 0.0
    %6999 = vmatpush1.msra.mxu0 0.0
    %7000 = vmatprep.subr.mxu0 0.0
    %7001 = vmatpush1.msra.mxu0 0.0
    %7002 = vmatprep.subr.mxu0 0.0
    %7003 = vmatpush1.msra.mxu0 0.0
    %7004 = vmatprep.subr.mxu0 0.0
    %7005 = vmatpush1.msra.mxu0 0.0
    %7006 = vmatprep.subr.mxu0 0.0
    %7007 = vmatpush1.msra.mxu0 0.0
    %7008 = vmatprep.subr.mxu0 0.0
    %7009 = vmatpush1.msra.mxu0 0.0
    %7010 = vmatprep.subr.mxu0 0.0
    %7011 = vmatpush1.msra.mxu0 0.0
    %7012 = vmatprep.subr.mxu0 0.0
    %7013 = vmatpush1.msra.mxu0 0.0
    %7014 = vmatprep.subr.mxu0 0.0
    %7015 = vmatpush1.msra.mxu0 0.0
    %7016 = vmatprep.subr.mxu0 0.0
    %7017 = vmatpush1.msra.mxu0 0.0
    %7018 = vmatprep.subr.mxu0 0.0
    %7019 = vmatpush1.msra.mxu0 0.0
    %7020 = vmatprep.subr.mxu0 0.0
    %7021 = vmatpush1.msra.mxu0 0.0
    %7022 = vmatprep.subr.mxu0 0.0
    %7023 = vmatpush1.msra.mxu0 0.0
    %7024 = vmatprep.subr.mxu0 0.0
    %7025 = vmatpush1.msra.mxu0 0.0
    %7026 = vmatprep.subr.mxu0 0.0
    %7027 = vmatpush1.msra.mxu0 0.0
    %7028 = vmatprep.subr.mxu0 0.0
    %7029 = vmatpush1.msra.mxu0 0.0
    %7030 = vmatprep.subr.mxu0 0.0
    %7031 = vmatpush1.msra.mxu0 0.0
    %7032 = vmatprep.subr.mxu0 0.0
    %7033 = vmatpush1.msra.mxu0 0.0
    %7034 = vmatprep.subr.mxu0 0.0
    %7035 = vmatpush1.msra.mxu0 0.0
    %7036 = vmatprep.subr.mxu0 0.0
    %7037 = vmatpush1.msra.mxu0 0.0
    %7038 = vmatprep.subr.mxu0 0.0
    %7039 = vmatpush1.msra.mxu0 0.0
    %7040 = vmatprep.subr.mxu0 0.0
    %7041 = vmatpush1.msra.mxu0 0.0
    %7042 = vmatprep.subr.mxu0 0.0
    %7043 = vmatpush1.msra.mxu0 0.0
    %7044 = vmatprep.subr.mxu0 0.0
    %7045 = vmatpush1.msra.mxu0 0.0
    %7046 = vmatprep.subr.mxu0 0.0
    %7047 = vmatpush1.msra.mxu0 0.0
    %7048 = vmatprep.subr.mxu0 0.0
    %7049 = vmatpush1.msra.mxu0 0.0
    %7050 = vmatprep.subr.mxu0 0.0
    %7051 = vmatpush1.msra.mxu0 0.0
    %7052 = vmatprep.subr.mxu0 0.0
    %7053 = vmatpush1.msra.mxu0 0.0
    %7054 = vmatprep.subr.mxu0 0.0
    %7055 = vmatpush1.msra.mxu0 0.0
    %7056 = vmatprep.mubr.f32.mxu0 0.0
    %7057 = vmatmul.mubr.f32.gmra.mrb[0].mxu0 %v6982
    %v7058 = vpop.f32.mrb[0].mxu0
    %v7059 = vadd.f32 %v6964, %v7058
    %v7060 = vpop.f32.mrb[0].mxu0
    %7061 = vmatprep.mubr.f32.mxu0 0.0
    %7062 = vmatmul.mubr.f32.gmra.mrb[0].mxu0 %v6984
    %v7063 = vpop.f32.mrb[0].mxu0
    %v7064 = vadd.f32 %v6969, %v7063
    %v7065 = vpop.f32.mrb[0].mxu0
    %7066 = vmatprep.mubr.f32.mxu0 0.0
    %7067 = vmatmul.mubr.f32.gmra.mrb[0].mxu0 %v6987
    %v7068 = vpop.f32.mrb[0].mxu0
    %v7069 = vadd.f32 %v6974, %v7068
    %v7070 = vpop.f32.mrb[0].mxu0
    %7071 = vmatprep.mubr.f32.mxu0 0.0
    %7072 = vmatmul.mubr.f32.gmra.mrb[0].mxu0 %v6990
    %v7073 = vpop.f32.mrb[0].mxu0
    %v7074 = vadd.f32 %v6979, %v7073
    %v7075 = vpop.f32.mrb[0].mxu0
    %7076 = vdwg.mxu0
    %7077 = vst.msk [vmem:[%s22] sm:$0xff] %vm719, %v7059
    %7078 = vst.msk [vmem:[%s22 + $0x8] sm:$0xff] %vm719, %v7064
    %7079 = vst.msk [vmem:[%s22 + $0x10] sm:$0xff] %vm719, %v7069
    %7080 = vst.msk [vmem:[%s22 + $0x18] sm:$0xff] %vm719, %v7074
    // Predicated region
    $region98: #{semantic_module_forward.1} parent=1 // pred_check
      _
    $region99: #{semantic_module_forward.1} parent=1 // pred_check_branch
      %7082 = sbr.rel (0) target = $region101
    $region100: #{semantic_module_forward.1} parent=1 // pred_region
      _
    $region101: #{semantic_module_forward.1} parent=1 // pred_fallthru
      _
    // Predicated region
    $region102: #{semantic_module_forward.1} parent=1 // pred_check
      _
    $region103: #{semantic_module_forward.1} parent=1 // pred_check_branch
      %7084 = sbr.rel (0) target = $region105
    $region104: #{semantic_module_forward.1} parent=1 // pred_region
      _
    $region105: #{semantic_module_forward.1} parent=1 // pred_fallthru
      _
    // Predicated region
    $region106: #{semantic_module_forward.1} parent=1 // pred_check
      _
    $region107: #{semantic_module_forward.1} parent=1 // pred_check_branch
      %7086 = sbr.rel (0) target = $region109
    $region108: #{semantic_module_forward.1} parent=1 // pred_region
      _
    $region109: #{semantic_module_forward.1} parent=1 // pred_fallthru
      _
    // Predicated region
    $region110: #{semantic_module_forward.1} parent=1 // pred_check
      _
    $region111: #{semantic_module_forward.1} parent=1 // pred_check_branch
      %7088 = sbr.rel (0) target = $region113
    $region112: #{semantic_module_forward.1} parent=1 // pred_region
      _
    $region113: #{semantic_module_forward.1} parent=1 // pred_fallthru
      _
    %7089 = vsyncpa [#allocation3], 1
    %7090 = vsyncpa [#allocation5], 1

</llo_original>
